<compile_context>
chip_gen: v7x
topology: tpu7x:2x2x1
jax: 0.10.0
libtpu: 0.0.40
codegen_flags: <defaults>
</compile_context>

<pallas_src>
import functools

import jax
import jax.numpy as jnp
import numpy as np
from jax import lax
from jax.experimental import pallas as pl
from jax.experimental.pallas import tpu as pltpu


# ----------------------------------- kernel -----------------------------------

def _bottleneck_kernel(x_ref, w1_ref, b1_ref, w2_ref, b2_ref, w3_ref, b3_ref,
                       o_ref, pad_ref, *, row_block, use_im2col):
    """One batch block per grid step (NHWC).

    x_ref  : (BB, H, W, Cin)      f32 input tile
    w1_ref : (Cin, P)             bf16, BN1 scale folded in
    w2_ref : (9, P, P) or (9P, P) bf16, BN2 scale folded in, taps ordered (dy, dx)
    w3_ref : (P, Cout)            bf16, BN3 scale folded in
    b*_ref : (1, C)               f32 folded BN biases
    o_ref  : (BB, H, W, Cout)     output tile
    pad_ref: (BB, H+2, W+2, P)    bf16 scratch: zero-padded conv1 output
    """
    BB, H, W, Cin = x_ref.shape
    P = w1_ref.shape[1]
    Cout = w3_ref.shape[1]
    RB = row_block
    n_rb = H // RB

    # ---- conv1 (1x1) + bn1 + relu over the whole batch block ------------------
    # Batch dim folded into the matmul M dimension (review: amortize grid-step
    # overhead / fill MXU M at small spatial sizes).
    x2d = x_ref[...].astype(jnp.bfloat16).reshape(BB * H * W, Cin)
    h1 = jnp.dot(x2d, w1_ref[...], preferred_element_type=jnp.float32)
    h1 = jnp.maximum(h1 + b1_ref[...], 0.0).astype(jnp.bfloat16)
    h1 = h1.reshape(BB, H, W, P)

    # ---- stage into zero-padded bf16 scratch for the 3x3 conv (padding=1) -----
    # Stores are aligned in the tiled (sublane/lane) dims: the +1 offset sits on
    # the untiled H axis and the zero side-columns are built into the stored
    # value. Border rows are re-zeroed per step (two tiny bf16 stores per image)
    # because a program_id==0-gated one-time memset is unsafe with a "parallel"
    # grid axis under megacore sharding (second core never sees program 0).
    zc = jnp.zeros((H, 1, P), jnp.bfloat16)
    zr = jnp.zeros((1, W + 2, P), jnp.bfloat16)
    for b in range(BB):
        pad_ref[b, 1:H + 1] = jnp.concatenate([zc, h1[b], zc], axis=1)
        pad_ref[b, 0:1] = zr
        pad_ref[b, H + 1:H + 2] = zr

    # ---- hoisted folded-BN biases (JAX does not CSE broadcast_in_dim) ---------
    b2 = b2_ref[...]
    b3 = b3_ref[...]

    # ---- conv2 (3x3) + bn2 + relu, conv3 (1x1) + bn3 + residual + relu --------
    # Row-tiled so the live working set stays bounded at real ResNet sizes.
    for b in range(BB):                     # BB is a small static constant
        def body(r, carry, b=b):
            row0 = pl.multiple_of(r * RB, RB)
            slab = pad_ref[b, pl.ds(row0, RB + 2)]          # (RB+2, W+2, P) bf16
            if use_im2col:
                # P % 128 == 0: lane-axis concat is cheap, one wide K=9P matmul.
                taps = [slab[dy:dy + RB, dx:dx + W, :]
                        for dy in range(3) for dx in range(3)]
                col = jnp.concatenate(taps, axis=-1).reshape(RB * W, 9 * P)
                h2 = jnp.dot(col, w2_ref[...],
                             preferred_element_type=jnp.float32)
            else:
                # P < 128: avoid the 9x lane-packing concat; accumulate 9
                # K=P matmuls straight off the tap slices (review).
                h2 = jnp.zeros((RB * W, P), jnp.float32)
                for k in range(9):
                    dy, dx = k // 3, k % 3
                    tap = slab[dy:dy + RB, dx:dx + W, :].reshape(RB * W, P)
                    h2 = h2 + jnp.dot(tap, w2_ref[k],
                                      preferred_element_type=jnp.float32)
            h2 = jnp.maximum(h2 + b2, 0.0).astype(jnp.bfloat16)
            h3 = jnp.dot(h2, w3_ref[...], preferred_element_type=jnp.float32)
            res = x_ref[b, pl.ds(row0, RB)].astype(jnp.float32)
            out = jnp.maximum(h3 + b3 + res.reshape(RB * W, Cout), 0.0)
            o_ref[b, pl.ds(row0, RB)] = out.reshape(RB, W, Cout).astype(o_ref.dtype)
            return carry

        lax.fori_loop(0, n_rb, body, 0, unroll=min(2, n_rb))


# --------------------------------- wrappers -----------------------------------

def _largest_divisor_leq(n, cap):
    cap = max(1, min(int(cap), int(n)))
    for d in range(cap, 0, -1):
        if n % d == 0:
            return d
    return 1


def _pick_vmem_limit(default=48 * 1024 * 1024):
    """~3/4 of per-core VMEM, capped at 96 MiB (v5e/v6e: 96 MiB, v7x: 48 MiB)."""
    try:
        info = pltpu.get_tpu_info()
        cap = getattr(info, "vmem_capacity_bytes", None)
        if cap is None:
            return default
        return int(min(96 * 1024 * 1024, (int(cap) * 3) // 4))
    except Exception:
        return default


def bottleneck_forward_nhwc(x_nhwc, w1f, b1, w2f, b2, w3f, b3,
                            *, row_block=None, batch_block=None):
    """Fused bottleneck block, NHWC in / NHWC out.

    w1f/w2f/w3f carry the folded BatchNorm scales (bf16 MXU operands);
    b1/b2/b3 are the folded BatchNorm biases (f32, shape (1, C)).
    """
    N, H, W, Cin = x_nhwc.shape
    P = w1f.shape[1]
    Cout = w3f.shape[1]
    assert Cout == Cin, "identity residual requires inplanes == planes * expansion"
    assert w2f.shape == (3, 3, P, P)

    # Row tile: largest divisor of H such that RB*W ~ 256 (never whole-image
    # fallback -> bounded im2col/tap temporaries at real ResNet sizes).
    target_rb = max(1, 256 // max(W, 1))
    if row_block is None:
        row_block = _largest_divisor_leq(H, target_rb)
    else:
        row_block = _largest_divisor_leq(H, row_block)

    # Batch tile: block several images per grid step at small spatial sizes so
    # conv1's M dimension reaches ~>=256 and grid-step overhead is amortized.
    if batch_block is None:
        batch_block = _largest_divisor_leq(N, max(1, 1024 // max(H * W, 1)))
    else:
        batch_block = _largest_divisor_leq(N, batch_block)

    use_im2col = (P % 128 == 0)
    if use_im2col:
        w2k = w2f.reshape(9 * P, P)                 # rows ordered (dy, dx, cin)
        w2_spec = pl.BlockSpec((9 * P, P), lambda n: (0, 0))
    else:
        w2k = w2f.reshape(9, P, P)                  # taps ordered (dy, dx)
        w2_spec = pl.BlockSpec((9, P, P), lambda n: (0, 0, 0))

    kernel = functools.partial(_bottleneck_kernel, row_block=row_block,
                               use_im2col=use_im2col)

    return pl.pallas_call(
        kernel,
        out_shape=jax.ShapeDtypeStruct((N, H, W, Cout), x_nhwc.dtype),
        grid_spec=pltpu.PrefetchScalarGridSpec(
            num_scalar_prefetch=0,
            grid=(N // batch_block,),
            in_specs=[
                pl.BlockSpec((batch_block, H, W, Cin), lambda n: (n, 0, 0, 0)),
                # Weights / biases are grid-invariant (constant index_map), so the
                # pipeline keeps them resident across grid steps.
                pl.BlockSpec((Cin, P), lambda n: (0, 0)),
                pl.BlockSpec((1, P), lambda n: (0, 0)),
                w2_spec,
                pl.BlockSpec((1, P), lambda n: (0, 0)),
                pl.BlockSpec((P, Cout), lambda n: (0, 0)),
                pl.BlockSpec((1, Cout), lambda n: (0, 0)),
            ],
            out_specs=pl.BlockSpec((batch_block, H, W, Cout),
                                   lambda n: (n, 0, 0, 0)),
            scratch_shapes=[
                pltpu.VMEM((batch_block, H + 2, W + 2, P), jnp.bfloat16),
            ],
        ),
        compiler_params=pltpu.CompilerParams(
            dimension_semantics=("parallel",),      # batch blocks are independent
            vmem_limit_bytes=_pick_vmem_limit(),
        ),
    )(x_nhwc, w1f, b1, w2k, b2, w3f, b3)


def bottleneck_forward(x_nchw, w1f, b1, w2f, b2, w3f, b3, **kw):
    """PyTorch-style NCHW boundary.

    If the surrounding model runs NHWC end-to-end, drop these two transposes
    (each is a full HBM read+write pass over the activations).
    """
    x = jnp.transpose(x_nchw, (0, 2, 3, 1))
    out = bottleneck_forward_nhwc(x, w1f, b1, w2f, b2, w3f, b3, **kw)
    return jnp.transpose(out, (0, 3, 1, 2))


# ----------------------------- parameter helpers -----------------------------

def fold_bn(gamma, beta, mean, var, eps=1e-5):
    scale = gamma / jnp.sqrt(var + eps)
    bias = beta - mean * scale
    return scale, bias


def fold_params(w1, s1, b1, w2, s2, b2, w3, s3, b3):
    """Fold BN scales into conv weights (bf16 MXU operands); keep biases f32."""
    w1f = (w1 * s1[None, :]).astype(jnp.bfloat16)
    w2f = (w2 * s2[None, None, None, :]).astype(jnp.bfloat16)
    w3f = (w3 * s3[None, :]).astype(jnp.bfloat16)
    return (w1f, b1.reshape(1, -1).astype(jnp.float32),
            w2f, b2.reshape(1, -1).astype(jnp.float32),
            w3f, b3.reshape(1, -1).astype(jnp.float32))


# --------------------------------- references --------------------------------

def ref_forward_bf16(x_nhwc, w1f, b1, w2f, b2, w3f, b3):
    """Plain-JAX reference mirroring the kernel's bf16-MXU / f32-accumulate math."""
    H, W = x_nhwc.shape[1:3]
    xb = x_nhwc.astype(jnp.bfloat16)
    h1 = jnp.einsum('nhwc,cp->nhwp', xb, w1f, preferred_element_type=jnp.float32)
    h1 = jnp.maximum(h1 + b1, 0.0)
    h1p = jnp.pad(h1, ((0, 0), (1, 1), (1, 1), (0, 0)))
    acc = jnp.zeros(h1.shape[:3] + (w2f.shape[-1],), jnp.float32)
    for dy in range(3):
        for dx in range(3):
            acc = acc + jnp.einsum(
                'nhwp,pq->nhwq',
                h1p[:, dy:dy + H, dx:dx + W, :].astype(jnp.bfloat16),
                w2f[dy, dx], preferred_element_type=jnp.float32)
    h2 = jnp.maximum(acc + b2, 0.0).astype(jnp.bfloat16)
    h3 = jnp.einsum('nhwq,qc->nhwc', h2, w3f, preferred_element_type=jnp.float32)
    return jnp.maximum(h3 + b3 + x_nhwc.astype(jnp.float32), 0.0)


def ref_forward_f32(x_nhwc, w1, s1, b1, w2, s2, b2, w3, s3, b3):
    """Full-precision reference of the original module semantics (eval-mode BN)."""
    H, W = x_nhwc.shape[1:3]
    h1 = jnp.maximum(jnp.einsum('nhwc,cp->nhwp', x_nhwc, w1) * s1 + b1, 0.0)
    h1p = jnp.pad(h1, ((0, 0), (1, 1), (1, 1), (0, 0)))
    acc = 0.0
    for dy in range(3):
        for dx in range(3):
            acc = acc + jnp.einsum('nhwp,pq->nhwq',
                                   h1p[:, dy:dy + H, dx:dx + W, :], w2[dy, dx])
    h2 = jnp.maximum(acc * s2 + b2, 0.0)
    h3 = jnp.einsum('nhwp,pq->nhwq', h2, w3) * s3 + b3
    return jnp.maximum(h3 + x_nhwc, 0.0)


# ------------------------------------ demo ------------------------------------

if __name__ == "__main__":
    # Module config: inplanes = planes * expansion so the identity residual path
    # is valid (stride=1, downsample=None).  planes=32 -> Cout=128 keeps the
    # output lane-dense (last dim multiple of 128).
    N, H, W = 2, 16, 16
    planes = 32
    expansion = 4
    inplanes = planes * expansion          # 128

    key = jax.random.PRNGKey(0)
    ks = jax.random.split(key, 8)

    # conv1.weight : (planes, inplanes, 1, 1)      -> matmul weight (inplanes, planes)
    w1 = 0.1 * jax.random.normal(ks[0], (inplanes, planes), jnp.float32)
    # conv2.weight : (planes, planes, 3, 3) (OIHW) -> HWIO taps (3, 3, planes, planes)
    w2 = 0.1 * jax.random.normal(ks[1], (3, 3, planes, planes), jnp.float32)
    # conv3.weight : (planes*4, planes, 1, 1)      -> matmul weight (planes, planes*4)
    w3 = 0.1 * jax.random.normal(ks[2], (planes, planes * expansion), jnp.float32)

    def bn_params(k, c):
        k1, k2, k3, k4 = jax.random.split(k, 4)
        gamma = 1.0 + 0.1 * jax.random.normal(k1, (c,), jnp.float32)
        beta = 0.1 * jax.random.normal(k2, (c,), jnp.float32)
        mean = 0.1 * jax.random.normal(k3, (c,), jnp.float32)
        var = jnp.abs(jax.random.normal(k4, (c,), jnp.float32)) + 0.5
        return fold_bn(gamma, beta, mean, var)

    s1, b1 = bn_params(ks[3], planes)
    s2, b2 = bn_params(ks[4], planes)
    s3, b3 = bn_params(ks[5], planes * expansion)

    # Input (PyTorch NCHW convention).
    x_nchw = jax.random.normal(ks[6], (N, inplanes, H, W), jnp.float32)

    # One-time BN-scale folding into the weights (outside the kernel).
    w1f, b1r, w2f, b2r, w3f, b3r = fold_params(w1, s1, b1, w2, s2, b2, w3, s3, b3)

    out = bottleneck_forward(x_nchw, w1f, b1r, w2f, b2r, w3f, b3r)
    out = jax.block_until_ready(out)

    x_nhwc = jnp.transpose(x_nchw, (0, 2, 3, 1))

    # Check 1: against a reference that mirrors the kernel's bf16/f32 math (tight).
    ref_b = jnp.transpose(ref_forward_bf16(x_nhwc, w1f, b1r, w2f, b2r, w3f, b3r),
                          (0, 3, 1, 2))
    np.testing.assert_allclose(np.asarray(out), np.asarray(ref_b),
                               rtol=1e-2, atol=1e-2)

    # Check 2: against the full-precision module semantics (loose, bf16 MXU inputs).
    ref_f = jnp.transpose(ref_forward_f32(x_nhwc, w1, s1, b1, w2, s2, b2, w3, s3, b3),
                          (0, 3, 1, 2))
    np.testing.assert_allclose(np.asarray(out), np.asarray(ref_f),
                               rtol=5e-2, atol=5e-2)

    print("KERNEL_OK")
</pallas_src>

<mosaic_0001>
module attributes {stable_mosaic.version = 11 : i64} {
  func.func @_bottleneck_kernel(%arg0: i32, %arg1: memref<2x16x16x128xf32, #tpu.memory_space<vmem>>, %arg2: memref<128x32xbf16, #tpu.memory_space<vmem>>, %arg3: memref<1x32xf32, #tpu.memory_space<vmem>>, %arg4: memref<9x32x32xbf16, #tpu.memory_space<vmem>>, %arg5: memref<1x32xf32, #tpu.memory_space<vmem>>, %arg6: memref<32x128xbf16, #tpu.memory_space<vmem>>, %arg7: memref<1x128xf32, #tpu.memory_space<vmem>>, %arg8: memref<2x16x16x128xf32, #tpu.memory_space<vmem>>, %arg9: memref<2x18x18x32xbf16, #tpu.memory_space<vmem>>) attributes {dimension_semantics = [#tpu.dimension_semantics<parallel>], iteration_bounds = array<i64: 1>, scalar_prefetch = 0 : i64, scratch_operands = 1 : i64, tpu.core_type = #tpu.core_type<tc>, window_params = [{transform_indices = @transform_0, window_bounds = array<i64: 2, 16, 16, 128>}, {pipeline_mode = #tpu.pipeline_mode<synchronous>, transform_indices = @transform_1, window_bounds = array<i64: 128, 32>}, {pipeline_mode = #tpu.pipeline_mode<synchronous>, transform_indices = @transform_2, window_bounds = array<i64: 1, 32>}, {pipeline_mode = #tpu.pipeline_mode<synchronous>, transform_indices = @transform_3, window_bounds = array<i64: 9, 32, 32>}, {pipeline_mode = #tpu.pipeline_mode<synchronous>, transform_indices = @transform_4, window_bounds = array<i64: 1, 32>}, {pipeline_mode = #tpu.pipeline_mode<synchronous>, transform_indices = @transform_5, window_bounds = array<i64: 32, 128>}, {pipeline_mode = #tpu.pipeline_mode<synchronous>, transform_indices = @transform_6, window_bounds = array<i64: 1, 128>}, {transform_indices = @transform_7, window_bounds = array<i64: 2, 16, 16, 128>}]} {
    %c0 = arith.constant 0 : index
    %c0_0 = arith.constant 0 : index
    %c0_1 = arith.constant 0 : index
    %c0_2 = arith.constant 0 : index
    %0 = vector.load %arg1[%c0, %c0_0, %c0_1, %c0_2] : memref<2x16x16x128xf32, #tpu.memory_space<vmem>>, vector<2x16x16x128xf32>
    %1 = arith.truncf %0 : vector<2x16x16x128xf32> to vector<2x16x16x128xbf16>
    %2 = vector.shape_cast %1 : vector<2x16x16x128xbf16> to vector<512x128xbf16>
    %c0_3 = arith.constant 0 : index
    %c0_4 = arith.constant 0 : index
    %3 = vector.load %arg2[%c0_3, %c0_4] : memref<128x32xbf16, #tpu.memory_space<vmem>>, vector<128x32xbf16>
    %cst = arith.constant dense<0.000000e+00> : vector<512x32xf32>
    %4 = tpu.matmul %2, %3, %cst {dimension_numbers = #tpu.dot_dimension_numbers<[1], [0], [0], [1], [0, 0, 1, 1], [], []>} : vector<512x128xbf16>, vector<128x32xbf16>, vector<512x32xf32> -> vector<512x32xf32>
    %c0_5 = arith.constant 0 : index
    %c0_6 = arith.constant 0 : index
    %5 = vector.load %arg3[%c0_5, %c0_6] : memref<1x32xf32, #tpu.memory_space<vmem>>, vector<1x32xf32>
    %6 = vector.broadcast %5 : vector<1x32xf32> to vector<512x32xf32>
    %7 = arith.addf %4, %6 : vector<512x32xf32>
    %cst_7 = arith.constant 0.000000e+00 : f32
    %8 = vector.broadcast %cst_7 : f32 to vector<512x32xf32>
    %9 = arith.maximumf %7, %8 : vector<512x32xf32>
    %10 = arith.truncf %9 : vector<512x32xf32> to vector<512x32xbf16>
    %11 = vector.shape_cast %10 : vector<512x32xbf16> to vector<2x16x16x32xbf16>
    %cst_8 = arith.constant 0.000000e+00 : bf16
    %12 = vector.broadcast %cst_8 : bf16 to vector<16x1x32xbf16>
    %cst_9 = arith.constant 0.000000e+00 : bf16
    %13 = vector.broadcast %cst_9 : bf16 to vector<1x18x32xbf16>
    %14 = vector.extract_strided_slice %11 {offsets = [0, 0, 0, 0], sizes = [1, 16, 16, 32], strides = [1, 1, 1, 1]} : vector<2x16x16x32xbf16> to vector<1x16x16x32xbf16>
    %15 = vector.shape_cast %14 : vector<1x16x16x32xbf16> to vector<16x16x32xbf16>
    %16 = tpu.concatenate %12, %15, %12 in 1 : vector<16x1x32xbf16>, vector<16x16x32xbf16>, vector<16x1x32xbf16> -> vector<16x18x32xbf16>
    %c0_10 = arith.constant 0 : index
    %c1 = arith.constant 1 : index
    %c0_11 = arith.constant 0 : index
    %c0_12 = arith.constant 0 : index
    %17 = vector.load %arg9[%c0_10, %c1, %c0_11, %c0_12] : memref<2x18x18x32xbf16, #tpu.memory_space<vmem>>, vector<1x16x18x32xbf16>
    %18 = vector.shape_cast %17 : vector<1x16x18x32xbf16> to vector<16x18x32xbf16>
    %19 = vector.shape_cast %16 : vector<16x18x32xbf16> to vector<1x16x18x32xbf16>
    tpu.vector_store %arg9[%c0_10, %c1, %c0_11, %c0_12], %19 {strides = array<i32>} : memref<2x18x18x32xbf16, #tpu.memory_space<vmem>>, vector<1x16x18x32xbf16>,
    %c0_13 = arith.constant 0 : index
    %c0_14 = arith.constant 0 : index
    %c0_15 = arith.constant 0 : index
    %c0_16 = arith.constant 0 : index
    %20 = vector.load %arg9[%c0_13, %c0_14, %c0_15, %c0_16] : memref<2x18x18x32xbf16, #tpu.memory_space<vmem>>, vector<1x1x18x32xbf16>
    %21 = vector.shape_cast %20 : vector<1x1x18x32xbf16> to vector<1x18x32xbf16>
    %22 = vector.shape_cast %13 : vector<1x18x32xbf16> to vector<1x1x18x32xbf16>
    tpu.vector_store %arg9[%c0_13, %c0_14, %c0_15, %c0_16], %22 {strides = array<i32>} : memref<2x18x18x32xbf16, #tpu.memory_space<vmem>>, vector<1x1x18x32xbf16>,
    %c0_17 = arith.constant 0 : index
    %c17 = arith.constant 17 : index
    %c0_18 = arith.constant 0 : index
    %c0_19 = arith.constant 0 : index
    %23 = vector.load %arg9[%c0_17, %c17, %c0_18, %c0_19] : memref<2x18x18x32xbf16, #tpu.memory_space<vmem>>, vector<1x1x18x32xbf16>
    %24 = vector.shape_cast %23 : vector<1x1x18x32xbf16> to vector<1x18x32xbf16>
    %25 = vector.shape_cast %13 : vector<1x18x32xbf16> to vector<1x1x18x32xbf16>
    tpu.vector_store %arg9[%c0_17, %c17, %c0_18, %c0_19], %25 {strides = array<i32>} : memref<2x18x18x32xbf16, #tpu.memory_space<vmem>>, vector<1x1x18x32xbf16>,
    %26 = vector.extract_strided_slice %11 {offsets = [1, 0, 0, 0], sizes = [1, 16, 16, 32], strides = [1, 1, 1, 1]} : vector<2x16x16x32xbf16> to vector<1x16x16x32xbf16>
    %27 = vector.shape_cast %26 : vector<1x16x16x32xbf16> to vector<16x16x32xbf16>
    %28 = tpu.concatenate %12, %27, %12 in 1 : vector<16x1x32xbf16>, vector<16x16x32xbf16>, vector<16x1x32xbf16> -> vector<16x18x32xbf16>
    %c1_20 = arith.constant 1 : index
    %c1_21 = arith.constant 1 : index
    %c0_22 = arith.constant 0 : index
    %c0_23 = arith.constant 0 : index
    %29 = vector.load %arg9[%c1_20, %c1_21, %c0_22, %c0_23] : memref<2x18x18x32xbf16, #tpu.memory_space<vmem>>, vector<1x16x18x32xbf16>
    %30 = vector.shape_cast %29 : vector<1x16x18x32xbf16> to vector<16x18x32xbf16>
    %31 = vector.shape_cast %28 : vector<16x18x32xbf16> to vector<1x16x18x32xbf16>
    tpu.vector_store %arg9[%c1_20, %c1_21, %c0_22, %c0_23], %31 {strides = array<i32>} : memref<2x18x18x32xbf16, #tpu.memory_space<vmem>>, vector<1x16x18x32xbf16>,
    %c1_24 = arith.constant 1 : index
    %c0_25 = arith.constant 0 : index
    %c0_26 = arith.constant 0 : index
    %c0_27 = arith.constant 0 : index
    %32 = vector.load %arg9[%c1_24, %c0_25, %c0_26, %c0_27] : memref<2x18x18x32xbf16, #tpu.memory_space<vmem>>, vector<1x1x18x32xbf16>
    %33 = vector.shape_cast %32 : vector<1x1x18x32xbf16> to vector<1x18x32xbf16>
    %34 = vector.shape_cast %13 : vector<1x18x32xbf16> to vector<1x1x18x32xbf16>
    tpu.vector_store %arg9[%c1_24, %c0_25, %c0_26, %c0_27], %34 {strides = array<i32>} : memref<2x18x18x32xbf16, #tpu.memory_space<vmem>>, vector<1x1x18x32xbf16>,
    %c1_28 = arith.constant 1 : index
    %c17_29 = arith.constant 17 : index
    %c0_30 = arith.constant 0 : index
    %c0_31 = arith.constant 0 : index
    %35 = vector.load %arg9[%c1_28, %c17_29, %c0_30, %c0_31] : memref<2x18x18x32xbf16, #tpu.memory_space<vmem>>, vector<1x1x18x32xbf16>
    %36 = vector.shape_cast %35 : vector<1x1x18x32xbf16> to vector<1x18x32xbf16>
    %37 = vector.shape_cast %13 : vector<1x18x32xbf16> to vector<1x1x18x32xbf16>
    tpu.vector_store %arg9[%c1_28, %c17_29, %c0_30, %c0_31], %37 {strides = array<i32>} : memref<2x18x18x32xbf16, #tpu.memory_space<vmem>>, vector<1x1x18x32xbf16>,
    %c0_32 = arith.constant 0 : index
    %c0_33 = arith.constant 0 : index
    %38 = vector.load %arg5[%c0_32, %c0_33] : memref<1x32xf32, #tpu.memory_space<vmem>>, vector<1x32xf32>
    %c0_34 = arith.constant 0 : index
    %c0_35 = arith.constant 0 : index
    %39 = vector.load %arg7[%c0_34, %c0_35] : memref<1x128xf32, #tpu.memory_space<vmem>>, vector<1x128xf32>
    %c0_i32 = arith.constant 0 : i32
    %c16_i32 = arith.constant 16 : i32
    %40 = arith.muli %c0_i32, %c16_i32 : i32
    %41 = tpu.assume_multiple %40, 16 : i32
    %c0_36 = arith.constant 0 : index
    %42 = arith.index_cast %41 : i32 to index
    %c0_37 = arith.constant 0 : index
    %c0_38 = arith.constant 0 : index
    %43 = vector.load %arg9[%c0_36, %42, %c0_37, %c0_38] : memref<2x18x18x32xbf16, #tpu.memory_space<vmem>>, vector<1x18x18x32xbf16>
    %44 = vector.shape_cast %43 : vector<1x18x18x32xbf16> to vector<18x18x32xbf16>
    %cst_39 = arith.constant 0.000000e+00 : f32
    %45 = vector.broadcast %cst_39 : f32 to vector<256x32xf32>
    %46 = vector.extract_strided_slice %44 {offsets = [0, 0, 0], sizes = [16, 16, 32], strides = [1, 1, 1]} : vector<18x18x32xbf16> to vector<16x16x32xbf16>
    %47 = vector.shape_cast %46 : vector<16x16x32xbf16> to vector<256x32xbf16>
    %c0_40 = arith.constant 0 : index
    %c0_41 = arith.constant 0 : index
    %c0_42 = arith.constant 0 : index
    %48 = vector.load %arg4[%c0_40, %c0_41, %c0_42] : memref<9x32x32xbf16, #tpu.memory_space<vmem>>, vector<1x32x32xbf16>
    %49 = vector.shape_cast %48 : vector<1x32x32xbf16> to vector<32x32xbf16>
    %cst_43 = arith.constant dense<0.000000e+00> : vector<256x32xf32>
    %50 = tpu.matmul %47, %49, %cst_43 {dimension_numbers = #tpu.dot_dimension_numbers<[1], [0], [0], [1], [0, 0, 1, 1], [], []>} : vector<256x32xbf16>, vector<32x32xbf16>, vector<256x32xf32> -> vector<256x32xf32>
    %51 = arith.addf %45, %50 : vector<256x32xf32>
    %52 = vector.extract_strided_slice %44 {offsets = [0, 1, 0], sizes = [16, 16, 32], strides = [1, 1, 1]} : vector<18x18x32xbf16> to vector<16x16x32xbf16>
    %53 = vector.shape_cast %52 : vector<16x16x32xbf16> to vector<256x32xbf16>
    %c1_44 = arith.constant 1 : index
    %c0_45 = arith.constant 0 : index
    %c0_46 = arith.constant 0 : index
    %54 = vector.load %arg4[%c1_44, %c0_45, %c0_46] : memref<9x32x32xbf16, #tpu.memory_space<vmem>>, vector<1x32x32xbf16>
    %55 = vector.shape_cast %54 : vector<1x32x32xbf16> to vector<32x32xbf16>
    %cst_47 = arith.constant dense<0.000000e+00> : vector<256x32xf32>
    %56 = tpu.matmul %53, %55, %cst_47 {dimension_numbers = #tpu.dot_dimension_numbers<[1], [0], [0], [1], [0, 0, 1, 1], [], []>} : vector<256x32xbf16>, vector<32x32xbf16>, vector<256x32xf32> -> vector<256x32xf32>
    %57 = arith.addf %51, %56 : vector<256x32xf32>
    %58 = vector.extract_strided_slice %44 {offsets = [0, 2, 0], sizes = [16, 16, 32], strides = [1, 1, 1]} : vector<18x18x32xbf16> to vector<16x16x32xbf16>
    %59 = vector.shape_cast %58 : vector<16x16x32xbf16> to vector<256x32xbf16>
    %c2 = arith.constant 2 : index
    %c0_48 = arith.constant 0 : index
    %c0_49 = arith.constant 0 : index
    %60 = vector.load %arg4[%c2, %c0_48, %c0_49] : memref<9x32x32xbf16, #tpu.memory_space<vmem>>, vector<1x32x32xbf16>
    %61 = vector.shape_cast %60 : vector<1x32x32xbf16> to vector<32x32xbf16>
    %cst_50 = arith.constant dense<0.000000e+00> : vector<256x32xf32>
    %62 = tpu.matmul %59, %61, %cst_50 {dimension_numbers = #tpu.dot_dimension_numbers<[1], [0], [0], [1], [0, 0, 1, 1], [], []>} : vector<256x32xbf16>, vector<32x32xbf16>, vector<256x32xf32> -> vector<256x32xf32>
    %63 = arith.addf %57, %62 : vector<256x32xf32>
    %64 = vector.extract_strided_slice %44 {offsets = [1, 0, 0], sizes = [16, 16, 32], strides = [1, 1, 1]} : vector<18x18x32xbf16> to vector<16x16x32xbf16>
    %65 = vector.shape_cast %64 : vector<16x16x32xbf16> to vector<256x32xbf16>
    %c3 = arith.constant 3 : index
    %c0_51 = arith.constant 0 : index
    %c0_52 = arith.constant 0 : index
    %66 = vector.load %arg4[%c3, %c0_51, %c0_52] : memref<9x32x32xbf16, #tpu.memory_space<vmem>>, vector<1x32x32xbf16>
    %67 = vector.shape_cast %66 : vector<1x32x32xbf16> to vector<32x32xbf16>
    %cst_53 = arith.constant dense<0.000000e+00> : vector<256x32xf32>
    %68 = tpu.matmul %65, %67, %cst_53 {dimension_numbers = #tpu.dot_dimension_numbers<[1], [0], [0], [1], [0, 0, 1, 1], [], []>} : vector<256x32xbf16>, vector<32x32xbf16>, vector<256x32xf32> -> vector<256x32xf32>
    %69 = arith.addf %63, %68 : vector<256x32xf32>
    %70 = vector.extract_strided_slice %44 {offsets = [1, 1, 0], sizes = [16, 16, 32], strides = [1, 1, 1]} : vector<18x18x32xbf16> to vector<16x16x32xbf16>
    %71 = vector.shape_cast %70 : vector<16x16x32xbf16> to vector<256x32xbf16>
    %c4 = arith.constant 4 : index
    %c0_54 = arith.constant 0 : index
    %c0_55 = arith.constant 0 : index
    %72 = vector.load %arg4[%c4, %c0_54, %c0_55] : memref<9x32x32xbf16, #tpu.memory_space<vmem>>, vector<1x32x32xbf16>
    %73 = vector.shape_cast %72 : vector<1x32x32xbf16> to vector<32x32xbf16>
    %cst_56 = arith.constant dense<0.000000e+00> : vector<256x32xf32>
    %74 = tpu.matmul %71, %73, %cst_56 {dimension_numbers = #tpu.dot_dimension_numbers<[1], [0], [0], [1], [0, 0, 1, 1], [], []>} : vector<256x32xbf16>, vector<32x32xbf16>, vector<256x32xf32> -> vector<256x32xf32>
    %75 = arith.addf %69, %74 : vector<256x32xf32>
    %76 = vector.extract_strided_slice %44 {offsets = [1, 2, 0], sizes = [16, 16, 32], strides = [1, 1, 1]} : vector<18x18x32xbf16> to vector<16x16x32xbf16>
    %77 = vector.shape_cast %76 : vector<16x16x32xbf16> to vector<256x32xbf16>
    %c5 = arith.constant 5 : index
    %c0_57 = arith.constant 0 : index
    %c0_58 = arith.constant 0 : index
    %78 = vector.load %arg4[%c5, %c0_57, %c0_58] : memref<9x32x32xbf16, #tpu.memory_space<vmem>>, vector<1x32x32xbf16>
    %79 = vector.shape_cast %78 : vector<1x32x32xbf16> to vector<32x32xbf16>
    %cst_59 = arith.constant dense<0.000000e+00> : vector<256x32xf32>
    %80 = tpu.matmul %77, %79, %cst_59 {dimension_numbers = #tpu.dot_dimension_numbers<[1], [0], [0], [1], [0, 0, 1, 1], [], []>} : vector<256x32xbf16>, vector<32x32xbf16>, vector<256x32xf32> -> vector<256x32xf32>
    %81 = arith.addf %75, %80 : vector<256x32xf32>
    %82 = vector.extract_strided_slice %44 {offsets = [2, 0, 0], sizes = [16, 16, 32], strides = [1, 1, 1]} : vector<18x18x32xbf16> to vector<16x16x32xbf16>
    %83 = vector.shape_cast %82 : vector<16x16x32xbf16> to vector<256x32xbf16>
    %c6 = arith.constant 6 : index
    %c0_60 = arith.constant 0 : index
    %c0_61 = arith.constant 0 : index
    %84 = vector.load %arg4[%c6, %c0_60, %c0_61] : memref<9x32x32xbf16, #tpu.memory_space<vmem>>, vector<1x32x32xbf16>
    %85 = vector.shape_cast %84 : vector<1x32x32xbf16> to vector<32x32xbf16>
    %cst_62 = arith.constant dense<0.000000e+00> : vector<256x32xf32>
    %86 = tpu.matmul %83, %85, %cst_62 {dimension_numbers = #tpu.dot_dimension_numbers<[1], [0], [0], [1], [0, 0, 1, 1], [], []>} : vector<256x32xbf16>, vector<32x32xbf16>, vector<256x32xf32> -> vector<256x32xf32>
    %87 = arith.addf %81, %86 : vector<256x32xf32>
    %88 = vector.extract_strided_slice %44 {offsets = [2, 1, 0], sizes = [16, 16, 32], strides = [1, 1, 1]} : vector<18x18x32xbf16> to vector<16x16x32xbf16>
    %89 = vector.shape_cast %88 : vector<16x16x32xbf16> to vector<256x32xbf16>
    %c7 = arith.constant 7 : index
    %c0_63 = arith.constant 0 : index
    %c0_64 = arith.constant 0 : index
    %90 = vector.load %arg4[%c7, %c0_63, %c0_64] : memref<9x32x32xbf16, #tpu.memory_space<vmem>>, vector<1x32x32xbf16>
    %91 = vector.shape_cast %90 : vector<1x32x32xbf16> to vector<32x32xbf16>
    %cst_65 = arith.constant dense<0.000000e+00> : vector<256x32xf32>
    %92 = tpu.matmul %89, %91, %cst_65 {dimension_numbers = #tpu.dot_dimension_numbers<[1], [0], [0], [1], [0, 0, 1, 1], [], []>} : vector<256x32xbf16>, vector<32x32xbf16>, vector<256x32xf32> -> vector<256x32xf32>
    %93 = arith.addf %87, %92 : vector<256x32xf32>
    %94 = vector.extract_strided_slice %44 {offsets = [2, 2, 0], sizes = [16, 16, 32], strides = [1, 1, 1]} : vector<18x18x32xbf16> to vector<16x16x32xbf16>
    %95 = vector.shape_cast %94 : vector<16x16x32xbf16> to vector<256x32xbf16>
    %c8 = arith.constant 8 : index
    %c0_66 = arith.constant 0 : index
    %c0_67 = arith.constant 0 : index
    %96 = vector.load %arg4[%c8, %c0_66, %c0_67] : memref<9x32x32xbf16, #tpu.memory_space<vmem>>, vector<1x32x32xbf16>
    %97 = vector.shape_cast %96 : vector<1x32x32xbf16> to vector<32x32xbf16>
    %cst_68 = arith.constant dense<0.000000e+00> : vector<256x32xf32>
    %98 = tpu.matmul %95, %97, %cst_68 {dimension_numbers = #tpu.dot_dimension_numbers<[1], [0], [0], [1], [0, 0, 1, 1], [], []>} : vector<256x32xbf16>, vector<32x32xbf16>, vector<256x32xf32> -> vector<256x32xf32>
    %99 = arith.addf %93, %98 : vector<256x32xf32>
    %100 = vector.broadcast %38 : vector<1x32xf32> to vector<256x32xf32>
    %101 = arith.addf %99, %100 : vector<256x32xf32>
    %cst_69 = arith.constant 0.000000e+00 : f32
    %102 = vector.broadcast %cst_69 : f32 to vector<256x32xf32>
    %103 = arith.maximumf %101, %102 : vector<256x32xf32>
    %104 = arith.truncf %103 : vector<256x32xf32> to vector<256x32xbf16>
    %c0_70 = arith.constant 0 : index
    %c0_71 = arith.constant 0 : index
    %105 = vector.load %arg6[%c0_70, %c0_71] : memref<32x128xbf16, #tpu.memory_space<vmem>>, vector<32x128xbf16>
    %cst_72 = arith.constant dense<0.000000e+00> : vector<256x128xf32>
    %106 = tpu.matmul %104, %105, %cst_72 {dimension_numbers = #tpu.dot_dimension_numbers<[1], [0], [0], [1], [0, 0, 1, 1], [], []>} : vector<256x32xbf16>, vector<32x128xbf16>, vector<256x128xf32> -> vector<256x128xf32>
    %c0_73 = arith.constant 0 : index
    %107 = arith.index_cast %41 : i32 to index
    %c0_74 = arith.constant 0 : index
    %c0_75 = arith.constant 0 : index
    %108 = vector.load %arg1[%c0_73, %107, %c0_74, %c0_75] : memref<2x16x16x128xf32, #tpu.memory_space<vmem>>, vector<1x16x16x128xf32>
    %109 = vector.shape_cast %108 : vector<1x16x16x128xf32> to vector<16x16x128xf32>
    %110 = vector.broadcast %39 : vector<1x128xf32> to vector<256x128xf32>
    %111 = arith.addf %106, %110 : vector<256x128xf32>
    %112 = vector.shape_cast %109 : vector<16x16x128xf32> to vector<256x128xf32>
    %113 = arith.addf %111, %112 : vector<256x128xf32>
    %cst_76 = arith.constant 0.000000e+00 : f32
    %114 = vector.broadcast %cst_76 : f32 to vector<256x128xf32>
    %115 = arith.maximumf %113, %114 : vector<256x128xf32>
    %116 = vector.shape_cast %115 : vector<256x128xf32> to vector<16x16x128xf32>
    %c0_77 = arith.constant 0 : index
    %117 = arith.index_cast %41 : i32 to index
    %c0_78 = arith.constant 0 : index
    %c0_79 = arith.constant 0 : index
    %118 = vector.load %arg8[%c0_77, %117, %c0_78, %c0_79] : memref<2x16x16x128xf32, #tpu.memory_space<vmem>>, vector<1x16x16x128xf32>
    %119 = vector.shape_cast %118 : vector<1x16x16x128xf32> to vector<16x16x128xf32>
    %120 = vector.shape_cast %116 : vector<16x16x128xf32> to vector<1x16x16x128xf32>
    tpu.vector_store %arg8[%c0_77, %117, %c0_78, %c0_79], %120 {strides = array<i32>} : memref<2x16x16x128xf32, #tpu.memory_space<vmem>>, vector<1x16x16x128xf32>,
    %c1_i32 = arith.constant 1 : i32
    %c0_i32_80 = arith.constant 0 : i32
    %c16_i32_81 = arith.constant 16 : i32
    %121 = arith.muli %c0_i32_80, %c16_i32_81 : i32
    %122 = tpu.assume_multiple %121, 16 : i32
    %c1_82 = arith.constant 1 : index
    %123 = arith.index_cast %122 : i32 to index
    %c0_83 = arith.constant 0 : index
    %c0_84 = arith.constant 0 : index
    %124 = vector.load %arg9[%c1_82, %123, %c0_83, %c0_84] : memref<2x18x18x32xbf16, #tpu.memory_space<vmem>>, vector<1x18x18x32xbf16>
    %125 = vector.shape_cast %124 : vector<1x18x18x32xbf16> to vector<18x18x32xbf16>
    %cst_85 = arith.constant 0.000000e+00 : f32
    %126 = vector.broadcast %cst_85 : f32 to vector<256x32xf32>
    %127 = vector.extract_strided_slice %125 {offsets = [0, 0, 0], sizes = [16, 16, 32], strides = [1, 1, 1]} : vector<18x18x32xbf16> to vector<16x16x32xbf16>
    %128 = vector.shape_cast %127 : vector<16x16x32xbf16> to vector<256x32xbf16>
    %c0_86 = arith.constant 0 : index
    %c0_87 = arith.constant 0 : index
    %c0_88 = arith.constant 0 : index
    %129 = vector.load %arg4[%c0_86, %c0_87, %c0_88] : memref<9x32x32xbf16, #tpu.memory_space<vmem>>, vector<1x32x32xbf16>
    %130 = vector.shape_cast %129 : vector<1x32x32xbf16> to vector<32x32xbf16>
    %cst_89 = arith.constant dense<0.000000e+00> : vector<256x32xf32>
    %131 = tpu.matmul %128, %130, %cst_89 {dimension_numbers = #tpu.dot_dimension_numbers<[1], [0], [0], [1], [0, 0, 1, 1], [], []>} : vector<256x32xbf16>, vector<32x32xbf16>, vector<256x32xf32> -> vector<256x32xf32>
    %132 = arith.addf %126, %131 : vector<256x32xf32>
    %133 = vector.extract_strided_slice %125 {offsets = [0, 1, 0], sizes = [16, 16, 32], strides = [1, 1, 1]} : vector<18x18x32xbf16> to vector<16x16x32xbf16>
    %134 = vector.shape_cast %133 : vector<16x16x32xbf16> to vector<256x32xbf16>
    %c1_90 = arith.constant 1 : index
    %c0_91 = arith.constant 0 : index
    %c0_92 = arith.constant 0 : index
    %135 = vector.load %arg4[%c1_90, %c0_91, %c0_92] : memref<9x32x32xbf16, #tpu.memory_space<vmem>>, vector<1x32x32xbf16>
    %136 = vector.shape_cast %135 : vector<1x32x32xbf16> to vector<32x32xbf16>
    %cst_93 = arith.constant dense<0.000000e+00> : vector<256x32xf32>
    %137 = tpu.matmul %134, %136, %cst_93 {dimension_numbers = #tpu.dot_dimension_numbers<[1], [0], [0], [1], [0, 0, 1, 1], [], []>} : vector<256x32xbf16>, vector<32x32xbf16>, vector<256x32xf32> -> vector<256x32xf32>
    %138 = arith.addf %132, %137 : vector<256x32xf32>
    %139 = vector.extract_strided_slice %125 {offsets = [0, 2, 0], sizes = [16, 16, 32], strides = [1, 1, 1]} : vector<18x18x32xbf16> to vector<16x16x32xbf16>
    %140 = vector.shape_cast %139 : vector<16x16x32xbf16> to vector<256x32xbf16>
    %c2_94 = arith.constant 2 : index
    %c0_95 = arith.constant 0 : index
    %c0_96 = arith.constant 0 : index
    %141 = vector.load %arg4[%c2_94, %c0_95, %c0_96] : memref<9x32x32xbf16, #tpu.memory_space<vmem>>, vector<1x32x32xbf16>
    %142 = vector.shape_cast %141 : vector<1x32x32xbf16> to vector<32x32xbf16>
    %cst_97 = arith.constant dense<0.000000e+00> : vector<256x32xf32>
    %143 = tpu.matmul %140, %142, %cst_97 {dimension_numbers = #tpu.dot_dimension_numbers<[1], [0], [0], [1], [0, 0, 1, 1], [], []>} : vector<256x32xbf16>, vector<32x32xbf16>, vector<256x32xf32> -> vector<256x32xf32>
    %144 = arith.addf %138, %143 : vector<256x32xf32>
    %145 = vector.extract_strided_slice %125 {offsets = [1, 0, 0], sizes = [16, 16, 32], strides = [1, 1, 1]} : vector<18x18x32xbf16> to vector<16x16x32xbf16>
    %146 = vector.shape_cast %145 : vector<16x16x32xbf16> to vector<256x32xbf16>
    %c3_98 = arith.constant 3 : index
    %c0_99 = arith.constant 0 : index
    %c0_100 = arith.constant 0 : index
    %147 = vector.load %arg4[%c3_98, %c0_99, %c0_100] : memref<9x32x32xbf16, #tpu.memory_space<vmem>>, vector<1x32x32xbf16>
    %148 = vector.shape_cast %147 : vector<1x32x32xbf16> to vector<32x32xbf16>
    %cst_101 = arith.constant dense<0.000000e+00> : vector<256x32xf32>
    %149 = tpu.matmul %146, %148, %cst_101 {dimension_numbers = #tpu.dot_dimension_numbers<[1], [0], [0], [1], [0, 0, 1, 1], [], []>} : vector<256x32xbf16>, vector<32x32xbf16>, vector<256x32xf32> -> vector<256x32xf32>
    %150 = arith.addf %144, %149 : vector<256x32xf32>
    %151 = vector.extract_strided_slice %125 {offsets = [1, 1, 0], sizes = [16, 16, 32], strides = [1, 1, 1]} : vector<18x18x32xbf16> to vector<16x16x32xbf16>
    %152 = vector.shape_cast %151 : vector<16x16x32xbf16> to vector<256x32xbf16>
    %c4_102 = arith.constant 4 : index
    %c0_103 = arith.constant 0 : index
    %c0_104 = arith.constant 0 : index
    %153 = vector.load %arg4[%c4_102, %c0_103, %c0_104] : memref<9x32x32xbf16, #tpu.memory_space<vmem>>, vector<1x32x32xbf16>
    %154 = vector.shape_cast %153 : vector<1x32x32xbf16> to vector<32x32xbf16>
    %cst_105 = arith.constant dense<0.000000e+00> : vector<256x32xf32>
    %155 = tpu.matmul %152, %154, %cst_105 {dimension_numbers = #tpu.dot_dimension_numbers<[1], [0], [0], [1], [0, 0, 1, 1], [], []>} : vector<256x32xbf16>, vector<32x32xbf16>, vector<256x32xf32> -> vector<256x32xf32>
    %156 = arith.addf %150, %155 : vector<256x32xf32>
    %157 = vector.extract_strided_slice %125 {offsets = [1, 2, 0], sizes = [16, 16, 32], strides = [1, 1, 1]} : vector<18x18x32xbf16> to vector<16x16x32xbf16>
    %158 = vector.shape_cast %157 : vector<16x16x32xbf16> to vector<256x32xbf16>
    %c5_106 = arith.constant 5 : index
    %c0_107 = arith.constant 0 : index
    %c0_108 = arith.constant 0 : index
    %159 = vector.load %arg4[%c5_106, %c0_107, %c0_108] : memref<9x32x32xbf16, #tpu.memory_space<vmem>>, vector<1x32x32xbf16>
    %160 = vector.shape_cast %159 : vector<1x32x32xbf16> to vector<32x32xbf16>
    %cst_109 = arith.constant dense<0.000000e+00> : vector<256x32xf32>
    %161 = tpu.matmul %158, %160, %cst_109 {dimension_numbers = #tpu.dot_dimension_numbers<[1], [0], [0], [1], [0, 0, 1, 1], [], []>} : vector<256x32xbf16>, vector<32x32xbf16>, vector<256x32xf32> -> vector<256x32xf32>
    %162 = arith.addf %156, %161 : vector<256x32xf32>
    %163 = vector.extract_strided_slice %125 {offsets = [2, 0, 0], sizes = [16, 16, 32], strides = [1, 1, 1]} : vector<18x18x32xbf16> to vector<16x16x32xbf16>
    %164 = vector.shape_cast %163 : vector<16x16x32xbf16> to vector<256x32xbf16>
    %c6_110 = arith.constant 6 : index
    %c0_111 = arith.constant 0 : index
    %c0_112 = arith.constant 0 : index
    %165 = vector.load %arg4[%c6_110, %c0_111, %c0_112] : memref<9x32x32xbf16, #tpu.memory_space<vmem>>, vector<1x32x32xbf16>
    %166 = vector.shape_cast %165 : vector<1x32x32xbf16> to vector<32x32xbf16>
    %cst_113 = arith.constant dense<0.000000e+00> : vector<256x32xf32>
    %167 = tpu.matmul %164, %166, %cst_113 {dimension_numbers = #tpu.dot_dimension_numbers<[1], [0], [0], [1], [0, 0, 1, 1], [], []>} : vector<256x32xbf16>, vector<32x32xbf16>, vector<256x32xf32> -> vector<256x32xf32>
    %168 = arith.addf %162, %167 : vector<256x32xf32>
    %169 = vector.extract_strided_slice %125 {offsets = [2, 1, 0], sizes = [16, 16, 32], strides = [1, 1, 1]} : vector<18x18x32xbf16> to vector<16x16x32xbf16>
    %170 = vector.shape_cast %169 : vector<16x16x32xbf16> to vector<256x32xbf16>
    %c7_114 = arith.constant 7 : index
    %c0_115 = arith.constant 0 : index
    %c0_116 = arith.constant 0 : index
    %171 = vector.load %arg4[%c7_114, %c0_115, %c0_116] : memref<9x32x32xbf16, #tpu.memory_space<vmem>>, vector<1x32x32xbf16>
    %172 = vector.shape_cast %171 : vector<1x32x32xbf16> to vector<32x32xbf16>
    %cst_117 = arith.constant dense<0.000000e+00> : vector<256x32xf32>
    %173 = tpu.matmul %170, %172, %cst_117 {dimension_numbers = #tpu.dot_dimension_numbers<[1], [0], [0], [1], [0, 0, 1, 1], [], []>} : vector<256x32xbf16>, vector<32x32xbf16>, vector<256x32xf32> -> vector<256x32xf32>
    %174 = arith.addf %168, %173 : vector<256x32xf32>
    %175 = vector.extract_strided_slice %125 {offsets = [2, 2, 0], sizes = [16, 16, 32], strides = [1, 1, 1]} : vector<18x18x32xbf16> to vector<16x16x32xbf16>
    %176 = vector.shape_cast %175 : vector<16x16x32xbf16> to vector<256x32xbf16>
    %c8_118 = arith.constant 8 : index
    %c0_119 = arith.constant 0 : index
    %c0_120 = arith.constant 0 : index
    %177 = vector.load %arg4[%c8_118, %c0_119, %c0_120] : memref<9x32x32xbf16, #tpu.memory_space<vmem>>, vector<1x32x32xbf16>
    %178 = vector.shape_cast %177 : vector<1x32x32xbf16> to vector<32x32xbf16>
    %cst_121 = arith.constant dense<0.000000e+00> : vector<256x32xf32>
    %179 = tpu.matmul %176, %178, %cst_121 {dimension_numbers = #tpu.dot_dimension_numbers<[1], [0], [0], [1], [0, 0, 1, 1], [], []>} : vector<256x32xbf16>, vector<32x32xbf16>, vector<256x32xf32> -> vector<256x32xf32>
    %180 = arith.addf %174, %179 : vector<256x32xf32>
    %181 = vector.broadcast %38 : vector<1x32xf32> to vector<256x32xf32>
    %182 = arith.addf %180, %181 : vector<256x32xf32>
    %cst_122 = arith.constant 0.000000e+00 : f32
    %183 = vector.broadcast %cst_122 : f32 to vector<256x32xf32>
    %184 = arith.maximumf %182, %183 : vector<256x32xf32>
    %185 = arith.truncf %184 : vector<256x32xf32> to vector<256x32xbf16>
    %c0_123 = arith.constant 0 : index
    %c0_124 = arith.constant 0 : index
    %186 = vector.load %arg6[%c0_123, %c0_124] : memref<32x128xbf16, #tpu.memory_space<vmem>>, vector<32x128xbf16>
    %cst_125 = arith.constant dense<0.000000e+00> : vector<256x128xf32>
    %187 = tpu.matmul %185, %186, %cst_125 {dimension_numbers = #tpu.dot_dimension_numbers<[1], [0], [0], [1], [0, 0, 1, 1], [], []>} : vector<256x32xbf16>, vector<32x128xbf16>, vector<256x128xf32> -> vector<256x128xf32>
    %c1_126 = arith.constant 1 : index
    %188 = arith.index_cast %122 : i32 to index
    %c0_127 = arith.constant 0 : index
    %c0_128 = arith.constant 0 : index
    %189 = vector.load %arg1[%c1_126, %188, %c0_127, %c0_128] : memref<2x16x16x128xf32, #tpu.memory_space<vmem>>, vector<1x16x16x128xf32>
    %190 = vector.shape_cast %189 : vector<1x16x16x128xf32> to vector<16x16x128xf32>
    %191 = vector.broadcast %39 : vector<1x128xf32> to vector<256x128xf32>
    %192 = arith.addf %187, %191 : vector<256x128xf32>
    %193 = vector.shape_cast %190 : vector<16x16x128xf32> to vector<256x128xf32>
    %194 = arith.addf %192, %193 : vector<256x128xf32>
    %cst_129 = arith.constant 0.000000e+00 : f32
    %195 = vector.broadcast %cst_129 : f32 to vector<256x128xf32>
    %196 = arith.maximumf %194, %195 : vector<256x128xf32>
    %197 = vector.shape_cast %196 : vector<256x128xf32> to vector<16x16x128xf32>
    %c1_130 = arith.constant 1 : index
    %198 = arith.index_cast %122 : i32 to index
    %c0_131 = arith.constant 0 : index
    %c0_132 = arith.constant 0 : index
    %199 = vector.load %arg8[%c1_130, %198, %c0_131, %c0_132] : memref<2x16x16x128xf32, #tpu.memory_space<vmem>>, vector<1x16x16x128xf32>
    %200 = vector.shape_cast %199 : vector<1x16x16x128xf32> to vector<16x16x128xf32>
    %201 = vector.shape_cast %197 : vector<16x16x128xf32> to vector<1x16x16x128xf32>
    tpu.vector_store %arg8[%c1_130, %198, %c0_131, %c0_132], %201 {strides = array<i32>} : memref<2x16x16x128xf32, #tpu.memory_space<vmem>>, vector<1x16x16x128xf32>,
    %c1_i32_133 = arith.constant 1 : i32
    return
  }
  func.func @transform_0(%arg0: i32) -> (i32, i32, i32, i32) {
    %c0_i32 = arith.constant 0 : i32
    %c0_i32_0 = arith.constant 0 : i32
    %c0_i32_1 = arith.constant 0 : i32
    %c0_i32_2 = arith.constant 0 : i32
    return %arg0, %c0_i32, %c0_i32_0, %c0_i32_1 : i32, i32, i32, i32
  }
  func.func @transform_1(%arg0: i32) -> (i32, i32) {
    %c0_i32 = arith.constant 0 : i32
    %c0_i32_0 = arith.constant 0 : i32
    %c0_i32_1 = arith.constant 0 : i32
    return %c0_i32, %c0_i32_0 : i32, i32
  }
  func.func @transform_2(%arg0: i32) -> (i32, i32) {
    %c0_i32 = arith.constant 0 : i32
    %c0_i32_0 = arith.constant 0 : i32
    %c0_i32_1 = arith.constant 0 : i32
    return %c0_i32, %c0_i32_0 : i32, i32
  }
  func.func @transform_3(%arg0: i32) -> (i32, i32, i32) {
    %c0_i32 = arith.constant 0 : i32
    %c0_i32_0 = arith.constant 0 : i32
    %c0_i32_1 = arith.constant 0 : i32
    %c0_i32_2 = arith.constant 0 : i32
    return %c0_i32, %c0_i32_0, %c0_i32_1 : i32, i32, i32
  }
  func.func @transform_4(%arg0: i32) -> (i32, i32) {
    %c0_i32 = arith.constant 0 : i32
    %c0_i32_0 = arith.constant 0 : i32
    %c0_i32_1 = arith.constant 0 : i32
    return %c0_i32, %c0_i32_0 : i32, i32
  }
  func.func @transform_5(%arg0: i32) -> (i32, i32) {
    %c0_i32 = arith.constant 0 : i32
    %c0_i32_0 = arith.constant 0 : i32
    %c0_i32_1 = arith.constant 0 : i32
    return %c0_i32, %c0_i32_0 : i32, i32
  }
  func.func @transform_6(%arg0: i32) -> (i32, i32) {
    %c0_i32 = arith.constant 0 : i32
    %c0_i32_0 = arith.constant 0 : i32
    %c0_i32_1 = arith.constant 0 : i32
    return %c0_i32, %c0_i32_0 : i32, i32
  }
  func.func @transform_7(%arg0: i32) -> (i32, i32, i32, i32) {
    %c0_i32 = arith.constant 0 : i32
    %c0_i32_0 = arith.constant 0 : i32
    %c0_i32_1 = arith.constant 0 : i32
    %c0_i32_2 = arith.constant 0 : i32
    return %arg0, %c0_i32, %c0_i32_0, %c0_i32_1 : i32, i32, i32, i32
  }
}

</mosaic_0001>

<llo_original>
// kernel: tpu_custom_call.1
$region0: #{tpu_custom_call.1}
  #allocation0 [shape = 'u32[]', space=smem, size = 0x4, offset = 0x4, fixed_abs, tag = 'smem constant byte address 0x4 - core index']
  #allocation1 [shape = 'u32[144,128]{1,0:T(1,128)}', space=vmem, size = 0x12000, scoped, tag = 'internal scratch']
  #allocation2 [shape = 'bf16[2,18,18,32]{3,2,1,0:T(8,128)(2,1)}', space=vmem, size = 0x36000, scoped, tag = 'scratch operand']
  %s0 = inlined_call_operand.hbm [shape: f32[2,16,16,128], index: 0, kind: input, shape index: {}]
  %s1 = inlined_call_operand.vmem [shape: bf16[128,32], index: 1, kind: input, shape index: {}]
  %s2 = inlined_call_operand.vmem [shape: f32[1,32], index: 2, kind: input, shape index: {}]
  %s3 = inlined_call_operand.hbm [shape: bf16[9,32,32], index: 3, kind: input, shape index: {}]
  %s4 = inlined_call_operand.vmem [shape: f32[1,32], index: 4, kind: input, shape index: {}]
  %s5 = inlined_call_operand.vmem [shape: bf16[32,128], index: 5, kind: input, shape index: {}]
  %s6 = inlined_call_operand.vmem [shape: f32[1,128], index: 6, kind: input, shape index: {}]
  %s7 = inlined_call_operand.hbm [shape: f32[2,16,16,128], index: 7, kind: output, shape index: {}]
  %s8 = sld [smem:[#allocation0]]
  $region46: #{tpu_custom_call.1} parent=0
    _
  %s10 = ssub.s32 1, %s8
  %s11 = scalar_select 0, %s10, %s8
  $region1: #{tpu_custom_call.1} parent=0
    #allocation3 [shape = 'u8[262144]{0}', space=vmem, size = 0x40000, scoped, tag = 'input window, operand 0, single buffered']
    #allocation4 [shape = 's32[1]{0}', space=sflag, size = 0x4, scoped, tag = 'scoped memory for tpu_custom_call.1']
    #allocation5 [shape = 's32[1]{0}', space=sflag, size = 0x4, scoped, tag = 'scoped memory for tpu_custom_call.1']
    #allocation6 [shape = 'u8[73728]{0}', space=vmem, size = 0x12000, scoped, tag = 'input window, operand 3, single buffered']
    #allocation7 [shape = 's32[1]{0}', space=sflag, size = 0x4, scoped, tag = 'scoped memory for tpu_custom_call.1']
    #allocation8 [shape = 'u8[262144]{0}', space=vmem, size = 0x40000, scoped, tag = 'output window, operand 0, single buffered']
    %12 = vsyncpa [#allocation4], 0
    %13 = vsyncpa [#allocation7], 0
    %14 = vsyncpa [#allocation5], 0
    // Predicated region
    $region2: #{tpu_custom_call.1} parent=1 // pred_check
      _
    $region3: #{tpu_custom_call.1} parent=1 // pred_check_branch
      %16 = sbr.rel (0) target = $region5
    $region4: #{tpu_custom_call.1} parent=1 // pred_region
      %s18 = ssub.s32 8192, 8192
      %19 = vsyncadd [#allocation4], %s18
      %s20 = sshll.u32 [#allocation3], 4
      %s21 = int_to_ptr.vmem [resolvable:$true] %s20
      %26 = dma.hbm_to_vmem [thread:$0]  %s0, 8192, %s21, [#allocation4], 128, 128, 8
    $region5: #{tpu_custom_call.1} parent=1 // pred_fallthru
      _
    // Predicated region
    $region6: #{tpu_custom_call.1} parent=1 // pred_check
      _
    $region7: #{tpu_custom_call.1} parent=1 // pred_check_branch
      %28 = sbr.rel (0) target = $region9
    $region8: #{tpu_custom_call.1} parent=1 // pred_region
      _
    $region9: #{tpu_custom_call.1} parent=1 // pred_fallthru
      _
    // Predicated region
    $region10: #{tpu_custom_call.1} parent=1 // pred_check
      _
    $region11: #{tpu_custom_call.1} parent=1 // pred_check_branch
      %30 = sbr.rel (0) target = $region13
    $region12: #{tpu_custom_call.1} parent=1 // pred_region
      _
    $region13: #{tpu_custom_call.1} parent=1 // pred_fallthru
      _
    // Predicated region
    $region14: #{tpu_custom_call.1} parent=1 // pred_check
      _
    $region15: #{tpu_custom_call.1} parent=1 // pred_check_branch
      %32 = sbr.rel (0) target = $region17
    $region16: #{tpu_custom_call.1} parent=1 // pred_region
      %s34 = ssub.s32 2304, 2304
      %35 = vsyncadd [#allocation7], %s34
      %s36 = sshll.u32 [#allocation6], 4
      %s37 = int_to_ptr.vmem [resolvable:$true] %s36
      %42 = dma.hbm_to_vmem [thread:$0]  %s3, 2304, %s37, [#allocation7], 64, 64, 4
    $region17: #{tpu_custom_call.1} parent=1 // pred_fallthru
      _
    // Predicated region
    $region18: #{tpu_custom_call.1} parent=1 // pred_check
      _
    $region19: #{tpu_custom_call.1} parent=1 // pred_check_branch
      %44 = sbr.rel (0) target = $region21
    $region20: #{tpu_custom_call.1} parent=1 // pred_region
      _
    $region21: #{tpu_custom_call.1} parent=1 // pred_fallthru
      _
    // Predicated region
    $region22: #{tpu_custom_call.1} parent=1 // pred_check
      _
    $region23: #{tpu_custom_call.1} parent=1 // pred_check_branch
      %46 = sbr.rel (0) target = $region25
    $region24: #{tpu_custom_call.1} parent=1 // pred_region
      _
    $region25: #{tpu_custom_call.1} parent=1 // pred_fallthru
      _
    // Predicated region
    $region26: #{tpu_custom_call.1} parent=1 // pred_check
      _
    $region27: #{tpu_custom_call.1} parent=1 // pred_check_branch
      %48 = sbr.rel (0) target = $region29
    $region28: #{tpu_custom_call.1} parent=1 // pred_region
      _
    $region29: #{tpu_custom_call.1} parent=1 // pred_fallthru
      _
    // Predicated region
    $region30: #{tpu_custom_call.1} parent=1 // pred_check
      _
    $region31: #{tpu_custom_call.1} parent=1 // pred_check_branch
      %50 = sbr.rel (0) target = $region33
    $region32: #{tpu_custom_call.1} parent=1 // pred_region
      %51 = dma.done [#allocation4], 8192
    $region33: #{tpu_custom_call.1} parent=1 // pred_fallthru
      _
    // Predicated region
    $region34: #{tpu_custom_call.1} parent=1 // pred_check
      _
    $region35: #{tpu_custom_call.1} parent=1 // pred_check_branch
      %53 = sbr.rel (0) target = $region37
    $region36: #{tpu_custom_call.1} parent=1 // pred_region
      %54 = dma.done [#allocation7], 2304
    $region37: #{tpu_custom_call.1} parent=1 // pred_fallthru
      _
    %v56 = vld [vmem:[#allocation3] sm:$0xff]
    %v57 = vld [vmem:[#allocation3 + $0x8] sm:$0xff]
    %v58 = vld [vmem:[#allocation3 + $0x10] sm:$0xff]
    %v59 = vld [vmem:[#allocation3 + $0x18] sm:$0xff]
    %v60 = vld [vmem:[#allocation3 + $0x20] sm:$0xff]
    %v61 = vld [vmem:[#allocation3 + $0x28] sm:$0xff]
    %v62 = vld [vmem:[#allocation3 + $0x30] sm:$0xff]
    %v63 = vld [vmem:[#allocation3 + $0x38] sm:$0xff]
    %v64 = vld [vmem:[#allocation3 + $0x40] sm:$0xff]
    %v65 = vld [vmem:[#allocation3 + $0x48] sm:$0xff]
    %v66 = vld [vmem:[#allocation3 + $0x50] sm:$0xff]
    %v67 = vld [vmem:[#allocation3 + $0x58] sm:$0xff]
    %v68 = vld [vmem:[#allocation3 + $0x60] sm:$0xff]
    %v69 = vld [vmem:[#allocation3 + $0x68] sm:$0xff]
    %v70 = vld [vmem:[#allocation3 + $0x70] sm:$0xff]
    %v71 = vld [vmem:[#allocation3 + $0x78] sm:$0xff]
    %v72 = vld [vmem:[#allocation3 + $0x80] sm:$0xff]
    %v73 = vld [vmem:[#allocation3 + $0x88] sm:$0xff]
    %v74 = vld [vmem:[#allocation3 + $0x90] sm:$0xff]
    %v75 = vld [vmem:[#allocation3 + $0x98] sm:$0xff]
    %v76 = vld [vmem:[#allocation3 + $0xa0] sm:$0xff]
    %v77 = vld [vmem:[#allocation3 + $0xa8] sm:$0xff]
    %v78 = vld [vmem:[#allocation3 + $0xb0] sm:$0xff]
    %v79 = vld [vmem:[#allocation3 + $0xb8] sm:$0xff]
    %v80 = vld [vmem:[#allocation3 + $0xc0] sm:$0xff]
    %v81 = vld [vmem:[#allocation3 + $0xc8] sm:$0xff]
    %v82 = vld [vmem:[#allocation3 + $0xd0] sm:$0xff]
    %v83 = vld [vmem:[#allocation3 + $0xd8] sm:$0xff]
    %v84 = vld [vmem:[#allocation3 + $0xe0] sm:$0xff]
    %v85 = vld [vmem:[#allocation3 + $0xe8] sm:$0xff]
    %v86 = vld [vmem:[#allocation3 + $0xf0] sm:$0xff]
    %v87 = vld [vmem:[#allocation3 + $0xf8] sm:$0xff]
    %v88 = vld [vmem:[#allocation3 + $0x100] sm:$0xff]
    %v89 = vld [vmem:[#allocation3 + $0x108] sm:$0xff]
    %v90 = vld [vmem:[#allocation3 + $0x110] sm:$0xff]
    %v91 = vld [vmem:[#allocation3 + $0x118] sm:$0xff]
    %v92 = vld [vmem:[#allocation3 + $0x120] sm:$0xff]
    %v93 = vld [vmem:[#allocation3 + $0x128] sm:$0xff]
    %v94 = vld [vmem:[#allocation3 + $0x130] sm:$0xff]
    %v95 = vld [vmem:[#allocation3 + $0x138] sm:$0xff]
    %v96 = vld [vmem:[#allocation3 + $0x140] sm:$0xff]
    %v97 = vld [vmem:[#allocation3 + $0x148] sm:$0xff]
    %v98 = vld [vmem:[#allocation3 + $0x150] sm:$0xff]
    %v99 = vld [vmem:[#allocation3 + $0x158] sm:$0xff]
    %v100 = vld [vmem:[#allocation3 + $0x160] sm:$0xff]
    %v101 = vld [vmem:[#allocation3 + $0x168] sm:$0xff]
    %v102 = vld [vmem:[#allocation3 + $0x170] sm:$0xff]
    %v103 = vld [vmem:[#allocation3 + $0x178] sm:$0xff]
    %v104 = vld [vmem:[#allocation3 + $0x180] sm:$0xff]
    %v105 = vld [vmem:[#allocation3 + $0x188] sm:$0xff]
    %v106 = vld [vmem:[#allocation3 + $0x190] sm:$0xff]
    %v107 = vld [vmem:[#allocation3 + $0x198] sm:$0xff]
    %v108 = vld [vmem:[#allocation3 + $0x1a0] sm:$0xff]
    %v109 = vld [vmem:[#allocation3 + $0x1a8] sm:$0xff]
    %v110 = vld [vmem:[#allocation3 + $0x1b0] sm:$0xff]
    %v111 = vld [vmem:[#allocation3 + $0x1b8] sm:$0xff]
    %v112 = vld [vmem:[#allocation3 + $0x1c0] sm:$0xff]
    %v113 = vld [vmem:[#allocation3 + $0x1c8] sm:$0xff]
    %v114 = vld [vmem:[#allocation3 + $0x1d0] sm:$0xff]
    %v115 = vld [vmem:[#allocation3 + $0x1d8] sm:$0xff]
    %v116 = vld [vmem:[#allocation3 + $0x1e0] sm:$0xff]
    %v117 = vld [vmem:[#allocation3 + $0x1e8] sm:$0xff]
    %v118 = vld [vmem:[#allocation3 + $0x1f0] sm:$0xff]
    %v119 = vld [vmem:[#allocation3 + $0x1f8] sm:$0xff]
    %v120 = vpack.c.bf16 %v57, %v56
    %v121 = vpack.c.bf16 %v59, %v58
    %v122 = vpack.c.bf16 %v61, %v60
    %v123 = vpack.c.bf16 %v63, %v62
    %v124 = vpack.c.bf16 %v65, %v64
    %v125 = vpack.c.bf16 %v67, %v66
    %v126 = vpack.c.bf16 %v69, %v68
    %v127 = vpack.c.bf16 %v71, %v70
    %v128 = vpack.c.bf16 %v73, %v72
    %v129 = vpack.c.bf16 %v75, %v74
    %v130 = vpack.c.bf16 %v77, %v76
    %v131 = vpack.c.bf16 %v79, %v78
    %v132 = vpack.c.bf16 %v81, %v80
    %v133 = vpack.c.bf16 %v83, %v82
    %v134 = vpack.c.bf16 %v85, %v84
    %v135 = vpack.c.bf16 %v87, %v86
    %v136 = vpack.c.bf16 %v89, %v88
    %v137 = vpack.c.bf16 %v91, %v90
    %v138 = vpack.c.bf16 %v93, %v92
    %v139 = vpack.c.bf16 %v95, %v94
    %v140 = vpack.c.bf16 %v97, %v96
    %v141 = vpack.c.bf16 %v99, %v98
    %v142 = vpack.c.bf16 %v101, %v100
    %v143 = vpack.c.bf16 %v103, %v102
    %v144 = vpack.c.bf16 %v105, %v104
    %v145 = vpack.c.bf16 %v107, %v106
    %v146 = vpack.c.bf16 %v109, %v108
    %v147 = vpack.c.bf16 %v111, %v110
    %v148 = vpack.c.bf16 %v113, %v112
    %v149 = vpack.c.bf16 %v115, %v114
    %v150 = vpack.c.bf16 %v117, %v116
    %v151 = vpack.c.bf16 %v119, %v118
    %v152 = vld [vmem:[%s1] sm:$0xf]
    %v153 = vld [vmem:[%s1 + $0x4] sm:$0xf]
    %v154 = vld [vmem:[%s1 + $0x8] sm:$0xf]
    %v155 = vld [vmem:[%s1 + $0xc] sm:$0xf]
    %v156 = vld [vmem:[%s1 + $0x10] sm:$0xf]
    %v157 = vld [vmem:[%s1 + $0x14] sm:$0xf]
    %v158 = vld [vmem:[%s1 + $0x18] sm:$0xf]
    %v159 = vld [vmem:[%s1 + $0x1c] sm:$0xf]
    %v160 = vld [vmem:[%s1 + $0x20] sm:$0xf]
    %v161 = vld [vmem:[%s1 + $0x24] sm:$0xf]
    %v162 = vld [vmem:[%s1 + $0x28] sm:$0xf]
    %v163 = vld [vmem:[%s1 + $0x2c] sm:$0xf]
    %v164 = vld [vmem:[%s1 + $0x30] sm:$0xf]
    %v165 = vld [vmem:[%s1 + $0x34] sm:$0xf]
    %v166 = vld [vmem:[%s1 + $0x38] sm:$0xf]
    %v167 = vld [vmem:[%s1 + $0x3c] sm:$0xf]
    %v168 = vld [vmem:[%s2] sm:$0x1]
    %v170 = vlaneseq
    %v171 = vshrl.u32 %v170, 7
    %v172 = vsub.s32 0, %v171
    %v173 = vrot.slane %v168, %v172
    %v191 = vunpack.c.l.b16 %v152
    %v192 = vunpack.c.l.b16 %v153
    %v193 = vunpack.c.l.b16 %v154
    %v194 = vunpack.c.l.b16 %v155
    %v195 = vunpack.c.l.b16 %v156
    %v196 = vunpack.c.l.b16 %v157
    %v197 = vunpack.c.l.b16 %v158
    %v198 = vunpack.c.l.b16 %v159
    %v199 = vunpack.c.l.b16 %v160
    %v200 = vunpack.c.l.b16 %v161
    %v201 = vunpack.c.l.b16 %v162
    %v202 = vunpack.c.l.b16 %v163
    %v203 = vunpack.c.l.b16 %v164
    %v204 = vunpack.c.l.b16 %v165
    %v205 = vunpack.c.l.b16 %v166
    %v206 = vunpack.c.l.b16 %v167
    %v207 = vpack.c.b16 %v192, %v191
    %v208 = vpack.c.b16 %v194, %v193
    %v209 = vpack.c.b16 %v196, %v195
    %v210 = vpack.c.b16 %v198, %v197
    %v211 = vpack.c.b16 %v200, %v199
    %v212 = vpack.c.b16 %v202, %v201
    %v213 = vpack.c.b16 %v204, %v203
    %v214 = vpack.c.b16 %v206, %v205
    %223 = vmatprep.subr.bf16.mxu0 0
    %224 = vmatpush1.bf16.msra.mxu0 %v207
    %225 = vmatprep.subr.bf16.mxu0 0
    %226 = vmatpush1.bf16.msra.mxu0 %v208
    %227 = vmatprep.subr.bf16.mxu0 0
    %228 = vmatpush1.bf16.msra.mxu0 %v209
    %229 = vmatprep.subr.bf16.mxu0 0
    %230 = vmatpush1.bf16.msra.mxu0 %v210
    %231 = vmatprep.subr.bf16.mxu0 0
    %232 = vmatpush1.bf16.msra.mxu0 %v211
    %233 = vmatprep.subr.bf16.mxu0 0
    %234 = vmatpush1.bf16.msra.mxu0 %v212
    %235 = vmatprep.subr.bf16.mxu0 0
    %236 = vmatpush1.bf16.msra.mxu0 %v213
    %237 = vmatprep.subr.bf16.mxu0 0
    %238 = vmatpush1.bf16.msra.mxu0 %v214
    %239 = vmatprep.subr.bf16.mxu0 0
    %240 = vmatpush1.bf16.msra.mxu0 0
    %241 = vmatprep.subr.bf16.mxu0 0
    %242 = vmatpush1.bf16.msra.mxu0 0
    %243 = vmatprep.subr.bf16.mxu0 0
    %244 = vmatpush1.bf16.msra.mxu0 0
    %245 = vmatprep.subr.bf16.mxu0 0
    %246 = vmatpush1.bf16.msra.mxu0 0
    %247 = vmatprep.subr.bf16.mxu0 0
    %248 = vmatpush1.bf16.msra.mxu0 0
    %249 = vmatprep.subr.bf16.mxu0 0
    %250 = vmatpush1.bf16.msra.mxu0 0
    %251 = vmatprep.subr.bf16.mxu0 0
    %252 = vmatpush1.bf16.msra.mxu0 0
    %253 = vmatprep.subr.bf16.mxu0 0
    %254 = vmatpush1.bf16.msra.mxu0 0
    %255 = vmatprep.mubr.bf16.mxu0 0
    %256 = vmatmul.mubr.bf16.gmra.mrb[0].mxu0 %v120
    %v257 = vpop.f32.mrb[0].mxu0
    %v258 = vadd.f32 %v173, %v257
    %v259 = vpop.f32.mrb[0].mxu0
    %v260 = vpop.f32.mrb[0].mxu0
    %v261 = vadd.f32 %v173, %v260
    %v262 = vpop.f32.mrb[0].mxu0
    %263 = vmatprep.mubr.bf16.mxu0 0
    %264 = vmatmul.mubr.bf16.gmra.mrb[0].mxu0 %v121
    %v265 = vpop.f32.mrb[0].mxu0
    %v266 = vadd.f32 %v173, %v265
    %v267 = vpop.f32.mrb[0].mxu0
    %v268 = vpop.f32.mrb[0].mxu0
    %v269 = vadd.f32 %v173, %v268
    %v270 = vpop.f32.mrb[0].mxu0
    %271 = vmatprep.mubr.bf16.mxu0 0
    %272 = vmatmul.mubr.bf16.gmra.mrb[0].mxu0 %v122
    %v273 = vpop.f32.mrb[0].mxu0
    %v274 = vadd.f32 %v173, %v273
    %v275 = vpop.f32.mrb[0].mxu0
    %v276 = vpop.f32.mrb[0].mxu0
    %v277 = vadd.f32 %v173, %v276
    %v278 = vpop.f32.mrb[0].mxu0
    %279 = vmatprep.mubr.bf16.mxu0 0
    %280 = vmatmul.mubr.bf16.gmra.mrb[0].mxu0 %v123
    %v281 = vpop.f32.mrb[0].mxu0
    %v282 = vadd.f32 %v173, %v281
    %v283 = vpop.f32.mrb[0].mxu0
    %v284 = vpop.f32.mrb[0].mxu0
    %v285 = vadd.f32 %v173, %v284
    %v286 = vpop.f32.mrb[0].mxu0
    %287 = vmatprep.mubr.bf16.mxu0 0
    %288 = vmatmul.mubr.bf16.gmra.mrb[0].mxu0 %v124
    %v289 = vpop.f32.mrb[0].mxu0
    %v290 = vadd.f32 %v173, %v289
    %v291 = vpop.f32.mrb[0].mxu0
    %v292 = vpop.f32.mrb[0].mxu0
    %v293 = vadd.f32 %v173, %v292
    %v294 = vpop.f32.mrb[0].mxu0
    %295 = vmatprep.mubr.bf16.mxu0 0
    %296 = vmatmul.mubr.bf16.gmra.mrb[0].mxu0 %v125
    %v297 = vpop.f32.mrb[0].mxu0
    %v298 = vadd.f32 %v173, %v297
    %v299 = vpop.f32.mrb[0].mxu0
    %v300 = vpop.f32.mrb[0].mxu0
    %v301 = vadd.f32 %v173, %v300
    %v302 = vpop.f32.mrb[0].mxu0
    %303 = vmatprep.mubr.bf16.mxu0 0
    %304 = vmatmul.mubr.bf16.gmra.mrb[0].mxu0 %v126
    %v305 = vpop.f32.mrb[0].mxu0
    %v306 = vadd.f32 %v173, %v305
    %v307 = vpop.f32.mrb[0].mxu0
    %v308 = vpop.f32.mrb[0].mxu0
    %v309 = vadd.f32 %v173, %v308
    %v310 = vpop.f32.mrb[0].mxu0
    %311 = vmatprep.mubr.bf16.mxu0 0
    %312 = vmatmul.mubr.bf16.gmra.mrb[0].mxu0 %v127
    %v313 = vpop.f32.mrb[0].mxu0
    %v314 = vadd.f32 %v173, %v313
    %v315 = vpop.f32.mrb[0].mxu0
    %v316 = vpop.f32.mrb[0].mxu0
    %v317 = vadd.f32 %v173, %v316
    %v318 = vpop.f32.mrb[0].mxu0
    %319 = vmatprep.mubr.bf16.mxu0 0
    %320 = vmatmul.mubr.bf16.gmra.mrb[0].mxu0 %v128
    %v321 = vpop.f32.mrb[0].mxu0
    %v322 = vadd.f32 %v173, %v321
    %v323 = vpop.f32.mrb[0].mxu0
    %v324 = vpop.f32.mrb[0].mxu0
    %v325 = vadd.f32 %v173, %v324
    %v326 = vpop.f32.mrb[0].mxu0
    %327 = vmatprep.mubr.bf16.mxu0 0
    %328 = vmatmul.mubr.bf16.gmra.mrb[0].mxu0 %v129
    %v329 = vpop.f32.mrb[0].mxu0
    %v330 = vadd.f32 %v173, %v329
    %v331 = vpop.f32.mrb[0].mxu0
    %v332 = vpop.f32.mrb[0].mxu0
    %v333 = vadd.f32 %v173, %v332
    %v334 = vpop.f32.mrb[0].mxu0
    %335 = vmatprep.mubr.bf16.mxu0 0
    %336 = vmatmul.mubr.bf16.gmra.mrb[0].mxu0 %v130
    %v337 = vpop.f32.mrb[0].mxu0
    %v338 = vadd.f32 %v173, %v337
    %v339 = vpop.f32.mrb[0].mxu0
    %v340 = vpop.f32.mrb[0].mxu0
    %v341 = vadd.f32 %v173, %v340
    %v342 = vpop.f32.mrb[0].mxu0
    %343 = vmatprep.mubr.bf16.mxu0 0
    %344 = vmatmul.mubr.bf16.gmra.mrb[0].mxu0 %v131
    %v345 = vpop.f32.mrb[0].mxu0
    %v346 = vadd.f32 %v173, %v345
    %v347 = vpop.f32.mrb[0].mxu0
    %v348 = vpop.f32.mrb[0].mxu0
    %v349 = vadd.f32 %v173, %v348
    %v350 = vpop.f32.mrb[0].mxu0
    %351 = vmatprep.mubr.bf16.mxu0 0
    %352 = vmatmul.mubr.bf16.gmra.mrb[0].mxu0 %v132
    %v353 = vpop.f32.mrb[0].mxu0
    %v354 = vadd.f32 %v173, %v353
    %v355 = vpop.f32.mrb[0].mxu0
    %v356 = vpop.f32.mrb[0].mxu0
    %v357 = vadd.f32 %v173, %v356
    %v358 = vpop.f32.mrb[0].mxu0
    %359 = vmatprep.mubr.bf16.mxu0 0
    %360 = vmatmul.mubr.bf16.gmra.mrb[0].mxu0 %v133
    %v361 = vpop.f32.mrb[0].mxu0
    %v362 = vadd.f32 %v173, %v361
    %v363 = vpop.f32.mrb[0].mxu0
    %v364 = vpop.f32.mrb[0].mxu0
    %v365 = vadd.f32 %v173, %v364
    %v366 = vpop.f32.mrb[0].mxu0
    %367 = vmatprep.mubr.bf16.mxu0 0
    %368 = vmatmul.mubr.bf16.gmra.mrb[0].mxu0 %v134
    %v369 = vpop.f32.mrb[0].mxu0
    %v370 = vadd.f32 %v173, %v369
    %v371 = vpop.f32.mrb[0].mxu0
    %v372 = vpop.f32.mrb[0].mxu0
    %v373 = vadd.f32 %v173, %v372
    %v374 = vpop.f32.mrb[0].mxu0
    %375 = vmatprep.mubr.bf16.mxu0 0
    %376 = vmatmul.mubr.bf16.gmra.mrb[0].mxu0 %v135
    %v377 = vpop.f32.mrb[0].mxu0
    %v378 = vadd.f32 %v173, %v377
    %v379 = vpop.f32.mrb[0].mxu0
    %v380 = vpop.f32.mrb[0].mxu0
    %v381 = vadd.f32 %v173, %v380
    %v382 = vpop.f32.mrb[0].mxu0
    %383 = vmatprep.mubr.bf16.mxu0 0
    %384 = vmatmul.mubr.bf16.gmra.mrb[0].mxu0 %v136
    %v385 = vpop.f32.mrb[0].mxu0
    %v386 = vadd.f32 %v173, %v385
    %v387 = vpop.f32.mrb[0].mxu0
    %v388 = vpop.f32.mrb[0].mxu0
    %v389 = vadd.f32 %v173, %v388
    %v390 = vpop.f32.mrb[0].mxu0
    %391 = vmatprep.mubr.bf16.mxu0 0
    %392 = vmatmul.mubr.bf16.gmra.mrb[0].mxu0 %v137
    %v393 = vpop.f32.mrb[0].mxu0
    %v394 = vadd.f32 %v173, %v393
    %v395 = vpop.f32.mrb[0].mxu0
    %v396 = vpop.f32.mrb[0].mxu0
    %v397 = vadd.f32 %v173, %v396
    %v398 = vpop.f32.mrb[0].mxu0
    %399 = vmatprep.mubr.bf16.mxu0 0
    %400 = vmatmul.mubr.bf16.gmra.mrb[0].mxu0 %v138
    %v401 = vpop.f32.mrb[0].mxu0
    %v402 = vadd.f32 %v173, %v401
    %v403 = vpop.f32.mrb[0].mxu0
    %v404 = vpop.f32.mrb[0].mxu0
    %v405 = vadd.f32 %v173, %v404
    %v406 = vpop.f32.mrb[0].mxu0
    %407 = vmatprep.mubr.bf16.mxu0 0
    %408 = vmatmul.mubr.bf16.gmra.mrb[0].mxu0 %v139
    %v409 = vpop.f32.mrb[0].mxu0
    %v410 = vadd.f32 %v173, %v409
    %v411 = vpop.f32.mrb[0].mxu0
    %v412 = vpop.f32.mrb[0].mxu0
    %v413 = vadd.f32 %v173, %v412
    %v414 = vpop.f32.mrb[0].mxu0
    %415 = vmatprep.mubr.bf16.mxu0 0
    %416 = vmatmul.mubr.bf16.gmra.mrb[0].mxu0 %v140
    %v417 = vpop.f32.mrb[0].mxu0
    %v418 = vadd.f32 %v173, %v417
    %v419 = vpop.f32.mrb[0].mxu0
    %v420 = vpop.f32.mrb[0].mxu0
    %v421 = vadd.f32 %v173, %v420
    %v422 = vpop.f32.mrb[0].mxu0
    %423 = vmatprep.mubr.bf16.mxu0 0
    %424 = vmatmul.mubr.bf16.gmra.mrb[0].mxu0 %v141
    %v425 = vpop.f32.mrb[0].mxu0
    %v426 = vadd.f32 %v173, %v425
    %v427 = vpop.f32.mrb[0].mxu0
    %v428 = vpop.f32.mrb[0].mxu0
    %v429 = vadd.f32 %v173, %v428
    %v430 = vpop.f32.mrb[0].mxu0
    %431 = vmatprep.mubr.bf16.mxu0 0
    %432 = vmatmul.mubr.bf16.gmra.mrb[0].mxu0 %v142
    %v433 = vpop.f32.mrb[0].mxu0
    %v434 = vadd.f32 %v173, %v433
    %v435 = vpop.f32.mrb[0].mxu0
    %v436 = vpop.f32.mrb[0].mxu0
    %v437 = vadd.f32 %v173, %v436
    %v438 = vpop.f32.mrb[0].mxu0
    %439 = vmatprep.mubr.bf16.mxu0 0
    %440 = vmatmul.mubr.bf16.gmra.mrb[0].mxu0 %v143
    %v441 = vpop.f32.mrb[0].mxu0
    %v442 = vadd.f32 %v173, %v441
    %v443 = vpop.f32.mrb[0].mxu0
    %v444 = vpop.f32.mrb[0].mxu0
    %v445 = vadd.f32 %v173, %v444
    %v446 = vpop.f32.mrb[0].mxu0
    %447 = vmatprep.mubr.bf16.mxu0 0
    %448 = vmatmul.mubr.bf16.gmra.mrb[0].mxu0 %v144
    %v449 = vpop.f32.mrb[0].mxu0
    %v450 = vadd.f32 %v173, %v449
    %v451 = vpop.f32.mrb[0].mxu0
    %v452 = vpop.f32.mrb[0].mxu0
    %v453 = vadd.f32 %v173, %v452
    %v454 = vpop.f32.mrb[0].mxu0
    %455 = vmatprep.mubr.bf16.mxu0 0
    %456 = vmatmul.mubr.bf16.gmra.mrb[0].mxu0 %v145
    %v457 = vpop.f32.mrb[0].mxu0
    %v458 = vadd.f32 %v173, %v457
    %v459 = vpop.f32.mrb[0].mxu0
    %v460 = vpop.f32.mrb[0].mxu0
    %v461 = vadd.f32 %v173, %v460
    %v462 = vpop.f32.mrb[0].mxu0
    %463 = vmatprep.mubr.bf16.mxu0 0
    %464 = vmatmul.mubr.bf16.gmra.mrb[0].mxu0 %v146
    %v465 = vpop.f32.mrb[0].mxu0
    %v466 = vadd.f32 %v173, %v465
    %v467 = vpop.f32.mrb[0].mxu0
    %v468 = vpop.f32.mrb[0].mxu0
    %v469 = vadd.f32 %v173, %v468
    %v470 = vpop.f32.mrb[0].mxu0
    %471 = vmatprep.mubr.bf16.mxu0 0
    %472 = vmatmul.mubr.bf16.gmra.mrb[0].mxu0 %v147
    %v473 = vpop.f32.mrb[0].mxu0
    %v474 = vadd.f32 %v173, %v473
    %v475 = vpop.f32.mrb[0].mxu0
    %v476 = vpop.f32.mrb[0].mxu0
    %v477 = vadd.f32 %v173, %v476
    %v478 = vpop.f32.mrb[0].mxu0
    %479 = vmatprep.mubr.bf16.mxu0 0
    %480 = vmatmul.mubr.bf16.gmra.mrb[0].mxu0 %v148
    %v481 = vpop.f32.mrb[0].mxu0
    %v482 = vadd.f32 %v173, %v481
    %v483 = vpop.f32.mrb[0].mxu0
    %v484 = vpop.f32.mrb[0].mxu0
    %v485 = vadd.f32 %v173, %v484
    %v486 = vpop.f32.mrb[0].mxu0
    %487 = vmatprep.mubr.bf16.mxu0 0
    %488 = vmatmul.mubr.bf16.gmra.mrb[0].mxu0 %v149
    %v489 = vpop.f32.mrb[0].mxu0
    %v490 = vadd.f32 %v173, %v489
    %v491 = vpop.f32.mrb[0].mxu0
    %v492 = vpop.f32.mrb[0].mxu0
    %v493 = vadd.f32 %v173, %v492
    %v494 = vpop.f32.mrb[0].mxu0
    %495 = vmatprep.mubr.bf16.mxu0 0
    %496 = vmatmul.mubr.bf16.gmra.mrb[0].mxu0 %v150
    %v497 = vpop.f32.mrb[0].mxu0
    %v498 = vadd.f32 %v173, %v497
    %v499 = vpop.f32.mrb[0].mxu0
    %v500 = vpop.f32.mrb[0].mxu0
    %v501 = vadd.f32 %v173, %v500
    %v502 = vpop.f32.mrb[0].mxu0
    %503 = vmatprep.mubr.bf16.mxu0 0
    %504 = vmatmul.mubr.bf16.gmra.mrb[0].mxu0 %v151
    %v505 = vpop.f32.mrb[0].mxu0
    %v506 = vadd.f32 %v173, %v505
    %v507 = vpop.f32.mrb[0].mxu0
    %v508 = vpop.f32.mrb[0].mxu0
    %v509 = vadd.f32 %v173, %v508
    %v510 = vpop.f32.mrb[0].mxu0
    %511 = vdwg.mxu0
    %v512 = vmax.f32 %v258, 0.0
    %v513 = vmax.f32 %v261, 0.0
    %v514 = vmax.f32 %v266, 0.0
    %v515 = vmax.f32 %v269, 0.0
    %v516 = vmax.f32 %v274, 0.0
    %v517 = vmax.f32 %v277, 0.0
    %v518 = vmax.f32 %v282, 0.0
    %v519 = vmax.f32 %v285, 0.0
    %v520 = vmax.f32 %v290, 0.0
    %v521 = vmax.f32 %v293, 0.0
    %v522 = vmax.f32 %v298, 0.0
    %v523 = vmax.f32 %v301, 0.0
    %v524 = vmax.f32 %v306, 0.0
    %v525 = vmax.f32 %v309, 0.0
    %v526 = vmax.f32 %v314, 0.0
    %v527 = vmax.f32 %v317, 0.0
    %v528 = vmax.f32 %v322, 0.0
    %v529 = vmax.f32 %v325, 0.0
    %v530 = vmax.f32 %v330, 0.0
    %v531 = vmax.f32 %v333, 0.0
    %v532 = vmax.f32 %v338, 0.0
    %v533 = vmax.f32 %v341, 0.0
    %v534 = vmax.f32 %v346, 0.0
    %v535 = vmax.f32 %v349, 0.0
    %v536 = vmax.f32 %v354, 0.0
    %v537 = vmax.f32 %v357, 0.0
    %v538 = vmax.f32 %v362, 0.0
    %v539 = vmax.f32 %v365, 0.0
    %v540 = vmax.f32 %v370, 0.0
    %v541 = vmax.f32 %v373, 0.0
    %v542 = vmax.f32 %v378, 0.0
    %v543 = vmax.f32 %v381, 0.0
    %v544 = vmax.f32 %v386, 0.0
    %v545 = vmax.f32 %v389, 0.0
    %v546 = vmax.f32 %v394, 0.0
    %v547 = vmax.f32 %v397, 0.0
    %v548 = vmax.f32 %v402, 0.0
    %v549 = vmax.f32 %v405, 0.0
    %v550 = vmax.f32 %v410, 0.0
    %v551 = vmax.f32 %v413, 0.0
    %v552 = vmax.f32 %v418, 0.0
    %v553 = vmax.f32 %v421, 0.0
    %v554 = vmax.f32 %v426, 0.0
    %v555 = vmax.f32 %v429, 0.0
    %v556 = vmax.f32 %v434, 0.0
    %v557 = vmax.f32 %v437, 0.0
    %v558 = vmax.f32 %v442, 0.0
    %v559 = vmax.f32 %v445, 0.0
    %v560 = vmax.f32 %v450, 0.0
    %v561 = vmax.f32 %v453, 0.0
    %v562 = vmax.f32 %v458, 0.0
    %v563 = vmax.f32 %v461, 0.0
    %v564 = vmax.f32 %v466, 0.0
    %v565 = vmax.f32 %v469, 0.0
    %v566 = vmax.f32 %v474, 0.0
    %v567 = vmax.f32 %v477, 0.0
    %v568 = vmax.f32 %v482, 0.0
    %v569 = vmax.f32 %v485, 0.0
    %v570 = vmax.f32 %v490, 0.0
    %v571 = vmax.f32 %v493, 0.0
    %v572 = vmax.f32 %v498, 0.0
    %v573 = vmax.f32 %v501, 0.0
    %v574 = vmax.f32 %v506, 0.0
    %v575 = vmax.f32 %v509, 0.0
    %v576 = vpack.c.bf16 %v513, %v512
    %v577 = vpack.c.bf16 %v515, %v514
    %v578 = vpack.c.bf16 %v517, %v516
    %v579 = vpack.c.bf16 %v519, %v518
    %v580 = vpack.c.bf16 %v521, %v520
    %v581 = vpack.c.bf16 %v523, %v522
    %v582 = vpack.c.bf16 %v525, %v524
    %v583 = vpack.c.bf16 %v527, %v526
    %v584 = vpack.c.bf16 %v529, %v528
    %v585 = vpack.c.bf16 %v531, %v530
    %v586 = vpack.c.bf16 %v533, %v532
    %v587 = vpack.c.bf16 %v535, %v534
    %v588 = vpack.c.bf16 %v537, %v536
    %v589 = vpack.c.bf16 %v539, %v538
    %v590 = vpack.c.bf16 %v541, %v540
    %v591 = vpack.c.bf16 %v543, %v542
    %v592 = vpack.c.bf16 %v545, %v544
    %v593 = vpack.c.bf16 %v547, %v546
    %v594 = vpack.c.bf16 %v549, %v548
    %v595 = vpack.c.bf16 %v551, %v550
    %v596 = vpack.c.bf16 %v553, %v552
    %v597 = vpack.c.bf16 %v555, %v554
    %v598 = vpack.c.bf16 %v557, %v556
    %v599 = vpack.c.bf16 %v559, %v558
    %v600 = vpack.c.bf16 %v561, %v560
    %v601 = vpack.c.bf16 %v563, %v562
    %v602 = vpack.c.bf16 %v565, %v564
    %v603 = vpack.c.bf16 %v567, %v566
    %v604 = vpack.c.bf16 %v569, %v568
    %v605 = vpack.c.bf16 %v571, %v570
    %v606 = vpack.c.bf16 %v573, %v572
    %v607 = vpack.c.bf16 %v575, %v574
    %v609 = vshrl.u32 %v576, 16
    %v611 = vrot.slane %v609, 7
    %v612 = vshll.u32 %v576, 16
    %v614 = vor.u32 %v611, %v612
    %v616 = vshrl.u32 %v577, 16
    %v618 = vrot.slane %v616, 7
    %v619 = vshll.u32 %v577, 16
    %v621 = vor.u32 %v618, %v619
    %v623 = vshrl.u32 %v578, 16
    %v625 = vrot.slane %v623, 7
    %v626 = vshll.u32 %v578, 16
    %v628 = vor.u32 %v625, %v626
    %v630 = vshrl.u32 %v579, 16
    %v632 = vrot.slane %v630, 7
    %v633 = vshll.u32 %v579, 16
    %v635 = vor.u32 %v632, %v633
    %v637 = vshrl.u32 %v580, 16
    %v639 = vrot.slane %v637, 7
    %v640 = vshll.u32 %v580, 16
    %v642 = vor.u32 %v639, %v640
    %v644 = vshrl.u32 %v581, 16
    %v646 = vrot.slane %v644, 7
    %v647 = vshll.u32 %v581, 16
    %v649 = vor.u32 %v646, %v647
    %v651 = vshrl.u32 %v582, 16
    %v653 = vrot.slane %v651, 7
    %v654 = vshll.u32 %v582, 16
    %v656 = vor.u32 %v653, %v654
    %v658 = vshrl.u32 %v583, 16
    %v660 = vrot.slane %v658, 7
    %v661 = vshll.u32 %v583, 16
    %v663 = vor.u32 %v660, %v661
    %v665 = vshrl.u32 %v584, 16
    %v667 = vrot.slane %v665, 7
    %v668 = vshll.u32 %v584, 16
    %v670 = vor.u32 %v667, %v668
    %v672 = vshrl.u32 %v585, 16
    %v674 = vrot.slane %v672, 7
    %v675 = vshll.u32 %v585, 16
    %v677 = vor.u32 %v674, %v675
    %v679 = vshrl.u32 %v586, 16
    %v681 = vrot.slane %v679, 7
    %v682 = vshll.u32 %v586, 16
    %v684 = vor.u32 %v681, %v682
    %v686 = vshrl.u32 %v587, 16
    %v688 = vrot.slane %v686, 7
    %v689 = vshll.u32 %v587, 16
    %v691 = vor.u32 %v688, %v689
    %v693 = vshrl.u32 %v588, 16
    %v695 = vrot.slane %v693, 7
    %v696 = vshll.u32 %v588, 16
    %v698 = vor.u32 %v695, %v696
    %v700 = vshrl.u32 %v589, 16
    %v702 = vrot.slane %v700, 7
    %v703 = vshll.u32 %v589, 16
    %v705 = vor.u32 %v702, %v703
    %v707 = vshrl.u32 %v590, 16
    %v709 = vrot.slane %v707, 7
    %v710 = vshll.u32 %v590, 16
    %v712 = vor.u32 %v709, %v710
    %v714 = vshrl.u32 %v591, 16
    %v716 = vrot.slane %v714, 7
    %v717 = vshll.u32 %v591, 16
    %v719 = vor.u32 %v716, %v717
    %vm752 = vcmask 1040384
    %vm753 = vsmask.f32 256
    %vm754 = vmand %vm752, %vm753
    %v755 = vsel %vm754, 0, %v614
    %v756 = vsel %vm754, 0, %v621
    %v757 = vsel %vm754, 0, %v628
    %v758 = vsel %vm754, 0, %v635
    %v759 = vsel %vm754, 0, %v642
    %v760 = vsel %vm754, 0, %v649
    %v761 = vsel %vm754, 0, %v656
    %v762 = vsel %vm754, 0, %v663
    %v763 = vsel %vm754, 0, %v670
    %v764 = vsel %vm754, 0, %v677
    %v765 = vsel %vm754, 0, %v684
    %v766 = vsel %vm754, 0, %v691
    %v767 = vsel %vm754, 0, %v698
    %v768 = vsel %vm754, 0, %v705
    %v769 = vsel %vm754, 0, %v712
    %v770 = vsel %vm754, 0, %v719
    %v771 = vsel %vm754, %v611, 0
    %v772 = vsel %vm754, %v618, 0
    %v773 = vsel %vm754, %v625, 0
    %v774 = vsel %vm754, %v632, 0
    %v775 = vsel %vm754, %v639, 0
    %v776 = vsel %vm754, %v646, 0
    %v777 = vsel %vm754, %v653, 0
    %v778 = vsel %vm754, %v660, 0
    %v779 = vsel %vm754, %v667, 0
    %v780 = vsel %vm754, %v674, 0
    %v781 = vsel %vm754, %v681, 0
    %v782 = vsel %vm754, %v688, 0
    %v783 = vsel %vm754, %v695, 0
    %v784 = vsel %vm754, %v702, 0
    %v785 = vsel %vm754, %v709, 0
    %v786 = vsel %vm754, %v716, 0
    %v819 = vunpack.c.l.b16 %v755
    %v820 = vunpack.c.h.b16 %v755
    %v821 = vunpack.c.l.b16 %v771
    %v822 = vunpack.c.l.b16 %v756
    %v823 = vunpack.c.h.b16 %v756
    %v824 = vunpack.c.l.b16 %v772
    %v825 = vunpack.c.l.b16 %v757
    %v826 = vunpack.c.h.b16 %v757
    %v827 = vunpack.c.l.b16 %v773
    %v828 = vunpack.c.l.b16 %v758
    %v829 = vunpack.c.h.b16 %v758
    %v830 = vunpack.c.l.b16 %v774
    %v831 = vunpack.c.l.b16 %v759
    %v832 = vunpack.c.h.b16 %v759
    %v833 = vunpack.c.l.b16 %v775
    %v834 = vunpack.c.l.b16 %v760
    %v835 = vunpack.c.h.b16 %v760
    %v836 = vunpack.c.l.b16 %v776
    %v837 = vunpack.c.l.b16 %v761
    %v838 = vunpack.c.h.b16 %v761
    %v839 = vunpack.c.l.b16 %v777
    %v840 = vunpack.c.l.b16 %v762
    %v841 = vunpack.c.h.b16 %v762
    %v842 = vunpack.c.l.b16 %v778
    %v843 = vunpack.c.l.b16 %v763
    %v844 = vunpack.c.h.b16 %v763
    %v845 = vunpack.c.l.b16 %v779
    %v846 = vunpack.c.l.b16 %v764
    %v847 = vunpack.c.h.b16 %v764
    %v848 = vunpack.c.l.b16 %v780
    %v849 = vunpack.c.l.b16 %v765
    %v850 = vunpack.c.h.b16 %v765
    %v851 = vunpack.c.l.b16 %v781
    %v852 = vunpack.c.l.b16 %v766
    %v853 = vunpack.c.h.b16 %v766
    %v854 = vunpack.c.l.b16 %v782
    %v855 = vunpack.c.l.b16 %v767
    %v856 = vunpack.c.h.b16 %v767
    %v857 = vunpack.c.l.b16 %v783
    %v858 = vunpack.c.l.b16 %v768
    %v859 = vunpack.c.h.b16 %v768
    %v860 = vunpack.c.l.b16 %v784
    %v861 = vunpack.c.l.b16 %v769
    %v862 = vunpack.c.h.b16 %v769
    %v863 = vunpack.c.l.b16 %v785
    %v864 = vunpack.c.l.b16 %v770
    %v865 = vunpack.c.h.b16 %v770
    %v866 = vunpack.c.l.b16 %v786
    %v867 = vpack.c.b16 %v819, %v819
    %v868 = vpack.c.b16 %v820, %v820
    %v869 = vpack.c.b16 %v821, %v821
    %v870 = vpack.c.b16 %v822, %v822
    %v871 = vpack.c.b16 %v823, %v823
    %v872 = vpack.c.b16 %v824, %v824
    %v873 = vpack.c.b16 %v825, %v825
    %v874 = vpack.c.b16 %v826, %v826
    %v875 = vpack.c.b16 %v827, %v827
    %v876 = vpack.c.b16 %v828, %v828
    %v877 = vpack.c.b16 %v829, %v829
    %v878 = vpack.c.b16 %v830, %v830
    %v879 = vpack.c.b16 %v831, %v831
    %v880 = vpack.c.b16 %v832, %v832
    %v881 = vpack.c.b16 %v833, %v833
    %v882 = vpack.c.b16 %v834, %v834
    %v883 = vpack.c.b16 %v835, %v835
    %v884 = vpack.c.b16 %v836, %v836
    %v885 = vpack.c.b16 %v837, %v837
    %v886 = vpack.c.b16 %v838, %v838
    %v887 = vpack.c.b16 %v839, %v839
    %v888 = vpack.c.b16 %v840, %v840
    %v889 = vpack.c.b16 %v841, %v841
    %v890 = vpack.c.b16 %v842, %v842
    %v891 = vpack.c.b16 %v843, %v843
    %v892 = vpack.c.b16 %v844, %v844
    %v893 = vpack.c.b16 %v845, %v845
    %v894 = vpack.c.b16 %v846, %v846
    %v895 = vpack.c.b16 %v847, %v847
    %v896 = vpack.c.b16 %v848, %v848
    %v897 = vpack.c.b16 %v849, %v849
    %v898 = vpack.c.b16 %v850, %v850
    %v899 = vpack.c.b16 %v851, %v851
    %v900 = vpack.c.b16 %v852, %v852
    %v901 = vpack.c.b16 %v853, %v853
    %v902 = vpack.c.b16 %v854, %v854
    %v903 = vpack.c.b16 %v855, %v855
    %v904 = vpack.c.b16 %v856, %v856
    %v905 = vpack.c.b16 %v857, %v857
    %v906 = vpack.c.b16 %v858, %v858
    %v907 = vpack.c.b16 %v859, %v859
    %v908 = vpack.c.b16 %v860, %v860
    %v909 = vpack.c.b16 %v861, %v861
    %v910 = vpack.c.b16 %v862, %v862
    %v911 = vpack.c.b16 %v863, %v863
    %v912 = vpack.c.b16 %v864, %v864
    %v913 = vpack.c.b16 %v865, %v865
    %v914 = vpack.c.b16 %v866, %v866
    %s963 = scalar_lea.vmem [#allocation2], 12
    %vm964 = vcmask 257024
    %965 = vst.msk [vmem:[%s963] sm:$0xf] %vm964, %v867
    %966 = vst.msk [vmem:[%s963 + $0x4] sm:$0xf] %vm964, %v868
    %vm967 = vcmask 253952
    %968 = vst.msk [vmem:[%s963 + $0x8] sm:$0x1] %vm967, %v869
    %969 = vst.msk [vmem:[%s963 + $0xc] sm:$0xf] %vm964, %v870
    %970 = vst.msk [vmem:[%s963 + $0x10] sm:$0xf] %vm964, %v871
    %971 = vst.msk [vmem:[%s963 + $0x14] sm:$0x1] %vm967, %v872
    %972 = vst.msk [vmem:[%s963 + $0x18] sm:$0xf] %vm964, %v873
    %973 = vst.msk [vmem:[%s963 + $0x1c] sm:$0xf] %vm964, %v874
    %974 = vst.msk [vmem:[%s963 + $0x20] sm:$0x1] %vm967, %v875
    %975 = vst.msk [vmem:[%s963 + $0x24] sm:$0xf] %vm964, %v876
    %976 = vst.msk [vmem:[%s963 + $0x28] sm:$0xf] %vm964, %v877
    %977 = vst.msk [vmem:[%s963 + $0x2c] sm:$0x1] %vm967, %v878
    %978 = vst.msk [vmem:[%s963 + $0x30] sm:$0xf] %vm964, %v879
    %979 = vst.msk [vmem:[%s963 + $0x34] sm:$0xf] %vm964, %v880
    %980 = vst.msk [vmem:[%s963 + $0x38] sm:$0x1] %vm967, %v881
    %981 = vst.msk [vmem:[%s963 + $0x3c] sm:$0xf] %vm964, %v882
    %982 = vst.msk [vmem:[%s963 + $0x40] sm:$0xf] %vm964, %v883
    %983 = vst.msk [vmem:[%s963 + $0x44] sm:$0x1] %vm967, %v884
    %984 = vst.msk [vmem:[%s963 + $0x48] sm:$0xf] %vm964, %v885
    %985 = vst.msk [vmem:[%s963 + $0x4c] sm:$0xf] %vm964, %v886
    %986 = vst.msk [vmem:[%s963 + $0x50] sm:$0x1] %vm967, %v887
    %987 = vst.msk [vmem:[%s963 + $0x54] sm:$0xf] %vm964, %v888
    %988 = vst.msk [vmem:[%s963 + $0x58] sm:$0xf] %vm964, %v889
    %989 = vst.msk [vmem:[%s963 + $0x5c] sm:$0x1] %vm967, %v890
    %990 = vst.msk [vmem:[%s963 + $0x60] sm:$0xf] %vm964, %v891
    %991 = vst.msk [vmem:[%s963 + $0x64] sm:$0xf] %vm964, %v892
    %992 = vst.msk [vmem:[%s963 + $0x68] sm:$0x1] %vm967, %v893
    %993 = vst.msk [vmem:[%s963 + $0x6c] sm:$0xf] %vm964, %v894
    %994 = vst.msk [vmem:[%s963 + $0x70] sm:$0xf] %vm964, %v895
    %995 = vst.msk [vmem:[%s963 + $0x74] sm:$0x1] %vm967, %v896
    %996 = vst.msk [vmem:[%s963 + $0x78] sm:$0xf] %vm964, %v897
    %997 = vst.msk [vmem:[%s963 + $0x7c] sm:$0xf] %vm964, %v898
    %998 = vst.msk [vmem:[%s963 + $0x80] sm:$0x1] %vm967, %v899
    %999 = vst.msk [vmem:[%s963 + $0x84] sm:$0xf] %vm964, %v900
    %1000 = vst.msk [vmem:[%s963 + $0x88] sm:$0xf] %vm964, %v901
    %1001 = vst.msk [vmem:[%s963 + $0x8c] sm:$0x1] %vm967, %v902
    %1002 = vst.msk [vmem:[%s963 + $0x90] sm:$0xf] %vm964, %v903
    %1003 = vst.msk [vmem:[%s963 + $0x94] sm:$0xf] %vm964, %v904
    %1004 = vst.msk [vmem:[%s963 + $0x98] sm:$0x1] %vm967, %v905
    %1005 = vst.msk [vmem:[%s963 + $0x9c] sm:$0xf] %vm964, %v906
    %1006 = vst.msk [vmem:[%s963 + $0xa0] sm:$0xf] %vm964, %v907
    %1007 = vst.msk [vmem:[%s963 + $0xa4] sm:$0x1] %vm967, %v908
    %1008 = vst.msk [vmem:[%s963 + $0xa8] sm:$0xf] %vm964, %v909
    %1009 = vst.msk [vmem:[%s963 + $0xac] sm:$0xf] %vm964, %v910
    %1010 = vst.msk [vmem:[%s963 + $0xb0] sm:$0x1] %vm967, %v911
    %1011 = vst.msk [vmem:[%s963 + $0xb4] sm:$0xf] %vm964, %v912
    %1012 = vst.msk [vmem:[%s963 + $0xb8] sm:$0xf] %vm964, %v913
    %1013 = vst.msk [vmem:[%s963 + $0xbc] sm:$0x1] %vm967, %v914
    %1014 = vst.msk [vmem:[#allocation2] sm:$0xf] %vm964, 0
    %1015 = vst.msk [vmem:[#allocation2 + $0x4] sm:$0xf] %vm964, 0
    %1016 = vst.msk [vmem:[#allocation2 + $0x8] sm:$0x1] %vm967, 0
    %s1017 = scalar_lea.vmem [#allocation2], 204
    %1018 = vst.msk [vmem:[%s1017] sm:$0xf] %vm964, 0
    %1019 = vst.msk [vmem:[%s1017 + $0x4] sm:$0xf] %vm964, 0
    %1020 = vst.msk [vmem:[%s1017 + $0x8] sm:$0x1] %vm967, 0
    %v1022 = vshrl.u32 %v592, 16
    %v1024 = vrot.slane %v1022, 7
    %v1025 = vshll.u32 %v592, 16
    %v1027 = vor.u32 %v1024, %v1025
    %v1029 = vshrl.u32 %v593, 16
    %v1031 = vrot.slane %v1029, 7
    %v1032 = vshll.u32 %v593, 16
    %v1034 = vor.u32 %v1031, %v1032
    %v1036 = vshrl.u32 %v594, 16
    %v1038 = vrot.slane %v1036, 7
    %v1039 = vshll.u32 %v594, 16
    %v1041 = vor.u32 %v1038, %v1039
    %v1043 = vshrl.u32 %v595, 16
    %v1045 = vrot.slane %v1043, 7
    %v1046 = vshll.u32 %v595, 16
    %v1048 = vor.u32 %v1045, %v1046
    %v1050 = vshrl.u32 %v596, 16
    %v1052 = vrot.slane %v1050, 7
    %v1053 = vshll.u32 %v596, 16
    %v1055 = vor.u32 %v1052, %v1053
    %v1057 = vshrl.u32 %v597, 16
    %v1059 = vrot.slane %v1057, 7
    %v1060 = vshll.u32 %v597, 16
    %v1062 = vor.u32 %v1059, %v1060
    %v1064 = vshrl.u32 %v598, 16
    %v1066 = vrot.slane %v1064, 7
    %v1067 = vshll.u32 %v598, 16
    %v1069 = vor.u32 %v1066, %v1067
    %v1071 = vshrl.u32 %v599, 16
    %v1073 = vrot.slane %v1071, 7
    %v1074 = vshll.u32 %v599, 16
    %v1076 = vor.u32 %v1073, %v1074
    %v1078 = vshrl.u32 %v600, 16
    %v1080 = vrot.slane %v1078, 7
    %v1081 = vshll.u32 %v600, 16
    %v1083 = vor.u32 %v1080, %v1081
    %v1085 = vshrl.u32 %v601, 16
    %v1087 = vrot.slane %v1085, 7
    %v1088 = vshll.u32 %v601, 16
    %v1090 = vor.u32 %v1087, %v1088
    %v1092 = vshrl.u32 %v602, 16
    %v1094 = vrot.slane %v1092, 7
    %v1095 = vshll.u32 %v602, 16
    %v1097 = vor.u32 %v1094, %v1095
    %v1099 = vshrl.u32 %v603, 16
    %v1101 = vrot.slane %v1099, 7
    %v1102 = vshll.u32 %v603, 16
    %v1104 = vor.u32 %v1101, %v1102
    %v1106 = vshrl.u32 %v604, 16
    %v1108 = vrot.slane %v1106, 7
    %v1109 = vshll.u32 %v604, 16
    %v1111 = vor.u32 %v1108, %v1109
    %v1113 = vshrl.u32 %v605, 16
    %v1115 = vrot.slane %v1113, 7
    %v1116 = vshll.u32 %v605, 16
    %v1118 = vor.u32 %v1115, %v1116
    %v1120 = vshrl.u32 %v606, 16
    %v1122 = vrot.slane %v1120, 7
    %v1123 = vshll.u32 %v606, 16
    %v1125 = vor.u32 %v1122, %v1123
    %v1127 = vshrl.u32 %v607, 16
    %v1129 = vrot.slane %v1127, 7
    %v1130 = vshll.u32 %v607, 16
    %v1132 = vor.u32 %v1129, %v1130
    %v1165 = vsel %vm754, 0, %v1027
    %v1166 = vsel %vm754, 0, %v1034
    %v1167 = vsel %vm754, 0, %v1041
    %v1168 = vsel %vm754, 0, %v1048
    %v1169 = vsel %vm754, 0, %v1055
    %v1170 = vsel %vm754, 0, %v1062
    %v1171 = vsel %vm754, 0, %v1069
    %v1172 = vsel %vm754, 0, %v1076
    %v1173 = vsel %vm754, 0, %v1083
    %v1174 = vsel %vm754, 0, %v1090
    %v1175 = vsel %vm754, 0, %v1097
    %v1176 = vsel %vm754, 0, %v1104
    %v1177 = vsel %vm754, 0, %v1111
    %v1178 = vsel %vm754, 0, %v1118
    %v1179 = vsel %vm754, 0, %v1125
    %v1180 = vsel %vm754, 0, %v1132
    %v1181 = vsel %vm754, %v1024, 0
    %v1182 = vsel %vm754, %v1031, 0
    %v1183 = vsel %vm754, %v1038, 0
    %v1184 = vsel %vm754, %v1045, 0
    %v1185 = vsel %vm754, %v1052, 0
    %v1186 = vsel %vm754, %v1059, 0
    %v1187 = vsel %vm754, %v1066, 0
    %v1188 = vsel %vm754, %v1073, 0
    %v1189 = vsel %vm754, %v1080, 0
    %v1190 = vsel %vm754, %v1087, 0
    %v1191 = vsel %vm754, %v1094, 0
    %v1192 = vsel %vm754, %v1101, 0
    %v1193 = vsel %vm754, %v1108, 0
    %v1194 = vsel %vm754, %v1115, 0
    %v1195 = vsel %vm754, %v1122, 0
    %v1196 = vsel %vm754, %v1129, 0
    %v1229 = vunpack.c.l.b16 %v1165
    %v1230 = vunpack.c.h.b16 %v1165
    %v1231 = vunpack.c.l.b16 %v1181
    %v1232 = vunpack.c.l.b16 %v1166
    %v1233 = vunpack.c.h.b16 %v1166
    %v1234 = vunpack.c.l.b16 %v1182
    %v1235 = vunpack.c.l.b16 %v1167
    %v1236 = vunpack.c.h.b16 %v1167
    %v1237 = vunpack.c.l.b16 %v1183
    %v1238 = vunpack.c.l.b16 %v1168
    %v1239 = vunpack.c.h.b16 %v1168
    %v1240 = vunpack.c.l.b16 %v1184
    %v1241 = vunpack.c.l.b16 %v1169
    %v1242 = vunpack.c.h.b16 %v1169
    %v1243 = vunpack.c.l.b16 %v1185
    %v1244 = vunpack.c.l.b16 %v1170
    %v1245 = vunpack.c.h.b16 %v1170
    %v1246 = vunpack.c.l.b16 %v1186
    %v1247 = vunpack.c.l.b16 %v1171
    %v1248 = vunpack.c.h.b16 %v1171
    %v1249 = vunpack.c.l.b16 %v1187
    %v1250 = vunpack.c.l.b16 %v1172
    %v1251 = vunpack.c.h.b16 %v1172
    %v1252 = vunpack.c.l.b16 %v1188
    %v1253 = vunpack.c.l.b16 %v1173
    %v1254 = vunpack.c.h.b16 %v1173
    %v1255 = vunpack.c.l.b16 %v1189
    %v1256 = vunpack.c.l.b16 %v1174
    %v1257 = vunpack.c.h.b16 %v1174
    %v1258 = vunpack.c.l.b16 %v1190
    %v1259 = vunpack.c.l.b16 %v1175
    %v1260 = vunpack.c.h.b16 %v1175
    %v1261 = vunpack.c.l.b16 %v1191
    %v1262 = vunpack.c.l.b16 %v1176
    %v1263 = vunpack.c.h.b16 %v1176
    %v1264 = vunpack.c.l.b16 %v1192
    %v1265 = vunpack.c.l.b16 %v1177
    %v1266 = vunpack.c.h.b16 %v1177
    %v1267 = vunpack.c.l.b16 %v1193
    %v1268 = vunpack.c.l.b16 %v1178
    %v1269 = vunpack.c.h.b16 %v1178
    %v1270 = vunpack.c.l.b16 %v1194
    %v1271 = vunpack.c.l.b16 %v1179
    %v1272 = vunpack.c.h.b16 %v1179
    %v1273 = vunpack.c.l.b16 %v1195
    %v1274 = vunpack.c.l.b16 %v1180
    %v1275 = vunpack.c.h.b16 %v1180
    %v1276 = vunpack.c.l.b16 %v1196
    %v1277 = vpack.c.b16 %v1229, %v1229
    %v1278 = vpack.c.b16 %v1230, %v1230
    %v1279 = vpack.c.b16 %v1231, %v1231
    %v1280 = vpack.c.b16 %v1232, %v1232
    %v1281 = vpack.c.b16 %v1233, %v1233
    %v1282 = vpack.c.b16 %v1234, %v1234
    %v1283 = vpack.c.b16 %v1235, %v1235
    %v1284 = vpack.c.b16 %v1236, %v1236
    %v1285 = vpack.c.b16 %v1237, %v1237
    %v1286 = vpack.c.b16 %v1238, %v1238
    %v1287 = vpack.c.b16 %v1239, %v1239
    %v1288 = vpack.c.b16 %v1240, %v1240
    %v1289 = vpack.c.b16 %v1241, %v1241
    %v1290 = vpack.c.b16 %v1242, %v1242
    %v1291 = vpack.c.b16 %v1243, %v1243
    %v1292 = vpack.c.b16 %v1244, %v1244
    %v1293 = vpack.c.b16 %v1245, %v1245
    %v1294 = vpack.c.b16 %v1246, %v1246
    %v1295 = vpack.c.b16 %v1247, %v1247
    %v1296 = vpack.c.b16 %v1248, %v1248
    %v1297 = vpack.c.b16 %v1249, %v1249
    %v1298 = vpack.c.b16 %v1250, %v1250
    %v1299 = vpack.c.b16 %v1251, %v1251
    %v1300 = vpack.c.b16 %v1252, %v1252
    %v1301 = vpack.c.b16 %v1253, %v1253
    %v1302 = vpack.c.b16 %v1254, %v1254
    %v1303 = vpack.c.b16 %v1255, %v1255
    %v1304 = vpack.c.b16 %v1256, %v1256
    %v1305 = vpack.c.b16 %v1257, %v1257
    %v1306 = vpack.c.b16 %v1258, %v1258
    %v1307 = vpack.c.b16 %v1259, %v1259
    %v1308 = vpack.c.b16 %v1260, %v1260
    %v1309 = vpack.c.b16 %v1261, %v1261
    %v1310 = vpack.c.b16 %v1262, %v1262
    %v1311 = vpack.c.b16 %v1263, %v1263
    %v1312 = vpack.c.b16 %v1264, %v1264
    %v1313 = vpack.c.b16 %v1265, %v1265
    %v1314 = vpack.c.b16 %v1266, %v1266
    %v1315 = vpack.c.b16 %v1267, %v1267
    %v1316 = vpack.c.b16 %v1268, %v1268
    %v1317 = vpack.c.b16 %v1269, %v1269
    %v1318 = vpack.c.b16 %v1270, %v1270
    %v1319 = vpack.c.b16 %v1271, %v1271
    %v1320 = vpack.c.b16 %v1272, %v1272
    %v1321 = vpack.c.b16 %v1273, %v1273
    %v1322 = vpack.c.b16 %v1274, %v1274
    %v1323 = vpack.c.b16 %v1275, %v1275
    %v1324 = vpack.c.b16 %v1276, %v1276
    %s1373 = scalar_lea.vmem [#allocation2], 228
    %1374 = vst.msk [vmem:[%s1373] sm:$0xf] %vm964, %v1277
    %1375 = vst.msk [vmem:[%s1373 + $0x4] sm:$0xf] %vm964, %v1278
    %1376 = vst.msk [vmem:[%s1373 + $0x8] sm:$0x1] %vm967, %v1279
    %1377 = vst.msk [vmem:[%s1373 + $0xc] sm:$0xf] %vm964, %v1280
    %1378 = vst.msk [vmem:[%s1373 + $0x10] sm:$0xf] %vm964, %v1281
    %1379 = vst.msk [vmem:[%s1373 + $0x14] sm:$0x1] %vm967, %v1282
    %1380 = vst.msk [vmem:[%s1373 + $0x18] sm:$0xf] %vm964, %v1283
    %1381 = vst.msk [vmem:[%s1373 + $0x1c] sm:$0xf] %vm964, %v1284
    %1382 = vst.msk [vmem:[%s1373 + $0x20] sm:$0x1] %vm967, %v1285
    %1383 = vst.msk [vmem:[%s1373 + $0x24] sm:$0xf] %vm964, %v1286
    %1384 = vst.msk [vmem:[%s1373 + $0x28] sm:$0xf] %vm964, %v1287
    %1385 = vst.msk [vmem:[%s1373 + $0x2c] sm:$0x1] %vm967, %v1288
    %1386 = vst.msk [vmem:[%s1373 + $0x30] sm:$0xf] %vm964, %v1289
    %1387 = vst.msk [vmem:[%s1373 + $0x34] sm:$0xf] %vm964, %v1290
    %1388 = vst.msk [vmem:[%s1373 + $0x38] sm:$0x1] %vm967, %v1291
    %1389 = vst.msk [vmem:[%s1373 + $0x3c] sm:$0xf] %vm964, %v1292
    %1390 = vst.msk [vmem:[%s1373 + $0x40] sm:$0xf] %vm964, %v1293
    %1391 = vst.msk [vmem:[%s1373 + $0x44] sm:$0x1] %vm967, %v1294
    %1392 = vst.msk [vmem:[%s1373 + $0x48] sm:$0xf] %vm964, %v1295
    %1393 = vst.msk [vmem:[%s1373 + $0x4c] sm:$0xf] %vm964, %v1296
    %1394 = vst.msk [vmem:[%s1373 + $0x50] sm:$0x1] %vm967, %v1297
    %1395 = vst.msk [vmem:[%s1373 + $0x54] sm:$0xf] %vm964, %v1298
    %1396 = vst.msk [vmem:[%s1373 + $0x58] sm:$0xf] %vm964, %v1299
    %1397 = vst.msk [vmem:[%s1373 + $0x5c] sm:$0x1] %vm967, %v1300
    %1398 = vst.msk [vmem:[%s1373 + $0x60] sm:$0xf] %vm964, %v1301
    %1399 = vst.msk [vmem:[%s1373 + $0x64] sm:$0xf] %vm964, %v1302
    %1400 = vst.msk [vmem:[%s1373 + $0x68] sm:$0x1] %vm967, %v1303
    %1401 = vst.msk [vmem:[%s1373 + $0x6c] sm:$0xf] %vm964, %v1304
    %1402 = vst.msk [vmem:[%s1373 + $0x70] sm:$0xf] %vm964, %v1305
    %1403 = vst.msk [vmem:[%s1373 + $0x74] sm:$0x1] %vm967, %v1306
    %1404 = vst.msk [vmem:[%s1373 + $0x78] sm:$0xf] %vm964, %v1307
    %1405 = vst.msk [vmem:[%s1373 + $0x7c] sm:$0xf] %vm964, %v1308
    %1406 = vst.msk [vmem:[%s1373 + $0x80] sm:$0x1] %vm967, %v1309
    %1407 = vst.msk [vmem:[%s1373 + $0x84] sm:$0xf] %vm964, %v1310
    %1408 = vst.msk [vmem:[%s1373 + $0x88] sm:$0xf] %vm964, %v1311
    %1409 = vst.msk [vmem:[%s1373 + $0x8c] sm:$0x1] %vm967, %v1312
    %1410 = vst.msk [vmem:[%s1373 + $0x90] sm:$0xf] %vm964, %v1313
    %1411 = vst.msk [vmem:[%s1373 + $0x94] sm:$0xf] %vm964, %v1314
    %1412 = vst.msk [vmem:[%s1373 + $0x98] sm:$0x1] %vm967, %v1315
    %1413 = vst.msk [vmem:[%s1373 + $0x9c] sm:$0xf] %vm964, %v1316
    %1414 = vst.msk [vmem:[%s1373 + $0xa0] sm:$0xf] %vm964, %v1317
    %1415 = vst.msk [vmem:[%s1373 + $0xa4] sm:$0x1] %vm967, %v1318
    %1416 = vst.msk [vmem:[%s1373 + $0xa8] sm:$0xf] %vm964, %v1319
    %1417 = vst.msk [vmem:[%s1373 + $0xac] sm:$0xf] %vm964, %v1320
    %1418 = vst.msk [vmem:[%s1373 + $0xb0] sm:$0x1] %vm967, %v1321
    %1419 = vst.msk [vmem:[%s1373 + $0xb4] sm:$0xf] %vm964, %v1322
    %1420 = vst.msk [vmem:[%s1373 + $0xb8] sm:$0xf] %vm964, %v1323
    %1421 = vst.msk [vmem:[%s1373 + $0xbc] sm:$0x1] %vm967, %v1324
    %s1422 = scalar_lea.vmem [#allocation2], 216
    %1423 = vst.msk [vmem:[%s1422] sm:$0xf] %vm964, 0
    %1424 = vst.msk [vmem:[%s1422 + $0x4] sm:$0xf] %vm964, 0
    %1425 = vst.msk [vmem:[%s1422 + $0x8] sm:$0x1] %vm967, 0
    %s1426 = scalar_lea.vmem [#allocation2], 420
    %1427 = vst.msk [vmem:[%s1426] sm:$0xf] %vm964, 0
    %1428 = vst.msk [vmem:[%s1426 + $0x4] sm:$0xf] %vm964, 0
    %1429 = vst.msk [vmem:[%s1426 + $0x8] sm:$0x1] %vm967, 0
    %v1430 = vld [vmem:[%s4] sm:$0x1]
    %v1431 = vld [vmem:[%s6] sm:$0x1]
    %s1432 = smul.u32 0, 3
    %s1433 = smul.addr %s1432, 4
    %s1434 = scalar_lea.vmem [#allocation2], %s1433
    %v1435 = vld [vmem:[%s1434] sm:$0xf]
    %v1436 = vld [vmem:[%s1434 + $0x4] sm:$0xf]
    %v1437 = vld [vmem:[%s1434 + $0x8] sm:$0x1]
    %v1438 = vld [vmem:[%s1434 + $0xc] sm:$0xf]
    %v1439 = vld [vmem:[%s1434 + $0x10] sm:$0xf]
    %v1440 = vld [vmem:[%s1434 + $0x14] sm:$0x1]
    %v1441 = vld [vmem:[%s1434 + $0x18] sm:$0xf]
    %v1442 = vld [vmem:[%s1434 + $0x1c] sm:$0xf]
    %v1443 = vld [vmem:[%s1434 + $0x20] sm:$0x1]
    %v1444 = vld [vmem:[%s1434 + $0x24] sm:$0xf]
    %v1445 = vld [vmem:[%s1434 + $0x28] sm:$0xf]
    %v1446 = vld [vmem:[%s1434 + $0x2c] sm:$0x1]
    %v1447 = vld [vmem:[%s1434 + $0x30] sm:$0xf]
    %v1448 = vld [vmem:[%s1434 + $0x34] sm:$0xf]
    %v1449 = vld [vmem:[%s1434 + $0x38] sm:$0x1]
    %v1450 = vld [vmem:[%s1434 + $0x3c] sm:$0xf]
    %v1451 = vld [vmem:[%s1434 + $0x40] sm:$0xf]
    %v1452 = vld [vmem:[%s1434 + $0x44] sm:$0x1]
    %v1453 = vld [vmem:[%s1434 + $0x48] sm:$0xf]
    %v1454 = vld [vmem:[%s1434 + $0x4c] sm:$0xf]
    %v1455 = vld [vmem:[%s1434 + $0x50] sm:$0x1]
    %v1456 = vld [vmem:[%s1434 + $0x54] sm:$0xf]
    %v1457 = vld [vmem:[%s1434 + $0x58] sm:$0xf]
    %v1458 = vld [vmem:[%s1434 + $0x5c] sm:$0x1]
    %v1459 = vld [vmem:[%s1434 + $0x60] sm:$0xf]
    %v1460 = vld [vmem:[%s1434 + $0x64] sm:$0xf]
    %v1461 = vld [vmem:[%s1434 + $0x68] sm:$0x1]
    %v1462 = vld [vmem:[%s1434 + $0x6c] sm:$0xf]
    %v1463 = vld [vmem:[%s1434 + $0x70] sm:$0xf]
    %v1464 = vld [vmem:[%s1434 + $0x74] sm:$0x1]
    %v1465 = vld [vmem:[%s1434 + $0x78] sm:$0xf]
    %v1466 = vld [vmem:[%s1434 + $0x7c] sm:$0xf]
    %v1467 = vld [vmem:[%s1434 + $0x80] sm:$0x1]
    %v1468 = vld [vmem:[%s1434 + $0x84] sm:$0xf]
    %v1469 = vld [vmem:[%s1434 + $0x88] sm:$0xf]
    %v1470 = vld [vmem:[%s1434 + $0x8c] sm:$0x1]
    %v1471 = vld [vmem:[%s1434 + $0x90] sm:$0xf]
    %v1472 = vld [vmem:[%s1434 + $0x94] sm:$0xf]
    %v1473 = vld [vmem:[%s1434 + $0x98] sm:$0x1]
    %v1474 = vld [vmem:[%s1434 + $0x9c] sm:$0xf]
    %v1475 = vld [vmem:[%s1434 + $0xa0] sm:$0xf]
    %v1476 = vld [vmem:[%s1434 + $0xa4] sm:$0x1]
    %v1477 = vld [vmem:[%s1434 + $0xa8] sm:$0xf]
    %v1478 = vld [vmem:[%s1434 + $0xac] sm:$0xf]
    %v1479 = vld [vmem:[%s1434 + $0xb0] sm:$0x1]
    %v1480 = vld [vmem:[%s1434 + $0xb4] sm:$0xf]
    %v1481 = vld [vmem:[%s1434 + $0xb8] sm:$0xf]
    %v1482 = vld [vmem:[%s1434 + $0xbc] sm:$0x1]
    %v1483 = vld [vmem:[%s1434 + $0xc0] sm:$0xf]
    %v1484 = vld [vmem:[%s1434 + $0xc4] sm:$0xf]
    %v1485 = vld [vmem:[%s1434 + $0xc8] sm:$0x1]
    %v1486 = vld [vmem:[%s1434 + $0xcc] sm:$0xf]
    %v1487 = vld [vmem:[%s1434 + $0xd0] sm:$0xf]
    %v1488 = vld [vmem:[%s1434 + $0xd4] sm:$0x1]
    %v1489 = vld [vmem:[#allocation6] sm:$0xf]
    %v1490 = vld [vmem:[#allocation6 + $0x4] sm:$0xf]
    %v1491 = vld [vmem:[#allocation6 + $0x8] sm:$0xf]
    %v1492 = vld [vmem:[#allocation6 + $0xc] sm:$0xf]
    %vm1493 = vsmask.f32 3328
    %vm1494 = vsmask.f32 7440
    %vm1495 = vmor %vm1493, %vm1494
    %v1497 = vshrl.u32 %v1435, 16
    %v1499 = vrot.slane %v1497, 4
    %v1500 = vshll.u32 %v1435, 16
    %v1502 = vrot.slane %v1500, 5
    %v1503 = vor.u32 %v1499, %v1502
    %v1504 = vrot.slane %v1503, 4
    %v1506 = vshll.u32 %v1436, 16
    %v1508 = vrot.slane %v1506, 5
    %v1509 = vsel %vm1495, %v1504, %v1508
    %v1510 = vshrl.u32 %v1436, 16
    %v1512 = vrot.slane %v1510, 4
    %v1513 = vor.u32 %v1512, %v1508
    %v1514 = vrot.slane %v1513, 4
    %v1516 = vshll.u32 %v1437, 16
    %v1518 = vrot.slane %v1516, 5
    %v1519 = vsel %vm1495, %v1514, %v1518
    %v1521 = vshrl.u32 %v1438, 16
    %v1523 = vrot.slane %v1521, 4
    %v1524 = vshll.u32 %v1438, 16
    %v1526 = vrot.slane %v1524, 5
    %v1527 = vor.u32 %v1523, %v1526
    %v1528 = vrot.slane %v1527, 4
    %v1530 = vshll.u32 %v1439, 16
    %v1532 = vrot.slane %v1530, 5
    %v1533 = vsel %vm1495, %v1528, %v1532
    %v1534 = vshrl.u32 %v1439, 16
    %v1536 = vrot.slane %v1534, 4
    %v1537 = vor.u32 %v1536, %v1532
    %v1538 = vrot.slane %v1537, 4
    %v1540 = vshll.u32 %v1440, 16
    %v1542 = vrot.slane %v1540, 5
    %v1543 = vsel %vm1495, %v1538, %v1542
    %v1545 = vshrl.u32 %v1441, 16
    %v1547 = vrot.slane %v1545, 4
    %v1548 = vshll.u32 %v1441, 16
    %v1550 = vrot.slane %v1548, 5
    %v1551 = vor.u32 %v1547, %v1550
    %v1552 = vrot.slane %v1551, 4
    %v1554 = vshll.u32 %v1442, 16
    %v1556 = vrot.slane %v1554, 5
    %v1557 = vsel %vm1495, %v1552, %v1556
    %v1558 = vshrl.u32 %v1442, 16
    %v1560 = vrot.slane %v1558, 4
    %v1561 = vor.u32 %v1560, %v1556
    %v1562 = vrot.slane %v1561, 4
    %v1564 = vshll.u32 %v1443, 16
    %v1566 = vrot.slane %v1564, 5
    %v1567 = vsel %vm1495, %v1562, %v1566
    %v1569 = vshrl.u32 %v1444, 16
    %v1571 = vrot.slane %v1569, 4
    %v1572 = vshll.u32 %v1444, 16
    %v1574 = vrot.slane %v1572, 5
    %v1575 = vor.u32 %v1571, %v1574
    %v1576 = vrot.slane %v1575, 4
    %v1578 = vshll.u32 %v1445, 16
    %v1580 = vrot.slane %v1578, 5
    %v1581 = vsel %vm1495, %v1576, %v1580
    %v1582 = vshrl.u32 %v1445, 16
    %v1584 = vrot.slane %v1582, 4
    %v1585 = vor.u32 %v1584, %v1580
    %v1586 = vrot.slane %v1585, 4
    %v1588 = vshll.u32 %v1446, 16
    %v1590 = vrot.slane %v1588, 5
    %v1591 = vsel %vm1495, %v1586, %v1590
    %v1593 = vshrl.u32 %v1447, 16
    %v1595 = vrot.slane %v1593, 4
    %v1596 = vshll.u32 %v1447, 16
    %v1598 = vrot.slane %v1596, 5
    %v1599 = vor.u32 %v1595, %v1598
    %v1600 = vrot.slane %v1599, 4
    %v1602 = vshll.u32 %v1448, 16
    %v1604 = vrot.slane %v1602, 5
    %v1605 = vsel %vm1495, %v1600, %v1604
    %v1606 = vshrl.u32 %v1448, 16
    %v1608 = vrot.slane %v1606, 4
    %v1609 = vor.u32 %v1608, %v1604
    %v1610 = vrot.slane %v1609, 4
    %v1612 = vshll.u32 %v1449, 16
    %v1614 = vrot.slane %v1612, 5
    %v1615 = vsel %vm1495, %v1610, %v1614
    %v1617 = vshrl.u32 %v1450, 16
    %v1619 = vrot.slane %v1617, 4
    %v1620 = vshll.u32 %v1450, 16
    %v1622 = vrot.slane %v1620, 5
    %v1623 = vor.u32 %v1619, %v1622
    %v1624 = vrot.slane %v1623, 4
    %v1626 = vshll.u32 %v1451, 16
    %v1628 = vrot.slane %v1626, 5
    %v1629 = vsel %vm1495, %v1624, %v1628
    %v1630 = vshrl.u32 %v1451, 16
    %v1632 = vrot.slane %v1630, 4
    %v1633 = vor.u32 %v1632, %v1628
    %v1634 = vrot.slane %v1633, 4
    %v1636 = vshll.u32 %v1452, 16
    %v1638 = vrot.slane %v1636, 5
    %v1639 = vsel %vm1495, %v1634, %v1638
    %v1641 = vshrl.u32 %v1453, 16
    %v1643 = vrot.slane %v1641, 4
    %v1644 = vshll.u32 %v1453, 16
    %v1646 = vrot.slane %v1644, 5
    %v1647 = vor.u32 %v1643, %v1646
    %v1648 = vrot.slane %v1647, 4
    %v1650 = vshll.u32 %v1454, 16
    %v1652 = vrot.slane %v1650, 5
    %v1653 = vsel %vm1495, %v1648, %v1652
    %v1654 = vshrl.u32 %v1454, 16
    %v1656 = vrot.slane %v1654, 4
    %v1657 = vor.u32 %v1656, %v1652
    %v1658 = vrot.slane %v1657, 4
    %v1660 = vshll.u32 %v1455, 16
    %v1662 = vrot.slane %v1660, 5
    %v1663 = vsel %vm1495, %v1658, %v1662
    %v1665 = vshrl.u32 %v1456, 16
    %v1667 = vrot.slane %v1665, 4
    %v1668 = vshll.u32 %v1456, 16
    %v1670 = vrot.slane %v1668, 5
    %v1671 = vor.u32 %v1667, %v1670
    %v1672 = vrot.slane %v1671, 4
    %v1674 = vshll.u32 %v1457, 16
    %v1676 = vrot.slane %v1674, 5
    %v1677 = vsel %vm1495, %v1672, %v1676
    %v1678 = vshrl.u32 %v1457, 16
    %v1680 = vrot.slane %v1678, 4
    %v1681 = vor.u32 %v1680, %v1676
    %v1682 = vrot.slane %v1681, 4
    %v1684 = vshll.u32 %v1458, 16
    %v1686 = vrot.slane %v1684, 5
    %v1687 = vsel %vm1495, %v1682, %v1686
    %v1689 = vshrl.u32 %v1459, 16
    %v1691 = vrot.slane %v1689, 4
    %v1692 = vshll.u32 %v1459, 16
    %v1694 = vrot.slane %v1692, 5
    %v1695 = vor.u32 %v1691, %v1694
    %v1696 = vrot.slane %v1695, 4
    %v1698 = vshll.u32 %v1460, 16
    %v1700 = vrot.slane %v1698, 5
    %v1701 = vsel %vm1495, %v1696, %v1700
    %v1702 = vshrl.u32 %v1460, 16
    %v1704 = vrot.slane %v1702, 4
    %v1705 = vor.u32 %v1704, %v1700
    %v1706 = vrot.slane %v1705, 4
    %v1708 = vshll.u32 %v1461, 16
    %v1710 = vrot.slane %v1708, 5
    %v1711 = vsel %vm1495, %v1706, %v1710
    %v1713 = vshrl.u32 %v1462, 16
    %v1715 = vrot.slane %v1713, 4
    %v1716 = vshll.u32 %v1462, 16
    %v1718 = vrot.slane %v1716, 5
    %v1719 = vor.u32 %v1715, %v1718
    %v1720 = vrot.slane %v1719, 4
    %v1722 = vshll.u32 %v1463, 16
    %v1724 = vrot.slane %v1722, 5
    %v1725 = vsel %vm1495, %v1720, %v1724
    %v1726 = vshrl.u32 %v1463, 16
    %v1728 = vrot.slane %v1726, 4
    %v1729 = vor.u32 %v1728, %v1724
    %v1730 = vrot.slane %v1729, 4
    %v1732 = vshll.u32 %v1464, 16
    %v1734 = vrot.slane %v1732, 5
    %v1735 = vsel %vm1495, %v1730, %v1734
    %v1737 = vshrl.u32 %v1465, 16
    %v1739 = vrot.slane %v1737, 4
    %v1740 = vshll.u32 %v1465, 16
    %v1742 = vrot.slane %v1740, 5
    %v1743 = vor.u32 %v1739, %v1742
    %v1744 = vrot.slane %v1743, 4
    %v1746 = vshll.u32 %v1466, 16
    %v1748 = vrot.slane %v1746, 5
    %v1749 = vsel %vm1495, %v1744, %v1748
    %v1750 = vshrl.u32 %v1466, 16
    %v1752 = vrot.slane %v1750, 4
    %v1753 = vor.u32 %v1752, %v1748
    %v1754 = vrot.slane %v1753, 4
    %v1756 = vshll.u32 %v1467, 16
    %v1758 = vrot.slane %v1756, 5
    %v1759 = vsel %vm1495, %v1754, %v1758
    %v1761 = vshrl.u32 %v1468, 16
    %v1763 = vrot.slane %v1761, 4
    %v1764 = vshll.u32 %v1468, 16
    %v1766 = vrot.slane %v1764, 5
    %v1767 = vor.u32 %v1763, %v1766
    %v1768 = vrot.slane %v1767, 4
    %v1770 = vshll.u32 %v1469, 16
    %v1772 = vrot.slane %v1770, 5
    %v1773 = vsel %vm1495, %v1768, %v1772
    %v1774 = vshrl.u32 %v1469, 16
    %v1776 = vrot.slane %v1774, 4
    %v1777 = vor.u32 %v1776, %v1772
    %v1778 = vrot.slane %v1777, 4
    %v1780 = vshll.u32 %v1470, 16
    %v1782 = vrot.slane %v1780, 5
    %v1783 = vsel %vm1495, %v1778, %v1782
    %v1785 = vshrl.u32 %v1471, 16
    %v1787 = vrot.slane %v1785, 4
    %v1788 = vshll.u32 %v1471, 16
    %v1790 = vrot.slane %v1788, 5
    %v1791 = vor.u32 %v1787, %v1790
    %v1792 = vrot.slane %v1791, 4
    %v1794 = vshll.u32 %v1472, 16
    %v1796 = vrot.slane %v1794, 5
    %v1797 = vsel %vm1495, %v1792, %v1796
    %v1798 = vshrl.u32 %v1472, 16
    %v1800 = vrot.slane %v1798, 4
    %v1801 = vor.u32 %v1800, %v1796
    %v1802 = vrot.slane %v1801, 4
    %v1804 = vshll.u32 %v1473, 16
    %v1806 = vrot.slane %v1804, 5
    %v1807 = vsel %vm1495, %v1802, %v1806
    %v1809 = vshrl.u32 %v1474, 16
    %v1811 = vrot.slane %v1809, 4
    %v1812 = vshll.u32 %v1474, 16
    %v1814 = vrot.slane %v1812, 5
    %v1815 = vor.u32 %v1811, %v1814
    %v1816 = vrot.slane %v1815, 4
    %v1818 = vshll.u32 %v1475, 16
    %v1820 = vrot.slane %v1818, 5
    %v1821 = vsel %vm1495, %v1816, %v1820
    %v1822 = vshrl.u32 %v1475, 16
    %v1824 = vrot.slane %v1822, 4
    %v1825 = vor.u32 %v1824, %v1820
    %v1826 = vrot.slane %v1825, 4
    %v1828 = vshll.u32 %v1476, 16
    %v1830 = vrot.slane %v1828, 5
    %v1831 = vsel %vm1495, %v1826, %v1830
    %v1833 = vshrl.u32 %v1477, 16
    %v1835 = vrot.slane %v1833, 4
    %v1836 = vshll.u32 %v1477, 16
    %v1838 = vrot.slane %v1836, 5
    %v1839 = vor.u32 %v1835, %v1838
    %v1840 = vrot.slane %v1839, 4
    %v1842 = vshll.u32 %v1478, 16
    %v1844 = vrot.slane %v1842, 5
    %v1845 = vsel %vm1495, %v1840, %v1844
    %v1846 = vshrl.u32 %v1478, 16
    %v1848 = vrot.slane %v1846, 4
    %v1849 = vor.u32 %v1848, %v1844
    %v1850 = vrot.slane %v1849, 4
    %v1852 = vshll.u32 %v1479, 16
    %v1854 = vrot.slane %v1852, 5
    %v1855 = vsel %vm1495, %v1850, %v1854
    %v1857 = vshrl.u32 %v1480, 16
    %v1859 = vrot.slane %v1857, 4
    %v1860 = vshll.u32 %v1480, 16
    %v1862 = vrot.slane %v1860, 5
    %v1863 = vor.u32 %v1859, %v1862
    %v1864 = vrot.slane %v1863, 4
    %v1866 = vshll.u32 %v1481, 16
    %v1868 = vrot.slane %v1866, 5
    %v1869 = vsel %vm1495, %v1864, %v1868
    %v1870 = vshrl.u32 %v1481, 16
    %v1872 = vrot.slane %v1870, 4
    %v1873 = vor.u32 %v1872, %v1868
    %v1874 = vrot.slane %v1873, 4
    %v1876 = vshll.u32 %v1482, 16
    %v1878 = vrot.slane %v1876, 5
    %v1879 = vsel %vm1495, %v1874, %v1878
    %s1880 = scalar_lea.vmem [#allocation6], 16
    %v1881 = vld [vmem:[%s1880] sm:$0xf]
    %v1882 = vld [vmem:[%s1880 + $0x4] sm:$0xf]
    %v1883 = vld [vmem:[%s1880 + $0x8] sm:$0xf]
    %v1884 = vld [vmem:[%s1880 + $0xc] sm:$0xf]
    %v1885 = vunpack.c.l.b16 %v1509
    %v1886 = vunpack.c.l.b16 %v1519
    %v1887 = vunpack.c.l.b16 %v1533
    %v1888 = vunpack.c.l.b16 %v1543
    %v1889 = vunpack.c.l.b16 %v1557
    %v1890 = vunpack.c.l.b16 %v1567
    %v1891 = vunpack.c.l.b16 %v1581
    %v1892 = vunpack.c.l.b16 %v1591
    %v1893 = vunpack.c.l.b16 %v1605
    %v1894 = vunpack.c.l.b16 %v1615
    %v1895 = vunpack.c.l.b16 %v1629
    %v1896 = vunpack.c.l.b16 %v1639
    %v1897 = vunpack.c.l.b16 %v1653
    %v1898 = vunpack.c.l.b16 %v1663
    %v1899 = vunpack.c.l.b16 %v1677
    %v1900 = vunpack.c.l.b16 %v1687
    %v1901 = vunpack.c.l.b16 %v1701
    %v1902 = vunpack.c.l.b16 %v1711
    %v1903 = vunpack.c.l.b16 %v1725
    %v1904 = vunpack.c.l.b16 %v1735
    %v1905 = vunpack.c.l.b16 %v1749
    %v1906 = vunpack.c.l.b16 %v1759
    %v1907 = vunpack.c.l.b16 %v1773
    %v1908 = vunpack.c.l.b16 %v1783
    %v1909 = vunpack.c.l.b16 %v1797
    %v1910 = vunpack.c.l.b16 %v1807
    %v1911 = vunpack.c.l.b16 %v1821
    %v1912 = vunpack.c.l.b16 %v1831
    %v1913 = vunpack.c.l.b16 %v1845
    %v1914 = vunpack.c.l.b16 %v1855
    %v1915 = vunpack.c.l.b16 %v1869
    %v1916 = vunpack.c.l.b16 %v1879
    %v1917 = vpack.c.b16 %v1886, %v1885
    %v1918 = vpack.c.b16 %v1888, %v1887
    %v1919 = vpack.c.b16 %v1890, %v1889
    %v1920 = vpack.c.b16 %v1892, %v1891
    %v1921 = vpack.c.b16 %v1894, %v1893
    %v1922 = vpack.c.b16 %v1896, %v1895
    %v1923 = vpack.c.b16 %v1898, %v1897
    %v1924 = vpack.c.b16 %v1900, %v1899
    %v1925 = vpack.c.b16 %v1902, %v1901
    %v1926 = vpack.c.b16 %v1904, %v1903
    %v1927 = vpack.c.b16 %v1906, %v1905
    %v1928 = vpack.c.b16 %v1908, %v1907
    %v1929 = vpack.c.b16 %v1910, %v1909
    %v1930 = vpack.c.b16 %v1912, %v1911
    %v1931 = vpack.c.b16 %v1914, %v1913
    %v1932 = vpack.c.b16 %v1916, %v1915
    %v1937 = vunpack.c.l.b16 %v1881
    %v1938 = vunpack.c.l.b16 %v1882
    %v1939 = vunpack.c.l.b16 %v1883
    %v1940 = vunpack.c.l.b16 %v1884
    %v1941 = vpack.c.b16 %v1938, %v1937
    %v1942 = vpack.c.b16 %v1940, %v1939
    %vm1945 = vcmask 261120
    %v1947 = vsel %vm1945, %v1917, 0
    %v1950 = vsel %vm1945, %v1918, 0
    %v1953 = vsel %vm1945, %v1919, 0
    %v1956 = vsel %vm1945, %v1920, 0
    %v1959 = vsel %vm1945, %v1921, 0
    %v1962 = vsel %vm1945, %v1922, 0
    %v1965 = vsel %vm1945, %v1923, 0
    %v1968 = vsel %vm1945, %v1924, 0
    %v1971 = vsel %vm1945, %v1925, 0
    %v1974 = vsel %vm1945, %v1926, 0
    %v1977 = vsel %vm1945, %v1927, 0
    %v1980 = vsel %vm1945, %v1928, 0
    %v1983 = vsel %vm1945, %v1929, 0
    %v1986 = vsel %vm1945, %v1930, 0
    %v1989 = vsel %vm1945, %v1931, 0
    %v1992 = vsel %vm1945, %v1932, 0
    %1994 = vmatprep.subr.bf16.mxu0 0
    %1995 = vmatpush1.bf16.msra.mxu0 %v1941
    %1996 = vmatprep.subr.bf16.mxu0 0
    %1997 = vmatpush1.bf16.msra.mxu0 %v1942
    %1998 = vmatprep.subr.bf16.mxu0 0
    %1999 = vmatpush1.bf16.msra.mxu0 0
    %2000 = vmatprep.subr.bf16.mxu0 0
    %2001 = vmatpush1.bf16.msra.mxu0 0
    %2002 = vmatprep.subr.bf16.mxu0 0
    %2003 = vmatpush1.bf16.msra.mxu0 0
    %2004 = vmatprep.subr.bf16.mxu0 0
    %2005 = vmatpush1.bf16.msra.mxu0 0
    %2006 = vmatprep.subr.bf16.mxu0 0
    %2007 = vmatpush1.bf16.msra.mxu0 0
    %2008 = vmatprep.subr.bf16.mxu0 0
    %2009 = vmatpush1.bf16.msra.mxu0 0
    %2010 = vmatprep.subr.bf16.mxu0 0
    %2011 = vmatpush1.bf16.msra.mxu0 0
    %2012 = vmatprep.subr.bf16.mxu0 0
    %2013 = vmatpush1.bf16.msra.mxu0 0
    %2014 = vmatprep.subr.bf16.mxu0 0
    %2015 = vmatpush1.bf16.msra.mxu0 0
    %2016 = vmatprep.subr.bf16.mxu0 0
    %2017 = vmatpush1.bf16.msra.mxu0 0
    %2018 = vmatprep.subr.bf16.mxu0 0
    %2019 = vmatpush1.bf16.msra.mxu0 0
    %2020 = vmatprep.subr.bf16.mxu0 0
    %2021 = vmatpush1.bf16.msra.mxu0 0
    %2022 = vmatprep.subr.bf16.mxu0 0
    %2023 = vmatpush1.bf16.msra.mxu0 0
    %2024 = vmatprep.subr.bf16.mxu0 0
    %2025 = vmatpush1.bf16.msra.mxu0 0
    %2026 = vmatprep.mubr.bf16.mxu0 0
    %2027 = vmatmul.mubr.bf16.gmra.mrb[0].mxu0 %v1947
    %v2028 = vpop.f32.mrb[0].mxu0
    %v2029 = vadd.f32 0.0, %v2028
    %v2030 = vpop.f32.mrb[0].mxu0
    %v2031 = vpop.f32.mrb[0].mxu0
    %v2032 = vadd.f32 0.0, %v2031
    %v2033 = vpop.f32.mrb[0].mxu0
    %2034 = vmatprep.mubr.bf16.mxu0 0
    %2035 = vmatmul.mubr.bf16.gmra.mrb[0].mxu0 %v1950
    %v2036 = vpop.f32.mrb[0].mxu0
    %v2037 = vadd.f32 0.0, %v2036
    %v2038 = vpop.f32.mrb[0].mxu0
    %v2039 = vpop.f32.mrb[0].mxu0
    %v2040 = vadd.f32 0.0, %v2039
    %v2041 = vpop.f32.mrb[0].mxu0
    %2042 = vmatprep.mubr.bf16.mxu0 0
    %2043 = vmatmul.mubr.bf16.gmra.mrb[0].mxu0 %v1953
    %v2044 = vpop.f32.mrb[0].mxu0
    %v2045 = vadd.f32 0.0, %v2044
    %v2046 = vpop.f32.mrb[0].mxu0
    %v2047 = vpop.f32.mrb[0].mxu0
    %v2048 = vadd.f32 0.0, %v2047
    %v2049 = vpop.f32.mrb[0].mxu0
    %2050 = vmatprep.mubr.bf16.mxu0 0
    %2051 = vmatmul.mubr.bf16.gmra.mrb[0].mxu0 %v1956
    %v2052 = vpop.f32.mrb[0].mxu0
    %v2053 = vadd.f32 0.0, %v2052
    %v2054 = vpop.f32.mrb[0].mxu0
    %v2055 = vpop.f32.mrb[0].mxu0
    %v2056 = vadd.f32 0.0, %v2055
    %v2057 = vpop.f32.mrb[0].mxu0
    %2058 = vmatprep.mubr.bf16.mxu0 0
    %2059 = vmatmul.mubr.bf16.gmra.mrb[0].mxu0 %v1959
    %v2060 = vpop.f32.mrb[0].mxu0
    %v2061 = vadd.f32 0.0, %v2060
    %v2062 = vpop.f32.mrb[0].mxu0
    %v2063 = vpop.f32.mrb[0].mxu0
    %v2064 = vadd.f32 0.0, %v2063
    %v2065 = vpop.f32.mrb[0].mxu0
    %2066 = vmatprep.mubr.bf16.mxu0 0
    %2067 = vmatmul.mubr.bf16.gmra.mrb[0].mxu0 %v1962
    %v2068 = vpop.f32.mrb[0].mxu0
    %v2069 = vadd.f32 0.0, %v2068
    %v2070 = vpop.f32.mrb[0].mxu0
    %v2071 = vpop.f32.mrb[0].mxu0
    %v2072 = vadd.f32 0.0, %v2071
    %v2073 = vpop.f32.mrb[0].mxu0
    %2074 = vmatprep.mubr.bf16.mxu0 0
    %2075 = vmatmul.mubr.bf16.gmra.mrb[0].mxu0 %v1965
    %v2076 = vpop.f32.mrb[0].mxu0
    %v2077 = vadd.f32 0.0, %v2076
    %v2078 = vpop.f32.mrb[0].mxu0
    %v2079 = vpop.f32.mrb[0].mxu0
    %v2080 = vadd.f32 0.0, %v2079
    %v2081 = vpop.f32.mrb[0].mxu0
    %2082 = vmatprep.mubr.bf16.mxu0 0
    %2083 = vmatmul.mubr.bf16.gmra.mrb[0].mxu0 %v1968
    %v2084 = vpop.f32.mrb[0].mxu0
    %v2085 = vadd.f32 0.0, %v2084
    %v2086 = vpop.f32.mrb[0].mxu0
    %v2087 = vpop.f32.mrb[0].mxu0
    %v2088 = vadd.f32 0.0, %v2087
    %v2089 = vpop.f32.mrb[0].mxu0
    %2090 = vmatprep.mubr.bf16.mxu0 0
    %2091 = vmatmul.mubr.bf16.gmra.mrb[0].mxu0 %v1971
    %v2092 = vpop.f32.mrb[0].mxu0
    %v2093 = vadd.f32 0.0, %v2092
    %v2094 = vpop.f32.mrb[0].mxu0
    %v2095 = vpop.f32.mrb[0].mxu0
    %v2096 = vadd.f32 0.0, %v2095
    %v2097 = vpop.f32.mrb[0].mxu0
    %2098 = vmatprep.mubr.bf16.mxu0 0
    %2099 = vmatmul.mubr.bf16.gmra.mrb[0].mxu0 %v1974
    %v2100 = vpop.f32.mrb[0].mxu0
    %v2101 = vadd.f32 0.0, %v2100
    %v2102 = vpop.f32.mrb[0].mxu0
    %v2103 = vpop.f32.mrb[0].mxu0
    %v2104 = vadd.f32 0.0, %v2103
    %v2105 = vpop.f32.mrb[0].mxu0
    %2106 = vmatprep.mubr.bf16.mxu0 0
    %2107 = vmatmul.mubr.bf16.gmra.mrb[0].mxu0 %v1977
    %v2108 = vpop.f32.mrb[0].mxu0
    %v2109 = vadd.f32 0.0, %v2108
    %v2110 = vpop.f32.mrb[0].mxu0
    %v2111 = vpop.f32.mrb[0].mxu0
    %v2112 = vadd.f32 0.0, %v2111
    %v2113 = vpop.f32.mrb[0].mxu0
    %2114 = vmatprep.mubr.bf16.mxu0 0
    %2115 = vmatmul.mubr.bf16.gmra.mrb[0].mxu0 %v1980
    %v2116 = vpop.f32.mrb[0].mxu0
    %v2117 = vadd.f32 0.0, %v2116
    %v2118 = vpop.f32.mrb[0].mxu0
    %v2119 = vpop.f32.mrb[0].mxu0
    %v2120 = vadd.f32 0.0, %v2119
    %v2121 = vpop.f32.mrb[0].mxu0
    %2122 = vmatprep.mubr.bf16.mxu0 0
    %2123 = vmatmul.mubr.bf16.gmra.mrb[0].mxu0 %v1983
    %v2124 = vpop.f32.mrb[0].mxu0
    %v2125 = vadd.f32 0.0, %v2124
    %v2126 = vpop.f32.mrb[0].mxu0
    %v2127 = vpop.f32.mrb[0].mxu0
    %v2128 = vadd.f32 0.0, %v2127
    %v2129 = vpop.f32.mrb[0].mxu0
    %2130 = vmatprep.mubr.bf16.mxu0 0
    %2131 = vmatmul.mubr.bf16.gmra.mrb[0].mxu0 %v1986
    %v2132 = vpop.f32.mrb[0].mxu0
    %v2133 = vadd.f32 0.0, %v2132
    %v2134 = vpop.f32.mrb[0].mxu0
    %v2135 = vpop.f32.mrb[0].mxu0
    %v2136 = vadd.f32 0.0, %v2135
    %v2137 = vpop.f32.mrb[0].mxu0
    %2138 = vmatprep.mubr.bf16.mxu0 0
    %2139 = vmatmul.mubr.bf16.gmra.mrb[0].mxu0 %v1989
    %v2140 = vpop.f32.mrb[0].mxu0
    %v2141 = vadd.f32 0.0, %v2140
    %v2142 = vpop.f32.mrb[0].mxu0
    %v2143 = vpop.f32.mrb[0].mxu0
    %v2144 = vadd.f32 0.0, %v2143
    %v2145 = vpop.f32.mrb[0].mxu0
    %2146 = vmatprep.mubr.bf16.mxu0 0
    %2147 = vmatmul.mubr.bf16.gmra.mrb[0].mxu0 %v1992
    %v2148 = vpop.f32.mrb[0].mxu0
    %v2149 = vadd.f32 0.0, %v2148
    %v2150 = vpop.f32.mrb[0].mxu0
    %v2151 = vpop.f32.mrb[0].mxu0
    %v2152 = vadd.f32 0.0, %v2151
    %v2153 = vpop.f32.mrb[0].mxu0
    %2154 = vdwg.mxu0
    %v2187 = vunpack.c.l.b16 %v1435
    %v2188 = vunpack.c.l.b16 %v1436
    %v2189 = vunpack.c.l.b16 %v1438
    %v2190 = vunpack.c.l.b16 %v1439
    %v2191 = vunpack.c.l.b16 %v1441
    %v2192 = vunpack.c.l.b16 %v1442
    %v2193 = vunpack.c.l.b16 %v1444
    %v2194 = vunpack.c.l.b16 %v1445
    %v2195 = vunpack.c.l.b16 %v1447
    %v2196 = vunpack.c.l.b16 %v1448
    %v2197 = vunpack.c.l.b16 %v1450
    %v2198 = vunpack.c.l.b16 %v1451
    %v2199 = vunpack.c.l.b16 %v1453
    %v2200 = vunpack.c.l.b16 %v1454
    %v2201 = vunpack.c.l.b16 %v1456
    %v2202 = vunpack.c.l.b16 %v1457
    %v2203 = vunpack.c.l.b16 %v1459
    %v2204 = vunpack.c.l.b16 %v1460
    %v2205 = vunpack.c.l.b16 %v1462
    %v2206 = vunpack.c.l.b16 %v1463
    %v2207 = vunpack.c.l.b16 %v1465
    %v2208 = vunpack.c.l.b16 %v1466
    %v2209 = vunpack.c.l.b16 %v1468
    %v2210 = vunpack.c.l.b16 %v1469
    %v2211 = vunpack.c.l.b16 %v1471
    %v2212 = vunpack.c.l.b16 %v1472
    %v2213 = vunpack.c.l.b16 %v1474
    %v2214 = vunpack.c.l.b16 %v1475
    %v2215 = vunpack.c.l.b16 %v1477
    %v2216 = vunpack.c.l.b16 %v1478
    %v2217 = vunpack.c.l.b16 %v1480
    %v2218 = vunpack.c.l.b16 %v1481
    %v2219 = vpack.c.b16 %v2188, %v2187
    %v2220 = vpack.c.b16 %v2190, %v2189
    %v2221 = vpack.c.b16 %v2192, %v2191
    %v2222 = vpack.c.b16 %v2194, %v2193
    %v2223 = vpack.c.b16 %v2196, %v2195
    %v2224 = vpack.c.b16 %v2198, %v2197
    %v2225 = vpack.c.b16 %v2200, %v2199
    %v2226 = vpack.c.b16 %v2202, %v2201
    %v2227 = vpack.c.b16 %v2204, %v2203
    %v2228 = vpack.c.b16 %v2206, %v2205
    %v2229 = vpack.c.b16 %v2208, %v2207
    %v2230 = vpack.c.b16 %v2210, %v2209
    %v2231 = vpack.c.b16 %v2212, %v2211
    %v2232 = vpack.c.b16 %v2214, %v2213
    %v2233 = vpack.c.b16 %v2216, %v2215
    %v2234 = vpack.c.b16 %v2218, %v2217
    %v2239 = vunpack.c.l.b16 %v1489
    %v2240 = vunpack.c.l.b16 %v1490
    %v2241 = vunpack.c.l.b16 %v1491
    %v2242 = vunpack.c.l.b16 %v1492
    %v2243 = vpack.c.b16 %v2240, %v2239
    %v2244 = vpack.c.b16 %v2242, %v2241
    %v2248 = vsel %vm1945, %v2219, 0
    %v2251 = vsel %vm1945, %v2220, 0
    %v2254 = vsel %vm1945, %v2221, 0
    %v2257 = vsel %vm1945, %v2222, 0
    %v2260 = vsel %vm1945, %v2223, 0
    %v2263 = vsel %vm1945, %v2224, 0
    %v2266 = vsel %vm1945, %v2225, 0
    %v2269 = vsel %vm1945, %v2226, 0
    %v2272 = vsel %vm1945, %v2227, 0
    %v2275 = vsel %vm1945, %v2228, 0
    %v2278 = vsel %vm1945, %v2229, 0
    %v2281 = vsel %vm1945, %v2230, 0
    %v2284 = vsel %vm1945, %v2231, 0
    %v2287 = vsel %vm1945, %v2232, 0
    %v2290 = vsel %vm1945, %v2233, 0
    %v2293 = vsel %vm1945, %v2234, 0
    %2295 = vmatprep.subr.bf16.mxu0 0
    %2296 = vmatpush1.bf16.msra.mxu0 %v2243
    %2297 = vmatprep.subr.bf16.mxu0 0
    %2298 = vmatpush1.bf16.msra.mxu0 %v2244
    %2299 = vmatprep.subr.bf16.mxu0 0
    %2300 = vmatpush1.bf16.msra.mxu0 0
    %2301 = vmatprep.subr.bf16.mxu0 0
    %2302 = vmatpush1.bf16.msra.mxu0 0
    %2303 = vmatprep.subr.bf16.mxu0 0
    %2304 = vmatpush1.bf16.msra.mxu0 0
    %2305 = vmatprep.subr.bf16.mxu0 0
    %2306 = vmatpush1.bf16.msra.mxu0 0
    %2307 = vmatprep.subr.bf16.mxu0 0
    %2308 = vmatpush1.bf16.msra.mxu0 0
    %2309 = vmatprep.subr.bf16.mxu0 0
    %2310 = vmatpush1.bf16.msra.mxu0 0
    %2311 = vmatprep.subr.bf16.mxu0 0
    %2312 = vmatpush1.bf16.msra.mxu0 0
    %2313 = vmatprep.subr.bf16.mxu0 0
    %2314 = vmatpush1.bf16.msra.mxu0 0
    %2315 = vmatprep.subr.bf16.mxu0 0
    %2316 = vmatpush1.bf16.msra.mxu0 0
    %2317 = vmatprep.subr.bf16.mxu0 0
    %2318 = vmatpush1.bf16.msra.mxu0 0
    %2319 = vmatprep.subr.bf16.mxu0 0
    %2320 = vmatpush1.bf16.msra.mxu0 0
    %2321 = vmatprep.subr.bf16.mxu0 0
    %2322 = vmatpush1.bf16.msra.mxu0 0
    %2323 = vmatprep.subr.bf16.mxu0 0
    %2324 = vmatpush1.bf16.msra.mxu0 0
    %2325 = vmatprep.subr.bf16.mxu0 0
    %2326 = vmatpush1.bf16.msra.mxu0 0
    %2327 = vmatprep.mubr.bf16.mxu0 0
    %2328 = vmatmul.mubr.bf16.gmra.mrb[0].mxu0 %v2248
    %v2329 = vpop.f32.mrb[0].mxu0
    %v2330 = vadd.f32 %v2029, %v2329
    %v2331 = vpop.f32.mrb[0].mxu0
    %v2332 = vpop.f32.mrb[0].mxu0
    %v2333 = vadd.f32 %v2032, %v2332
    %v2334 = vpop.f32.mrb[0].mxu0
    %2335 = vmatprep.mubr.bf16.mxu0 0
    %2336 = vmatmul.mubr.bf16.gmra.mrb[0].mxu0 %v2251
    %v2337 = vpop.f32.mrb[0].mxu0
    %v2338 = vadd.f32 %v2037, %v2337
    %v2339 = vpop.f32.mrb[0].mxu0
    %v2340 = vpop.f32.mrb[0].mxu0
    %v2341 = vadd.f32 %v2040, %v2340
    %v2342 = vpop.f32.mrb[0].mxu0
    %2343 = vmatprep.mubr.bf16.mxu0 0
    %2344 = vmatmul.mubr.bf16.gmra.mrb[0].mxu0 %v2254
    %v2345 = vpop.f32.mrb[0].mxu0
    %v2346 = vadd.f32 %v2045, %v2345
    %v2347 = vpop.f32.mrb[0].mxu0
    %v2348 = vpop.f32.mrb[0].mxu0
    %v2349 = vadd.f32 %v2048, %v2348
    %v2350 = vpop.f32.mrb[0].mxu0
    %2351 = vmatprep.mubr.bf16.mxu0 0
    %2352 = vmatmul.mubr.bf16.gmra.mrb[0].mxu0 %v2257
    %v2353 = vpop.f32.mrb[0].mxu0
    %v2354 = vadd.f32 %v2053, %v2353
    %v2355 = vpop.f32.mrb[0].mxu0
    %v2356 = vpop.f32.mrb[0].mxu0
    %v2357 = vadd.f32 %v2056, %v2356
    %v2358 = vpop.f32.mrb[0].mxu0
    %2359 = vmatprep.mubr.bf16.mxu0 0
    %2360 = vmatmul.mubr.bf16.gmra.mrb[0].mxu0 %v2260
    %v2361 = vpop.f32.mrb[0].mxu0
    %v2362 = vadd.f32 %v2061, %v2361
    %v2363 = vpop.f32.mrb[0].mxu0
    %v2364 = vpop.f32.mrb[0].mxu0
    %v2365 = vadd.f32 %v2064, %v2364
    %v2366 = vpop.f32.mrb[0].mxu0
    %2367 = vmatprep.mubr.bf16.mxu0 0
    %2368 = vmatmul.mubr.bf16.gmra.mrb[0].mxu0 %v2263
    %v2369 = vpop.f32.mrb[0].mxu0
    %v2370 = vadd.f32 %v2069, %v2369
    %v2371 = vpop.f32.mrb[0].mxu0
    %v2372 = vpop.f32.mrb[0].mxu0
    %v2373 = vadd.f32 %v2072, %v2372
    %v2374 = vpop.f32.mrb[0].mxu0
    %2375 = vmatprep.mubr.bf16.mxu0 0
    %2376 = vmatmul.mubr.bf16.gmra.mrb[0].mxu0 %v2266
    %v2377 = vpop.f32.mrb[0].mxu0
    %v2378 = vadd.f32 %v2077, %v2377
    %v2379 = vpop.f32.mrb[0].mxu0
    %v2380 = vpop.f32.mrb[0].mxu0
    %v2381 = vadd.f32 %v2080, %v2380
    %v2382 = vpop.f32.mrb[0].mxu0
    %2383 = vmatprep.mubr.bf16.mxu0 0
    %2384 = vmatmul.mubr.bf16.gmra.mrb[0].mxu0 %v2269
    %v2385 = vpop.f32.mrb[0].mxu0
    %v2386 = vadd.f32 %v2085, %v2385
    %v2387 = vpop.f32.mrb[0].mxu0
    %v2388 = vpop.f32.mrb[0].mxu0
    %v2389 = vadd.f32 %v2088, %v2388
    %v2390 = vpop.f32.mrb[0].mxu0
    %2391 = vmatprep.mubr.bf16.mxu0 0
    %2392 = vmatmul.mubr.bf16.gmra.mrb[0].mxu0 %v2272
    %v2393 = vpop.f32.mrb[0].mxu0
    %v2394 = vadd.f32 %v2093, %v2393
    %v2395 = vpop.f32.mrb[0].mxu0
    %v2396 = vpop.f32.mrb[0].mxu0
    %v2397 = vadd.f32 %v2096, %v2396
    %v2398 = vpop.f32.mrb[0].mxu0
    %2399 = vmatprep.mubr.bf16.mxu0 0
    %2400 = vmatmul.mubr.bf16.gmra.mrb[0].mxu0 %v2275
    %v2401 = vpop.f32.mrb[0].mxu0
    %v2402 = vadd.f32 %v2101, %v2401
    %v2403 = vpop.f32.mrb[0].mxu0
    %v2404 = vpop.f32.mrb[0].mxu0
    %v2405 = vadd.f32 %v2104, %v2404
    %v2406 = vpop.f32.mrb[0].mxu0
    %2407 = vmatprep.mubr.bf16.mxu0 0
    %2408 = vmatmul.mubr.bf16.gmra.mrb[0].mxu0 %v2278
    %v2409 = vpop.f32.mrb[0].mxu0
    %v2410 = vadd.f32 %v2109, %v2409
    %v2411 = vpop.f32.mrb[0].mxu0
    %v2412 = vpop.f32.mrb[0].mxu0
    %v2413 = vadd.f32 %v2112, %v2412
    %v2414 = vpop.f32.mrb[0].mxu0
    %2415 = vmatprep.mubr.bf16.mxu0 0
    %2416 = vmatmul.mubr.bf16.gmra.mrb[0].mxu0 %v2281
    %v2417 = vpop.f32.mrb[0].mxu0
    %v2418 = vadd.f32 %v2117, %v2417
    %v2419 = vpop.f32.mrb[0].mxu0
    %v2420 = vpop.f32.mrb[0].mxu0
    %v2421 = vadd.f32 %v2120, %v2420
    %v2422 = vpop.f32.mrb[0].mxu0
    %2423 = vmatprep.mubr.bf16.mxu0 0
    %2424 = vmatmul.mubr.bf16.gmra.mrb[0].mxu0 %v2284
    %v2425 = vpop.f32.mrb[0].mxu0
    %v2426 = vadd.f32 %v2125, %v2425
    %v2427 = vpop.f32.mrb[0].mxu0
    %v2428 = vpop.f32.mrb[0].mxu0
    %v2429 = vadd.f32 %v2128, %v2428
    %v2430 = vpop.f32.mrb[0].mxu0
    %2431 = vmatprep.mubr.bf16.mxu0 0
    %2432 = vmatmul.mubr.bf16.gmra.mrb[0].mxu0 %v2287
    %v2433 = vpop.f32.mrb[0].mxu0
    %v2434 = vadd.f32 %v2133, %v2433
    %v2435 = vpop.f32.mrb[0].mxu0
    %v2436 = vpop.f32.mrb[0].mxu0
    %v2437 = vadd.f32 %v2136, %v2436
    %v2438 = vpop.f32.mrb[0].mxu0
    %2439 = vmatprep.mubr.bf16.mxu0 0
    %2440 = vmatmul.mubr.bf16.gmra.mrb[0].mxu0 %v2290
    %v2441 = vpop.f32.mrb[0].mxu0
    %v2442 = vadd.f32 %v2141, %v2441
    %v2443 = vpop.f32.mrb[0].mxu0
    %v2444 = vpop.f32.mrb[0].mxu0
    %v2445 = vadd.f32 %v2144, %v2444
    %v2446 = vpop.f32.mrb[0].mxu0
    %2447 = vmatprep.mubr.bf16.mxu0 0
    %2448 = vmatmul.mubr.bf16.gmra.mrb[0].mxu0 %v2293
    %v2449 = vpop.f32.mrb[0].mxu0
    %v2450 = vadd.f32 %v2149, %v2449
    %v2451 = vpop.f32.mrb[0].mxu0
    %v2452 = vpop.f32.mrb[0].mxu0
    %v2453 = vadd.f32 %v2152, %v2452
    %v2454 = vpop.f32.mrb[0].mxu0
    %2455 = vdwg.mxu0
    %vm2472 = vcmask 1042432
    %vm2473 = vcmask 1046532
    %vm2474 = vmor %vm2472, %vm2473
    %v2475 = vrot.slane %v1435, 5
    %v2476 = vrot.slane %v2475, 4
    %v2477 = vrot.slane %v1436, 5
    %v2478 = vsel %vm2474, %v2476, %v2477
    %v2479 = vrot.slane %v2477, 4
    %v2480 = vrot.slane %v1437, 5
    %v2481 = vsel %vm2474, %v2479, %v2480
    %v2482 = vrot.slane %v1438, 5
    %v2483 = vrot.slane %v2482, 4
    %v2484 = vrot.slane %v1439, 5
    %v2485 = vsel %vm2474, %v2483, %v2484
    %v2486 = vrot.slane %v2484, 4
    %v2487 = vrot.slane %v1440, 5
    %v2488 = vsel %vm2474, %v2486, %v2487
    %v2489 = vrot.slane %v1441, 5
    %v2490 = vrot.slane %v2489, 4
    %v2491 = vrot.slane %v1442, 5
    %v2492 = vsel %vm2474, %v2490, %v2491
    %v2493 = vrot.slane %v2491, 4
    %v2494 = vrot.slane %v1443, 5
    %v2495 = vsel %vm2474, %v2493, %v2494
    %v2496 = vrot.slane %v1444, 5
    %v2497 = vrot.slane %v2496, 4
    %v2498 = vrot.slane %v1445, 5
    %v2499 = vsel %vm2474, %v2497, %v2498
    %v2500 = vrot.slane %v2498, 4
    %v2501 = vrot.slane %v1446, 5
    %v2502 = vsel %vm2474, %v2500, %v2501
    %v2503 = vrot.slane %v1447, 5
    %v2504 = vrot.slane %v2503, 4
    %v2505 = vrot.slane %v1448, 5
    %v2506 = vsel %vm2474, %v2504, %v2505
    %v2507 = vrot.slane %v2505, 4
    %v2508 = vrot.slane %v1449, 5
    %v2509 = vsel %vm2474, %v2507, %v2508
    %v2510 = vrot.slane %v1450, 5
    %v2511 = vrot.slane %v2510, 4
    %v2512 = vrot.slane %v1451, 5
    %v2513 = vsel %vm2474, %v2511, %v2512
    %v2514 = vrot.slane %v2512, 4
    %v2515 = vrot.slane %v1452, 5
    %v2516 = vsel %vm2474, %v2514, %v2515
    %v2517 = vrot.slane %v1453, 5
    %v2518 = vrot.slane %v2517, 4
    %v2519 = vrot.slane %v1454, 5
    %v2520 = vsel %vm2474, %v2518, %v2519
    %v2521 = vrot.slane %v2519, 4
    %v2522 = vrot.slane %v1455, 5
    %v2523 = vsel %vm2474, %v2521, %v2522
    %v2524 = vrot.slane %v1456, 5
    %v2525 = vrot.slane %v2524, 4
    %v2526 = vrot.slane %v1457, 5
    %v2527 = vsel %vm2474, %v2525, %v2526
    %v2528 = vrot.slane %v2526, 4
    %v2529 = vrot.slane %v1458, 5
    %v2530 = vsel %vm2474, %v2528, %v2529
    %v2531 = vrot.slane %v1459, 5
    %v2532 = vrot.slane %v2531, 4
    %v2533 = vrot.slane %v1460, 5
    %v2534 = vsel %vm2474, %v2532, %v2533
    %v2535 = vrot.slane %v2533, 4
    %v2536 = vrot.slane %v1461, 5
    %v2537 = vsel %vm2474, %v2535, %v2536
    %v2538 = vrot.slane %v1462, 5
    %v2539 = vrot.slane %v2538, 4
    %v2540 = vrot.slane %v1463, 5
    %v2541 = vsel %vm2474, %v2539, %v2540
    %v2542 = vrot.slane %v2540, 4
    %v2543 = vrot.slane %v1464, 5
    %v2544 = vsel %vm2474, %v2542, %v2543
    %v2545 = vrot.slane %v1465, 5
    %v2546 = vrot.slane %v2545, 4
    %v2547 = vrot.slane %v1466, 5
    %v2548 = vsel %vm2474, %v2546, %v2547
    %v2549 = vrot.slane %v2547, 4
    %v2550 = vrot.slane %v1467, 5
    %v2551 = vsel %vm2474, %v2549, %v2550
    %v2552 = vrot.slane %v1468, 5
    %v2553 = vrot.slane %v2552, 4
    %v2554 = vrot.slane %v1469, 5
    %v2555 = vsel %vm2474, %v2553, %v2554
    %v2556 = vrot.slane %v2554, 4
    %v2557 = vrot.slane %v1470, 5
    %v2558 = vsel %vm2474, %v2556, %v2557
    %v2559 = vrot.slane %v1471, 5
    %v2560 = vrot.slane %v2559, 4
    %v2561 = vrot.slane %v1472, 5
    %v2562 = vsel %vm2474, %v2560, %v2561
    %v2563 = vrot.slane %v2561, 4
    %v2564 = vrot.slane %v1473, 5
    %v2565 = vsel %vm2474, %v2563, %v2564
    %v2566 = vrot.slane %v1474, 5
    %v2567 = vrot.slane %v2566, 4
    %v2568 = vrot.slane %v1475, 5
    %v2569 = vsel %vm2474, %v2567, %v2568
    %v2570 = vrot.slane %v2568, 4
    %v2571 = vrot.slane %v1476, 5
    %v2572 = vsel %vm2474, %v2570, %v2571
    %v2573 = vrot.slane %v1477, 5
    %v2574 = vrot.slane %v2573, 4
    %v2575 = vrot.slane %v1478, 5
    %v2576 = vsel %vm2474, %v2574, %v2575
    %v2577 = vrot.slane %v2575, 4
    %v2578 = vrot.slane %v1479, 5
    %v2579 = vsel %vm2474, %v2577, %v2578
    %v2580 = vrot.slane %v1480, 5
    %v2581 = vrot.slane %v2580, 4
    %v2582 = vrot.slane %v1481, 5
    %v2583 = vsel %vm2474, %v2581, %v2582
    %v2584 = vrot.slane %v2582, 4
    %v2585 = vrot.slane %v1482, 5
    %v2586 = vsel %vm2474, %v2584, %v2585
    %s2587 = scalar_lea.vmem [#allocation6], 32
    %v2588 = vld [vmem:[%s2587] sm:$0xf]
    %v2589 = vld [vmem:[%s2587 + $0x4] sm:$0xf]
    %v2590 = vld [vmem:[%s2587 + $0x8] sm:$0xf]
    %v2591 = vld [vmem:[%s2587 + $0xc] sm:$0xf]
    %v2592 = vunpack.c.l.b16 %v2478
    %v2593 = vunpack.c.l.b16 %v2481
    %v2594 = vunpack.c.l.b16 %v2485
    %v2595 = vunpack.c.l.b16 %v2488
    %v2596 = vunpack.c.l.b16 %v2492
    %v2597 = vunpack.c.l.b16 %v2495
    %v2598 = vunpack.c.l.b16 %v2499
    %v2599 = vunpack.c.l.b16 %v2502
    %v2600 = vunpack.c.l.b16 %v2506
    %v2601 = vunpack.c.l.b16 %v2509
    %v2602 = vunpack.c.l.b16 %v2513
    %v2603 = vunpack.c.l.b16 %v2516
    %v2604 = vunpack.c.l.b16 %v2520
    %v2605 = vunpack.c.l.b16 %v2523
    %v2606 = vunpack.c.l.b16 %v2527
    %v2607 = vunpack.c.l.b16 %v2530
    %v2608 = vunpack.c.l.b16 %v2534
    %v2609 = vunpack.c.l.b16 %v2537
    %v2610 = vunpack.c.l.b16 %v2541
    %v2611 = vunpack.c.l.b16 %v2544
    %v2612 = vunpack.c.l.b16 %v2548
    %v2613 = vunpack.c.l.b16 %v2551
    %v2614 = vunpack.c.l.b16 %v2555
    %v2615 = vunpack.c.l.b16 %v2558
    %v2616 = vunpack.c.l.b16 %v2562
    %v2617 = vunpack.c.l.b16 %v2565
    %v2618 = vunpack.c.l.b16 %v2569
    %v2619 = vunpack.c.l.b16 %v2572
    %v2620 = vunpack.c.l.b16 %v2576
    %v2621 = vunpack.c.l.b16 %v2579
    %v2622 = vunpack.c.l.b16 %v2583
    %v2623 = vunpack.c.l.b16 %v2586
    %v2624 = vpack.c.b16 %v2593, %v2592
    %v2625 = vpack.c.b16 %v2595, %v2594
    %v2626 = vpack.c.b16 %v2597, %v2596
    %v2627 = vpack.c.b16 %v2599, %v2598
    %v2628 = vpack.c.b16 %v2601, %v2600
    %v2629 = vpack.c.b16 %v2603, %v2602
    %v2630 = vpack.c.b16 %v2605, %v2604
    %v2631 = vpack.c.b16 %v2607, %v2606
    %v2632 = vpack.c.b16 %v2609, %v2608
    %v2633 = vpack.c.b16 %v2611, %v2610
    %v2634 = vpack.c.b16 %v2613, %v2612
    %v2635 = vpack.c.b16 %v2615, %v2614
    %v2636 = vpack.c.b16 %v2617, %v2616
    %v2637 = vpack.c.b16 %v2619, %v2618
    %v2638 = vpack.c.b16 %v2621, %v2620
    %v2639 = vpack.c.b16 %v2623, %v2622
    %v2644 = vunpack.c.l.b16 %v2588
    %v2645 = vunpack.c.l.b16 %v2589
    %v2646 = vunpack.c.l.b16 %v2590
    %v2647 = vunpack.c.l.b16 %v2591
    %v2648 = vpack.c.b16 %v2645, %v2644
    %v2649 = vpack.c.b16 %v2647, %v2646
    %v2653 = vsel %vm1945, %v2624, 0
    %v2656 = vsel %vm1945, %v2625, 0
    %v2659 = vsel %vm1945, %v2626, 0
    %v2662 = vsel %vm1945, %v2627, 0
    %v2665 = vsel %vm1945, %v2628, 0
    %v2668 = vsel %vm1945, %v2629, 0
    %v2671 = vsel %vm1945, %v2630, 0
    %v2674 = vsel %vm1945, %v2631, 0
    %v2677 = vsel %vm1945, %v2632, 0
    %v2680 = vsel %vm1945, %v2633, 0
    %v2683 = vsel %vm1945, %v2634, 0
    %v2686 = vsel %vm1945, %v2635, 0
    %v2689 = vsel %vm1945, %v2636, 0
    %v2692 = vsel %vm1945, %v2637, 0
    %v2695 = vsel %vm1945, %v2638, 0
    %v2698 = vsel %vm1945, %v2639, 0
    %2700 = vmatprep.subr.bf16.mxu0 0
    %2701 = vmatpush1.bf16.msra.mxu0 %v2648
    %2702 = vmatprep.subr.bf16.mxu0 0
    %2703 = vmatpush1.bf16.msra.mxu0 %v2649
    %2704 = vmatprep.subr.bf16.mxu0 0
    %2705 = vmatpush1.bf16.msra.mxu0 0
    %2706 = vmatprep.subr.bf16.mxu0 0
    %2707 = vmatpush1.bf16.msra.mxu0 0
    %2708 = vmatprep.subr.bf16.mxu0 0
    %2709 = vmatpush1.bf16.msra.mxu0 0
    %2710 = vmatprep.subr.bf16.mxu0 0
    %2711 = vmatpush1.bf16.msra.mxu0 0
    %2712 = vmatprep.subr.bf16.mxu0 0
    %2713 = vmatpush1.bf16.msra.mxu0 0
    %2714 = vmatprep.subr.bf16.mxu0 0
    %2715 = vmatpush1.bf16.msra.mxu0 0
    %2716 = vmatprep.subr.bf16.mxu0 0
    %2717 = vmatpush1.bf16.msra.mxu0 0
    %2718 = vmatprep.subr.bf16.mxu0 0
    %2719 = vmatpush1.bf16.msra.mxu0 0
    %2720 = vmatprep.subr.bf16.mxu0 0
    %2721 = vmatpush1.bf16.msra.mxu0 0
    %2722 = vmatprep.subr.bf16.mxu0 0
    %2723 = vmatpush1.bf16.msra.mxu0 0
    %2724 = vmatprep.subr.bf16.mxu0 0
    %2725 = vmatpush1.bf16.msra.mxu0 0
    %2726 = vmatprep.subr.bf16.mxu0 0
    %2727 = vmatpush1.bf16.msra.mxu0 0
    %2728 = vmatprep.subr.bf16.mxu0 0
    %2729 = vmatpush1.bf16.msra.mxu0 0
    %2730 = vmatprep.subr.bf16.mxu0 0
    %2731 = vmatpush1.bf16.msra.mxu0 0
    %2732 = vmatprep.mubr.bf16.mxu0 0
    %2733 = vmatmul.mubr.bf16.gmra.mrb[0].mxu0 %v2653
    %v2734 = vpop.f32.mrb[0].mxu0
    %v2735 = vadd.f32 0.0, %v2734
    %v2736 = vpop.f32.mrb[0].mxu0
    %v2737 = vpop.f32.mrb[0].mxu0
    %v2738 = vadd.f32 0.0, %v2737
    %v2739 = vpop.f32.mrb[0].mxu0
    %2740 = vmatprep.mubr.bf16.mxu0 0
    %2741 = vmatmul.mubr.bf16.gmra.mrb[0].mxu0 %v2656
    %v2742 = vpop.f32.mrb[0].mxu0
    %v2743 = vadd.f32 0.0, %v2742
    %v2744 = vpop.f32.mrb[0].mxu0
    %v2745 = vpop.f32.mrb[0].mxu0
    %v2746 = vadd.f32 0.0, %v2745
    %v2747 = vpop.f32.mrb[0].mxu0
    %2748 = vmatprep.mubr.bf16.mxu0 0
    %2749 = vmatmul.mubr.bf16.gmra.mrb[0].mxu0 %v2659
    %v2750 = vpop.f32.mrb[0].mxu0
    %v2751 = vadd.f32 0.0, %v2750
    %v2752 = vpop.f32.mrb[0].mxu0
    %v2753 = vpop.f32.mrb[0].mxu0
    %v2754 = vadd.f32 0.0, %v2753
    %v2755 = vpop.f32.mrb[0].mxu0
    %2756 = vmatprep.mubr.bf16.mxu0 0
    %2757 = vmatmul.mubr.bf16.gmra.mrb[0].mxu0 %v2662
    %v2758 = vpop.f32.mrb[0].mxu0
    %v2759 = vadd.f32 0.0, %v2758
    %v2760 = vpop.f32.mrb[0].mxu0
    %v2761 = vpop.f32.mrb[0].mxu0
    %v2762 = vadd.f32 0.0, %v2761
    %v2763 = vpop.f32.mrb[0].mxu0
    %2764 = vmatprep.mubr.bf16.mxu0 0
    %2765 = vmatmul.mubr.bf16.gmra.mrb[0].mxu0 %v2665
    %v2766 = vpop.f32.mrb[0].mxu0
    %v2767 = vadd.f32 0.0, %v2766
    %v2768 = vpop.f32.mrb[0].mxu0
    %v2769 = vpop.f32.mrb[0].mxu0
    %v2770 = vadd.f32 0.0, %v2769
    %v2771 = vpop.f32.mrb[0].mxu0
    %2772 = vmatprep.mubr.bf16.mxu0 0
    %2773 = vmatmul.mubr.bf16.gmra.mrb[0].mxu0 %v2668
    %v2774 = vpop.f32.mrb[0].mxu0
    %v2775 = vadd.f32 0.0, %v2774
    %v2776 = vpop.f32.mrb[0].mxu0
    %v2777 = vpop.f32.mrb[0].mxu0
    %v2778 = vadd.f32 0.0, %v2777
    %v2779 = vpop.f32.mrb[0].mxu0
    %2780 = vmatprep.mubr.bf16.mxu0 0
    %2781 = vmatmul.mubr.bf16.gmra.mrb[0].mxu0 %v2671
    %v2782 = vpop.f32.mrb[0].mxu0
    %v2783 = vadd.f32 0.0, %v2782
    %v2784 = vpop.f32.mrb[0].mxu0
    %v2785 = vpop.f32.mrb[0].mxu0
    %v2786 = vadd.f32 0.0, %v2785
    %v2787 = vpop.f32.mrb[0].mxu0
    %2788 = vmatprep.mubr.bf16.mxu0 0
    %2789 = vmatmul.mubr.bf16.gmra.mrb[0].mxu0 %v2674
    %v2790 = vpop.f32.mrb[0].mxu0
    %v2791 = vadd.f32 0.0, %v2790
    %v2792 = vpop.f32.mrb[0].mxu0
    %v2793 = vpop.f32.mrb[0].mxu0
    %v2794 = vadd.f32 0.0, %v2793
    %v2795 = vpop.f32.mrb[0].mxu0
    %2796 = vmatprep.mubr.bf16.mxu0 0
    %2797 = vmatmul.mubr.bf16.gmra.mrb[0].mxu0 %v2677
    %v2798 = vpop.f32.mrb[0].mxu0
    %v2799 = vadd.f32 0.0, %v2798
    %v2800 = vpop.f32.mrb[0].mxu0
    %v2801 = vpop.f32.mrb[0].mxu0
    %v2802 = vadd.f32 0.0, %v2801
    %v2803 = vpop.f32.mrb[0].mxu0
    %2804 = vmatprep.mubr.bf16.mxu0 0
    %2805 = vmatmul.mubr.bf16.gmra.mrb[0].mxu0 %v2680
    %v2806 = vpop.f32.mrb[0].mxu0
    %v2807 = vadd.f32 0.0, %v2806
    %v2808 = vpop.f32.mrb[0].mxu0
    %v2809 = vpop.f32.mrb[0].mxu0
    %v2810 = vadd.f32 0.0, %v2809
    %v2811 = vpop.f32.mrb[0].mxu0
    %2812 = vmatprep.mubr.bf16.mxu0 0
    %2813 = vmatmul.mubr.bf16.gmra.mrb[0].mxu0 %v2683
    %v2814 = vpop.f32.mrb[0].mxu0
    %v2815 = vadd.f32 0.0, %v2814
    %v2816 = vpop.f32.mrb[0].mxu0
    %v2817 = vpop.f32.mrb[0].mxu0
    %v2818 = vadd.f32 0.0, %v2817
    %v2819 = vpop.f32.mrb[0].mxu0
    %2820 = vmatprep.mubr.bf16.mxu0 0
    %2821 = vmatmul.mubr.bf16.gmra.mrb[0].mxu0 %v2686
    %v2822 = vpop.f32.mrb[0].mxu0
    %v2823 = vadd.f32 0.0, %v2822
    %v2824 = vpop.f32.mrb[0].mxu0
    %v2825 = vpop.f32.mrb[0].mxu0
    %v2826 = vadd.f32 0.0, %v2825
    %v2827 = vpop.f32.mrb[0].mxu0
    %2828 = vmatprep.mubr.bf16.mxu0 0
    %2829 = vmatmul.mubr.bf16.gmra.mrb[0].mxu0 %v2689
    %v2830 = vpop.f32.mrb[0].mxu0
    %v2831 = vadd.f32 0.0, %v2830
    %v2832 = vpop.f32.mrb[0].mxu0
    %v2833 = vpop.f32.mrb[0].mxu0
    %v2834 = vadd.f32 0.0, %v2833
    %v2835 = vpop.f32.mrb[0].mxu0
    %2836 = vmatprep.mubr.bf16.mxu0 0
    %2837 = vmatmul.mubr.bf16.gmra.mrb[0].mxu0 %v2692
    %v2838 = vpop.f32.mrb[0].mxu0
    %v2839 = vadd.f32 0.0, %v2838
    %v2840 = vpop.f32.mrb[0].mxu0
    %v2841 = vpop.f32.mrb[0].mxu0
    %v2842 = vadd.f32 0.0, %v2841
    %v2843 = vpop.f32.mrb[0].mxu0
    %2844 = vmatprep.mubr.bf16.mxu0 0
    %2845 = vmatmul.mubr.bf16.gmra.mrb[0].mxu0 %v2695
    %v2846 = vpop.f32.mrb[0].mxu0
    %v2847 = vadd.f32 0.0, %v2846
    %v2848 = vpop.f32.mrb[0].mxu0
    %v2849 = vpop.f32.mrb[0].mxu0
    %v2850 = vadd.f32 0.0, %v2849
    %v2851 = vpop.f32.mrb[0].mxu0
    %2852 = vmatprep.mubr.bf16.mxu0 0
    %2853 = vmatmul.mubr.bf16.gmra.mrb[0].mxu0 %v2698
    %v2854 = vpop.f32.mrb[0].mxu0
    %v2855 = vadd.f32 0.0, %v2854
    %v2856 = vpop.f32.mrb[0].mxu0
    %v2857 = vpop.f32.mrb[0].mxu0
    %v2858 = vadd.f32 0.0, %v2857
    %v2859 = vpop.f32.mrb[0].mxu0
    %2860 = vdwg.mxu0
    %v2861 = vadd.f32 %v2330, %v2735
    %v2862 = vadd.f32 %v2333, %v2738
    %v2863 = vadd.f32 %v2338, %v2743
    %v2864 = vadd.f32 %v2341, %v2746
    %v2865 = vadd.f32 %v2346, %v2751
    %v2866 = vadd.f32 %v2349, %v2754
    %v2867 = vadd.f32 %v2354, %v2759
    %v2868 = vadd.f32 %v2357, %v2762
    %v2869 = vadd.f32 %v2362, %v2767
    %v2870 = vadd.f32 %v2365, %v2770
    %v2871 = vadd.f32 %v2370, %v2775
    %v2872 = vadd.f32 %v2373, %v2778
    %v2873 = vadd.f32 %v2378, %v2783
    %v2874 = vadd.f32 %v2381, %v2786
    %v2875 = vadd.f32 %v2386, %v2791
    %v2876 = vadd.f32 %v2389, %v2794
    %v2877 = vadd.f32 %v2394, %v2799
    %v2878 = vadd.f32 %v2397, %v2802
    %v2879 = vadd.f32 %v2402, %v2807
    %v2880 = vadd.f32 %v2405, %v2810
    %v2881 = vadd.f32 %v2410, %v2815
    %v2882 = vadd.f32 %v2413, %v2818
    %v2883 = vadd.f32 %v2418, %v2823
    %v2884 = vadd.f32 %v2421, %v2826
    %v2885 = vadd.f32 %v2426, %v2831
    %v2886 = vadd.f32 %v2429, %v2834
    %v2887 = vadd.f32 %v2434, %v2839
    %v2888 = vadd.f32 %v2437, %v2842
    %v2889 = vadd.f32 %v2442, %v2847
    %v2890 = vadd.f32 %v2445, %v2850
    %v2891 = vadd.f32 %v2450, %v2855
    %v2892 = vadd.f32 %v2453, %v2858
    %s2893 = scalar_lea.vmem [#allocation6], 48
    %v2894 = vld [vmem:[%s2893] sm:$0xf]
    %v2895 = vld [vmem:[%s2893 + $0x4] sm:$0xf]
    %v2896 = vld [vmem:[%s2893 + $0x8] sm:$0xf]
    %v2897 = vld [vmem:[%s2893 + $0xc] sm:$0xf]
    %v2900 = vunpack.c.l.b16 %v1483
    %v2901 = vunpack.c.l.b16 %v1484
    %v2902 = vpack.c.b16 %v2901, %v2900
    %v2907 = vunpack.c.l.b16 %v2894
    %v2908 = vunpack.c.l.b16 %v2895
    %v2909 = vunpack.c.l.b16 %v2896
    %v2910 = vunpack.c.l.b16 %v2897
    %v2911 = vpack.c.b16 %v2908, %v2907
    %v2912 = vpack.c.b16 %v2910, %v2909
    %v2916 = vsel %vm1945, %v2902, 0
    %2918 = vmatprep.subr.bf16.mxu0 0
    %2919 = vmatpush1.bf16.msra.mxu0 %v2911
    %2920 = vmatprep.subr.bf16.mxu0 0
    %2921 = vmatpush1.bf16.msra.mxu0 %v2912
    %2922 = vmatprep.subr.bf16.mxu0 0
    %2923 = vmatpush1.bf16.msra.mxu0 0
    %2924 = vmatprep.subr.bf16.mxu0 0
    %2925 = vmatpush1.bf16.msra.mxu0 0
    %2926 = vmatprep.subr.bf16.mxu0 0
    %2927 = vmatpush1.bf16.msra.mxu0 0
    %2928 = vmatprep.subr.bf16.mxu0 0
    %2929 = vmatpush1.bf16.msra.mxu0 0
    %2930 = vmatprep.subr.bf16.mxu0 0
    %2931 = vmatpush1.bf16.msra.mxu0 0
    %2932 = vmatprep.subr.bf16.mxu0 0
    %2933 = vmatpush1.bf16.msra.mxu0 0
    %2934 = vmatprep.subr.bf16.mxu0 0
    %2935 = vmatpush1.bf16.msra.mxu0 0
    %2936 = vmatprep.subr.bf16.mxu0 0
    %2937 = vmatpush1.bf16.msra.mxu0 0
    %2938 = vmatprep.subr.bf16.mxu0 0
    %2939 = vmatpush1.bf16.msra.mxu0 0
    %2940 = vmatprep.subr.bf16.mxu0 0
    %2941 = vmatpush1.bf16.msra.mxu0 0
    %2942 = vmatprep.subr.bf16.mxu0 0
    %2943 = vmatpush1.bf16.msra.mxu0 0
    %2944 = vmatprep.subr.bf16.mxu0 0
    %2945 = vmatpush1.bf16.msra.mxu0 0
    %2946 = vmatprep.subr.bf16.mxu0 0
    %2947 = vmatpush1.bf16.msra.mxu0 0
    %2948 = vmatprep.subr.bf16.mxu0 0
    %2949 = vmatpush1.bf16.msra.mxu0 0
    %2950 = vmatprep.mubr.bf16.mxu0 0
    %2951 = vmatmul.mubr.bf16.gmra.mrb[0].mxu0 %v2251
    %v2952 = vpop.f32.mrb[0].mxu0
    %v2953 = vadd.f32 0.0, %v2952
    %v2954 = vpop.f32.mrb[0].mxu0
    %v2955 = vpop.f32.mrb[0].mxu0
    %v2956 = vadd.f32 0.0, %v2955
    %v2957 = vpop.f32.mrb[0].mxu0
    %2958 = vmatprep.mubr.bf16.mxu0 0
    %2959 = vmatmul.mubr.bf16.gmra.mrb[0].mxu0 %v2254
    %v2960 = vpop.f32.mrb[0].mxu0
    %v2961 = vadd.f32 0.0, %v2960
    %v2962 = vpop.f32.mrb[0].mxu0
    %v2963 = vpop.f32.mrb[0].mxu0
    %v2964 = vadd.f32 0.0, %v2963
    %v2965 = vpop.f32.mrb[0].mxu0
    %2966 = vmatprep.mubr.bf16.mxu0 0
    %2967 = vmatmul.mubr.bf16.gmra.mrb[0].mxu0 %v2257
    %v2968 = vpop.f32.mrb[0].mxu0
    %v2969 = vadd.f32 0.0, %v2968
    %v2970 = vpop.f32.mrb[0].mxu0
    %v2971 = vpop.f32.mrb[0].mxu0
    %v2972 = vadd.f32 0.0, %v2971
    %v2973 = vpop.f32.mrb[0].mxu0
    %2974 = vmatprep.mubr.bf16.mxu0 0
    %2975 = vmatmul.mubr.bf16.gmra.mrb[0].mxu0 %v2260
    %v2976 = vpop.f32.mrb[0].mxu0
    %v2977 = vadd.f32 0.0, %v2976
    %v2978 = vpop.f32.mrb[0].mxu0
    %v2979 = vpop.f32.mrb[0].mxu0
    %v2980 = vadd.f32 0.0, %v2979
    %v2981 = vpop.f32.mrb[0].mxu0
    %2982 = vmatprep.mubr.bf16.mxu0 0
    %2983 = vmatmul.mubr.bf16.gmra.mrb[0].mxu0 %v2263
    %v2984 = vpop.f32.mrb[0].mxu0
    %v2985 = vadd.f32 0.0, %v2984
    %v2986 = vpop.f32.mrb[0].mxu0
    %v2987 = vpop.f32.mrb[0].mxu0
    %v2988 = vadd.f32 0.0, %v2987
    %v2989 = vpop.f32.mrb[0].mxu0
    %2990 = vmatprep.mubr.bf16.mxu0 0
    %2991 = vmatmul.mubr.bf16.gmra.mrb[0].mxu0 %v2266
    %v2992 = vpop.f32.mrb[0].mxu0
    %v2993 = vadd.f32 0.0, %v2992
    %v2994 = vpop.f32.mrb[0].mxu0
    %v2995 = vpop.f32.mrb[0].mxu0
    %v2996 = vadd.f32 0.0, %v2995
    %v2997 = vpop.f32.mrb[0].mxu0
    %2998 = vmatprep.mubr.bf16.mxu0 0
    %2999 = vmatmul.mubr.bf16.gmra.mrb[0].mxu0 %v2269
    %v3000 = vpop.f32.mrb[0].mxu0
    %v3001 = vadd.f32 0.0, %v3000
    %v3002 = vpop.f32.mrb[0].mxu0
    %v3003 = vpop.f32.mrb[0].mxu0
    %v3004 = vadd.f32 0.0, %v3003
    %v3005 = vpop.f32.mrb[0].mxu0
    %3006 = vmatprep.mubr.bf16.mxu0 0
    %3007 = vmatmul.mubr.bf16.gmra.mrb[0].mxu0 %v2272
    %v3008 = vpop.f32.mrb[0].mxu0
    %v3009 = vadd.f32 0.0, %v3008
    %v3010 = vpop.f32.mrb[0].mxu0
    %v3011 = vpop.f32.mrb[0].mxu0
    %v3012 = vadd.f32 0.0, %v3011
    %v3013 = vpop.f32.mrb[0].mxu0
    %3014 = vmatprep.mubr.bf16.mxu0 0
    %3015 = vmatmul.mubr.bf16.gmra.mrb[0].mxu0 %v2275
    %v3016 = vpop.f32.mrb[0].mxu0
    %v3017 = vadd.f32 0.0, %v3016
    %v3018 = vpop.f32.mrb[0].mxu0
    %v3019 = vpop.f32.mrb[0].mxu0
    %v3020 = vadd.f32 0.0, %v3019
    %v3021 = vpop.f32.mrb[0].mxu0
    %3022 = vmatprep.mubr.bf16.mxu0 0
    %3023 = vmatmul.mubr.bf16.gmra.mrb[0].mxu0 %v2278
    %v3024 = vpop.f32.mrb[0].mxu0
    %v3025 = vadd.f32 0.0, %v3024
    %v3026 = vpop.f32.mrb[0].mxu0
    %v3027 = vpop.f32.mrb[0].mxu0
    %v3028 = vadd.f32 0.0, %v3027
    %v3029 = vpop.f32.mrb[0].mxu0
    %3030 = vmatprep.mubr.bf16.mxu0 0
    %3031 = vmatmul.mubr.bf16.gmra.mrb[0].mxu0 %v2281
    %v3032 = vpop.f32.mrb[0].mxu0
    %v3033 = vadd.f32 0.0, %v3032
    %v3034 = vpop.f32.mrb[0].mxu0
    %v3035 = vpop.f32.mrb[0].mxu0
    %v3036 = vadd.f32 0.0, %v3035
    %v3037 = vpop.f32.mrb[0].mxu0
    %3038 = vmatprep.mubr.bf16.mxu0 0
    %3039 = vmatmul.mubr.bf16.gmra.mrb[0].mxu0 %v2284
    %v3040 = vpop.f32.mrb[0].mxu0
    %v3041 = vadd.f32 0.0, %v3040
    %v3042 = vpop.f32.mrb[0].mxu0
    %v3043 = vpop.f32.mrb[0].mxu0
    %v3044 = vadd.f32 0.0, %v3043
    %v3045 = vpop.f32.mrb[0].mxu0
    %3046 = vmatprep.mubr.bf16.mxu0 0
    %3047 = vmatmul.mubr.bf16.gmra.mrb[0].mxu0 %v2287
    %v3048 = vpop.f32.mrb[0].mxu0
    %v3049 = vadd.f32 0.0, %v3048
    %v3050 = vpop.f32.mrb[0].mxu0
    %v3051 = vpop.f32.mrb[0].mxu0
    %v3052 = vadd.f32 0.0, %v3051
    %v3053 = vpop.f32.mrb[0].mxu0
    %3054 = vmatprep.mubr.bf16.mxu0 0
    %3055 = vmatmul.mubr.bf16.gmra.mrb[0].mxu0 %v2290
    %v3056 = vpop.f32.mrb[0].mxu0
    %v3057 = vadd.f32 0.0, %v3056
    %v3058 = vpop.f32.mrb[0].mxu0
    %v3059 = vpop.f32.mrb[0].mxu0
    %v3060 = vadd.f32 0.0, %v3059
    %v3061 = vpop.f32.mrb[0].mxu0
    %3062 = vmatprep.mubr.bf16.mxu0 0
    %3063 = vmatmul.mubr.bf16.gmra.mrb[0].mxu0 %v2293
    %v3064 = vpop.f32.mrb[0].mxu0
    %v3065 = vadd.f32 0.0, %v3064
    %v3066 = vpop.f32.mrb[0].mxu0
    %v3067 = vpop.f32.mrb[0].mxu0
    %v3068 = vadd.f32 0.0, %v3067
    %v3069 = vpop.f32.mrb[0].mxu0
    %3070 = vmatprep.mubr.bf16.mxu0 0
    %3071 = vmatmul.mubr.bf16.gmra.mrb[0].mxu0 %v2916
    %v3072 = vpop.f32.mrb[0].mxu0
    %v3073 = vadd.f32 0.0, %v3072
    %v3074 = vpop.f32.mrb[0].mxu0
    %v3075 = vpop.f32.mrb[0].mxu0
    %v3076 = vadd.f32 0.0, %v3075
    %v3077 = vpop.f32.mrb[0].mxu0
    %3078 = vdwg.mxu0
    %v3079 = vadd.f32 %v2861, %v2953
    %v3080 = vadd.f32 %v2862, %v2956
    %v3081 = vadd.f32 %v2863, %v2961
    %v3082 = vadd.f32 %v2864, %v2964
    %v3083 = vadd.f32 %v2865, %v2969
    %v3084 = vadd.f32 %v2866, %v2972
    %v3085 = vadd.f32 %v2867, %v2977
    %v3086 = vadd.f32 %v2868, %v2980
    %v3087 = vadd.f32 %v2869, %v2985
    %v3088 = vadd.f32 %v2870, %v2988
    %v3089 = vadd.f32 %v2871, %v2993
    %v3090 = vadd.f32 %v2872, %v2996
    %v3091 = vadd.f32 %v2873, %v3001
    %v3092 = vadd.f32 %v2874, %v3004
    %v3093 = vadd.f32 %v2875, %v3009
    %v3094 = vadd.f32 %v2876, %v3012
    %v3095 = vadd.f32 %v2877, %v3017
    %v3096 = vadd.f32 %v2878, %v3020
    %v3097 = vadd.f32 %v2879, %v3025
    %v3098 = vadd.f32 %v2880, %v3028
    %v3099 = vadd.f32 %v2881, %v3033
    %v3100 = vadd.f32 %v2882, %v3036
    %v3101 = vadd.f32 %v2883, %v3041
    %v3102 = vadd.f32 %v2884, %v3044
    %v3103 = vadd.f32 %v2885, %v3049
    %v3104 = vadd.f32 %v2886, %v3052
    %v3105 = vadd.f32 %v2887, %v3057
    %v3106 = vadd.f32 %v2888, %v3060
    %v3107 = vadd.f32 %v2889, %v3065
    %v3108 = vadd.f32 %v2890, %v3068
    %v3109 = vadd.f32 %v2891, %v3073
    %v3110 = vadd.f32 %v2892, %v3076
    %v3112 = vshrl.u32 %v1483, 16
    %v3114 = vrot.slane %v3112, 4
    %v3115 = vshll.u32 %v1483, 16
    %v3117 = vrot.slane %v3115, 5
    %v3118 = vor.u32 %v3114, %v3117
    %v3119 = vrot.slane %v3118, 4
    %v3121 = vshll.u32 %v1484, 16
    %v3123 = vrot.slane %v3121, 5
    %v3124 = vsel %vm1495, %v3119, %v3123
    %v3125 = vshrl.u32 %v1484, 16
    %v3127 = vrot.slane %v3125, 4
    %v3128 = vor.u32 %v3127, %v3123
    %v3129 = vrot.slane %v3128, 4
    %v3131 = vshll.u32 %v1485, 16
    %v3133 = vrot.slane %v3131, 5
    %v3134 = vsel %vm1495, %v3129, %v3133
    %s3135 = scalar_lea.vmem [#allocation6], 64
    %v3136 = vld [vmem:[%s3135] sm:$0xf]
    %v3137 = vld [vmem:[%s3135 + $0x4] sm:$0xf]
    %v3138 = vld [vmem:[%s3135 + $0x8] sm:$0xf]
    %v3139 = vld [vmem:[%s3135 + $0xc] sm:$0xf]
    %v3140 = vunpack.c.l.b16 %v3124
    %v3141 = vunpack.c.l.b16 %v3134
    %v3142 = vpack.c.b16 %v3141, %v3140
    %v3147 = vunpack.c.l.b16 %v3136
    %v3148 = vunpack.c.l.b16 %v3137
    %v3149 = vunpack.c.l.b16 %v3138
    %v3150 = vunpack.c.l.b16 %v3139
    %v3151 = vpack.c.b16 %v3148, %v3147
    %v3152 = vpack.c.b16 %v3150, %v3149
    %v3156 = vsel %vm1945, %v3142, 0
    %3158 = vmatprep.subr.bf16.mxu0 0
    %3159 = vmatpush1.bf16.msra.mxu0 %v3151
    %3160 = vmatprep.subr.bf16.mxu0 0
    %3161 = vmatpush1.bf16.msra.mxu0 %v3152
    %3162 = vmatprep.subr.bf16.mxu0 0
    %3163 = vmatpush1.bf16.msra.mxu0 0
    %3164 = vmatprep.subr.bf16.mxu0 0
    %3165 = vmatpush1.bf16.msra.mxu0 0
    %3166 = vmatprep.subr.bf16.mxu0 0
    %3167 = vmatpush1.bf16.msra.mxu0 0
    %3168 = vmatprep.subr.bf16.mxu0 0
    %3169 = vmatpush1.bf16.msra.mxu0 0
    %3170 = vmatprep.subr.bf16.mxu0 0
    %3171 = vmatpush1.bf16.msra.mxu0 0
    %3172 = vmatprep.subr.bf16.mxu0 0
    %3173 = vmatpush1.bf16.msra.mxu0 0
    %3174 = vmatprep.subr.bf16.mxu0 0
    %3175 = vmatpush1.bf16.msra.mxu0 0
    %3176 = vmatprep.subr.bf16.mxu0 0
    %3177 = vmatpush1.bf16.msra.mxu0 0
    %3178 = vmatprep.subr.bf16.mxu0 0
    %3179 = vmatpush1.bf16.msra.mxu0 0
    %3180 = vmatprep.subr.bf16.mxu0 0
    %3181 = vmatpush1.bf16.msra.mxu0 0
    %3182 = vmatprep.subr.bf16.mxu0 0
    %3183 = vmatpush1.bf16.msra.mxu0 0
    %3184 = vmatprep.subr.bf16.mxu0 0
    %3185 = vmatpush1.bf16.msra.mxu0 0
    %3186 = vmatprep.subr.bf16.mxu0 0
    %3187 = vmatpush1.bf16.msra.mxu0 0
    %3188 = vmatprep.subr.bf16.mxu0 0
    %3189 = vmatpush1.bf16.msra.mxu0 0
    %3190 = vmatprep.mubr.bf16.mxu0 0
    %3191 = vmatmul.mubr.bf16.gmra.mrb[0].mxu0 %v1950
    %v3192 = vpop.f32.mrb[0].mxu0
    %v3193 = vadd.f32 0.0, %v3192
    %v3194 = vpop.f32.mrb[0].mxu0
    %v3195 = vpop.f32.mrb[0].mxu0
    %v3196 = vadd.f32 0.0, %v3195
    %v3197 = vpop.f32.mrb[0].mxu0
    %3198 = vmatprep.mubr.bf16.mxu0 0
    %3199 = vmatmul.mubr.bf16.gmra.mrb[0].mxu0 %v1953
    %v3200 = vpop.f32.mrb[0].mxu0
    %v3201 = vadd.f32 0.0, %v3200
    %v3202 = vpop.f32.mrb[0].mxu0
    %v3203 = vpop.f32.mrb[0].mxu0
    %v3204 = vadd.f32 0.0, %v3203
    %v3205 = vpop.f32.mrb[0].mxu0
    %3206 = vmatprep.mubr.bf16.mxu0 0
    %3207 = vmatmul.mubr.bf16.gmra.mrb[0].mxu0 %v1956
    %v3208 = vpop.f32.mrb[0].mxu0
    %v3209 = vadd.f32 0.0, %v3208
    %v3210 = vpop.f32.mrb[0].mxu0
    %v3211 = vpop.f32.mrb[0].mxu0
    %v3212 = vadd.f32 0.0, %v3211
    %v3213 = vpop.f32.mrb[0].mxu0
    %3214 = vmatprep.mubr.bf16.mxu0 0
    %3215 = vmatmul.mubr.bf16.gmra.mrb[0].mxu0 %v1959
    %v3216 = vpop.f32.mrb[0].mxu0
    %v3217 = vadd.f32 0.0, %v3216
    %v3218 = vpop.f32.mrb[0].mxu0
    %v3219 = vpop.f32.mrb[0].mxu0
    %v3220 = vadd.f32 0.0, %v3219
    %v3221 = vpop.f32.mrb[0].mxu0
    %3222 = vmatprep.mubr.bf16.mxu0 0
    %3223 = vmatmul.mubr.bf16.gmra.mrb[0].mxu0 %v1962
    %v3224 = vpop.f32.mrb[0].mxu0
    %v3225 = vadd.f32 0.0, %v3224
    %v3226 = vpop.f32.mrb[0].mxu0
    %v3227 = vpop.f32.mrb[0].mxu0
    %v3228 = vadd.f32 0.0, %v3227
    %v3229 = vpop.f32.mrb[0].mxu0
    %3230 = vmatprep.mubr.bf16.mxu0 0
    %3231 = vmatmul.mubr.bf16.gmra.mrb[0].mxu0 %v1965
    %v3232 = vpop.f32.mrb[0].mxu0
    %v3233 = vadd.f32 0.0, %v3232
    %v3234 = vpop.f32.mrb[0].mxu0
    %v3235 = vpop.f32.mrb[0].mxu0
    %v3236 = vadd.f32 0.0, %v3235
    %v3237 = vpop.f32.mrb[0].mxu0
    %3238 = vmatprep.mubr.bf16.mxu0 0
    %3239 = vmatmul.mubr.bf16.gmra.mrb[0].mxu0 %v1968
    %v3240 = vpop.f32.mrb[0].mxu0
    %v3241 = vadd.f32 0.0, %v3240
    %v3242 = vpop.f32.mrb[0].mxu0
    %v3243 = vpop.f32.mrb[0].mxu0
    %v3244 = vadd.f32 0.0, %v3243
    %v3245 = vpop.f32.mrb[0].mxu0
    %3246 = vmatprep.mubr.bf16.mxu0 0
    %3247 = vmatmul.mubr.bf16.gmra.mrb[0].mxu0 %v1971
    %v3248 = vpop.f32.mrb[0].mxu0
    %v3249 = vadd.f32 0.0, %v3248
    %v3250 = vpop.f32.mrb[0].mxu0
    %v3251 = vpop.f32.mrb[0].mxu0
    %v3252 = vadd.f32 0.0, %v3251
    %v3253 = vpop.f32.mrb[0].mxu0
    %3254 = vmatprep.mubr.bf16.mxu0 0
    %3255 = vmatmul.mubr.bf16.gmra.mrb[0].mxu0 %v1974
    %v3256 = vpop.f32.mrb[0].mxu0
    %v3257 = vadd.f32 0.0, %v3256
    %v3258 = vpop.f32.mrb[0].mxu0
    %v3259 = vpop.f32.mrb[0].mxu0
    %v3260 = vadd.f32 0.0, %v3259
    %v3261 = vpop.f32.mrb[0].mxu0
    %3262 = vmatprep.mubr.bf16.mxu0 0
    %3263 = vmatmul.mubr.bf16.gmra.mrb[0].mxu0 %v1977
    %v3264 = vpop.f32.mrb[0].mxu0
    %v3265 = vadd.f32 0.0, %v3264
    %v3266 = vpop.f32.mrb[0].mxu0
    %v3267 = vpop.f32.mrb[0].mxu0
    %v3268 = vadd.f32 0.0, %v3267
    %v3269 = vpop.f32.mrb[0].mxu0
    %3270 = vmatprep.mubr.bf16.mxu0 0
    %3271 = vmatmul.mubr.bf16.gmra.mrb[0].mxu0 %v1980
    %v3272 = vpop.f32.mrb[0].mxu0
    %v3273 = vadd.f32 0.0, %v3272
    %v3274 = vpop.f32.mrb[0].mxu0
    %v3275 = vpop.f32.mrb[0].mxu0
    %v3276 = vadd.f32 0.0, %v3275
    %v3277 = vpop.f32.mrb[0].mxu0
    %3278 = vmatprep.mubr.bf16.mxu0 0
    %3279 = vmatmul.mubr.bf16.gmra.mrb[0].mxu0 %v1983
    %v3280 = vpop.f32.mrb[0].mxu0
    %v3281 = vadd.f32 0.0, %v3280
    %v3282 = vpop.f32.mrb[0].mxu0
    %v3283 = vpop.f32.mrb[0].mxu0
    %v3284 = vadd.f32 0.0, %v3283
    %v3285 = vpop.f32.mrb[0].mxu0
    %3286 = vmatprep.mubr.bf16.mxu0 0
    %3287 = vmatmul.mubr.bf16.gmra.mrb[0].mxu0 %v1986
    %v3288 = vpop.f32.mrb[0].mxu0
    %v3289 = vadd.f32 0.0, %v3288
    %v3290 = vpop.f32.mrb[0].mxu0
    %v3291 = vpop.f32.mrb[0].mxu0
    %v3292 = vadd.f32 0.0, %v3291
    %v3293 = vpop.f32.mrb[0].mxu0
    %3294 = vmatprep.mubr.bf16.mxu0 0
    %3295 = vmatmul.mubr.bf16.gmra.mrb[0].mxu0 %v1989
    %v3296 = vpop.f32.mrb[0].mxu0
    %v3297 = vadd.f32 0.0, %v3296
    %v3298 = vpop.f32.mrb[0].mxu0
    %v3299 = vpop.f32.mrb[0].mxu0
    %v3300 = vadd.f32 0.0, %v3299
    %v3301 = vpop.f32.mrb[0].mxu0
    %3302 = vmatprep.mubr.bf16.mxu0 0
    %3303 = vmatmul.mubr.bf16.gmra.mrb[0].mxu0 %v1992
    %v3304 = vpop.f32.mrb[0].mxu0
    %v3305 = vadd.f32 0.0, %v3304
    %v3306 = vpop.f32.mrb[0].mxu0
    %v3307 = vpop.f32.mrb[0].mxu0
    %v3308 = vadd.f32 0.0, %v3307
    %v3309 = vpop.f32.mrb[0].mxu0
    %3310 = vmatprep.mubr.bf16.mxu0 0
    %3311 = vmatmul.mubr.bf16.gmra.mrb[0].mxu0 %v3156
    %v3312 = vpop.f32.mrb[0].mxu0
    %v3313 = vadd.f32 0.0, %v3312
    %v3314 = vpop.f32.mrb[0].mxu0
    %v3315 = vpop.f32.mrb[0].mxu0
    %v3316 = vadd.f32 0.0, %v3315
    %v3317 = vpop.f32.mrb[0].mxu0
    %3318 = vdwg.mxu0
    %v3319 = vadd.f32 %v3079, %v3193
    %v3320 = vadd.f32 %v3080, %v3196
    %v3321 = vadd.f32 %v3081, %v3201
    %v3322 = vadd.f32 %v3082, %v3204
    %v3323 = vadd.f32 %v3083, %v3209
    %v3324 = vadd.f32 %v3084, %v3212
    %v3325 = vadd.f32 %v3085, %v3217
    %v3326 = vadd.f32 %v3086, %v3220
    %v3327 = vadd.f32 %v3087, %v3225
    %v3328 = vadd.f32 %v3088, %v3228
    %v3329 = vadd.f32 %v3089, %v3233
    %v3330 = vadd.f32 %v3090, %v3236
    %v3331 = vadd.f32 %v3091, %v3241
    %v3332 = vadd.f32 %v3092, %v3244
    %v3333 = vadd.f32 %v3093, %v3249
    %v3334 = vadd.f32 %v3094, %v3252
    %v3335 = vadd.f32 %v3095, %v3257
    %v3336 = vadd.f32 %v3096, %v3260
    %v3337 = vadd.f32 %v3097, %v3265
    %v3338 = vadd.f32 %v3098, %v3268
    %v3339 = vadd.f32 %v3099, %v3273
    %v3340 = vadd.f32 %v3100, %v3276
    %v3341 = vadd.f32 %v3101, %v3281
    %v3342 = vadd.f32 %v3102, %v3284
    %v3343 = vadd.f32 %v3103, %v3289
    %v3344 = vadd.f32 %v3104, %v3292
    %v3345 = vadd.f32 %v3105, %v3297
    %v3346 = vadd.f32 %v3106, %v3300
    %v3347 = vadd.f32 %v3107, %v3305
    %v3348 = vadd.f32 %v3108, %v3308
    %v3349 = vadd.f32 %v3109, %v3313
    %v3350 = vadd.f32 %v3110, %v3316
    %v3352 = vrot.slane %v1483, 5
    %v3353 = vrot.slane %v3352, 4
    %v3354 = vrot.slane %v1484, 5
    %v3355 = vsel %vm2474, %v3353, %v3354
    %v3356 = vrot.slane %v3354, 4
    %v3357 = vrot.slane %v1485, 5
    %v3358 = vsel %vm2474, %v3356, %v3357
    %s3359 = scalar_lea.vmem [#allocation6], 80
    %v3360 = vld [vmem:[%s3359] sm:$0xf]
    %v3361 = vld [vmem:[%s3359 + $0x4] sm:$0xf]
    %v3362 = vld [vmem:[%s3359 + $0x8] sm:$0xf]
    %v3363 = vld [vmem:[%s3359 + $0xc] sm:$0xf]
    %v3364 = vunpack.c.l.b16 %v3355
    %v3365 = vunpack.c.l.b16 %v3358
    %v3366 = vpack.c.b16 %v3365, %v3364
    %v3371 = vunpack.c.l.b16 %v3360
    %v3372 = vunpack.c.l.b16 %v3361
    %v3373 = vunpack.c.l.b16 %v3362
    %v3374 = vunpack.c.l.b16 %v3363
    %v3375 = vpack.c.b16 %v3372, %v3371
    %v3376 = vpack.c.b16 %v3374, %v3373
    %v3380 = vsel %vm1945, %v3366, 0
    %3382 = vmatprep.subr.bf16.mxu0 0
    %3383 = vmatpush1.bf16.msra.mxu0 %v3375
    %3384 = vmatprep.subr.bf16.mxu0 0
    %3385 = vmatpush1.bf16.msra.mxu0 %v3376
    %3386 = vmatprep.subr.bf16.mxu0 0
    %3387 = vmatpush1.bf16.msra.mxu0 0
    %3388 = vmatprep.subr.bf16.mxu0 0
    %3389 = vmatpush1.bf16.msra.mxu0 0
    %3390 = vmatprep.subr.bf16.mxu0 0
    %3391 = vmatpush1.bf16.msra.mxu0 0
    %3392 = vmatprep.subr.bf16.mxu0 0
    %3393 = vmatpush1.bf16.msra.mxu0 0
    %3394 = vmatprep.subr.bf16.mxu0 0
    %3395 = vmatpush1.bf16.msra.mxu0 0
    %3396 = vmatprep.subr.bf16.mxu0 0
    %3397 = vmatpush1.bf16.msra.mxu0 0
    %3398 = vmatprep.subr.bf16.mxu0 0
    %3399 = vmatpush1.bf16.msra.mxu0 0
    %3400 = vmatprep.subr.bf16.mxu0 0
    %3401 = vmatpush1.bf16.msra.mxu0 0
    %3402 = vmatprep.subr.bf16.mxu0 0
    %3403 = vmatpush1.bf16.msra.mxu0 0
    %3404 = vmatprep.subr.bf16.mxu0 0
    %3405 = vmatpush1.bf16.msra.mxu0 0
    %3406 = vmatprep.subr.bf16.mxu0 0
    %3407 = vmatpush1.bf16.msra.mxu0 0
    %3408 = vmatprep.subr.bf16.mxu0 0
    %3409 = vmatpush1.bf16.msra.mxu0 0
    %3410 = vmatprep.subr.bf16.mxu0 0
    %3411 = vmatpush1.bf16.msra.mxu0 0
    %3412 = vmatprep.subr.bf16.mxu0 0
    %3413 = vmatpush1.bf16.msra.mxu0 0
    %3414 = vmatprep.mubr.bf16.mxu0 0
    %3415 = vmatmul.mubr.bf16.gmra.mrb[0].mxu0 %v2656
    %v3416 = vpop.f32.mrb[0].mxu0
    %v3417 = vadd.f32 0.0, %v3416
    %v3418 = vpop.f32.mrb[0].mxu0
    %v3419 = vpop.f32.mrb[0].mxu0
    %v3420 = vadd.f32 0.0, %v3419
    %v3421 = vpop.f32.mrb[0].mxu0
    %3422 = vmatprep.mubr.bf16.mxu0 0
    %3423 = vmatmul.mubr.bf16.gmra.mrb[0].mxu0 %v2659
    %v3424 = vpop.f32.mrb[0].mxu0
    %v3425 = vadd.f32 0.0, %v3424
    %v3426 = vpop.f32.mrb[0].mxu0
    %v3427 = vpop.f32.mrb[0].mxu0
    %v3428 = vadd.f32 0.0, %v3427
    %v3429 = vpop.f32.mrb[0].mxu0
    %3430 = vmatprep.mubr.bf16.mxu0 0
    %3431 = vmatmul.mubr.bf16.gmra.mrb[0].mxu0 %v2662
    %v3432 = vpop.f32.mrb[0].mxu0
    %v3433 = vadd.f32 0.0, %v3432
    %v3434 = vpop.f32.mrb[0].mxu0
    %v3435 = vpop.f32.mrb[0].mxu0
    %v3436 = vadd.f32 0.0, %v3435
    %v3437 = vpop.f32.mrb[0].mxu0
    %3438 = vmatprep.mubr.bf16.mxu0 0
    %3439 = vmatmul.mubr.bf16.gmra.mrb[0].mxu0 %v2665
    %v3440 = vpop.f32.mrb[0].mxu0
    %v3441 = vadd.f32 0.0, %v3440
    %v3442 = vpop.f32.mrb[0].mxu0
    %v3443 = vpop.f32.mrb[0].mxu0
    %v3444 = vadd.f32 0.0, %v3443
    %v3445 = vpop.f32.mrb[0].mxu0
    %3446 = vmatprep.mubr.bf16.mxu0 0
    %3447 = vmatmul.mubr.bf16.gmra.mrb[0].mxu0 %v2668
    %v3448 = vpop.f32.mrb[0].mxu0
    %v3449 = vadd.f32 0.0, %v3448
    %v3450 = vpop.f32.mrb[0].mxu0
    %v3451 = vpop.f32.mrb[0].mxu0
    %v3452 = vadd.f32 0.0, %v3451
    %v3453 = vpop.f32.mrb[0].mxu0
    %3454 = vmatprep.mubr.bf16.mxu0 0
    %3455 = vmatmul.mubr.bf16.gmra.mrb[0].mxu0 %v2671
    %v3456 = vpop.f32.mrb[0].mxu0
    %v3457 = vadd.f32 0.0, %v3456
    %v3458 = vpop.f32.mrb[0].mxu0
    %v3459 = vpop.f32.mrb[0].mxu0
    %v3460 = vadd.f32 0.0, %v3459
    %v3461 = vpop.f32.mrb[0].mxu0
    %3462 = vmatprep.mubr.bf16.mxu0 0
    %3463 = vmatmul.mubr.bf16.gmra.mrb[0].mxu0 %v2674
    %v3464 = vpop.f32.mrb[0].mxu0
    %v3465 = vadd.f32 0.0, %v3464
    %v3466 = vpop.f32.mrb[0].mxu0
    %v3467 = vpop.f32.mrb[0].mxu0
    %v3468 = vadd.f32 0.0, %v3467
    %v3469 = vpop.f32.mrb[0].mxu0
    %3470 = vmatprep.mubr.bf16.mxu0 0
    %3471 = vmatmul.mubr.bf16.gmra.mrb[0].mxu0 %v2677
    %v3472 = vpop.f32.mrb[0].mxu0
    %v3473 = vadd.f32 0.0, %v3472
    %v3474 = vpop.f32.mrb[0].mxu0
    %v3475 = vpop.f32.mrb[0].mxu0
    %v3476 = vadd.f32 0.0, %v3475
    %v3477 = vpop.f32.mrb[0].mxu0
    %3478 = vmatprep.mubr.bf16.mxu0 0
    %3479 = vmatmul.mubr.bf16.gmra.mrb[0].mxu0 %v2680
    %v3480 = vpop.f32.mrb[0].mxu0
    %v3481 = vadd.f32 0.0, %v3480
    %v3482 = vpop.f32.mrb[0].mxu0
    %v3483 = vpop.f32.mrb[0].mxu0
    %v3484 = vadd.f32 0.0, %v3483
    %v3485 = vpop.f32.mrb[0].mxu0
    %3486 = vmatprep.mubr.bf16.mxu0 0
    %3487 = vmatmul.mubr.bf16.gmra.mrb[0].mxu0 %v2683
    %v3488 = vpop.f32.mrb[0].mxu0
    %v3489 = vadd.f32 0.0, %v3488
    %v3490 = vpop.f32.mrb[0].mxu0
    %v3491 = vpop.f32.mrb[0].mxu0
    %v3492 = vadd.f32 0.0, %v3491
    %v3493 = vpop.f32.mrb[0].mxu0
    %3494 = vmatprep.mubr.bf16.mxu0 0
    %3495 = vmatmul.mubr.bf16.gmra.mrb[0].mxu0 %v2686
    %v3496 = vpop.f32.mrb[0].mxu0
    %v3497 = vadd.f32 0.0, %v3496
    %v3498 = vpop.f32.mrb[0].mxu0
    %v3499 = vpop.f32.mrb[0].mxu0
    %v3500 = vadd.f32 0.0, %v3499
    %v3501 = vpop.f32.mrb[0].mxu0
    %3502 = vmatprep.mubr.bf16.mxu0 0
    %3503 = vmatmul.mubr.bf16.gmra.mrb[0].mxu0 %v2689
    %v3504 = vpop.f32.mrb[0].mxu0
    %v3505 = vadd.f32 0.0, %v3504
    %v3506 = vpop.f32.mrb[0].mxu0
    %v3507 = vpop.f32.mrb[0].mxu0
    %v3508 = vadd.f32 0.0, %v3507
    %v3509 = vpop.f32.mrb[0].mxu0
    %3510 = vmatprep.mubr.bf16.mxu0 0
    %3511 = vmatmul.mubr.bf16.gmra.mrb[0].mxu0 %v2692
    %v3512 = vpop.f32.mrb[0].mxu0
    %v3513 = vadd.f32 0.0, %v3512
    %v3514 = vpop.f32.mrb[0].mxu0
    %v3515 = vpop.f32.mrb[0].mxu0
    %v3516 = vadd.f32 0.0, %v3515
    %v3517 = vpop.f32.mrb[0].mxu0
    %3518 = vmatprep.mubr.bf16.mxu0 0
    %3519 = vmatmul.mubr.bf16.gmra.mrb[0].mxu0 %v2695
    %v3520 = vpop.f32.mrb[0].mxu0
    %v3521 = vadd.f32 0.0, %v3520
    %v3522 = vpop.f32.mrb[0].mxu0
    %v3523 = vpop.f32.mrb[0].mxu0
    %v3524 = vadd.f32 0.0, %v3523
    %v3525 = vpop.f32.mrb[0].mxu0
    %3526 = vmatprep.mubr.bf16.mxu0 0
    %3527 = vmatmul.mubr.bf16.gmra.mrb[0].mxu0 %v2698
    %v3528 = vpop.f32.mrb[0].mxu0
    %v3529 = vadd.f32 0.0, %v3528
    %v3530 = vpop.f32.mrb[0].mxu0
    %v3531 = vpop.f32.mrb[0].mxu0
    %v3532 = vadd.f32 0.0, %v3531
    %v3533 = vpop.f32.mrb[0].mxu0
    %3534 = vmatprep.mubr.bf16.mxu0 0
    %3535 = vmatmul.mubr.bf16.gmra.mrb[0].mxu0 %v3380
    %v3536 = vpop.f32.mrb[0].mxu0
    %v3537 = vadd.f32 0.0, %v3536
    %v3538 = vpop.f32.mrb[0].mxu0
    %v3539 = vpop.f32.mrb[0].mxu0
    %v3540 = vadd.f32 0.0, %v3539
    %v3541 = vpop.f32.mrb[0].mxu0
    %3542 = vdwg.mxu0
    %v3543 = vadd.f32 %v3319, %v3417
    %v3544 = vadd.f32 %v3320, %v3420
    %v3545 = vadd.f32 %v3321, %v3425
    %v3546 = vadd.f32 %v3322, %v3428
    %v3547 = vadd.f32 %v3323, %v3433
    %v3548 = vadd.f32 %v3324, %v3436
    %v3549 = vadd.f32 %v3325, %v3441
    %v3550 = vadd.f32 %v3326, %v3444
    %v3551 = vadd.f32 %v3327, %v3449
    %v3552 = vadd.f32 %v3328, %v3452
    %v3553 = vadd.f32 %v3329, %v3457
    %v3554 = vadd.f32 %v3330, %v3460
    %v3555 = vadd.f32 %v3331, %v3465
    %v3556 = vadd.f32 %v3332, %v3468
    %v3557 = vadd.f32 %v3333, %v3473
    %v3558 = vadd.f32 %v3334, %v3476
    %v3559 = vadd.f32 %v3335, %v3481
    %v3560 = vadd.f32 %v3336, %v3484
    %v3561 = vadd.f32 %v3337, %v3489
    %v3562 = vadd.f32 %v3338, %v3492
    %v3563 = vadd.f32 %v3339, %v3497
    %v3564 = vadd.f32 %v3340, %v3500
    %v3565 = vadd.f32 %v3341, %v3505
    %v3566 = vadd.f32 %v3342, %v3508
    %v3567 = vadd.f32 %v3343, %v3513
    %v3568 = vadd.f32 %v3344, %v3516
    %v3569 = vadd.f32 %v3345, %v3521
    %v3570 = vadd.f32 %v3346, %v3524
    %v3571 = vadd.f32 %v3347, %v3529
    %v3572 = vadd.f32 %v3348, %v3532
    %v3573 = vadd.f32 %v3349, %v3537
    %v3574 = vadd.f32 %v3350, %v3540
    %s3575 = scalar_lea.vmem [#allocation6], 96
    %v3576 = vld [vmem:[%s3575] sm:$0xf]
    %v3577 = vld [vmem:[%s3575 + $0x4] sm:$0xf]
    %v3578 = vld [vmem:[%s3575 + $0x8] sm:$0xf]
    %v3579 = vld [vmem:[%s3575 + $0xc] sm:$0xf]
    %v3582 = vunpack.c.l.b16 %v1486
    %v3583 = vunpack.c.l.b16 %v1487
    %v3584 = vpack.c.b16 %v3583, %v3582
    %v3589 = vunpack.c.l.b16 %v3576
    %v3590 = vunpack.c.l.b16 %v3577
    %v3591 = vunpack.c.l.b16 %v3578
    %v3592 = vunpack.c.l.b16 %v3579
    %v3593 = vpack.c.b16 %v3590, %v3589
    %v3594 = vpack.c.b16 %v3592, %v3591
    %v3598 = vsel %vm1945, %v3584, 0
    %3600 = vmatprep.subr.bf16.mxu0 0
    %3601 = vmatpush1.bf16.msra.mxu0 %v3593
    %3602 = vmatprep.subr.bf16.mxu0 0
    %3603 = vmatpush1.bf16.msra.mxu0 %v3594
    %3604 = vmatprep.subr.bf16.mxu0 0
    %3605 = vmatpush1.bf16.msra.mxu0 0
    %3606 = vmatprep.subr.bf16.mxu0 0
    %3607 = vmatpush1.bf16.msra.mxu0 0
    %3608 = vmatprep.subr.bf16.mxu0 0
    %3609 = vmatpush1.bf16.msra.mxu0 0
    %3610 = vmatprep.subr.bf16.mxu0 0
    %3611 = vmatpush1.bf16.msra.mxu0 0
    %3612 = vmatprep.subr.bf16.mxu0 0
    %3613 = vmatpush1.bf16.msra.mxu0 0
    %3614 = vmatprep.subr.bf16.mxu0 0
    %3615 = vmatpush1.bf16.msra.mxu0 0
    %3616 = vmatprep.subr.bf16.mxu0 0
    %3617 = vmatpush1.bf16.msra.mxu0 0
    %3618 = vmatprep.subr.bf16.mxu0 0
    %3619 = vmatpush1.bf16.msra.mxu0 0
    %3620 = vmatprep.subr.bf16.mxu0 0
    %3621 = vmatpush1.bf16.msra.mxu0 0
    %3622 = vmatprep.subr.bf16.mxu0 0
    %3623 = vmatpush1.bf16.msra.mxu0 0
    %3624 = vmatprep.subr.bf16.mxu0 0
    %3625 = vmatpush1.bf16.msra.mxu0 0
    %3626 = vmatprep.subr.bf16.mxu0 0
    %3627 = vmatpush1.bf16.msra.mxu0 0
    %3628 = vmatprep.subr.bf16.mxu0 0
    %3629 = vmatpush1.bf16.msra.mxu0 0
    %3630 = vmatprep.subr.bf16.mxu0 0
    %3631 = vmatpush1.bf16.msra.mxu0 0
    %3632 = vmatprep.mubr.bf16.mxu0 0
    %3633 = vmatmul.mubr.bf16.gmra.mrb[0].mxu0 %v2254
    %v3634 = vpop.f32.mrb[0].mxu0
    %v3635 = vadd.f32 0.0, %v3634
    %v3636 = vpop.f32.mrb[0].mxu0
    %v3637 = vpop.f32.mrb[0].mxu0
    %v3638 = vadd.f32 0.0, %v3637
    %v3639 = vpop.f32.mrb[0].mxu0
    %3640 = vmatprep.mubr.bf16.mxu0 0
    %3641 = vmatmul.mubr.bf16.gmra.mrb[0].mxu0 %v2257
    %v3642 = vpop.f32.mrb[0].mxu0
    %v3643 = vadd.f32 0.0, %v3642
    %v3644 = vpop.f32.mrb[0].mxu0
    %v3645 = vpop.f32.mrb[0].mxu0
    %v3646 = vadd.f32 0.0, %v3645
    %v3647 = vpop.f32.mrb[0].mxu0
    %3648 = vmatprep.mubr.bf16.mxu0 0
    %3649 = vmatmul.mubr.bf16.gmra.mrb[0].mxu0 %v2260
    %v3650 = vpop.f32.mrb[0].mxu0
    %v3651 = vadd.f32 0.0, %v3650
    %v3652 = vpop.f32.mrb[0].mxu0
    %v3653 = vpop.f32.mrb[0].mxu0
    %v3654 = vadd.f32 0.0, %v3653
    %v3655 = vpop.f32.mrb[0].mxu0
    %3656 = vmatprep.mubr.bf16.mxu0 0
    %3657 = vmatmul.mubr.bf16.gmra.mrb[0].mxu0 %v2263
    %v3658 = vpop.f32.mrb[0].mxu0
    %v3659 = vadd.f32 0.0, %v3658
    %v3660 = vpop.f32.mrb[0].mxu0
    %v3661 = vpop.f32.mrb[0].mxu0
    %v3662 = vadd.f32 0.0, %v3661
    %v3663 = vpop.f32.mrb[0].mxu0
    %3664 = vmatprep.mubr.bf16.mxu0 0
    %3665 = vmatmul.mubr.bf16.gmra.mrb[0].mxu0 %v2266
    %v3666 = vpop.f32.mrb[0].mxu0
    %v3667 = vadd.f32 0.0, %v3666
    %v3668 = vpop.f32.mrb[0].mxu0
    %v3669 = vpop.f32.mrb[0].mxu0
    %v3670 = vadd.f32 0.0, %v3669
    %v3671 = vpop.f32.mrb[0].mxu0
    %3672 = vmatprep.mubr.bf16.mxu0 0
    %3673 = vmatmul.mubr.bf16.gmra.mrb[0].mxu0 %v2269
    %v3674 = vpop.f32.mrb[0].mxu0
    %v3675 = vadd.f32 0.0, %v3674
    %v3676 = vpop.f32.mrb[0].mxu0
    %v3677 = vpop.f32.mrb[0].mxu0
    %v3678 = vadd.f32 0.0, %v3677
    %v3679 = vpop.f32.mrb[0].mxu0
    %3680 = vmatprep.mubr.bf16.mxu0 0
    %3681 = vmatmul.mubr.bf16.gmra.mrb[0].mxu0 %v2272
    %v3682 = vpop.f32.mrb[0].mxu0
    %v3683 = vadd.f32 0.0, %v3682
    %v3684 = vpop.f32.mrb[0].mxu0
    %v3685 = vpop.f32.mrb[0].mxu0
    %v3686 = vadd.f32 0.0, %v3685
    %v3687 = vpop.f32.mrb[0].mxu0
    %3688 = vmatprep.mubr.bf16.mxu0 0
    %3689 = vmatmul.mubr.bf16.gmra.mrb[0].mxu0 %v2275
    %v3690 = vpop.f32.mrb[0].mxu0
    %v3691 = vadd.f32 0.0, %v3690
    %v3692 = vpop.f32.mrb[0].mxu0
    %v3693 = vpop.f32.mrb[0].mxu0
    %v3694 = vadd.f32 0.0, %v3693
    %v3695 = vpop.f32.mrb[0].mxu0
    %3696 = vmatprep.mubr.bf16.mxu0 0
    %3697 = vmatmul.mubr.bf16.gmra.mrb[0].mxu0 %v2278
    %v3698 = vpop.f32.mrb[0].mxu0
    %v3699 = vadd.f32 0.0, %v3698
    %v3700 = vpop.f32.mrb[0].mxu0
    %v3701 = vpop.f32.mrb[0].mxu0
    %v3702 = vadd.f32 0.0, %v3701
    %v3703 = vpop.f32.mrb[0].mxu0
    %3704 = vmatprep.mubr.bf16.mxu0 0
    %3705 = vmatmul.mubr.bf16.gmra.mrb[0].mxu0 %v2281
    %v3706 = vpop.f32.mrb[0].mxu0
    %v3707 = vadd.f32 0.0, %v3706
    %v3708 = vpop.f32.mrb[0].mxu0
    %v3709 = vpop.f32.mrb[0].mxu0
    %v3710 = vadd.f32 0.0, %v3709
    %v3711 = vpop.f32.mrb[0].mxu0
    %3712 = vmatprep.mubr.bf16.mxu0 0
    %3713 = vmatmul.mubr.bf16.gmra.mrb[0].mxu0 %v2284
    %v3714 = vpop.f32.mrb[0].mxu0
    %v3715 = vadd.f32 0.0, %v3714
    %v3716 = vpop.f32.mrb[0].mxu0
    %v3717 = vpop.f32.mrb[0].mxu0
    %v3718 = vadd.f32 0.0, %v3717
    %v3719 = vpop.f32.mrb[0].mxu0
    %3720 = vmatprep.mubr.bf16.mxu0 0
    %3721 = vmatmul.mubr.bf16.gmra.mrb[0].mxu0 %v2287
    %v3722 = vpop.f32.mrb[0].mxu0
    %v3723 = vadd.f32 0.0, %v3722
    %v3724 = vpop.f32.mrb[0].mxu0
    %v3725 = vpop.f32.mrb[0].mxu0
    %v3726 = vadd.f32 0.0, %v3725
    %v3727 = vpop.f32.mrb[0].mxu0
    %3728 = vmatprep.mubr.bf16.mxu0 0
    %3729 = vmatmul.mubr.bf16.gmra.mrb[0].mxu0 %v2290
    %v3730 = vpop.f32.mrb[0].mxu0
    %v3731 = vadd.f32 0.0, %v3730
    %v3732 = vpop.f32.mrb[0].mxu0
    %v3733 = vpop.f32.mrb[0].mxu0
    %v3734 = vadd.f32 0.0, %v3733
    %v3735 = vpop.f32.mrb[0].mxu0
    %3736 = vmatprep.mubr.bf16.mxu0 0
    %3737 = vmatmul.mubr.bf16.gmra.mrb[0].mxu0 %v2293
    %v3738 = vpop.f32.mrb[0].mxu0
    %v3739 = vadd.f32 0.0, %v3738
    %v3740 = vpop.f32.mrb[0].mxu0
    %v3741 = vpop.f32.mrb[0].mxu0
    %v3742 = vadd.f32 0.0, %v3741
    %v3743 = vpop.f32.mrb[0].mxu0
    %3744 = vmatprep.mubr.bf16.mxu0 0
    %3745 = vmatmul.mubr.bf16.gmra.mrb[0].mxu0 %v2916
    %v3746 = vpop.f32.mrb[0].mxu0
    %v3747 = vadd.f32 0.0, %v3746
    %v3748 = vpop.f32.mrb[0].mxu0
    %v3749 = vpop.f32.mrb[0].mxu0
    %v3750 = vadd.f32 0.0, %v3749
    %v3751 = vpop.f32.mrb[0].mxu0
    %3752 = vmatprep.mubr.bf16.mxu0 0
    %3753 = vmatmul.mubr.bf16.gmra.mrb[0].mxu0 %v3598
    %v3754 = vpop.f32.mrb[0].mxu0
    %v3755 = vadd.f32 0.0, %v3754
    %v3756 = vpop.f32.mrb[0].mxu0
    %v3757 = vpop.f32.mrb[0].mxu0
    %v3758 = vadd.f32 0.0, %v3757
    %v3759 = vpop.f32.mrb[0].mxu0
    %3760 = vdwg.mxu0
    %v3761 = vadd.f32 %v3543, %v3635
    %v3762 = vadd.f32 %v3544, %v3638
    %v3763 = vadd.f32 %v3545, %v3643
    %v3764 = vadd.f32 %v3546, %v3646
    %v3765 = vadd.f32 %v3547, %v3651
    %v3766 = vadd.f32 %v3548, %v3654
    %v3767 = vadd.f32 %v3549, %v3659
    %v3768 = vadd.f32 %v3550, %v3662
    %v3769 = vadd.f32 %v3551, %v3667
    %v3770 = vadd.f32 %v3552, %v3670
    %v3771 = vadd.f32 %v3553, %v3675
    %v3772 = vadd.f32 %v3554, %v3678
    %v3773 = vadd.f32 %v3555, %v3683
    %v3774 = vadd.f32 %v3556, %v3686
    %v3775 = vadd.f32 %v3557, %v3691
    %v3776 = vadd.f32 %v3558, %v3694
    %v3777 = vadd.f32 %v3559, %v3699
    %v3778 = vadd.f32 %v3560, %v3702
    %v3779 = vadd.f32 %v3561, %v3707
    %v3780 = vadd.f32 %v3562, %v3710
    %v3781 = vadd.f32 %v3563, %v3715
    %v3782 = vadd.f32 %v3564, %v3718
    %v3783 = vadd.f32 %v3565, %v3723
    %v3784 = vadd.f32 %v3566, %v3726
    %v3785 = vadd.f32 %v3567, %v3731
    %v3786 = vadd.f32 %v3568, %v3734
    %v3787 = vadd.f32 %v3569, %v3739
    %v3788 = vadd.f32 %v3570, %v3742
    %v3789 = vadd.f32 %v3571, %v3747
    %v3790 = vadd.f32 %v3572, %v3750
    %v3791 = vadd.f32 %v3573, %v3755
    %v3792 = vadd.f32 %v3574, %v3758
    %v3794 = vshrl.u32 %v1486, 16
    %v3796 = vrot.slane %v3794, 4
    %v3797 = vshll.u32 %v1486, 16
    %v3799 = vrot.slane %v3797, 5
    %v3800 = vor.u32 %v3796, %v3799
    %v3801 = vrot.slane %v3800, 4
    %v3803 = vshll.u32 %v1487, 16
    %v3805 = vrot.slane %v3803, 5
    %v3806 = vsel %vm1495, %v3801, %v3805
    %v3807 = vshrl.u32 %v1487, 16
    %v3809 = vrot.slane %v3807, 4
    %v3810 = vor.u32 %v3809, %v3805
    %v3811 = vrot.slane %v3810, 4
    %v3813 = vshll.u32 %v1488, 16
    %v3815 = vrot.slane %v3813, 5
    %v3816 = vsel %vm1495, %v3811, %v3815
    %s3817 = scalar_lea.vmem [#allocation6], 112
    %v3818 = vld [vmem:[%s3817] sm:$0xf]
    %v3819 = vld [vmem:[%s3817 + $0x4] sm:$0xf]
    %v3820 = vld [vmem:[%s3817 + $0x8] sm:$0xf]
    %v3821 = vld [vmem:[%s3817 + $0xc] sm:$0xf]
    %v3822 = vunpack.c.l.b16 %v3806
    %v3823 = vunpack.c.l.b16 %v3816
    %v3824 = vpack.c.b16 %v3823, %v3822
    %v3829 = vunpack.c.l.b16 %v3818
    %v3830 = vunpack.c.l.b16 %v3819
    %v3831 = vunpack.c.l.b16 %v3820
    %v3832 = vunpack.c.l.b16 %v3821
    %v3833 = vpack.c.b16 %v3830, %v3829
    %v3834 = vpack.c.b16 %v3832, %v3831
    %v3838 = vsel %vm1945, %v3824, 0
    %3840 = vmatprep.subr.bf16.mxu0 0
    %3841 = vmatpush1.bf16.msra.mxu0 %v3833
    %3842 = vmatprep.subr.bf16.mxu0 0
    %3843 = vmatpush1.bf16.msra.mxu0 %v3834
    %3844 = vmatprep.subr.bf16.mxu0 0
    %3845 = vmatpush1.bf16.msra.mxu0 0
    %3846 = vmatprep.subr.bf16.mxu0 0
    %3847 = vmatpush1.bf16.msra.mxu0 0
    %3848 = vmatprep.subr.bf16.mxu0 0
    %3849 = vmatpush1.bf16.msra.mxu0 0
    %3850 = vmatprep.subr.bf16.mxu0 0
    %3851 = vmatpush1.bf16.msra.mxu0 0
    %3852 = vmatprep.subr.bf16.mxu0 0
    %3853 = vmatpush1.bf16.msra.mxu0 0
    %3854 = vmatprep.subr.bf16.mxu0 0
    %3855 = vmatpush1.bf16.msra.mxu0 0
    %3856 = vmatprep.subr.bf16.mxu0 0
    %3857 = vmatpush1.bf16.msra.mxu0 0
    %3858 = vmatprep.subr.bf16.mxu0 0
    %3859 = vmatpush1.bf16.msra.mxu0 0
    %3860 = vmatprep.subr.bf16.mxu0 0
    %3861 = vmatpush1.bf16.msra.mxu0 0
    %3862 = vmatprep.subr.bf16.mxu0 0
    %3863 = vmatpush1.bf16.msra.mxu0 0
    %3864 = vmatprep.subr.bf16.mxu0 0
    %3865 = vmatpush1.bf16.msra.mxu0 0
    %3866 = vmatprep.subr.bf16.mxu0 0
    %3867 = vmatpush1.bf16.msra.mxu0 0
    %3868 = vmatprep.subr.bf16.mxu0 0
    %3869 = vmatpush1.bf16.msra.mxu0 0
    %3870 = vmatprep.subr.bf16.mxu0 0
    %3871 = vmatpush1.bf16.msra.mxu0 0
    %3872 = vmatprep.mubr.bf16.mxu0 0
    %3873 = vmatmul.mubr.bf16.gmra.mrb[0].mxu0 %v1953
    %v3874 = vpop.f32.mrb[0].mxu0
    %v3875 = vadd.f32 0.0, %v3874
    %v3876 = vpop.f32.mrb[0].mxu0
    %v3877 = vpop.f32.mrb[0].mxu0
    %v3878 = vadd.f32 0.0, %v3877
    %v3879 = vpop.f32.mrb[0].mxu0
    %3880 = vmatprep.mubr.bf16.mxu0 0
    %3881 = vmatmul.mubr.bf16.gmra.mrb[0].mxu0 %v1956
    %v3882 = vpop.f32.mrb[0].mxu0
    %v3883 = vadd.f32 0.0, %v3882
    %v3884 = vpop.f32.mrb[0].mxu0
    %v3885 = vpop.f32.mrb[0].mxu0
    %v3886 = vadd.f32 0.0, %v3885
    %v3887 = vpop.f32.mrb[0].mxu0
    %3888 = vmatprep.mubr.bf16.mxu0 0
    %3889 = vmatmul.mubr.bf16.gmra.mrb[0].mxu0 %v1959
    %v3890 = vpop.f32.mrb[0].mxu0
    %v3891 = vadd.f32 0.0, %v3890
    %v3892 = vpop.f32.mrb[0].mxu0
    %v3893 = vpop.f32.mrb[0].mxu0
    %v3894 = vadd.f32 0.0, %v3893
    %v3895 = vpop.f32.mrb[0].mxu0
    %3896 = vmatprep.mubr.bf16.mxu0 0
    %3897 = vmatmul.mubr.bf16.gmra.mrb[0].mxu0 %v1962
    %v3898 = vpop.f32.mrb[0].mxu0
    %v3899 = vadd.f32 0.0, %v3898
    %v3900 = vpop.f32.mrb[0].mxu0
    %v3901 = vpop.f32.mrb[0].mxu0
    %v3902 = vadd.f32 0.0, %v3901
    %v3903 = vpop.f32.mrb[0].mxu0
    %3904 = vmatprep.mubr.bf16.mxu0 0
    %3905 = vmatmul.mubr.bf16.gmra.mrb[0].mxu0 %v1965
    %v3906 = vpop.f32.mrb[0].mxu0
    %v3907 = vadd.f32 0.0, %v3906
    %v3908 = vpop.f32.mrb[0].mxu0
    %v3909 = vpop.f32.mrb[0].mxu0
    %v3910 = vadd.f32 0.0, %v3909
    %v3911 = vpop.f32.mrb[0].mxu0
    %3912 = vmatprep.mubr.bf16.mxu0 0
    %3913 = vmatmul.mubr.bf16.gmra.mrb[0].mxu0 %v1968
    %v3914 = vpop.f32.mrb[0].mxu0
    %v3915 = vadd.f32 0.0, %v3914
    %v3916 = vpop.f32.mrb[0].mxu0
    %v3917 = vpop.f32.mrb[0].mxu0
    %v3918 = vadd.f32 0.0, %v3917
    %v3919 = vpop.f32.mrb[0].mxu0
    %3920 = vmatprep.mubr.bf16.mxu0 0
    %3921 = vmatmul.mubr.bf16.gmra.mrb[0].mxu0 %v1971
    %v3922 = vpop.f32.mrb[0].mxu0
    %v3923 = vadd.f32 0.0, %v3922
    %v3924 = vpop.f32.mrb[0].mxu0
    %v3925 = vpop.f32.mrb[0].mxu0
    %v3926 = vadd.f32 0.0, %v3925
    %v3927 = vpop.f32.mrb[0].mxu0
    %3928 = vmatprep.mubr.bf16.mxu0 0
    %3929 = vmatmul.mubr.bf16.gmra.mrb[0].mxu0 %v1974
    %v3930 = vpop.f32.mrb[0].mxu0
    %v3931 = vadd.f32 0.0, %v3930
    %v3932 = vpop.f32.mrb[0].mxu0
    %v3933 = vpop.f32.mrb[0].mxu0
    %v3934 = vadd.f32 0.0, %v3933
    %v3935 = vpop.f32.mrb[0].mxu0
    %3936 = vmatprep.mubr.bf16.mxu0 0
    %3937 = vmatmul.mubr.bf16.gmra.mrb[0].mxu0 %v1977
    %v3938 = vpop.f32.mrb[0].mxu0
    %v3939 = vadd.f32 0.0, %v3938
    %v3940 = vpop.f32.mrb[0].mxu0
    %v3941 = vpop.f32.mrb[0].mxu0
    %v3942 = vadd.f32 0.0, %v3941
    %v3943 = vpop.f32.mrb[0].mxu0
    %3944 = vmatprep.mubr.bf16.mxu0 0
    %3945 = vmatmul.mubr.bf16.gmra.mrb[0].mxu0 %v1980
    %v3946 = vpop.f32.mrb[0].mxu0
    %v3947 = vadd.f32 0.0, %v3946
    %v3948 = vpop.f32.mrb[0].mxu0
    %v3949 = vpop.f32.mrb[0].mxu0
    %v3950 = vadd.f32 0.0, %v3949
    %v3951 = vpop.f32.mrb[0].mxu0
    %3952 = vmatprep.mubr.bf16.mxu0 0
    %3953 = vmatmul.mubr.bf16.gmra.mrb[0].mxu0 %v1983
    %v3954 = vpop.f32.mrb[0].mxu0
    %v3955 = vadd.f32 0.0, %v3954
    %v3956 = vpop.f32.mrb[0].mxu0
    %v3957 = vpop.f32.mrb[0].mxu0
    %v3958 = vadd.f32 0.0, %v3957
    %v3959 = vpop.f32.mrb[0].mxu0
    %3960 = vmatprep.mubr.bf16.mxu0 0
    %3961 = vmatmul.mubr.bf16.gmra.mrb[0].mxu0 %v1986
    %v3962 = vpop.f32.mrb[0].mxu0
    %v3963 = vadd.f32 0.0, %v3962
    %v3964 = vpop.f32.mrb[0].mxu0
    %v3965 = vpop.f32.mrb[0].mxu0
    %v3966 = vadd.f32 0.0, %v3965
    %v3967 = vpop.f32.mrb[0].mxu0
    %3968 = vmatprep.mubr.bf16.mxu0 0
    %3969 = vmatmul.mubr.bf16.gmra.mrb[0].mxu0 %v1989
    %v3970 = vpop.f32.mrb[0].mxu0
    %v3971 = vadd.f32 0.0, %v3970
    %v3972 = vpop.f32.mrb[0].mxu0
    %v3973 = vpop.f32.mrb[0].mxu0
    %v3974 = vadd.f32 0.0, %v3973
    %v3975 = vpop.f32.mrb[0].mxu0
    %3976 = vmatprep.mubr.bf16.mxu0 0
    %3977 = vmatmul.mubr.bf16.gmra.mrb[0].mxu0 %v1992
    %v3978 = vpop.f32.mrb[0].mxu0
    %v3979 = vadd.f32 0.0, %v3978
    %v3980 = vpop.f32.mrb[0].mxu0
    %v3981 = vpop.f32.mrb[0].mxu0
    %v3982 = vadd.f32 0.0, %v3981
    %v3983 = vpop.f32.mrb[0].mxu0
    %3984 = vmatprep.mubr.bf16.mxu0 0
    %3985 = vmatmul.mubr.bf16.gmra.mrb[0].mxu0 %v3156
    %v3986 = vpop.f32.mrb[0].mxu0
    %v3987 = vadd.f32 0.0, %v3986
    %v3988 = vpop.f32.mrb[0].mxu0
    %v3989 = vpop.f32.mrb[0].mxu0
    %v3990 = vadd.f32 0.0, %v3989
    %v3991 = vpop.f32.mrb[0].mxu0
    %3992 = vmatprep.mubr.bf16.mxu0 0
    %3993 = vmatmul.mubr.bf16.gmra.mrb[0].mxu0 %v3838
    %v3994 = vpop.f32.mrb[0].mxu0
    %v3995 = vadd.f32 0.0, %v3994
    %v3996 = vpop.f32.mrb[0].mxu0
    %v3997 = vpop.f32.mrb[0].mxu0
    %v3998 = vadd.f32 0.0, %v3997
    %v3999 = vpop.f32.mrb[0].mxu0
    %4000 = vdwg.mxu0
    %v4001 = vadd.f32 %v3761, %v3875
    %v4002 = vadd.f32 %v3762, %v3878
    %v4003 = vadd.f32 %v3763, %v3883
    %v4004 = vadd.f32 %v3764, %v3886
    %v4005 = vadd.f32 %v3765, %v3891
    %v4006 = vadd.f32 %v3766, %v3894
    %v4007 = vadd.f32 %v3767, %v3899
    %v4008 = vadd.f32 %v3768, %v3902
    %v4009 = vadd.f32 %v3769, %v3907
    %v4010 = vadd.f32 %v3770, %v3910
    %v4011 = vadd.f32 %v3771, %v3915
    %v4012 = vadd.f32 %v3772, %v3918
    %v4013 = vadd.f32 %v3773, %v3923
    %v4014 = vadd.f32 %v3774, %v3926
    %v4015 = vadd.f32 %v3775, %v3931
    %v4016 = vadd.f32 %v3776, %v3934
    %v4017 = vadd.f32 %v3777, %v3939
    %v4018 = vadd.f32 %v3778, %v3942
    %v4019 = vadd.f32 %v3779, %v3947
    %v4020 = vadd.f32 %v3780, %v3950
    %v4021 = vadd.f32 %v3781, %v3955
    %v4022 = vadd.f32 %v3782, %v3958
    %v4023 = vadd.f32 %v3783, %v3963
    %v4024 = vadd.f32 %v3784, %v3966
    %v4025 = vadd.f32 %v3785, %v3971
    %v4026 = vadd.f32 %v3786, %v3974
    %v4027 = vadd.f32 %v3787, %v3979
    %v4028 = vadd.f32 %v3788, %v3982
    %v4029 = vadd.f32 %v3789, %v3987
    %v4030 = vadd.f32 %v3790, %v3990
    %v4031 = vadd.f32 %v3791, %v3995
    %v4032 = vadd.f32 %v3792, %v3998
    %v4034 = vrot.slane %v1486, 5
    %v4035 = vrot.slane %v4034, 4
    %v4036 = vrot.slane %v1487, 5
    %v4037 = vsel %vm2474, %v4035, %v4036
    %v4038 = vrot.slane %v4036, 4
    %v4039 = vrot.slane %v1488, 5
    %v4040 = vsel %vm2474, %v4038, %v4039
    %s4041 = scalar_lea.vmem [#allocation6], 128
    %v4042 = vld [vmem:[%s4041] sm:$0xf]
    %v4043 = vld [vmem:[%s4041 + $0x4] sm:$0xf]
    %v4044 = vld [vmem:[%s4041 + $0x8] sm:$0xf]
    %v4045 = vld [vmem:[%s4041 + $0xc] sm:$0xf]
    %v4046 = vunpack.c.l.b16 %v4037
    %v4047 = vunpack.c.l.b16 %v4040
    %v4048 = vpack.c.b16 %v4047, %v4046
    %v4053 = vunpack.c.l.b16 %v4042
    %v4054 = vunpack.c.l.b16 %v4043
    %v4055 = vunpack.c.l.b16 %v4044
    %v4056 = vunpack.c.l.b16 %v4045
    %v4057 = vpack.c.b16 %v4054, %v4053
    %v4058 = vpack.c.b16 %v4056, %v4055
    %v4062 = vsel %vm1945, %v4048, 0
    %4064 = vmatprep.subr.bf16.mxu0 0
    %4065 = vmatpush1.bf16.msra.mxu0 %v4057
    %4066 = vmatprep.subr.bf16.mxu0 0
    %4067 = vmatpush1.bf16.msra.mxu0 %v4058
    %4068 = vmatprep.subr.bf16.mxu0 0
    %4069 = vmatpush1.bf16.msra.mxu0 0
    %4070 = vmatprep.subr.bf16.mxu0 0
    %4071 = vmatpush1.bf16.msra.mxu0 0
    %4072 = vmatprep.subr.bf16.mxu0 0
    %4073 = vmatpush1.bf16.msra.mxu0 0
    %4074 = vmatprep.subr.bf16.mxu0 0
    %4075 = vmatpush1.bf16.msra.mxu0 0
    %4076 = vmatprep.subr.bf16.mxu0 0
    %4077 = vmatpush1.bf16.msra.mxu0 0
    %4078 = vmatprep.subr.bf16.mxu0 0
    %4079 = vmatpush1.bf16.msra.mxu0 0
    %4080 = vmatprep.subr.bf16.mxu0 0
    %4081 = vmatpush1.bf16.msra.mxu0 0
    %4082 = vmatprep.subr.bf16.mxu0 0
    %4083 = vmatpush1.bf16.msra.mxu0 0
    %4084 = vmatprep.subr.bf16.mxu0 0
    %4085 = vmatpush1.bf16.msra.mxu0 0
    %4086 = vmatprep.subr.bf16.mxu0 0
    %4087 = vmatpush1.bf16.msra.mxu0 0
    %4088 = vmatprep.subr.bf16.mxu0 0
    %4089 = vmatpush1.bf16.msra.mxu0 0
    %4090 = vmatprep.subr.bf16.mxu0 0
    %4091 = vmatpush1.bf16.msra.mxu0 0
    %4092 = vmatprep.subr.bf16.mxu0 0
    %4093 = vmatpush1.bf16.msra.mxu0 0
    %4094 = vmatprep.subr.bf16.mxu0 0
    %4095 = vmatpush1.bf16.msra.mxu0 0
    %4096 = vmatprep.mubr.bf16.mxu0 0
    %4097 = vmatmul.mubr.bf16.gmra.mrb[0].mxu0 %v2659
    %v4098 = vpop.f32.mrb[0].mxu0
    %v4099 = vadd.f32 0.0, %v4098
    %v4100 = vpop.f32.mrb[0].mxu0
    %v4101 = vpop.f32.mrb[0].mxu0
    %v4102 = vadd.f32 0.0, %v4101
    %v4103 = vpop.f32.mrb[0].mxu0
    %4104 = vmatprep.mubr.bf16.mxu0 0
    %4105 = vmatmul.mubr.bf16.gmra.mrb[0].mxu0 %v2662
    %v4106 = vpop.f32.mrb[0].mxu0
    %v4107 = vadd.f32 0.0, %v4106
    %v4108 = vpop.f32.mrb[0].mxu0
    %v4109 = vpop.f32.mrb[0].mxu0
    %v4110 = vadd.f32 0.0, %v4109
    %v4111 = vpop.f32.mrb[0].mxu0
    %4112 = vmatprep.mubr.bf16.mxu0 0
    %4113 = vmatmul.mubr.bf16.gmra.mrb[0].mxu0 %v2665
    %v4114 = vpop.f32.mrb[0].mxu0
    %v4115 = vadd.f32 0.0, %v4114
    %v4116 = vpop.f32.mrb[0].mxu0
    %v4117 = vpop.f32.mrb[0].mxu0
    %v4118 = vadd.f32 0.0, %v4117
    %v4119 = vpop.f32.mrb[0].mxu0
    %4120 = vmatprep.mubr.bf16.mxu0 0
    %4121 = vmatmul.mubr.bf16.gmra.mrb[0].mxu0 %v2668
    %v4122 = vpop.f32.mrb[0].mxu0
    %v4123 = vadd.f32 0.0, %v4122
    %v4124 = vpop.f32.mrb[0].mxu0
    %v4125 = vpop.f32.mrb[0].mxu0
    %v4126 = vadd.f32 0.0, %v4125
    %v4127 = vpop.f32.mrb[0].mxu0
    %4128 = vmatprep.mubr.bf16.mxu0 0
    %4129 = vmatmul.mubr.bf16.gmra.mrb[0].mxu0 %v2671
    %v4130 = vpop.f32.mrb[0].mxu0
    %v4131 = vadd.f32 0.0, %v4130
    %v4132 = vpop.f32.mrb[0].mxu0
    %v4133 = vpop.f32.mrb[0].mxu0
    %v4134 = vadd.f32 0.0, %v4133
    %v4135 = vpop.f32.mrb[0].mxu0
    %4136 = vmatprep.mubr.bf16.mxu0 0
    %4137 = vmatmul.mubr.bf16.gmra.mrb[0].mxu0 %v2674
    %v4138 = vpop.f32.mrb[0].mxu0
    %v4139 = vadd.f32 0.0, %v4138
    %v4140 = vpop.f32.mrb[0].mxu0
    %v4141 = vpop.f32.mrb[0].mxu0
    %v4142 = vadd.f32 0.0, %v4141
    %v4143 = vpop.f32.mrb[0].mxu0
    %4144 = vmatprep.mubr.bf16.mxu0 0
    %4145 = vmatmul.mubr.bf16.gmra.mrb[0].mxu0 %v2677
    %v4146 = vpop.f32.mrb[0].mxu0
    %v4147 = vadd.f32 0.0, %v4146
    %v4148 = vpop.f32.mrb[0].mxu0
    %v4149 = vpop.f32.mrb[0].mxu0
    %v4150 = vadd.f32 0.0, %v4149
    %v4151 = vpop.f32.mrb[0].mxu0
    %4152 = vmatprep.mubr.bf16.mxu0 0
    %4153 = vmatmul.mubr.bf16.gmra.mrb[0].mxu0 %v2680
    %v4154 = vpop.f32.mrb[0].mxu0
    %v4155 = vadd.f32 0.0, %v4154
    %v4156 = vpop.f32.mrb[0].mxu0
    %v4157 = vpop.f32.mrb[0].mxu0
    %v4158 = vadd.f32 0.0, %v4157
    %v4159 = vpop.f32.mrb[0].mxu0
    %4160 = vmatprep.mubr.bf16.mxu0 0
    %4161 = vmatmul.mubr.bf16.gmra.mrb[0].mxu0 %v2683
    %v4162 = vpop.f32.mrb[0].mxu0
    %v4163 = vadd.f32 0.0, %v4162
    %v4164 = vpop.f32.mrb[0].mxu0
    %v4165 = vpop.f32.mrb[0].mxu0
    %v4166 = vadd.f32 0.0, %v4165
    %v4167 = vpop.f32.mrb[0].mxu0
    %4168 = vmatprep.mubr.bf16.mxu0 0
    %4169 = vmatmul.mubr.bf16.gmra.mrb[0].mxu0 %v2686
    %v4170 = vpop.f32.mrb[0].mxu0
    %v4171 = vadd.f32 0.0, %v4170
    %v4172 = vpop.f32.mrb[0].mxu0
    %v4173 = vpop.f32.mrb[0].mxu0
    %v4174 = vadd.f32 0.0, %v4173
    %v4175 = vpop.f32.mrb[0].mxu0
    %4176 = vmatprep.mubr.bf16.mxu0 0
    %4177 = vmatmul.mubr.bf16.gmra.mrb[0].mxu0 %v2689
    %v4178 = vpop.f32.mrb[0].mxu0
    %v4179 = vadd.f32 0.0, %v4178
    %v4180 = vpop.f32.mrb[0].mxu0
    %v4181 = vpop.f32.mrb[0].mxu0
    %v4182 = vadd.f32 0.0, %v4181
    %v4183 = vpop.f32.mrb[0].mxu0
    %4184 = vmatprep.mubr.bf16.mxu0 0
    %4185 = vmatmul.mubr.bf16.gmra.mrb[0].mxu0 %v2692
    %v4186 = vpop.f32.mrb[0].mxu0
    %v4187 = vadd.f32 0.0, %v4186
    %v4188 = vpop.f32.mrb[0].mxu0
    %v4189 = vpop.f32.mrb[0].mxu0
    %v4190 = vadd.f32 0.0, %v4189
    %v4191 = vpop.f32.mrb[0].mxu0
    %4192 = vmatprep.mubr.bf16.mxu0 0
    %4193 = vmatmul.mubr.bf16.gmra.mrb[0].mxu0 %v2695
    %v4194 = vpop.f32.mrb[0].mxu0
    %v4195 = vadd.f32 0.0, %v4194
    %v4196 = vpop.f32.mrb[0].mxu0
    %v4197 = vpop.f32.mrb[0].mxu0
    %v4198 = vadd.f32 0.0, %v4197
    %v4199 = vpop.f32.mrb[0].mxu0
    %4200 = vmatprep.mubr.bf16.mxu0 0
    %4201 = vmatmul.mubr.bf16.gmra.mrb[0].mxu0 %v2698
    %v4202 = vpop.f32.mrb[0].mxu0
    %v4203 = vadd.f32 0.0, %v4202
    %v4204 = vpop.f32.mrb[0].mxu0
    %v4205 = vpop.f32.mrb[0].mxu0
    %v4206 = vadd.f32 0.0, %v4205
    %v4207 = vpop.f32.mrb[0].mxu0
    %4208 = vmatprep.mubr.bf16.mxu0 0
    %4209 = vmatmul.mubr.bf16.gmra.mrb[0].mxu0 %v3380
    %v4210 = vpop.f32.mrb[0].mxu0
    %v4211 = vadd.f32 0.0, %v4210
    %v4212 = vpop.f32.mrb[0].mxu0
    %v4213 = vpop.f32.mrb[0].mxu0
    %v4214 = vadd.f32 0.0, %v4213
    %v4215 = vpop.f32.mrb[0].mxu0
    %4216 = vmatprep.mubr.bf16.mxu0 0
    %4217 = vmatmul.mubr.bf16.gmra.mrb[0].mxu0 %v4062
    %v4218 = vpop.f32.mrb[0].mxu0
    %v4219 = vadd.f32 0.0, %v4218
    %v4220 = vpop.f32.mrb[0].mxu0
    %v4221 = vpop.f32.mrb[0].mxu0
    %v4222 = vadd.f32 0.0, %v4221
    %v4223 = vpop.f32.mrb[0].mxu0
    %4224 = vdwg.mxu0
    %v4225 = vadd.f32 %v4001, %v4099
    %v4226 = vadd.f32 %v4002, %v4102
    %v4227 = vadd.f32 %v4003, %v4107
    %v4228 = vadd.f32 %v4004, %v4110
    %v4229 = vadd.f32 %v4005, %v4115
    %v4230 = vadd.f32 %v4006, %v4118
    %v4231 = vadd.f32 %v4007, %v4123
    %v4232 = vadd.f32 %v4008, %v4126
    %v4233 = vadd.f32 %v4009, %v4131
    %v4234 = vadd.f32 %v4010, %v4134
    %v4235 = vadd.f32 %v4011, %v4139
    %v4236 = vadd.f32 %v4012, %v4142
    %v4237 = vadd.f32 %v4013, %v4147
    %v4238 = vadd.f32 %v4014, %v4150
    %v4239 = vadd.f32 %v4015, %v4155
    %v4240 = vadd.f32 %v4016, %v4158
    %v4241 = vadd.f32 %v4017, %v4163
    %v4242 = vadd.f32 %v4018, %v4166
    %v4243 = vadd.f32 %v4019, %v4171
    %v4244 = vadd.f32 %v4020, %v4174
    %v4245 = vadd.f32 %v4021, %v4179
    %v4246 = vadd.f32 %v4022, %v4182
    %v4247 = vadd.f32 %v4023, %v4187
    %v4248 = vadd.f32 %v4024, %v4190
    %v4249 = vadd.f32 %v4025, %v4195
    %v4250 = vadd.f32 %v4026, %v4198
    %v4251 = vadd.f32 %v4027, %v4203
    %v4252 = vadd.f32 %v4028, %v4206
    %v4253 = vadd.f32 %v4029, %v4211
    %v4254 = vadd.f32 %v4030, %v4214
    %v4255 = vadd.f32 %v4031, %v4219
    %v4256 = vadd.f32 %v4032, %v4222
    %v4258 = vlaneseq
    %v4259 = vshrl.u32 %v4258, 7
    %v4260 = vsub.s32 0, %v4259
    %v4261 = vrot.slane %v1430, %v4260
    %v4263 = vadd.f32 %v4225, %v4261
    %v4264 = vadd.f32 %v4226, %v4261
    %v4265 = vadd.f32 %v4227, %v4261
    %v4266 = vadd.f32 %v4228, %v4261
    %v4267 = vadd.f32 %v4229, %v4261
    %v4268 = vadd.f32 %v4230, %v4261
    %v4269 = vadd.f32 %v4231, %v4261
    %v4270 = vadd.f32 %v4232, %v4261
    %v4271 = vadd.f32 %v4233, %v4261
    %v4272 = vadd.f32 %v4234, %v4261
    %v4273 = vadd.f32 %v4235, %v4261
    %v4274 = vadd.f32 %v4236, %v4261
    %v4275 = vadd.f32 %v4237, %v4261
    %v4276 = vadd.f32 %v4238, %v4261
    %v4277 = vadd.f32 %v4239, %v4261
    %v4278 = vadd.f32 %v4240, %v4261
    %v4279 = vadd.f32 %v4241, %v4261
    %v4280 = vadd.f32 %v4242, %v4261
    %v4281 = vadd.f32 %v4243, %v4261
    %v4282 = vadd.f32 %v4244, %v4261
    %v4283 = vadd.f32 %v4245, %v4261
    %v4284 = vadd.f32 %v4246, %v4261
    %v4285 = vadd.f32 %v4247, %v4261
    %v4286 = vadd.f32 %v4248, %v4261
    %v4287 = vadd.f32 %v4249, %v4261
    %v4288 = vadd.f32 %v4250, %v4261
    %v4289 = vadd.f32 %v4251, %v4261
    %v4290 = vadd.f32 %v4252, %v4261
    %v4291 = vadd.f32 %v4253, %v4261
    %v4292 = vadd.f32 %v4254, %v4261
    %v4293 = vadd.f32 %v4255, %v4261
    %v4294 = vadd.f32 %v4256, %v4261
    %v4295 = vmax.f32 %v4263, 0.0
    %v4296 = vmax.f32 %v4264, 0.0
    %v4297 = vmax.f32 %v4265, 0.0
    %v4298 = vmax.f32 %v4266, 0.0
    %v4299 = vmax.f32 %v4267, 0.0
    %v4300 = vmax.f32 %v4268, 0.0
    %v4301 = vmax.f32 %v4269, 0.0
    %v4302 = vmax.f32 %v4270, 0.0
    %v4303 = vmax.f32 %v4271, 0.0
    %v4304 = vmax.f32 %v4272, 0.0
    %v4305 = vmax.f32 %v4273, 0.0
    %v4306 = vmax.f32 %v4274, 0.0
    %v4307 = vmax.f32 %v4275, 0.0
    %v4308 = vmax.f32 %v4276, 0.0
    %v4309 = vmax.f32 %v4277, 0.0
    %v4310 = vmax.f32 %v4278, 0.0
    %v4311 = vmax.f32 %v4279, 0.0
    %v4312 = vmax.f32 %v4280, 0.0
    %v4313 = vmax.f32 %v4281, 0.0
    %v4314 = vmax.f32 %v4282, 0.0
    %v4315 = vmax.f32 %v4283, 0.0
    %v4316 = vmax.f32 %v4284, 0.0
    %v4317 = vmax.f32 %v4285, 0.0
    %v4318 = vmax.f32 %v4286, 0.0
    %v4319 = vmax.f32 %v4287, 0.0
    %v4320 = vmax.f32 %v4288, 0.0
    %v4321 = vmax.f32 %v4289, 0.0
    %v4322 = vmax.f32 %v4290, 0.0
    %v4323 = vmax.f32 %v4291, 0.0
    %v4324 = vmax.f32 %v4292, 0.0
    %v4325 = vmax.f32 %v4293, 0.0
    %v4326 = vmax.f32 %v4294, 0.0
    %v4327 = vpack.c.bf16 %v4296, %v4295
    %v4328 = vpack.c.bf16 %v4298, %v4297
    %v4329 = vpack.c.bf16 %v4300, %v4299
    %v4330 = vpack.c.bf16 %v4302, %v4301
    %v4331 = vpack.c.bf16 %v4304, %v4303
    %v4332 = vpack.c.bf16 %v4306, %v4305
    %v4333 = vpack.c.bf16 %v4308, %v4307
    %v4334 = vpack.c.bf16 %v4310, %v4309
    %v4335 = vpack.c.bf16 %v4312, %v4311
    %v4336 = vpack.c.bf16 %v4314, %v4313
    %v4337 = vpack.c.bf16 %v4316, %v4315
    %v4338 = vpack.c.bf16 %v4318, %v4317
    %v4339 = vpack.c.bf16 %v4320, %v4319
    %v4340 = vpack.c.bf16 %v4322, %v4321
    %v4341 = vpack.c.bf16 %v4324, %v4323
    %v4342 = vpack.c.bf16 %v4326, %v4325
    %v4343 = vld [vmem:[%s5] sm:$0xf]
    %v4344 = vld [vmem:[%s5 + $0x4] sm:$0xf]
    %v4345 = vld [vmem:[%s5 + $0x8] sm:$0xf]
    %v4346 = vld [vmem:[%s5 + $0xc] sm:$0xf]
    %s4347 = smul.u32 0, 16
    %s4348 = scalar_lea.vmem [#allocation3], %s4347
    %v4349 = vld [vmem:[%s4348] sm:$0xff]
    %v4350 = vld [vmem:[%s4348 + $0x8] sm:$0xff]
    %v4351 = vld [vmem:[%s4348 + $0x10] sm:$0xff]
    %v4352 = vld [vmem:[%s4348 + $0x18] sm:$0xff]
    %v4353 = vld [vmem:[%s4348 + $0x20] sm:$0xff]
    %v4354 = vld [vmem:[%s4348 + $0x28] sm:$0xff]
    %v4355 = vld [vmem:[%s4348 + $0x30] sm:$0xff]
    %v4356 = vld [vmem:[%s4348 + $0x38] sm:$0xff]
    %v4357 = vld [vmem:[%s4348 + $0x40] sm:$0xff]
    %v4358 = vld [vmem:[%s4348 + $0x48] sm:$0xff]
    %v4359 = vld [vmem:[%s4348 + $0x50] sm:$0xff]
    %v4360 = vld [vmem:[%s4348 + $0x58] sm:$0xff]
    %v4361 = vld [vmem:[%s4348 + $0x60] sm:$0xff]
    %v4362 = vld [vmem:[%s4348 + $0x68] sm:$0xff]
    %v4363 = vld [vmem:[%s4348 + $0x70] sm:$0xff]
    %v4364 = vld [vmem:[%s4348 + $0x78] sm:$0xff]
    %v4365 = vld [vmem:[%s4348 + $0x80] sm:$0xff]
    %v4366 = vld [vmem:[%s4348 + $0x88] sm:$0xff]
    %v4367 = vld [vmem:[%s4348 + $0x90] sm:$0xff]
    %v4368 = vld [vmem:[%s4348 + $0x98] sm:$0xff]
    %v4369 = vld [vmem:[%s4348 + $0xa0] sm:$0xff]
    %v4370 = vld [vmem:[%s4348 + $0xa8] sm:$0xff]
    %v4371 = vld [vmem:[%s4348 + $0xb0] sm:$0xff]
    %v4372 = vld [vmem:[%s4348 + $0xb8] sm:$0xff]
    %v4373 = vld [vmem:[%s4348 + $0xc0] sm:$0xff]
    %v4374 = vld [vmem:[%s4348 + $0xc8] sm:$0xff]
    %v4375 = vld [vmem:[%s4348 + $0xd0] sm:$0xff]
    %v4376 = vld [vmem:[%s4348 + $0xd8] sm:$0xff]
    %v4377 = vld [vmem:[%s4348 + $0xe0] sm:$0xff]
    %v4378 = vld [vmem:[%s4348 + $0xe8] sm:$0xff]
    %v4379 = vld [vmem:[%s4348 + $0xf0] sm:$0xff]
    %v4380 = vld [vmem:[%s4348 + $0xf8] sm:$0xff]
    %v4382 = vlaneseq
    %v4383 = vshrl.u32 %v4382, 7
    %v4384 = vsub.s32 0, %v4383
    %v4385 = vrot.slane %v1431, %v4384
    %v4391 = vunpack.c.l.b16 %v4343
    %v4392 = vunpack.c.l.b16 %v4344
    %v4393 = vunpack.c.l.b16 %v4345
    %v4394 = vunpack.c.l.b16 %v4346
    %v4395 = vpack.c.b16 %v4392, %v4391
    %v4396 = vpack.c.b16 %v4394, %v4393
    %v4400 = vsel %vm1945, %v4327, 0
    %v4403 = vsel %vm1945, %v4328, 0
    %v4406 = vsel %vm1945, %v4329, 0
    %v4409 = vsel %vm1945, %v4330, 0
    %v4412 = vsel %vm1945, %v4331, 0
    %v4415 = vsel %vm1945, %v4332, 0
    %v4418 = vsel %vm1945, %v4333, 0
    %v4421 = vsel %vm1945, %v4334, 0
    %v4424 = vsel %vm1945, %v4335, 0
    %v4427 = vsel %vm1945, %v4336, 0
    %v4430 = vsel %vm1945, %v4337, 0
    %v4433 = vsel %vm1945, %v4338, 0
    %v4436 = vsel %vm1945, %v4339, 0
    %v4439 = vsel %vm1945, %v4340, 0
    %v4442 = vsel %vm1945, %v4341, 0
    %v4445 = vsel %vm1945, %v4342, 0
    %4447 = vmatprep.subr.bf16.mxu0 0
    %4448 = vmatpush1.bf16.msra.mxu0 %v4395
    %4449 = vmatprep.subr.bf16.mxu0 0
    %4450 = vmatpush1.bf16.msra.mxu0 %v4396
    %4451 = vmatprep.subr.bf16.mxu0 0
    %4452 = vmatpush1.bf16.msra.mxu0 0
    %4453 = vmatprep.subr.bf16.mxu0 0
    %4454 = vmatpush1.bf16.msra.mxu0 0
    %4455 = vmatprep.subr.bf16.mxu0 0
    %4456 = vmatpush1.bf16.msra.mxu0 0
    %4457 = vmatprep.subr.bf16.mxu0 0
    %4458 = vmatpush1.bf16.msra.mxu0 0
    %4459 = vmatprep.subr.bf16.mxu0 0
    %4460 = vmatpush1.bf16.msra.mxu0 0
    %4461 = vmatprep.subr.bf16.mxu0 0
    %4462 = vmatpush1.bf16.msra.mxu0 0
    %4463 = vmatprep.subr.bf16.mxu0 0
    %4464 = vmatpush1.bf16.msra.mxu0 0
    %4465 = vmatprep.subr.bf16.mxu0 0
    %4466 = vmatpush1.bf16.msra.mxu0 0
    %4467 = vmatprep.subr.bf16.mxu0 0
    %4468 = vmatpush1.bf16.msra.mxu0 0
    %4469 = vmatprep.subr.bf16.mxu0 0
    %4470 = vmatpush1.bf16.msra.mxu0 0
    %4471 = vmatprep.subr.bf16.mxu0 0
    %4472 = vmatpush1.bf16.msra.mxu0 0
    %4473 = vmatprep.subr.bf16.mxu0 0
    %4474 = vmatpush1.bf16.msra.mxu0 0
    %4475 = vmatprep.subr.bf16.mxu0 0
    %4476 = vmatpush1.bf16.msra.mxu0 0
    %4477 = vmatprep.subr.bf16.mxu0 0
    %4478 = vmatpush1.bf16.msra.mxu0 0
    %4479 = vmatprep.mubr.bf16.mxu0 0
    %4480 = vmatmul.mubr.bf16.gmra.mrb[0].mxu0 %v4400
    %v4481 = vpop.f32.mrb[0].mxu0
    %v4482 = vadd.f32 %v4385, %v4481
    %v4483 = vpop.f32.mrb[0].mxu0
    %v4484 = vpop.f32.mrb[0].mxu0
    %v4485 = vadd.f32 %v4385, %v4484
    %v4486 = vpop.f32.mrb[0].mxu0
    %4487 = vmatprep.mubr.bf16.mxu0 0
    %4488 = vmatmul.mubr.bf16.gmra.mrb[0].mxu0 %v4403
    %v4489 = vpop.f32.mrb[0].mxu0
    %v4490 = vadd.f32 %v4385, %v4489
    %v4491 = vpop.f32.mrb[0].mxu0
    %v4492 = vpop.f32.mrb[0].mxu0
    %v4493 = vadd.f32 %v4385, %v4492
    %v4494 = vpop.f32.mrb[0].mxu0
    %4495 = vmatprep.mubr.bf16.mxu0 0
    %4496 = vmatmul.mubr.bf16.gmra.mrb[0].mxu0 %v4406
    %v4497 = vpop.f32.mrb[0].mxu0
    %v4498 = vadd.f32 %v4385, %v4497
    %v4499 = vpop.f32.mrb[0].mxu0
    %v4500 = vpop.f32.mrb[0].mxu0
    %v4501 = vadd.f32 %v4385, %v4500
    %v4502 = vpop.f32.mrb[0].mxu0
    %4503 = vmatprep.mubr.bf16.mxu0 0
    %4504 = vmatmul.mubr.bf16.gmra.mrb[0].mxu0 %v4409
    %v4505 = vpop.f32.mrb[0].mxu0
    %v4506 = vadd.f32 %v4385, %v4505
    %v4507 = vpop.f32.mrb[0].mxu0
    %v4508 = vpop.f32.mrb[0].mxu0
    %v4509 = vadd.f32 %v4385, %v4508
    %v4510 = vpop.f32.mrb[0].mxu0
    %4511 = vmatprep.mubr.bf16.mxu0 0
    %4512 = vmatmul.mubr.bf16.gmra.mrb[0].mxu0 %v4412
    %v4513 = vpop.f32.mrb[0].mxu0
    %v4514 = vadd.f32 %v4385, %v4513
    %v4515 = vpop.f32.mrb[0].mxu0
    %v4516 = vpop.f32.mrb[0].mxu0
    %v4517 = vadd.f32 %v4385, %v4516
    %v4518 = vpop.f32.mrb[0].mxu0
    %4519 = vmatprep.mubr.bf16.mxu0 0
    %4520 = vmatmul.mubr.bf16.gmra.mrb[0].mxu0 %v4415
    %v4521 = vpop.f32.mrb[0].mxu0
    %v4522 = vadd.f32 %v4385, %v4521
    %v4523 = vpop.f32.mrb[0].mxu0
    %v4524 = vpop.f32.mrb[0].mxu0
    %v4525 = vadd.f32 %v4385, %v4524
    %v4526 = vpop.f32.mrb[0].mxu0
    %4527 = vmatprep.mubr.bf16.mxu0 0
    %4528 = vmatmul.mubr.bf16.gmra.mrb[0].mxu0 %v4418
    %v4529 = vpop.f32.mrb[0].mxu0
    %v4530 = vadd.f32 %v4385, %v4529
    %v4531 = vpop.f32.mrb[0].mxu0
    %v4532 = vpop.f32.mrb[0].mxu0
    %v4533 = vadd.f32 %v4385, %v4532
    %v4534 = vpop.f32.mrb[0].mxu0
    %4535 = vmatprep.mubr.bf16.mxu0 0
    %4536 = vmatmul.mubr.bf16.gmra.mrb[0].mxu0 %v4421
    %v4537 = vpop.f32.mrb[0].mxu0
    %v4538 = vadd.f32 %v4385, %v4537
    %v4539 = vpop.f32.mrb[0].mxu0
    %v4540 = vpop.f32.mrb[0].mxu0
    %v4541 = vadd.f32 %v4385, %v4540
    %v4542 = vpop.f32.mrb[0].mxu0
    %4543 = vmatprep.mubr.bf16.mxu0 0
    %4544 = vmatmul.mubr.bf16.gmra.mrb[0].mxu0 %v4424
    %v4545 = vpop.f32.mrb[0].mxu0
    %v4546 = vadd.f32 %v4385, %v4545
    %v4547 = vpop.f32.mrb[0].mxu0
    %v4548 = vpop.f32.mrb[0].mxu0
    %v4549 = vadd.f32 %v4385, %v4548
    %v4550 = vpop.f32.mrb[0].mxu0
    %4551 = vmatprep.mubr.bf16.mxu0 0
    %4552 = vmatmul.mubr.bf16.gmra.mrb[0].mxu0 %v4427
    %v4553 = vpop.f32.mrb[0].mxu0
    %v4554 = vadd.f32 %v4385, %v4553
    %v4555 = vpop.f32.mrb[0].mxu0
    %v4556 = vpop.f32.mrb[0].mxu0
    %v4557 = vadd.f32 %v4385, %v4556
    %v4558 = vpop.f32.mrb[0].mxu0
    %4559 = vmatprep.mubr.bf16.mxu0 0
    %4560 = vmatmul.mubr.bf16.gmra.mrb[0].mxu0 %v4430
    %v4561 = vpop.f32.mrb[0].mxu0
    %v4562 = vadd.f32 %v4385, %v4561
    %v4563 = vpop.f32.mrb[0].mxu0
    %v4564 = vpop.f32.mrb[0].mxu0
    %v4565 = vadd.f32 %v4385, %v4564
    %v4566 = vpop.f32.mrb[0].mxu0
    %4567 = vmatprep.mubr.bf16.mxu0 0
    %4568 = vmatmul.mubr.bf16.gmra.mrb[0].mxu0 %v4433
    %v4569 = vpop.f32.mrb[0].mxu0
    %v4570 = vadd.f32 %v4385, %v4569
    %v4571 = vpop.f32.mrb[0].mxu0
    %v4572 = vpop.f32.mrb[0].mxu0
    %v4573 = vadd.f32 %v4385, %v4572
    %v4574 = vpop.f32.mrb[0].mxu0
    %4575 = vmatprep.mubr.bf16.mxu0 0
    %4576 = vmatmul.mubr.bf16.gmra.mrb[0].mxu0 %v4436
    %v4577 = vpop.f32.mrb[0].mxu0
    %v4578 = vadd.f32 %v4385, %v4577
    %v4579 = vpop.f32.mrb[0].mxu0
    %v4580 = vpop.f32.mrb[0].mxu0
    %v4581 = vadd.f32 %v4385, %v4580
    %v4582 = vpop.f32.mrb[0].mxu0
    %4583 = vmatprep.mubr.bf16.mxu0 0
    %4584 = vmatmul.mubr.bf16.gmra.mrb[0].mxu0 %v4439
    %v4585 = vpop.f32.mrb[0].mxu0
    %v4586 = vadd.f32 %v4385, %v4585
    %v4587 = vpop.f32.mrb[0].mxu0
    %v4588 = vpop.f32.mrb[0].mxu0
    %v4589 = vadd.f32 %v4385, %v4588
    %v4590 = vpop.f32.mrb[0].mxu0
    %4591 = vmatprep.mubr.bf16.mxu0 0
    %4592 = vmatmul.mubr.bf16.gmra.mrb[0].mxu0 %v4442
    %v4593 = vpop.f32.mrb[0].mxu0
    %v4594 = vadd.f32 %v4385, %v4593
    %v4595 = vpop.f32.mrb[0].mxu0
    %v4596 = vpop.f32.mrb[0].mxu0
    %v4597 = vadd.f32 %v4385, %v4596
    %v4598 = vpop.f32.mrb[0].mxu0
    %4599 = vmatprep.mubr.bf16.mxu0 0
    %4600 = vmatmul.mubr.bf16.gmra.mrb[0].mxu0 %v4445
    %v4601 = vpop.f32.mrb[0].mxu0
    %v4602 = vadd.f32 %v4385, %v4601
    %v4603 = vpop.f32.mrb[0].mxu0
    %v4604 = vpop.f32.mrb[0].mxu0
    %v4605 = vadd.f32 %v4385, %v4604
    %v4606 = vpop.f32.mrb[0].mxu0
    %4607 = vdwg.mxu0
    %v4608 = vadd.f32 %v4482, %v4349
    %v4609 = vadd.f32 %v4485, %v4350
    %v4610 = vadd.f32 %v4490, %v4351
    %v4611 = vadd.f32 %v4493, %v4352
    %v4612 = vadd.f32 %v4498, %v4353
    %v4613 = vadd.f32 %v4501, %v4354
    %v4614 = vadd.f32 %v4506, %v4355
    %v4615 = vadd.f32 %v4509, %v4356
    %v4616 = vadd.f32 %v4514, %v4357
    %v4617 = vadd.f32 %v4517, %v4358
    %v4618 = vadd.f32 %v4522, %v4359
    %v4619 = vadd.f32 %v4525, %v4360
    %v4620 = vadd.f32 %v4530, %v4361
    %v4621 = vadd.f32 %v4533, %v4362
    %v4622 = vadd.f32 %v4538, %v4363
    %v4623 = vadd.f32 %v4541, %v4364
    %v4624 = vadd.f32 %v4546, %v4365
    %v4625 = vadd.f32 %v4549, %v4366
    %v4626 = vadd.f32 %v4554, %v4367
    %v4627 = vadd.f32 %v4557, %v4368
    %v4628 = vadd.f32 %v4562, %v4369
    %v4629 = vadd.f32 %v4565, %v4370
    %v4630 = vadd.f32 %v4570, %v4371
    %v4631 = vadd.f32 %v4573, %v4372
    %v4632 = vadd.f32 %v4578, %v4373
    %v4633 = vadd.f32 %v4581, %v4374
    %v4634 = vadd.f32 %v4586, %v4375
    %v4635 = vadd.f32 %v4589, %v4376
    %v4636 = vadd.f32 %v4594, %v4377
    %v4637 = vadd.f32 %v4597, %v4378
    %v4638 = vadd.f32 %v4602, %v4379
    %v4639 = vadd.f32 %v4605, %v4380
    %v4640 = vmax.f32 %v4608, 0.0
    %v4641 = vmax.f32 %v4609, 0.0
    %v4642 = vmax.f32 %v4610, 0.0
    %v4643 = vmax.f32 %v4611, 0.0
    %v4644 = vmax.f32 %v4612, 0.0
    %v4645 = vmax.f32 %v4613, 0.0
    %v4646 = vmax.f32 %v4614, 0.0
    %v4647 = vmax.f32 %v4615, 0.0
    %v4648 = vmax.f32 %v4616, 0.0
    %v4649 = vmax.f32 %v4617, 0.0
    %v4650 = vmax.f32 %v4618, 0.0
    %v4651 = vmax.f32 %v4619, 0.0
    %v4652 = vmax.f32 %v4620, 0.0
    %v4653 = vmax.f32 %v4621, 0.0
    %v4654 = vmax.f32 %v4622, 0.0
    %v4655 = vmax.f32 %v4623, 0.0
    %v4656 = vmax.f32 %v4624, 0.0
    %v4657 = vmax.f32 %v4625, 0.0
    %v4658 = vmax.f32 %v4626, 0.0
    %v4659 = vmax.f32 %v4627, 0.0
    %v4660 = vmax.f32 %v4628, 0.0
    %v4661 = vmax.f32 %v4629, 0.0
    %v4662 = vmax.f32 %v4630, 0.0
    %v4663 = vmax.f32 %v4631, 0.0
    %v4664 = vmax.f32 %v4632, 0.0
    %v4665 = vmax.f32 %v4633, 0.0
    %v4666 = vmax.f32 %v4634, 0.0
    %v4667 = vmax.f32 %v4635, 0.0
    %v4668 = vmax.f32 %v4636, 0.0
    %v4669 = vmax.f32 %v4637, 0.0
    %v4670 = vmax.f32 %v4638, 0.0
    %v4671 = vmax.f32 %v4639, 0.0
    %s4672 = scalar_lea.vmem [#allocation8], %s4347
    %4673 = vst [vmem:[%s4672] sm:$0xff] %v4640
    %4674 = vst [vmem:[%s4672 + $0x8] sm:$0xff] %v4641
    %4675 = vst [vmem:[%s4672 + $0x10] sm:$0xff] %v4642
    %4676 = vst [vmem:[%s4672 + $0x18] sm:$0xff] %v4643
    %4677 = vst [vmem:[%s4672 + $0x20] sm:$0xff] %v4644
    %4678 = vst [vmem:[%s4672 + $0x28] sm:$0xff] %v4645
    %4679 = vst [vmem:[%s4672 + $0x30] sm:$0xff] %v4646
    %4680 = vst [vmem:[%s4672 + $0x38] sm:$0xff] %v4647
    %4681 = vst [vmem:[%s4672 + $0x40] sm:$0xff] %v4648
    %4682 = vst [vmem:[%s4672 + $0x48] sm:$0xff] %v4649
    %4683 = vst [vmem:[%s4672 + $0x50] sm:$0xff] %v4650
    %4684 = vst [vmem:[%s4672 + $0x58] sm:$0xff] %v4651
    %4685 = vst [vmem:[%s4672 + $0x60] sm:$0xff] %v4652
    %4686 = vst [vmem:[%s4672 + $0x68] sm:$0xff] %v4653
    %4687 = vst [vmem:[%s4672 + $0x70] sm:$0xff] %v4654
    %4688 = vst [vmem:[%s4672 + $0x78] sm:$0xff] %v4655
    %4689 = vst [vmem:[%s4672 + $0x80] sm:$0xff] %v4656
    %4690 = vst [vmem:[%s4672 + $0x88] sm:$0xff] %v4657
    %4691 = vst [vmem:[%s4672 + $0x90] sm:$0xff] %v4658
    %4692 = vst [vmem:[%s4672 + $0x98] sm:$0xff] %v4659
    %4693 = vst [vmem:[%s4672 + $0xa0] sm:$0xff] %v4660
    %4694 = vst [vmem:[%s4672 + $0xa8] sm:$0xff] %v4661
    %4695 = vst [vmem:[%s4672 + $0xb0] sm:$0xff] %v4662
    %4696 = vst [vmem:[%s4672 + $0xb8] sm:$0xff] %v4663
    %4697 = vst [vmem:[%s4672 + $0xc0] sm:$0xff] %v4664
    %4698 = vst [vmem:[%s4672 + $0xc8] sm:$0xff] %v4665
    %4699 = vst [vmem:[%s4672 + $0xd0] sm:$0xff] %v4666
    %4700 = vst [vmem:[%s4672 + $0xd8] sm:$0xff] %v4667
    %4701 = vst [vmem:[%s4672 + $0xe0] sm:$0xff] %v4668
    %4702 = vst [vmem:[%s4672 + $0xe8] sm:$0xff] %v4669
    %4703 = vst [vmem:[%s4672 + $0xf0] sm:$0xff] %v4670
    %4704 = vst [vmem:[%s4672 + $0xf8] sm:$0xff] %v4671
    %s4705 = sadd.s32 %s1432, 54
    %s4706 = smul.addr %s4705, 4
    %s4707 = scalar_lea.vmem [#allocation2], %s4706
    %v4708 = vld [vmem:[%s4707] sm:$0xf]
    %v4709 = vld [vmem:[%s4707 + $0x4] sm:$0xf]
    %v4710 = vld [vmem:[%s4707 + $0x8] sm:$0x1]
    %v4711 = vld [vmem:[%s4707 + $0xc] sm:$0xf]
    %v4712 = vld [vmem:[%s4707 + $0x10] sm:$0xf]
    %v4713 = vld [vmem:[%s4707 + $0x14] sm:$0x1]
    %v4714 = vld [vmem:[%s4707 + $0x18] sm:$0xf]
    %v4715 = vld [vmem:[%s4707 + $0x1c] sm:$0xf]
    %v4716 = vld [vmem:[%s4707 + $0x20] sm:$0x1]
    %v4717 = vld [vmem:[%s4707 + $0x24] sm:$0xf]
    %v4718 = vld [vmem:[%s4707 + $0x28] sm:$0xf]
    %v4719 = vld [vmem:[%s4707 + $0x2c] sm:$0x1]
    %v4720 = vld [vmem:[%s4707 + $0x30] sm:$0xf]
    %v4721 = vld [vmem:[%s4707 + $0x34] sm:$0xf]
    %v4722 = vld [vmem:[%s4707 + $0x38] sm:$0x1]
    %v4723 = vld [vmem:[%s4707 + $0x3c] sm:$0xf]
    %v4724 = vld [vmem:[%s4707 + $0x40] sm:$0xf]
    %v4725 = vld [vmem:[%s4707 + $0x44] sm:$0x1]
    %v4726 = vld [vmem:[%s4707 + $0x48] sm:$0xf]
    %v4727 = vld [vmem:[%s4707 + $0x4c] sm:$0xf]
    %v4728 = vld [vmem:[%s4707 + $0x50] sm:$0x1]
    %v4729 = vld [vmem:[%s4707 + $0x54] sm:$0xf]
    %v4730 = vld [vmem:[%s4707 + $0x58] sm:$0xf]
    %v4731 = vld [vmem:[%s4707 + $0x5c] sm:$0x1]
    %v4732 = vld [vmem:[%s4707 + $0x60] sm:$0xf]
    %v4733 = vld [vmem:[%s4707 + $0x64] sm:$0xf]
    %v4734 = vld [vmem:[%s4707 + $0x68] sm:$0x1]
    %v4735 = vld [vmem:[%s4707 + $0x6c] sm:$0xf]
    %v4736 = vld [vmem:[%s4707 + $0x70] sm:$0xf]
    %v4737 = vld [vmem:[%s4707 + $0x74] sm:$0x1]
    %v4738 = vld [vmem:[%s4707 + $0x78] sm:$0xf]
    %v4739 = vld [vmem:[%s4707 + $0x7c] sm:$0xf]
    %v4740 = vld [vmem:[%s4707 + $0x80] sm:$0x1]
    %v4741 = vld [vmem:[%s4707 + $0x84] sm:$0xf]
    %v4742 = vld [vmem:[%s4707 + $0x88] sm:$0xf]
    %v4743 = vld [vmem:[%s4707 + $0x8c] sm:$0x1]
    %v4744 = vld [vmem:[%s4707 + $0x90] sm:$0xf]
    %v4745 = vld [vmem:[%s4707 + $0x94] sm:$0xf]
    %v4746 = vld [vmem:[%s4707 + $0x98] sm:$0x1]
    %v4747 = vld [vmem:[%s4707 + $0x9c] sm:$0xf]
    %v4748 = vld [vmem:[%s4707 + $0xa0] sm:$0xf]
    %v4749 = vld [vmem:[%s4707 + $0xa4] sm:$0x1]
    %v4750 = vld [vmem:[%s4707 + $0xa8] sm:$0xf]
    %v4751 = vld [vmem:[%s4707 + $0xac] sm:$0xf]
    %v4752 = vld [vmem:[%s4707 + $0xb0] sm:$0x1]
    %v4753 = vld [vmem:[%s4707 + $0xb4] sm:$0xf]
    %v4754 = vld [vmem:[%s4707 + $0xb8] sm:$0xf]
    %v4755 = vld [vmem:[%s4707 + $0xbc] sm:$0x1]
    %v4756 = vld [vmem:[%s4707 + $0xc0] sm:$0xf]
    %v4757 = vld [vmem:[%s4707 + $0xc4] sm:$0xf]
    %v4758 = vld [vmem:[%s4707 + $0xc8] sm:$0x1]
    %v4759 = vld [vmem:[%s4707 + $0xcc] sm:$0xf]
    %v4760 = vld [vmem:[%s4707 + $0xd0] sm:$0xf]
    %v4761 = vld [vmem:[%s4707 + $0xd4] sm:$0x1]
    %v4762 = vld [vmem:[#allocation6] sm:$0xf]
    %v4763 = vld [vmem:[#allocation6 + $0x4] sm:$0xf]
    %v4764 = vld [vmem:[#allocation6 + $0x8] sm:$0xf]
    %v4765 = vld [vmem:[#allocation6 + $0xc] sm:$0xf]
    %v4767 = vshrl.u32 %v4708, 16
    %v4769 = vrot.slane %v4767, 4
    %v4770 = vshll.u32 %v4708, 16
    %v4772 = vrot.slane %v4770, 5
    %v4773 = vor.u32 %v4769, %v4772
    %v4774 = vrot.slane %v4773, 4
    %v4776 = vshll.u32 %v4709, 16
    %v4778 = vrot.slane %v4776, 5
    %v4779 = vsel %vm1495, %v4774, %v4778
    %v4780 = vshrl.u32 %v4709, 16
    %v4782 = vrot.slane %v4780, 4
    %v4783 = vor.u32 %v4782, %v4778
    %v4784 = vrot.slane %v4783, 4
    %v4786 = vshll.u32 %v4710, 16
    %v4788 = vrot.slane %v4786, 5
    %v4789 = vsel %vm1495, %v4784, %v4788
    %v4791 = vshrl.u32 %v4711, 16
    %v4793 = vrot.slane %v4791, 4
    %v4794 = vshll.u32 %v4711, 16
    %v4796 = vrot.slane %v4794, 5
    %v4797 = vor.u32 %v4793, %v4796
    %v4798 = vrot.slane %v4797, 4
    %v4800 = vshll.u32 %v4712, 16
    %v4802 = vrot.slane %v4800, 5
    %v4803 = vsel %vm1495, %v4798, %v4802
    %v4804 = vshrl.u32 %v4712, 16
    %v4806 = vrot.slane %v4804, 4
    %v4807 = vor.u32 %v4806, %v4802
    %v4808 = vrot.slane %v4807, 4
    %v4810 = vshll.u32 %v4713, 16
    %v4812 = vrot.slane %v4810, 5
    %v4813 = vsel %vm1495, %v4808, %v4812
    %v4815 = vshrl.u32 %v4714, 16
    %v4817 = vrot.slane %v4815, 4
    %v4818 = vshll.u32 %v4714, 16
    %v4820 = vrot.slane %v4818, 5
    %v4821 = vor.u32 %v4817, %v4820
    %v4822 = vrot.slane %v4821, 4
    %v4824 = vshll.u32 %v4715, 16
    %v4826 = vrot.slane %v4824, 5
    %v4827 = vsel %vm1495, %v4822, %v4826
    %v4828 = vshrl.u32 %v4715, 16
    %v4830 = vrot.slane %v4828, 4
    %v4831 = vor.u32 %v4830, %v4826
    %v4832 = vrot.slane %v4831, 4
    %v4834 = vshll.u32 %v4716, 16
    %v4836 = vrot.slane %v4834, 5
    %v4837 = vsel %vm1495, %v4832, %v4836
    %v4839 = vshrl.u32 %v4717, 16
    %v4841 = vrot.slane %v4839, 4
    %v4842 = vshll.u32 %v4717, 16
    %v4844 = vrot.slane %v4842, 5
    %v4845 = vor.u32 %v4841, %v4844
    %v4846 = vrot.slane %v4845, 4
    %v4848 = vshll.u32 %v4718, 16
    %v4850 = vrot.slane %v4848, 5
    %v4851 = vsel %vm1495, %v4846, %v4850
    %v4852 = vshrl.u32 %v4718, 16
    %v4854 = vrot.slane %v4852, 4
    %v4855 = vor.u32 %v4854, %v4850
    %v4856 = vrot.slane %v4855, 4
    %v4858 = vshll.u32 %v4719, 16
    %v4860 = vrot.slane %v4858, 5
    %v4861 = vsel %vm1495, %v4856, %v4860
    %v4863 = vshrl.u32 %v4720, 16
    %v4865 = vrot.slane %v4863, 4
    %v4866 = vshll.u32 %v4720, 16
    %v4868 = vrot.slane %v4866, 5
    %v4869 = vor.u32 %v4865, %v4868
    %v4870 = vrot.slane %v4869, 4
    %v4872 = vshll.u32 %v4721, 16
    %v4874 = vrot.slane %v4872, 5
    %v4875 = vsel %vm1495, %v4870, %v4874
    %v4876 = vshrl.u32 %v4721, 16
    %v4878 = vrot.slane %v4876, 4
    %v4879 = vor.u32 %v4878, %v4874
    %v4880 = vrot.slane %v4879, 4
    %v4882 = vshll.u32 %v4722, 16
    %v4884 = vrot.slane %v4882, 5
    %v4885 = vsel %vm1495, %v4880, %v4884
    %v4887 = vshrl.u32 %v4723, 16
    %v4889 = vrot.slane %v4887, 4
    %v4890 = vshll.u32 %v4723, 16
    %v4892 = vrot.slane %v4890, 5
    %v4893 = vor.u32 %v4889, %v4892
    %v4894 = vrot.slane %v4893, 4
    %v4896 = vshll.u32 %v4724, 16
    %v4898 = vrot.slane %v4896, 5
    %v4899 = vsel %vm1495, %v4894, %v4898
    %v4900 = vshrl.u32 %v4724, 16
    %v4902 = vrot.slane %v4900, 4
    %v4903 = vor.u32 %v4902, %v4898
    %v4904 = vrot.slane %v4903, 4
    %v4906 = vshll.u32 %v4725, 16
    %v4908 = vrot.slane %v4906, 5
    %v4909 = vsel %vm1495, %v4904, %v4908
    %v4911 = vshrl.u32 %v4726, 16
    %v4913 = vrot.slane %v4911, 4
    %v4914 = vshll.u32 %v4726, 16
    %v4916 = vrot.slane %v4914, 5
    %v4917 = vor.u32 %v4913, %v4916
    %v4918 = vrot.slane %v4917, 4
    %v4920 = vshll.u32 %v4727, 16
    %v4922 = vrot.slane %v4920, 5
    %v4923 = vsel %vm1495, %v4918, %v4922
    %v4924 = vshrl.u32 %v4727, 16
    %v4926 = vrot.slane %v4924, 4
    %v4927 = vor.u32 %v4926, %v4922
    %v4928 = vrot.slane %v4927, 4
    %v4930 = vshll.u32 %v4728, 16
    %v4932 = vrot.slane %v4930, 5
    %v4933 = vsel %vm1495, %v4928, %v4932
    %v4935 = vshrl.u32 %v4729, 16
    %v4937 = vrot.slane %v4935, 4
    %v4938 = vshll.u32 %v4729, 16
    %v4940 = vrot.slane %v4938, 5
    %v4941 = vor.u32 %v4937, %v4940
    %v4942 = vrot.slane %v4941, 4
    %v4944 = vshll.u32 %v4730, 16
    %v4946 = vrot.slane %v4944, 5
    %v4947 = vsel %vm1495, %v4942, %v4946
    %v4948 = vshrl.u32 %v4730, 16
    %v4950 = vrot.slane %v4948, 4
    %v4951 = vor.u32 %v4950, %v4946
    %v4952 = vrot.slane %v4951, 4
    %v4954 = vshll.u32 %v4731, 16
    %v4956 = vrot.slane %v4954, 5
    %v4957 = vsel %vm1495, %v4952, %v4956
    %v4959 = vshrl.u32 %v4732, 16
    %v4961 = vrot.slane %v4959, 4
    %v4962 = vshll.u32 %v4732, 16
    %v4964 = vrot.slane %v4962, 5
    %v4965 = vor.u32 %v4961, %v4964
    %v4966 = vrot.slane %v4965, 4
    %v4968 = vshll.u32 %v4733, 16
    %v4970 = vrot.slane %v4968, 5
    %v4971 = vsel %vm1495, %v4966, %v4970
    %v4972 = vshrl.u32 %v4733, 16
    %v4974 = vrot.slane %v4972, 4
    %v4975 = vor.u32 %v4974, %v4970
    %v4976 = vrot.slane %v4975, 4
    %v4978 = vshll.u32 %v4734, 16
    %v4980 = vrot.slane %v4978, 5
    %v4981 = vsel %vm1495, %v4976, %v4980
    %v4983 = vshrl.u32 %v4735, 16
    %v4985 = vrot.slane %v4983, 4
    %v4986 = vshll.u32 %v4735, 16
    %v4988 = vrot.slane %v4986, 5
    %v4989 = vor.u32 %v4985, %v4988
    %v4990 = vrot.slane %v4989, 4
    %v4992 = vshll.u32 %v4736, 16
    %v4994 = vrot.slane %v4992, 5
    %v4995 = vsel %vm1495, %v4990, %v4994
    %v4996 = vshrl.u32 %v4736, 16
    %v4998 = vrot.slane %v4996, 4
    %v4999 = vor.u32 %v4998, %v4994
    %v5000 = vrot.slane %v4999, 4
    %v5002 = vshll.u32 %v4737, 16
    %v5004 = vrot.slane %v5002, 5
    %v5005 = vsel %vm1495, %v5000, %v5004
    %v5007 = vshrl.u32 %v4738, 16
    %v5009 = vrot.slane %v5007, 4
    %v5010 = vshll.u32 %v4738, 16
    %v5012 = vrot.slane %v5010, 5
    %v5013 = vor.u32 %v5009, %v5012
    %v5014 = vrot.slane %v5013, 4
    %v5016 = vshll.u32 %v4739, 16
    %v5018 = vrot.slane %v5016, 5
    %v5019 = vsel %vm1495, %v5014, %v5018
    %v5020 = vshrl.u32 %v4739, 16
    %v5022 = vrot.slane %v5020, 4
    %v5023 = vor.u32 %v5022, %v5018
    %v5024 = vrot.slane %v5023, 4
    %v5026 = vshll.u32 %v4740, 16
    %v5028 = vrot.slane %v5026, 5
    %v5029 = vsel %vm1495, %v5024, %v5028
    %v5031 = vshrl.u32 %v4741, 16
    %v5033 = vrot.slane %v5031, 4
    %v5034 = vshll.u32 %v4741, 16
    %v5036 = vrot.slane %v5034, 5
    %v5037 = vor.u32 %v5033, %v5036
    %v5038 = vrot.slane %v5037, 4
    %v5040 = vshll.u32 %v4742, 16
    %v5042 = vrot.slane %v5040, 5
    %v5043 = vsel %vm1495, %v5038, %v5042
    %v5044 = vshrl.u32 %v4742, 16
    %v5046 = vrot.slane %v5044, 4
    %v5047 = vor.u32 %v5046, %v5042
    %v5048 = vrot.slane %v5047, 4
    %v5050 = vshll.u32 %v4743, 16
    %v5052 = vrot.slane %v5050, 5
    %v5053 = vsel %vm1495, %v5048, %v5052
    %v5055 = vshrl.u32 %v4744, 16
    %v5057 = vrot.slane %v5055, 4
    %v5058 = vshll.u32 %v4744, 16
    %v5060 = vrot.slane %v5058, 5
    %v5061 = vor.u32 %v5057, %v5060
    %v5062 = vrot.slane %v5061, 4
    %v5064 = vshll.u32 %v4745, 16
    %v5066 = vrot.slane %v5064, 5
    %v5067 = vsel %vm1495, %v5062, %v5066
    %v5068 = vshrl.u32 %v4745, 16
    %v5070 = vrot.slane %v5068, 4
    %v5071 = vor.u32 %v5070, %v5066
    %v5072 = vrot.slane %v5071, 4
    %v5074 = vshll.u32 %v4746, 16
    %v5076 = vrot.slane %v5074, 5
    %v5077 = vsel %vm1495, %v5072, %v5076
    %v5079 = vshrl.u32 %v4747, 16
    %v5081 = vrot.slane %v5079, 4
    %v5082 = vshll.u32 %v4747, 16
    %v5084 = vrot.slane %v5082, 5
    %v5085 = vor.u32 %v5081, %v5084
    %v5086 = vrot.slane %v5085, 4
    %v5088 = vshll.u32 %v4748, 16
    %v5090 = vrot.slane %v5088, 5
    %v5091 = vsel %vm1495, %v5086, %v5090
    %v5092 = vshrl.u32 %v4748, 16
    %v5094 = vrot.slane %v5092, 4
    %v5095 = vor.u32 %v5094, %v5090
    %v5096 = vrot.slane %v5095, 4
    %v5098 = vshll.u32 %v4749, 16
    %v5100 = vrot.slane %v5098, 5
    %v5101 = vsel %vm1495, %v5096, %v5100
    %v5103 = vshrl.u32 %v4750, 16
    %v5105 = vrot.slane %v5103, 4
    %v5106 = vshll.u32 %v4750, 16
    %v5108 = vrot.slane %v5106, 5
    %v5109 = vor.u32 %v5105, %v5108
    %v5110 = vrot.slane %v5109, 4
    %v5112 = vshll.u32 %v4751, 16
    %v5114 = vrot.slane %v5112, 5
    %v5115 = vsel %vm1495, %v5110, %v5114
    %v5116 = vshrl.u32 %v4751, 16
    %v5118 = vrot.slane %v5116, 4
    %v5119 = vor.u32 %v5118, %v5114
    %v5120 = vrot.slane %v5119, 4
    %v5122 = vshll.u32 %v4752, 16
    %v5124 = vrot.slane %v5122, 5
    %v5125 = vsel %vm1495, %v5120, %v5124
    %v5127 = vshrl.u32 %v4753, 16
    %v5129 = vrot.slane %v5127, 4
    %v5130 = vshll.u32 %v4753, 16
    %v5132 = vrot.slane %v5130, 5
    %v5133 = vor.u32 %v5129, %v5132
    %v5134 = vrot.slane %v5133, 4
    %v5136 = vshll.u32 %v4754, 16
    %v5138 = vrot.slane %v5136, 5
    %v5139 = vsel %vm1495, %v5134, %v5138
    %v5140 = vshrl.u32 %v4754, 16
    %v5142 = vrot.slane %v5140, 4
    %v5143 = vor.u32 %v5142, %v5138
    %v5144 = vrot.slane %v5143, 4
    %v5146 = vshll.u32 %v4755, 16
    %v5148 = vrot.slane %v5146, 5
    %v5149 = vsel %vm1495, %v5144, %v5148
    %v5150 = vld [vmem:[%s1880] sm:$0xf]
    %v5151 = vld [vmem:[%s1880 + $0x4] sm:$0xf]
    %v5152 = vld [vmem:[%s1880 + $0x8] sm:$0xf]
    %v5153 = vld [vmem:[%s1880 + $0xc] sm:$0xf]
    %v5154 = vunpack.c.l.b16 %v4779
    %v5155 = vunpack.c.l.b16 %v4789
    %v5156 = vunpack.c.l.b16 %v4803
    %v5157 = vunpack.c.l.b16 %v4813
    %v5158 = vunpack.c.l.b16 %v4827
    %v5159 = vunpack.c.l.b16 %v4837
    %v5160 = vunpack.c.l.b16 %v4851
    %v5161 = vunpack.c.l.b16 %v4861
    %v5162 = vunpack.c.l.b16 %v4875
    %v5163 = vunpack.c.l.b16 %v4885
    %v5164 = vunpack.c.l.b16 %v4899
    %v5165 = vunpack.c.l.b16 %v4909
    %v5166 = vunpack.c.l.b16 %v4923
    %v5167 = vunpack.c.l.b16 %v4933
    %v5168 = vunpack.c.l.b16 %v4947
    %v5169 = vunpack.c.l.b16 %v4957
    %v5170 = vunpack.c.l.b16 %v4971
    %v5171 = vunpack.c.l.b16 %v4981
    %v5172 = vunpack.c.l.b16 %v4995
    %v5173 = vunpack.c.l.b16 %v5005
    %v5174 = vunpack.c.l.b16 %v5019
    %v5175 = vunpack.c.l.b16 %v5029
    %v5176 = vunpack.c.l.b16 %v5043
    %v5177 = vunpack.c.l.b16 %v5053
    %v5178 = vunpack.c.l.b16 %v5067
    %v5179 = vunpack.c.l.b16 %v5077
    %v5180 = vunpack.c.l.b16 %v5091
    %v5181 = vunpack.c.l.b16 %v5101
    %v5182 = vunpack.c.l.b16 %v5115
    %v5183 = vunpack.c.l.b16 %v5125
    %v5184 = vunpack.c.l.b16 %v5139
    %v5185 = vunpack.c.l.b16 %v5149
    %v5186 = vpack.c.b16 %v5155, %v5154
    %v5187 = vpack.c.b16 %v5157, %v5156
    %v5188 = vpack.c.b16 %v5159, %v5158
    %v5189 = vpack.c.b16 %v5161, %v5160
    %v5190 = vpack.c.b16 %v5163, %v5162
    %v5191 = vpack.c.b16 %v5165, %v5164
    %v5192 = vpack.c.b16 %v5167, %v5166
    %v5193 = vpack.c.b16 %v5169, %v5168
    %v5194 = vpack.c.b16 %v5171, %v5170
    %v5195 = vpack.c.b16 %v5173, %v5172
    %v5196 = vpack.c.b16 %v5175, %v5174
    %v5197 = vpack.c.b16 %v5177, %v5176
    %v5198 = vpack.c.b16 %v5179, %v5178
    %v5199 = vpack.c.b16 %v5181, %v5180
    %v5200 = vpack.c.b16 %v5183, %v5182
    %v5201 = vpack.c.b16 %v5185, %v5184
    %v5206 = vunpack.c.l.b16 %v5150
    %v5207 = vunpack.c.l.b16 %v5151
    %v5208 = vunpack.c.l.b16 %v5152
    %v5209 = vunpack.c.l.b16 %v5153
    %v5210 = vpack.c.b16 %v5207, %v5206
    %v5211 = vpack.c.b16 %v5209, %v5208
    %v5215 = vsel %vm1945, %v5186, 0
    %v5218 = vsel %vm1945, %v5187, 0
    %v5221 = vsel %vm1945, %v5188, 0
    %v5224 = vsel %vm1945, %v5189, 0
    %v5227 = vsel %vm1945, %v5190, 0
    %v5230 = vsel %vm1945, %v5191, 0
    %v5233 = vsel %vm1945, %v5192, 0
    %v5236 = vsel %vm1945, %v5193, 0
    %v5239 = vsel %vm1945, %v5194, 0
    %v5242 = vsel %vm1945, %v5195, 0
    %v5245 = vsel %vm1945, %v5196, 0
    %v5248 = vsel %vm1945, %v5197, 0
    %v5251 = vsel %vm1945, %v5198, 0
    %v5254 = vsel %vm1945, %v5199, 0
    %v5257 = vsel %vm1945, %v5200, 0
    %v5260 = vsel %vm1945, %v5201, 0
    %5262 = vmatprep.subr.bf16.mxu0 0
    %5263 = vmatpush1.bf16.msra.mxu0 %v5210
    %5264 = vmatprep.subr.bf16.mxu0 0
    %5265 = vmatpush1.bf16.msra.mxu0 %v5211
    %5266 = vmatprep.subr.bf16.mxu0 0
    %5267 = vmatpush1.bf16.msra.mxu0 0
    %5268 = vmatprep.subr.bf16.mxu0 0
    %5269 = vmatpush1.bf16.msra.mxu0 0
    %5270 = vmatprep.subr.bf16.mxu0 0
    %5271 = vmatpush1.bf16.msra.mxu0 0
    %5272 = vmatprep.subr.bf16.mxu0 0
    %5273 = vmatpush1.bf16.msra.mxu0 0
    %5274 = vmatprep.subr.bf16.mxu0 0
    %5275 = vmatpush1.bf16.msra.mxu0 0
    %5276 = vmatprep.subr.bf16.mxu0 0
    %5277 = vmatpush1.bf16.msra.mxu0 0
    %5278 = vmatprep.subr.bf16.mxu0 0
    %5279 = vmatpush1.bf16.msra.mxu0 0
    %5280 = vmatprep.subr.bf16.mxu0 0
    %5281 = vmatpush1.bf16.msra.mxu0 0
    %5282 = vmatprep.subr.bf16.mxu0 0
    %5283 = vmatpush1.bf16.msra.mxu0 0
    %5284 = vmatprep.subr.bf16.mxu0 0
    %5285 = vmatpush1.bf16.msra.mxu0 0
    %5286 = vmatprep.subr.bf16.mxu0 0
    %5287 = vmatpush1.bf16.msra.mxu0 0
    %5288 = vmatprep.subr.bf16.mxu0 0
    %5289 = vmatpush1.bf16.msra.mxu0 0
    %5290 = vmatprep.subr.bf16.mxu0 0
    %5291 = vmatpush1.bf16.msra.mxu0 0
    %5292 = vmatprep.subr.bf16.mxu0 0
    %5293 = vmatpush1.bf16.msra.mxu0 0
    %5294 = vmatprep.mubr.bf16.mxu0 0
    %5295 = vmatmul.mubr.bf16.gmra.mrb[0].mxu0 %v5215
    %v5296 = vpop.f32.mrb[0].mxu0
    %v5297 = vadd.f32 0.0, %v5296
    %v5298 = vpop.f32.mrb[0].mxu0
    %v5299 = vpop.f32.mrb[0].mxu0
    %v5300 = vadd.f32 0.0, %v5299
    %v5301 = vpop.f32.mrb[0].mxu0
    %5302 = vmatprep.mubr.bf16.mxu0 0
    %5303 = vmatmul.mubr.bf16.gmra.mrb[0].mxu0 %v5218
    %v5304 = vpop.f32.mrb[0].mxu0
    %v5305 = vadd.f32 0.0, %v5304
    %v5306 = vpop.f32.mrb[0].mxu0
    %v5307 = vpop.f32.mrb[0].mxu0
    %v5308 = vadd.f32 0.0, %v5307
    %v5309 = vpop.f32.mrb[0].mxu0
    %5310 = vmatprep.mubr.bf16.mxu0 0
    %5311 = vmatmul.mubr.bf16.gmra.mrb[0].mxu0 %v5221
    %v5312 = vpop.f32.mrb[0].mxu0
    %v5313 = vadd.f32 0.0, %v5312
    %v5314 = vpop.f32.mrb[0].mxu0
    %v5315 = vpop.f32.mrb[0].mxu0
    %v5316 = vadd.f32 0.0, %v5315
    %v5317 = vpop.f32.mrb[0].mxu0
    %5318 = vmatprep.mubr.bf16.mxu0 0
    %5319 = vmatmul.mubr.bf16.gmra.mrb[0].mxu0 %v5224
    %v5320 = vpop.f32.mrb[0].mxu0
    %v5321 = vadd.f32 0.0, %v5320
    %v5322 = vpop.f32.mrb[0].mxu0
    %v5323 = vpop.f32.mrb[0].mxu0
    %v5324 = vadd.f32 0.0, %v5323
    %v5325 = vpop.f32.mrb[0].mxu0
    %5326 = vmatprep.mubr.bf16.mxu0 0
    %5327 = vmatmul.mubr.bf16.gmra.mrb[0].mxu0 %v5227
    %v5328 = vpop.f32.mrb[0].mxu0
    %v5329 = vadd.f32 0.0, %v5328
    %v5330 = vpop.f32.mrb[0].mxu0
    %v5331 = vpop.f32.mrb[0].mxu0
    %v5332 = vadd.f32 0.0, %v5331
    %v5333 = vpop.f32.mrb[0].mxu0
    %5334 = vmatprep.mubr.bf16.mxu0 0
    %5335 = vmatmul.mubr.bf16.gmra.mrb[0].mxu0 %v5230
    %v5336 = vpop.f32.mrb[0].mxu0
    %v5337 = vadd.f32 0.0, %v5336
    %v5338 = vpop.f32.mrb[0].mxu0
    %v5339 = vpop.f32.mrb[0].mxu0
    %v5340 = vadd.f32 0.0, %v5339
    %v5341 = vpop.f32.mrb[0].mxu0
    %5342 = vmatprep.mubr.bf16.mxu0 0
    %5343 = vmatmul.mubr.bf16.gmra.mrb[0].mxu0 %v5233
    %v5344 = vpop.f32.mrb[0].mxu0
    %v5345 = vadd.f32 0.0, %v5344
    %v5346 = vpop.f32.mrb[0].mxu0
    %v5347 = vpop.f32.mrb[0].mxu0
    %v5348 = vadd.f32 0.0, %v5347
    %v5349 = vpop.f32.mrb[0].mxu0
    %5350 = vmatprep.mubr.bf16.mxu0 0
    %5351 = vmatmul.mubr.bf16.gmra.mrb[0].mxu0 %v5236
    %v5352 = vpop.f32.mrb[0].mxu0
    %v5353 = vadd.f32 0.0, %v5352
    %v5354 = vpop.f32.mrb[0].mxu0
    %v5355 = vpop.f32.mrb[0].mxu0
    %v5356 = vadd.f32 0.0, %v5355
    %v5357 = vpop.f32.mrb[0].mxu0
    %5358 = vmatprep.mubr.bf16.mxu0 0
    %5359 = vmatmul.mubr.bf16.gmra.mrb[0].mxu0 %v5239
    %v5360 = vpop.f32.mrb[0].mxu0
    %v5361 = vadd.f32 0.0, %v5360
    %v5362 = vpop.f32.mrb[0].mxu0
    %v5363 = vpop.f32.mrb[0].mxu0
    %v5364 = vadd.f32 0.0, %v5363
    %v5365 = vpop.f32.mrb[0].mxu0
    %5366 = vmatprep.mubr.bf16.mxu0 0
    %5367 = vmatmul.mubr.bf16.gmra.mrb[0].mxu0 %v5242
    %v5368 = vpop.f32.mrb[0].mxu0
    %v5369 = vadd.f32 0.0, %v5368
    %v5370 = vpop.f32.mrb[0].mxu0
    %v5371 = vpop.f32.mrb[0].mxu0
    %v5372 = vadd.f32 0.0, %v5371
    %v5373 = vpop.f32.mrb[0].mxu0
    %5374 = vmatprep.mubr.bf16.mxu0 0
    %5375 = vmatmul.mubr.bf16.gmra.mrb[0].mxu0 %v5245
    %v5376 = vpop.f32.mrb[0].mxu0
    %v5377 = vadd.f32 0.0, %v5376
    %v5378 = vpop.f32.mrb[0].mxu0
    %v5379 = vpop.f32.mrb[0].mxu0
    %v5380 = vadd.f32 0.0, %v5379
    %v5381 = vpop.f32.mrb[0].mxu0
    %5382 = vmatprep.mubr.bf16.mxu0 0
    %5383 = vmatmul.mubr.bf16.gmra.mrb[0].mxu0 %v5248
    %v5384 = vpop.f32.mrb[0].mxu0
    %v5385 = vadd.f32 0.0, %v5384
    %v5386 = vpop.f32.mrb[0].mxu0
    %v5387 = vpop.f32.mrb[0].mxu0
    %v5388 = vadd.f32 0.0, %v5387
    %v5389 = vpop.f32.mrb[0].mxu0
    %5390 = vmatprep.mubr.bf16.mxu0 0
    %5391 = vmatmul.mubr.bf16.gmra.mrb[0].mxu0 %v5251
    %v5392 = vpop.f32.mrb[0].mxu0
    %v5393 = vadd.f32 0.0, %v5392
    %v5394 = vpop.f32.mrb[0].mxu0
    %v5395 = vpop.f32.mrb[0].mxu0
    %v5396 = vadd.f32 0.0, %v5395
    %v5397 = vpop.f32.mrb[0].mxu0
    %5398 = vmatprep.mubr.bf16.mxu0 0
    %5399 = vmatmul.mubr.bf16.gmra.mrb[0].mxu0 %v5254
    %v5400 = vpop.f32.mrb[0].mxu0
    %v5401 = vadd.f32 0.0, %v5400
    %v5402 = vpop.f32.mrb[0].mxu0
    %v5403 = vpop.f32.mrb[0].mxu0
    %v5404 = vadd.f32 0.0, %v5403
    %v5405 = vpop.f32.mrb[0].mxu0
    %5406 = vmatprep.mubr.bf16.mxu0 0
    %5407 = vmatmul.mubr.bf16.gmra.mrb[0].mxu0 %v5257
    %v5408 = vpop.f32.mrb[0].mxu0
    %v5409 = vadd.f32 0.0, %v5408
    %v5410 = vpop.f32.mrb[0].mxu0
    %v5411 = vpop.f32.mrb[0].mxu0
    %v5412 = vadd.f32 0.0, %v5411
    %v5413 = vpop.f32.mrb[0].mxu0
    %5414 = vmatprep.mubr.bf16.mxu0 0
    %5415 = vmatmul.mubr.bf16.gmra.mrb[0].mxu0 %v5260
    %v5416 = vpop.f32.mrb[0].mxu0
    %v5417 = vadd.f32 0.0, %v5416
    %v5418 = vpop.f32.mrb[0].mxu0
    %v5419 = vpop.f32.mrb[0].mxu0
    %v5420 = vadd.f32 0.0, %v5419
    %v5421 = vpop.f32.mrb[0].mxu0
    %5422 = vdwg.mxu0
    %v5455 = vunpack.c.l.b16 %v4708
    %v5456 = vunpack.c.l.b16 %v4709
    %v5457 = vunpack.c.l.b16 %v4711
    %v5458 = vunpack.c.l.b16 %v4712
    %v5459 = vunpack.c.l.b16 %v4714
    %v5460 = vunpack.c.l.b16 %v4715
    %v5461 = vunpack.c.l.b16 %v4717
    %v5462 = vunpack.c.l.b16 %v4718
    %v5463 = vunpack.c.l.b16 %v4720
    %v5464 = vunpack.c.l.b16 %v4721
    %v5465 = vunpack.c.l.b16 %v4723
    %v5466 = vunpack.c.l.b16 %v4724
    %v5467 = vunpack.c.l.b16 %v4726
    %v5468 = vunpack.c.l.b16 %v4727
    %v5469 = vunpack.c.l.b16 %v4729
    %v5470 = vunpack.c.l.b16 %v4730
    %v5471 = vunpack.c.l.b16 %v4732
    %v5472 = vunpack.c.l.b16 %v4733
    %v5473 = vunpack.c.l.b16 %v4735
    %v5474 = vunpack.c.l.b16 %v4736
    %v5475 = vunpack.c.l.b16 %v4738
    %v5476 = vunpack.c.l.b16 %v4739
    %v5477 = vunpack.c.l.b16 %v4741
    %v5478 = vunpack.c.l.b16 %v4742
    %v5479 = vunpack.c.l.b16 %v4744
    %v5480 = vunpack.c.l.b16 %v4745
    %v5481 = vunpack.c.l.b16 %v4747
    %v5482 = vunpack.c.l.b16 %v4748
    %v5483 = vunpack.c.l.b16 %v4750
    %v5484 = vunpack.c.l.b16 %v4751
    %v5485 = vunpack.c.l.b16 %v4753
    %v5486 = vunpack.c.l.b16 %v4754
    %v5487 = vpack.c.b16 %v5456, %v5455
    %v5488 = vpack.c.b16 %v5458, %v5457
    %v5489 = vpack.c.b16 %v5460, %v5459
    %v5490 = vpack.c.b16 %v5462, %v5461
    %v5491 = vpack.c.b16 %v5464, %v5463
    %v5492 = vpack.c.b16 %v5466, %v5465
    %v5493 = vpack.c.b16 %v5468, %v5467
    %v5494 = vpack.c.b16 %v5470, %v5469
    %v5495 = vpack.c.b16 %v5472, %v5471
    %v5496 = vpack.c.b16 %v5474, %v5473
    %v5497 = vpack.c.b16 %v5476, %v5475
    %v5498 = vpack.c.b16 %v5478, %v5477
    %v5499 = vpack.c.b16 %v5480, %v5479
    %v5500 = vpack.c.b16 %v5482, %v5481
    %v5501 = vpack.c.b16 %v5484, %v5483
    %v5502 = vpack.c.b16 %v5486, %v5485
    %v5507 = vunpack.c.l.b16 %v4762
    %v5508 = vunpack.c.l.b16 %v4763
    %v5509 = vunpack.c.l.b16 %v4764
    %v5510 = vunpack.c.l.b16 %v4765
    %v5511 = vpack.c.b16 %v5508, %v5507
    %v5512 = vpack.c.b16 %v5510, %v5509
    %v5516 = vsel %vm1945, %v5487, 0
    %v5519 = vsel %vm1945, %v5488, 0
    %v5522 = vsel %vm1945, %v5489, 0
    %v5525 = vsel %vm1945, %v5490, 0
    %v5528 = vsel %vm1945, %v5491, 0
    %v5531 = vsel %vm1945, %v5492, 0
    %v5534 = vsel %vm1945, %v5493, 0
    %v5537 = vsel %vm1945, %v5494, 0
    %v5540 = vsel %vm1945, %v5495, 0
    %v5543 = vsel %vm1945, %v5496, 0
    %v5546 = vsel %vm1945, %v5497, 0
    %v5549 = vsel %vm1945, %v5498, 0
    %v5552 = vsel %vm1945, %v5499, 0
    %v5555 = vsel %vm1945, %v5500, 0
    %v5558 = vsel %vm1945, %v5501, 0
    %v5561 = vsel %vm1945, %v5502, 0
    %5563 = vmatprep.subr.bf16.mxu0 0
    %5564 = vmatpush1.bf16.msra.mxu0 %v5511
    %5565 = vmatprep.subr.bf16.mxu0 0
    %5566 = vmatpush1.bf16.msra.mxu0 %v5512
    %5567 = vmatprep.subr.bf16.mxu0 0
    %5568 = vmatpush1.bf16.msra.mxu0 0
    %5569 = vmatprep.subr.bf16.mxu0 0
    %5570 = vmatpush1.bf16.msra.mxu0 0
    %5571 = vmatprep.subr.bf16.mxu0 0
    %5572 = vmatpush1.bf16.msra.mxu0 0
    %5573 = vmatprep.subr.bf16.mxu0 0
    %5574 = vmatpush1.bf16.msra.mxu0 0
    %5575 = vmatprep.subr.bf16.mxu0 0
    %5576 = vmatpush1.bf16.msra.mxu0 0
    %5577 = vmatprep.subr.bf16.mxu0 0
    %5578 = vmatpush1.bf16.msra.mxu0 0
    %5579 = vmatprep.subr.bf16.mxu0 0
    %5580 = vmatpush1.bf16.msra.mxu0 0
    %5581 = vmatprep.subr.bf16.mxu0 0
    %5582 = vmatpush1.bf16.msra.mxu0 0
    %5583 = vmatprep.subr.bf16.mxu0 0
    %5584 = vmatpush1.bf16.msra.mxu0 0
    %5585 = vmatprep.subr.bf16.mxu0 0
    %5586 = vmatpush1.bf16.msra.mxu0 0
    %5587 = vmatprep.subr.bf16.mxu0 0
    %5588 = vmatpush1.bf16.msra.mxu0 0
    %5589 = vmatprep.subr.bf16.mxu0 0
    %5590 = vmatpush1.bf16.msra.mxu0 0
    %5591 = vmatprep.subr.bf16.mxu0 0
    %5592 = vmatpush1.bf16.msra.mxu0 0
    %5593 = vmatprep.subr.bf16.mxu0 0
    %5594 = vmatpush1.bf16.msra.mxu0 0
    %5595 = vmatprep.mubr.bf16.mxu0 0
    %5596 = vmatmul.mubr.bf16.gmra.mrb[0].mxu0 %v5516
    %v5597 = vpop.f32.mrb[0].mxu0
    %v5598 = vadd.f32 %v5297, %v5597
    %v5599 = vpop.f32.mrb[0].mxu0
    %v5600 = vpop.f32.mrb[0].mxu0
    %v5601 = vadd.f32 %v5300, %v5600
    %v5602 = vpop.f32.mrb[0].mxu0
    %5603 = vmatprep.mubr.bf16.mxu0 0
    %5604 = vmatmul.mubr.bf16.gmra.mrb[0].mxu0 %v5519
    %v5605 = vpop.f32.mrb[0].mxu0
    %v5606 = vadd.f32 %v5305, %v5605
    %v5607 = vpop.f32.mrb[0].mxu0
    %v5608 = vpop.f32.mrb[0].mxu0
    %v5609 = vadd.f32 %v5308, %v5608
    %v5610 = vpop.f32.mrb[0].mxu0
    %5611 = vmatprep.mubr.bf16.mxu0 0
    %5612 = vmatmul.mubr.bf16.gmra.mrb[0].mxu0 %v5522
    %v5613 = vpop.f32.mrb[0].mxu0
    %v5614 = vadd.f32 %v5313, %v5613
    %v5615 = vpop.f32.mrb[0].mxu0
    %v5616 = vpop.f32.mrb[0].mxu0
    %v5617 = vadd.f32 %v5316, %v5616
    %v5618 = vpop.f32.mrb[0].mxu0
    %5619 = vmatprep.mubr.bf16.mxu0 0
    %5620 = vmatmul.mubr.bf16.gmra.mrb[0].mxu0 %v5525
    %v5621 = vpop.f32.mrb[0].mxu0
    %v5622 = vadd.f32 %v5321, %v5621
    %v5623 = vpop.f32.mrb[0].mxu0
    %v5624 = vpop.f32.mrb[0].mxu0
    %v5625 = vadd.f32 %v5324, %v5624
    %v5626 = vpop.f32.mrb[0].mxu0
    %5627 = vmatprep.mubr.bf16.mxu0 0
    %5628 = vmatmul.mubr.bf16.gmra.mrb[0].mxu0 %v5528
    %v5629 = vpop.f32.mrb[0].mxu0
    %v5630 = vadd.f32 %v5329, %v5629
    %v5631 = vpop.f32.mrb[0].mxu0
    %v5632 = vpop.f32.mrb[0].mxu0
    %v5633 = vadd.f32 %v5332, %v5632
    %v5634 = vpop.f32.mrb[0].mxu0
    %5635 = vmatprep.mubr.bf16.mxu0 0
    %5636 = vmatmul.mubr.bf16.gmra.mrb[0].mxu0 %v5531
    %v5637 = vpop.f32.mrb[0].mxu0
    %v5638 = vadd.f32 %v5337, %v5637
    %v5639 = vpop.f32.mrb[0].mxu0
    %v5640 = vpop.f32.mrb[0].mxu0
    %v5641 = vadd.f32 %v5340, %v5640
    %v5642 = vpop.f32.mrb[0].mxu0
    %5643 = vmatprep.mubr.bf16.mxu0 0
    %5644 = vmatmul.mubr.bf16.gmra.mrb[0].mxu0 %v5534
    %v5645 = vpop.f32.mrb[0].mxu0
    %v5646 = vadd.f32 %v5345, %v5645
    %v5647 = vpop.f32.mrb[0].mxu0
    %v5648 = vpop.f32.mrb[0].mxu0
    %v5649 = vadd.f32 %v5348, %v5648
    %v5650 = vpop.f32.mrb[0].mxu0
    %5651 = vmatprep.mubr.bf16.mxu0 0
    %5652 = vmatmul.mubr.bf16.gmra.mrb[0].mxu0 %v5537
    %v5653 = vpop.f32.mrb[0].mxu0
    %v5654 = vadd.f32 %v5353, %v5653
    %v5655 = vpop.f32.mrb[0].mxu0
    %v5656 = vpop.f32.mrb[0].mxu0
    %v5657 = vadd.f32 %v5356, %v5656
    %v5658 = vpop.f32.mrb[0].mxu0
    %5659 = vmatprep.mubr.bf16.mxu0 0
    %5660 = vmatmul.mubr.bf16.gmra.mrb[0].mxu0 %v5540
    %v5661 = vpop.f32.mrb[0].mxu0
    %v5662 = vadd.f32 %v5361, %v5661
    %v5663 = vpop.f32.mrb[0].mxu0
    %v5664 = vpop.f32.mrb[0].mxu0
    %v5665 = vadd.f32 %v5364, %v5664
    %v5666 = vpop.f32.mrb[0].mxu0
    %5667 = vmatprep.mubr.bf16.mxu0 0
    %5668 = vmatmul.mubr.bf16.gmra.mrb[0].mxu0 %v5543
    %v5669 = vpop.f32.mrb[0].mxu0
    %v5670 = vadd.f32 %v5369, %v5669
    %v5671 = vpop.f32.mrb[0].mxu0
    %v5672 = vpop.f32.mrb[0].mxu0
    %v5673 = vadd.f32 %v5372, %v5672
    %v5674 = vpop.f32.mrb[0].mxu0
    %5675 = vmatprep.mubr.bf16.mxu0 0
    %5676 = vmatmul.mubr.bf16.gmra.mrb[0].mxu0 %v5546
    %v5677 = vpop.f32.mrb[0].mxu0
    %v5678 = vadd.f32 %v5377, %v5677
    %v5679 = vpop.f32.mrb[0].mxu0
    %v5680 = vpop.f32.mrb[0].mxu0
    %v5681 = vadd.f32 %v5380, %v5680
    %v5682 = vpop.f32.mrb[0].mxu0
    %5683 = vmatprep.mubr.bf16.mxu0 0
    %5684 = vmatmul.mubr.bf16.gmra.mrb[0].mxu0 %v5549
    %v5685 = vpop.f32.mrb[0].mxu0
    %v5686 = vadd.f32 %v5385, %v5685
    %v5687 = vpop.f32.mrb[0].mxu0
    %v5688 = vpop.f32.mrb[0].mxu0
    %v5689 = vadd.f32 %v5388, %v5688
    %v5690 = vpop.f32.mrb[0].mxu0
    %5691 = vmatprep.mubr.bf16.mxu0 0
    %5692 = vmatmul.mubr.bf16.gmra.mrb[0].mxu0 %v5552
    %v5693 = vpop.f32.mrb[0].mxu0
    %v5694 = vadd.f32 %v5393, %v5693
    %v5695 = vpop.f32.mrb[0].mxu0
    %v5696 = vpop.f32.mrb[0].mxu0
    %v5697 = vadd.f32 %v5396, %v5696
    %v5698 = vpop.f32.mrb[0].mxu0
    %5699 = vmatprep.mubr.bf16.mxu0 0
    %5700 = vmatmul.mubr.bf16.gmra.mrb[0].mxu0 %v5555
    %v5701 = vpop.f32.mrb[0].mxu0
    %v5702 = vadd.f32 %v5401, %v5701
    %v5703 = vpop.f32.mrb[0].mxu0
    %v5704 = vpop.f32.mrb[0].mxu0
    %v5705 = vadd.f32 %v5404, %v5704
    %v5706 = vpop.f32.mrb[0].mxu0
    %5707 = vmatprep.mubr.bf16.mxu0 0
    %5708 = vmatmul.mubr.bf16.gmra.mrb[0].mxu0 %v5558
    %v5709 = vpop.f32.mrb[0].mxu0
    %v5710 = vadd.f32 %v5409, %v5709
    %v5711 = vpop.f32.mrb[0].mxu0
    %v5712 = vpop.f32.mrb[0].mxu0
    %v5713 = vadd.f32 %v5412, %v5712
    %v5714 = vpop.f32.mrb[0].mxu0
    %5715 = vmatprep.mubr.bf16.mxu0 0
    %5716 = vmatmul.mubr.bf16.gmra.mrb[0].mxu0 %v5561
    %v5717 = vpop.f32.mrb[0].mxu0
    %v5718 = vadd.f32 %v5417, %v5717
    %v5719 = vpop.f32.mrb[0].mxu0
    %v5720 = vpop.f32.mrb[0].mxu0
    %v5721 = vadd.f32 %v5420, %v5720
    %v5722 = vpop.f32.mrb[0].mxu0
    %5723 = vdwg.mxu0
    %v5740 = vrot.slane %v4708, 5
    %v5741 = vrot.slane %v5740, 4
    %v5742 = vrot.slane %v4709, 5
    %v5743 = vsel %vm2474, %v5741, %v5742
    %v5744 = vrot.slane %v5742, 4
    %v5745 = vrot.slane %v4710, 5
    %v5746 = vsel %vm2474, %v5744, %v5745
    %v5747 = vrot.slane %v4711, 5
    %v5748 = vrot.slane %v5747, 4
    %v5749 = vrot.slane %v4712, 5
    %v5750 = vsel %vm2474, %v5748, %v5749
    %v5751 = vrot.slane %v5749, 4
    %v5752 = vrot.slane %v4713, 5
    %v5753 = vsel %vm2474, %v5751, %v5752
    %v5754 = vrot.slane %v4714, 5
    %v5755 = vrot.slane %v5754, 4
    %v5756 = vrot.slane %v4715, 5
    %v5757 = vsel %vm2474, %v5755, %v5756
    %v5758 = vrot.slane %v5756, 4
    %v5759 = vrot.slane %v4716, 5
    %v5760 = vsel %vm2474, %v5758, %v5759
    %v5761 = vrot.slane %v4717, 5
    %v5762 = vrot.slane %v5761, 4
    %v5763 = vrot.slane %v4718, 5
    %v5764 = vsel %vm2474, %v5762, %v5763
    %v5765 = vrot.slane %v5763, 4
    %v5766 = vrot.slane %v4719, 5
    %v5767 = vsel %vm2474, %v5765, %v5766
    %v5768 = vrot.slane %v4720, 5
    %v5769 = vrot.slane %v5768, 4
    %v5770 = vrot.slane %v4721, 5
    %v5771 = vsel %vm2474, %v5769, %v5770
    %v5772 = vrot.slane %v5770, 4
    %v5773 = vrot.slane %v4722, 5
    %v5774 = vsel %vm2474, %v5772, %v5773
    %v5775 = vrot.slane %v4723, 5
    %v5776 = vrot.slane %v5775, 4
    %v5777 = vrot.slane %v4724, 5
    %v5778 = vsel %vm2474, %v5776, %v5777
    %v5779 = vrot.slane %v5777, 4
    %v5780 = vrot.slane %v4725, 5
    %v5781 = vsel %vm2474, %v5779, %v5780
    %v5782 = vrot.slane %v4726, 5
    %v5783 = vrot.slane %v5782, 4
    %v5784 = vrot.slane %v4727, 5
    %v5785 = vsel %vm2474, %v5783, %v5784
    %v5786 = vrot.slane %v5784, 4
    %v5787 = vrot.slane %v4728, 5
    %v5788 = vsel %vm2474, %v5786, %v5787
    %v5789 = vrot.slane %v4729, 5
    %v5790 = vrot.slane %v5789, 4
    %v5791 = vrot.slane %v4730, 5
    %v5792 = vsel %vm2474, %v5790, %v5791
    %v5793 = vrot.slane %v5791, 4
    %v5794 = vrot.slane %v4731, 5
    %v5795 = vsel %vm2474, %v5793, %v5794
    %v5796 = vrot.slane %v4732, 5
    %v5797 = vrot.slane %v5796, 4
    %v5798 = vrot.slane %v4733, 5
    %v5799 = vsel %vm2474, %v5797, %v5798
    %v5800 = vrot.slane %v5798, 4
    %v5801 = vrot.slane %v4734, 5
    %v5802 = vsel %vm2474, %v5800, %v5801
    %v5803 = vrot.slane %v4735, 5
    %v5804 = vrot.slane %v5803, 4
    %v5805 = vrot.slane %v4736, 5
    %v5806 = vsel %vm2474, %v5804, %v5805
    %v5807 = vrot.slane %v5805, 4
    %v5808 = vrot.slane %v4737, 5
    %v5809 = vsel %vm2474, %v5807, %v5808
    %v5810 = vrot.slane %v4738, 5
    %v5811 = vrot.slane %v5810, 4
    %v5812 = vrot.slane %v4739, 5
    %v5813 = vsel %vm2474, %v5811, %v5812
    %v5814 = vrot.slane %v5812, 4
    %v5815 = vrot.slane %v4740, 5
    %v5816 = vsel %vm2474, %v5814, %v5815
    %v5817 = vrot.slane %v4741, 5
    %v5818 = vrot.slane %v5817, 4
    %v5819 = vrot.slane %v4742, 5
    %v5820 = vsel %vm2474, %v5818, %v5819
    %v5821 = vrot.slane %v5819, 4
    %v5822 = vrot.slane %v4743, 5
    %v5823 = vsel %vm2474, %v5821, %v5822
    %v5824 = vrot.slane %v4744, 5
    %v5825 = vrot.slane %v5824, 4
    %v5826 = vrot.slane %v4745, 5
    %v5827 = vsel %vm2474, %v5825, %v5826
    %v5828 = vrot.slane %v5826, 4
    %v5829 = vrot.slane %v4746, 5
    %v5830 = vsel %vm2474, %v5828, %v5829
    %v5831 = vrot.slane %v4747, 5
    %v5832 = vrot.slane %v5831, 4
    %v5833 = vrot.slane %v4748, 5
    %v5834 = vsel %vm2474, %v5832, %v5833
    %v5835 = vrot.slane %v5833, 4
    %v5836 = vrot.slane %v4749, 5
    %v5837 = vsel %vm2474, %v5835, %v5836
    %v5838 = vrot.slane %v4750, 5
    %v5839 = vrot.slane %v5838, 4
    %v5840 = vrot.slane %v4751, 5
    %v5841 = vsel %vm2474, %v5839, %v5840
    %v5842 = vrot.slane %v5840, 4
    %v5843 = vrot.slane %v4752, 5
    %v5844 = vsel %vm2474, %v5842, %v5843
    %v5845 = vrot.slane %v4753, 5
    %v5846 = vrot.slane %v5845, 4
    %v5847 = vrot.slane %v4754, 5
    %v5848 = vsel %vm2474, %v5846, %v5847
    %v5849 = vrot.slane %v5847, 4
    %v5850 = vrot.slane %v4755, 5
    %v5851 = vsel %vm2474, %v5849, %v5850
    %v5852 = vld [vmem:[%s2587] sm:$0xf]
    %v5853 = vld [vmem:[%s2587 + $0x4] sm:$0xf]
    %v5854 = vld [vmem:[%s2587 + $0x8] sm:$0xf]
    %v5855 = vld [vmem:[%s2587 + $0xc] sm:$0xf]
    %v5856 = vunpack.c.l.b16 %v5743
    %v5857 = vunpack.c.l.b16 %v5746
    %v5858 = vunpack.c.l.b16 %v5750
    %v5859 = vunpack.c.l.b16 %v5753
    %v5860 = vunpack.c.l.b16 %v5757
    %v5861 = vunpack.c.l.b16 %v5760
    %v5862 = vunpack.c.l.b16 %v5764
    %v5863 = vunpack.c.l.b16 %v5767
    %v5864 = vunpack.c.l.b16 %v5771
    %v5865 = vunpack.c.l.b16 %v5774
    %v5866 = vunpack.c.l.b16 %v5778
    %v5867 = vunpack.c.l.b16 %v5781
    %v5868 = vunpack.c.l.b16 %v5785
    %v5869 = vunpack.c.l.b16 %v5788
    %v5870 = vunpack.c.l.b16 %v5792
    %v5871 = vunpack.c.l.b16 %v5795
    %v5872 = vunpack.c.l.b16 %v5799
    %v5873 = vunpack.c.l.b16 %v5802
    %v5874 = vunpack.c.l.b16 %v5806
    %v5875 = vunpack.c.l.b16 %v5809
    %v5876 = vunpack.c.l.b16 %v5813
    %v5877 = vunpack.c.l.b16 %v5816
    %v5878 = vunpack.c.l.b16 %v5820
    %v5879 = vunpack.c.l.b16 %v5823
    %v5880 = vunpack.c.l.b16 %v5827
    %v5881 = vunpack.c.l.b16 %v5830
    %v5882 = vunpack.c.l.b16 %v5834
    %v5883 = vunpack.c.l.b16 %v5837
    %v5884 = vunpack.c.l.b16 %v5841
    %v5885 = vunpack.c.l.b16 %v5844
    %v5886 = vunpack.c.l.b16 %v5848
    %v5887 = vunpack.c.l.b16 %v5851
    %v5888 = vpack.c.b16 %v5857, %v5856
    %v5889 = vpack.c.b16 %v5859, %v5858
    %v5890 = vpack.c.b16 %v5861, %v5860
    %v5891 = vpack.c.b16 %v5863, %v5862
    %v5892 = vpack.c.b16 %v5865, %v5864
    %v5893 = vpack.c.b16 %v5867, %v5866
    %v5894 = vpack.c.b16 %v5869, %v5868
    %v5895 = vpack.c.b16 %v5871, %v5870
    %v5896 = vpack.c.b16 %v5873, %v5872
    %v5897 = vpack.c.b16 %v5875, %v5874
    %v5898 = vpack.c.b16 %v5877, %v5876
    %v5899 = vpack.c.b16 %v5879, %v5878
    %v5900 = vpack.c.b16 %v5881, %v5880
    %v5901 = vpack.c.b16 %v5883, %v5882
    %v5902 = vpack.c.b16 %v5885, %v5884
    %v5903 = vpack.c.b16 %v5887, %v5886
    %v5908 = vunpack.c.l.b16 %v5852
    %v5909 = vunpack.c.l.b16 %v5853
    %v5910 = vunpack.c.l.b16 %v5854
    %v5911 = vunpack.c.l.b16 %v5855
    %v5912 = vpack.c.b16 %v5909, %v5908
    %v5913 = vpack.c.b16 %v5911, %v5910
    %v5917 = vsel %vm1945, %v5888, 0
    %v5920 = vsel %vm1945, %v5889, 0
    %v5923 = vsel %vm1945, %v5890, 0
    %v5926 = vsel %vm1945, %v5891, 0
    %v5929 = vsel %vm1945, %v5892, 0
    %v5932 = vsel %vm1945, %v5893, 0
    %v5935 = vsel %vm1945, %v5894, 0
    %v5938 = vsel %vm1945, %v5895, 0
    %v5941 = vsel %vm1945, %v5896, 0
    %v5944 = vsel %vm1945, %v5897, 0
    %v5947 = vsel %vm1945, %v5898, 0
    %v5950 = vsel %vm1945, %v5899, 0
    %v5953 = vsel %vm1945, %v5900, 0
    %v5956 = vsel %vm1945, %v5901, 0
    %v5959 = vsel %vm1945, %v5902, 0
    %v5962 = vsel %vm1945, %v5903, 0
    %5964 = vmatprep.subr.bf16.mxu0 0
    %5965 = vmatpush1.bf16.msra.mxu0 %v5912
    %5966 = vmatprep.subr.bf16.mxu0 0
    %5967 = vmatpush1.bf16.msra.mxu0 %v5913
    %5968 = vmatprep.subr.bf16.mxu0 0
    %5969 = vmatpush1.bf16.msra.mxu0 0
    %5970 = vmatprep.subr.bf16.mxu0 0
    %5971 = vmatpush1.bf16.msra.mxu0 0
    %5972 = vmatprep.subr.bf16.mxu0 0
    %5973 = vmatpush1.bf16.msra.mxu0 0
    %5974 = vmatprep.subr.bf16.mxu0 0
    %5975 = vmatpush1.bf16.msra.mxu0 0
    %5976 = vmatprep.subr.bf16.mxu0 0
    %5977 = vmatpush1.bf16.msra.mxu0 0
    %5978 = vmatprep.subr.bf16.mxu0 0
    %5979 = vmatpush1.bf16.msra.mxu0 0
    %5980 = vmatprep.subr.bf16.mxu0 0
    %5981 = vmatpush1.bf16.msra.mxu0 0
    %5982 = vmatprep.subr.bf16.mxu0 0
    %5983 = vmatpush1.bf16.msra.mxu0 0
    %5984 = vmatprep.subr.bf16.mxu0 0
    %5985 = vmatpush1.bf16.msra.mxu0 0
    %5986 = vmatprep.subr.bf16.mxu0 0
    %5987 = vmatpush1.bf16.msra.mxu0 0
    %5988 = vmatprep.subr.bf16.mxu0 0
    %5989 = vmatpush1.bf16.msra.mxu0 0
    %5990 = vmatprep.subr.bf16.mxu0 0
    %5991 = vmatpush1.bf16.msra.mxu0 0
    %5992 = vmatprep.subr.bf16.mxu0 0
    %5993 = vmatpush1.bf16.msra.mxu0 0
    %5994 = vmatprep.subr.bf16.mxu0 0
    %5995 = vmatpush1.bf16.msra.mxu0 0
    %5996 = vmatprep.mubr.bf16.mxu0 0
    %5997 = vmatmul.mubr.bf16.gmra.mrb[0].mxu0 %v5917
    %v5998 = vpop.f32.mrb[0].mxu0
    %v5999 = vadd.f32 0.0, %v5998
    %v6000 = vpop.f32.mrb[0].mxu0
    %v6001 = vpop.f32.mrb[0].mxu0
    %v6002 = vadd.f32 0.0, %v6001
    %v6003 = vpop.f32.mrb[0].mxu0
    %6004 = vmatprep.mubr.bf16.mxu0 0
    %6005 = vmatmul.mubr.bf16.gmra.mrb[0].mxu0 %v5920
    %v6006 = vpop.f32.mrb[0].mxu0
    %v6007 = vadd.f32 0.0, %v6006
    %v6008 = vpop.f32.mrb[0].mxu0
    %v6009 = vpop.f32.mrb[0].mxu0
    %v6010 = vadd.f32 0.0, %v6009
    %v6011 = vpop.f32.mrb[0].mxu0
    %6012 = vmatprep.mubr.bf16.mxu0 0
    %6013 = vmatmul.mubr.bf16.gmra.mrb[0].mxu0 %v5923
    %v6014 = vpop.f32.mrb[0].mxu0
    %v6015 = vadd.f32 0.0, %v6014
    %v6016 = vpop.f32.mrb[0].mxu0
    %v6017 = vpop.f32.mrb[0].mxu0
    %v6018 = vadd.f32 0.0, %v6017
    %v6019 = vpop.f32.mrb[0].mxu0
    %6020 = vmatprep.mubr.bf16.mxu0 0
    %6021 = vmatmul.mubr.bf16.gmra.mrb[0].mxu0 %v5926
    %v6022 = vpop.f32.mrb[0].mxu0
    %v6023 = vadd.f32 0.0, %v6022
    %v6024 = vpop.f32.mrb[0].mxu0
    %v6025 = vpop.f32.mrb[0].mxu0
    %v6026 = vadd.f32 0.0, %v6025
    %v6027 = vpop.f32.mrb[0].mxu0
    %6028 = vmatprep.mubr.bf16.mxu0 0
    %6029 = vmatmul.mubr.bf16.gmra.mrb[0].mxu0 %v5929
    %v6030 = vpop.f32.mrb[0].mxu0
    %v6031 = vadd.f32 0.0, %v6030
    %v6032 = vpop.f32.mrb[0].mxu0
    %v6033 = vpop.f32.mrb[0].mxu0
    %v6034 = vadd.f32 0.0, %v6033
    %v6035 = vpop.f32.mrb[0].mxu0
    %6036 = vmatprep.mubr.bf16.mxu0 0
    %6037 = vmatmul.mubr.bf16.gmra.mrb[0].mxu0 %v5932
    %v6038 = vpop.f32.mrb[0].mxu0
    %v6039 = vadd.f32 0.0, %v6038
    %v6040 = vpop.f32.mrb[0].mxu0
    %v6041 = vpop.f32.mrb[0].mxu0
    %v6042 = vadd.f32 0.0, %v6041
    %v6043 = vpop.f32.mrb[0].mxu0
    %6044 = vmatprep.mubr.bf16.mxu0 0
    %6045 = vmatmul.mubr.bf16.gmra.mrb[0].mxu0 %v5935
    %v6046 = vpop.f32.mrb[0].mxu0
    %v6047 = vadd.f32 0.0, %v6046
    %v6048 = vpop.f32.mrb[0].mxu0
    %v6049 = vpop.f32.mrb[0].mxu0
    %v6050 = vadd.f32 0.0, %v6049
    %v6051 = vpop.f32.mrb[0].mxu0
    %6052 = vmatprep.mubr.bf16.mxu0 0
    %6053 = vmatmul.mubr.bf16.gmra.mrb[0].mxu0 %v5938
    %v6054 = vpop.f32.mrb[0].mxu0
    %v6055 = vadd.f32 0.0, %v6054
    %v6056 = vpop.f32.mrb[0].mxu0
    %v6057 = vpop.f32.mrb[0].mxu0
    %v6058 = vadd.f32 0.0, %v6057
    %v6059 = vpop.f32.mrb[0].mxu0
    %6060 = vmatprep.mubr.bf16.mxu0 0
    %6061 = vmatmul.mubr.bf16.gmra.mrb[0].mxu0 %v5941
    %v6062 = vpop.f32.mrb[0].mxu0
    %v6063 = vadd.f32 0.0, %v6062
    %v6064 = vpop.f32.mrb[0].mxu0
    %v6065 = vpop.f32.mrb[0].mxu0
    %v6066 = vadd.f32 0.0, %v6065
    %v6067 = vpop.f32.mrb[0].mxu0
    %6068 = vmatprep.mubr.bf16.mxu0 0
    %6069 = vmatmul.mubr.bf16.gmra.mrb[0].mxu0 %v5944
    %v6070 = vpop.f32.mrb[0].mxu0
    %v6071 = vadd.f32 0.0, %v6070
    %v6072 = vpop.f32.mrb[0].mxu0
    %v6073 = vpop.f32.mrb[0].mxu0
    %v6074 = vadd.f32 0.0, %v6073
    %v6075 = vpop.f32.mrb[0].mxu0
    %6076 = vmatprep.mubr.bf16.mxu0 0
    %6077 = vmatmul.mubr.bf16.gmra.mrb[0].mxu0 %v5947
    %v6078 = vpop.f32.mrb[0].mxu0
    %v6079 = vadd.f32 0.0, %v6078
    %v6080 = vpop.f32.mrb[0].mxu0
    %v6081 = vpop.f32.mrb[0].mxu0
    %v6082 = vadd.f32 0.0, %v6081
    %v6083 = vpop.f32.mrb[0].mxu0
    %6084 = vmatprep.mubr.bf16.mxu0 0
    %6085 = vmatmul.mubr.bf16.gmra.mrb[0].mxu0 %v5950
    %v6086 = vpop.f32.mrb[0].mxu0
    %v6087 = vadd.f32 0.0, %v6086
    %v6088 = vpop.f32.mrb[0].mxu0
    %v6089 = vpop.f32.mrb[0].mxu0
    %v6090 = vadd.f32 0.0, %v6089
    %v6091 = vpop.f32.mrb[0].mxu0
    %6092 = vmatprep.mubr.bf16.mxu0 0
    %6093 = vmatmul.mubr.bf16.gmra.mrb[0].mxu0 %v5953
    %v6094 = vpop.f32.mrb[0].mxu0
    %v6095 = vadd.f32 0.0, %v6094
    %v6096 = vpop.f32.mrb[0].mxu0
    %v6097 = vpop.f32.mrb[0].mxu0
    %v6098 = vadd.f32 0.0, %v6097
    %v6099 = vpop.f32.mrb[0].mxu0
    %6100 = vmatprep.mubr.bf16.mxu0 0
    %6101 = vmatmul.mubr.bf16.gmra.mrb[0].mxu0 %v5956
    %v6102 = vpop.f32.mrb[0].mxu0
    %v6103 = vadd.f32 0.0, %v6102
    %v6104 = vpop.f32.mrb[0].mxu0
    %v6105 = vpop.f32.mrb[0].mxu0
    %v6106 = vadd.f32 0.0, %v6105
    %v6107 = vpop.f32.mrb[0].mxu0
    %6108 = vmatprep.mubr.bf16.mxu0 0
    %6109 = vmatmul.mubr.bf16.gmra.mrb[0].mxu0 %v5959
    %v6110 = vpop.f32.mrb[0].mxu0
    %v6111 = vadd.f32 0.0, %v6110
    %v6112 = vpop.f32.mrb[0].mxu0
    %v6113 = vpop.f32.mrb[0].mxu0
    %v6114 = vadd.f32 0.0, %v6113
    %v6115 = vpop.f32.mrb[0].mxu0
    %6116 = vmatprep.mubr.bf16.mxu0 0
    %6117 = vmatmul.mubr.bf16.gmra.mrb[0].mxu0 %v5962
    %v6118 = vpop.f32.mrb[0].mxu0
    %v6119 = vadd.f32 0.0, %v6118
    %v6120 = vpop.f32.mrb[0].mxu0
    %v6121 = vpop.f32.mrb[0].mxu0
    %v6122 = vadd.f32 0.0, %v6121
    %v6123 = vpop.f32.mrb[0].mxu0
    %6124 = vdwg.mxu0
    %v6125 = vadd.f32 %v5598, %v5999
    %v6126 = vadd.f32 %v5601, %v6002
    %v6127 = vadd.f32 %v5606, %v6007
    %v6128 = vadd.f32 %v5609, %v6010
    %v6129 = vadd.f32 %v5614, %v6015
    %v6130 = vadd.f32 %v5617, %v6018
    %v6131 = vadd.f32 %v5622, %v6023
    %v6132 = vadd.f32 %v5625, %v6026
    %v6133 = vadd.f32 %v5630, %v6031
    %v6134 = vadd.f32 %v5633, %v6034
    %v6135 = vadd.f32 %v5638, %v6039
    %v6136 = vadd.f32 %v5641, %v6042
    %v6137 = vadd.f32 %v5646, %v6047
    %v6138 = vadd.f32 %v5649, %v6050
    %v6139 = vadd.f32 %v5654, %v6055
    %v6140 = vadd.f32 %v5657, %v6058
    %v6141 = vadd.f32 %v5662, %v6063
    %v6142 = vadd.f32 %v5665, %v6066
    %v6143 = vadd.f32 %v5670, %v6071
    %v6144 = vadd.f32 %v5673, %v6074
    %v6145 = vadd.f32 %v5678, %v6079
    %v6146 = vadd.f32 %v5681, %v6082
    %v6147 = vadd.f32 %v5686, %v6087
    %v6148 = vadd.f32 %v5689, %v6090
    %v6149 = vadd.f32 %v5694, %v6095
    %v6150 = vadd.f32 %v5697, %v6098
    %v6151 = vadd.f32 %v5702, %v6103
    %v6152 = vadd.f32 %v5705, %v6106
    %v6153 = vadd.f32 %v5710, %v6111
    %v6154 = vadd.f32 %v5713, %v6114
    %v6155 = vadd.f32 %v5718, %v6119
    %v6156 = vadd.f32 %v5721, %v6122
    %v6157 = vld [vmem:[%s2893] sm:$0xf]
    %v6158 = vld [vmem:[%s2893 + $0x4] sm:$0xf]
    %v6159 = vld [vmem:[%s2893 + $0x8] sm:$0xf]
    %v6160 = vld [vmem:[%s2893 + $0xc] sm:$0xf]
    %v6163 = vunpack.c.l.b16 %v4756
    %v6164 = vunpack.c.l.b16 %v4757
    %v6165 = vpack.c.b16 %v6164, %v6163
    %v6170 = vunpack.c.l.b16 %v6157
    %v6171 = vunpack.c.l.b16 %v6158
    %v6172 = vunpack.c.l.b16 %v6159
    %v6173 = vunpack.c.l.b16 %v6160
    %v6174 = vpack.c.b16 %v6171, %v6170
    %v6175 = vpack.c.b16 %v6173, %v6172
    %v6179 = vsel %vm1945, %v6165, 0
    %6181 = vmatprep.subr.bf16.mxu0 0
    %6182 = vmatpush1.bf16.msra.mxu0 %v6174
    %6183 = vmatprep.subr.bf16.mxu0 0
    %6184 = vmatpush1.bf16.msra.mxu0 %v6175
    %6185 = vmatprep.subr.bf16.mxu0 0
    %6186 = vmatpush1.bf16.msra.mxu0 0
    %6187 = vmatprep.subr.bf16.mxu0 0
    %6188 = vmatpush1.bf16.msra.mxu0 0
    %6189 = vmatprep.subr.bf16.mxu0 0
    %6190 = vmatpush1.bf16.msra.mxu0 0
    %6191 = vmatprep.subr.bf16.mxu0 0
    %6192 = vmatpush1.bf16.msra.mxu0 0
    %6193 = vmatprep.subr.bf16.mxu0 0
    %6194 = vmatpush1.bf16.msra.mxu0 0
    %6195 = vmatprep.subr.bf16.mxu0 0
    %6196 = vmatpush1.bf16.msra.mxu0 0
    %6197 = vmatprep.subr.bf16.mxu0 0
    %6198 = vmatpush1.bf16.msra.mxu0 0
    %6199 = vmatprep.subr.bf16.mxu0 0
    %6200 = vmatpush1.bf16.msra.mxu0 0
    %6201 = vmatprep.subr.bf16.mxu0 0
    %6202 = vmatpush1.bf16.msra.mxu0 0
    %6203 = vmatprep.subr.bf16.mxu0 0
    %6204 = vmatpush1.bf16.msra.mxu0 0
    %6205 = vmatprep.subr.bf16.mxu0 0
    %6206 = vmatpush1.bf16.msra.mxu0 0
    %6207 = vmatprep.subr.bf16.mxu0 0
    %6208 = vmatpush1.bf16.msra.mxu0 0
    %6209 = vmatprep.subr.bf16.mxu0 0
    %6210 = vmatpush1.bf16.msra.mxu0 0
    %6211 = vmatprep.subr.bf16.mxu0 0
    %6212 = vmatpush1.bf16.msra.mxu0 0
    %6213 = vmatprep.mubr.bf16.mxu0 0
    %6214 = vmatmul.mubr.bf16.gmra.mrb[0].mxu0 %v5519
    %v6215 = vpop.f32.mrb[0].mxu0
    %v6216 = vadd.f32 0.0, %v6215
    %v6217 = vpop.f32.mrb[0].mxu0
    %v6218 = vpop.f32.mrb[0].mxu0
    %v6219 = vadd.f32 0.0, %v6218
    %v6220 = vpop.f32.mrb[0].mxu0
    %6221 = vmatprep.mubr.bf16.mxu0 0
    %6222 = vmatmul.mubr.bf16.gmra.mrb[0].mxu0 %v5522
    %v6223 = vpop.f32.mrb[0].mxu0
    %v6224 = vadd.f32 0.0, %v6223
    %v6225 = vpop.f32.mrb[0].mxu0
    %v6226 = vpop.f32.mrb[0].mxu0
    %v6227 = vadd.f32 0.0, %v6226
    %v6228 = vpop.f32.mrb[0].mxu0
    %6229 = vmatprep.mubr.bf16.mxu0 0
    %6230 = vmatmul.mubr.bf16.gmra.mrb[0].mxu0 %v5525
    %v6231 = vpop.f32.mrb[0].mxu0
    %v6232 = vadd.f32 0.0, %v6231
    %v6233 = vpop.f32.mrb[0].mxu0
    %v6234 = vpop.f32.mrb[0].mxu0
    %v6235 = vadd.f32 0.0, %v6234
    %v6236 = vpop.f32.mrb[0].mxu0
    %6237 = vmatprep.mubr.bf16.mxu0 0
    %6238 = vmatmul.mubr.bf16.gmra.mrb[0].mxu0 %v5528
    %v6239 = vpop.f32.mrb[0].mxu0
    %v6240 = vadd.f32 0.0, %v6239
    %v6241 = vpop.f32.mrb[0].mxu0
    %v6242 = vpop.f32.mrb[0].mxu0
    %v6243 = vadd.f32 0.0, %v6242
    %v6244 = vpop.f32.mrb[0].mxu0
    %6245 = vmatprep.mubr.bf16.mxu0 0
    %6246 = vmatmul.mubr.bf16.gmra.mrb[0].mxu0 %v5531
    %v6247 = vpop.f32.mrb[0].mxu0
    %v6248 = vadd.f32 0.0, %v6247
    %v6249 = vpop.f32.mrb[0].mxu0
    %v6250 = vpop.f32.mrb[0].mxu0
    %v6251 = vadd.f32 0.0, %v6250
    %v6252 = vpop.f32.mrb[0].mxu0
    %6253 = vmatprep.mubr.bf16.mxu0 0
    %6254 = vmatmul.mubr.bf16.gmra.mrb[0].mxu0 %v5534
    %v6255 = vpop.f32.mrb[0].mxu0
    %v6256 = vadd.f32 0.0, %v6255
    %v6257 = vpop.f32.mrb[0].mxu0
    %v6258 = vpop.f32.mrb[0].mxu0
    %v6259 = vadd.f32 0.0, %v6258
    %v6260 = vpop.f32.mrb[0].mxu0
    %6261 = vmatprep.mubr.bf16.mxu0 0
    %6262 = vmatmul.mubr.bf16.gmra.mrb[0].mxu0 %v5537
    %v6263 = vpop.f32.mrb[0].mxu0
    %v6264 = vadd.f32 0.0, %v6263
    %v6265 = vpop.f32.mrb[0].mxu0
    %v6266 = vpop.f32.mrb[0].mxu0
    %v6267 = vadd.f32 0.0, %v6266
    %v6268 = vpop.f32.mrb[0].mxu0
    %6269 = vmatprep.mubr.bf16.mxu0 0
    %6270 = vmatmul.mubr.bf16.gmra.mrb[0].mxu0 %v5540
    %v6271 = vpop.f32.mrb[0].mxu0
    %v6272 = vadd.f32 0.0, %v6271
    %v6273 = vpop.f32.mrb[0].mxu0
    %v6274 = vpop.f32.mrb[0].mxu0
    %v6275 = vadd.f32 0.0, %v6274
    %v6276 = vpop.f32.mrb[0].mxu0
    %6277 = vmatprep.mubr.bf16.mxu0 0
    %6278 = vmatmul.mubr.bf16.gmra.mrb[0].mxu0 %v5543
    %v6279 = vpop.f32.mrb[0].mxu0
    %v6280 = vadd.f32 0.0, %v6279
    %v6281 = vpop.f32.mrb[0].mxu0
    %v6282 = vpop.f32.mrb[0].mxu0
    %v6283 = vadd.f32 0.0, %v6282
    %v6284 = vpop.f32.mrb[0].mxu0
    %6285 = vmatprep.mubr.bf16.mxu0 0
    %6286 = vmatmul.mubr.bf16.gmra.mrb[0].mxu0 %v5546
    %v6287 = vpop.f32.mrb[0].mxu0
    %v6288 = vadd.f32 0.0, %v6287
    %v6289 = vpop.f32.mrb[0].mxu0
    %v6290 = vpop.f32.mrb[0].mxu0
    %v6291 = vadd.f32 0.0, %v6290
    %v6292 = vpop.f32.mrb[0].mxu0
    %6293 = vmatprep.mubr.bf16.mxu0 0
    %6294 = vmatmul.mubr.bf16.gmra.mrb[0].mxu0 %v5549
    %v6295 = vpop.f32.mrb[0].mxu0
    %v6296 = vadd.f32 0.0, %v6295
    %v6297 = vpop.f32.mrb[0].mxu0
    %v6298 = vpop.f32.mrb[0].mxu0
    %v6299 = vadd.f32 0.0, %v6298
    %v6300 = vpop.f32.mrb[0].mxu0
    %6301 = vmatprep.mubr.bf16.mxu0 0
    %6302 = vmatmul.mubr.bf16.gmra.mrb[0].mxu0 %v5552
    %v6303 = vpop.f32.mrb[0].mxu0
    %v6304 = vadd.f32 0.0, %v6303
    %v6305 = vpop.f32.mrb[0].mxu0
    %v6306 = vpop.f32.mrb[0].mxu0
    %v6307 = vadd.f32 0.0, %v6306
    %v6308 = vpop.f32.mrb[0].mxu0
    %6309 = vmatprep.mubr.bf16.mxu0 0
    %6310 = vmatmul.mubr.bf16.gmra.mrb[0].mxu0 %v5555
    %v6311 = vpop.f32.mrb[0].mxu0
    %v6312 = vadd.f32 0.0, %v6311
    %v6313 = vpop.f32.mrb[0].mxu0
    %v6314 = vpop.f32.mrb[0].mxu0
    %v6315 = vadd.f32 0.0, %v6314
    %v6316 = vpop.f32.mrb[0].mxu0
    %6317 = vmatprep.mubr.bf16.mxu0 0
    %6318 = vmatmul.mubr.bf16.gmra.mrb[0].mxu0 %v5558
    %v6319 = vpop.f32.mrb[0].mxu0
    %v6320 = vadd.f32 0.0, %v6319
    %v6321 = vpop.f32.mrb[0].mxu0
    %v6322 = vpop.f32.mrb[0].mxu0
    %v6323 = vadd.f32 0.0, %v6322
    %v6324 = vpop.f32.mrb[0].mxu0
    %6325 = vmatprep.mubr.bf16.mxu0 0
    %6326 = vmatmul.mubr.bf16.gmra.mrb[0].mxu0 %v5561
    %v6327 = vpop.f32.mrb[0].mxu0
    %v6328 = vadd.f32 0.0, %v6327
    %v6329 = vpop.f32.mrb[0].mxu0
    %v6330 = vpop.f32.mrb[0].mxu0
    %v6331 = vadd.f32 0.0, %v6330
    %v6332 = vpop.f32.mrb[0].mxu0
    %6333 = vmatprep.mubr.bf16.mxu0 0
    %6334 = vmatmul.mubr.bf16.gmra.mrb[0].mxu0 %v6179
    %v6335 = vpop.f32.mrb[0].mxu0
    %v6336 = vadd.f32 0.0, %v6335
    %v6337 = vpop.f32.mrb[0].mxu0
    %v6338 = vpop.f32.mrb[0].mxu0
    %v6339 = vadd.f32 0.0, %v6338
    %v6340 = vpop.f32.mrb[0].mxu0
    %6341 = vdwg.mxu0
    %v6342 = vadd.f32 %v6125, %v6216
    %v6343 = vadd.f32 %v6126, %v6219
    %v6344 = vadd.f32 %v6127, %v6224
    %v6345 = vadd.f32 %v6128, %v6227
    %v6346 = vadd.f32 %v6129, %v6232
    %v6347 = vadd.f32 %v6130, %v6235
    %v6348 = vadd.f32 %v6131, %v6240
    %v6349 = vadd.f32 %v6132, %v6243
    %v6350 = vadd.f32 %v6133, %v6248
    %v6351 = vadd.f32 %v6134, %v6251
    %v6352 = vadd.f32 %v6135, %v6256
    %v6353 = vadd.f32 %v6136, %v6259
    %v6354 = vadd.f32 %v6137, %v6264
    %v6355 = vadd.f32 %v6138, %v6267
    %v6356 = vadd.f32 %v6139, %v6272
    %v6357 = vadd.f32 %v6140, %v6275
    %v6358 = vadd.f32 %v6141, %v6280
    %v6359 = vadd.f32 %v6142, %v6283
    %v6360 = vadd.f32 %v6143, %v6288
    %v6361 = vadd.f32 %v6144, %v6291
    %v6362 = vadd.f32 %v6145, %v6296
    %v6363 = vadd.f32 %v6146, %v6299
    %v6364 = vadd.f32 %v6147, %v6304
    %v6365 = vadd.f32 %v6148, %v6307
    %v6366 = vadd.f32 %v6149, %v6312
    %v6367 = vadd.f32 %v6150, %v6315
    %v6368 = vadd.f32 %v6151, %v6320
    %v6369 = vadd.f32 %v6152, %v6323
    %v6370 = vadd.f32 %v6153, %v6328
    %v6371 = vadd.f32 %v6154, %v6331
    %v6372 = vadd.f32 %v6155, %v6336
    %v6373 = vadd.f32 %v6156, %v6339
    %v6375 = vshrl.u32 %v4756, 16
    %v6377 = vrot.slane %v6375, 4
    %v6378 = vshll.u32 %v4756, 16
    %v6380 = vrot.slane %v6378, 5
    %v6381 = vor.u32 %v6377, %v6380
    %v6382 = vrot.slane %v6381, 4
    %v6384 = vshll.u32 %v4757, 16
    %v6386 = vrot.slane %v6384, 5
    %v6387 = vsel %vm1495, %v6382, %v6386
    %v6388 = vshrl.u32 %v4757, 16
    %v6390 = vrot.slane %v6388, 4
    %v6391 = vor.u32 %v6390, %v6386
    %v6392 = vrot.slane %v6391, 4
    %v6394 = vshll.u32 %v4758, 16
    %v6396 = vrot.slane %v6394, 5
    %v6397 = vsel %vm1495, %v6392, %v6396
    %v6398 = vld [vmem:[%s3135] sm:$0xf]
    %v6399 = vld [vmem:[%s3135 + $0x4] sm:$0xf]
    %v6400 = vld [vmem:[%s3135 + $0x8] sm:$0xf]
    %v6401 = vld [vmem:[%s3135 + $0xc] sm:$0xf]
    %v6402 = vunpack.c.l.b16 %v6387
    %v6403 = vunpack.c.l.b16 %v6397
    %v6404 = vpack.c.b16 %v6403, %v6402
    %v6409 = vunpack.c.l.b16 %v6398
    %v6410 = vunpack.c.l.b16 %v6399
    %v6411 = vunpack.c.l.b16 %v6400
    %v6412 = vunpack.c.l.b16 %v6401
    %v6413 = vpack.c.b16 %v6410, %v6409
    %v6414 = vpack.c.b16 %v6412, %v6411
    %v6418 = vsel %vm1945, %v6404, 0
    %6420 = vmatprep.subr.bf16.mxu0 0
    %6421 = vmatpush1.bf16.msra.mxu0 %v6413
    %6422 = vmatprep.subr.bf16.mxu0 0
    %6423 = vmatpush1.bf16.msra.mxu0 %v6414
    %6424 = vmatprep.subr.bf16.mxu0 0
    %6425 = vmatpush1.bf16.msra.mxu0 0
    %6426 = vmatprep.subr.bf16.mxu0 0
    %6427 = vmatpush1.bf16.msra.mxu0 0
    %6428 = vmatprep.subr.bf16.mxu0 0
    %6429 = vmatpush1.bf16.msra.mxu0 0
    %6430 = vmatprep.subr.bf16.mxu0 0
    %6431 = vmatpush1.bf16.msra.mxu0 0
    %6432 = vmatprep.subr.bf16.mxu0 0
    %6433 = vmatpush1.bf16.msra.mxu0 0
    %6434 = vmatprep.subr.bf16.mxu0 0
    %6435 = vmatpush1.bf16.msra.mxu0 0
    %6436 = vmatprep.subr.bf16.mxu0 0
    %6437 = vmatpush1.bf16.msra.mxu0 0
    %6438 = vmatprep.subr.bf16.mxu0 0
    %6439 = vmatpush1.bf16.msra.mxu0 0
    %6440 = vmatprep.subr.bf16.mxu0 0
    %6441 = vmatpush1.bf16.msra.mxu0 0
    %6442 = vmatprep.subr.bf16.mxu0 0
    %6443 = vmatpush1.bf16.msra.mxu0 0
    %6444 = vmatprep.subr.bf16.mxu0 0
    %6445 = vmatpush1.bf16.msra.mxu0 0
    %6446 = vmatprep.subr.bf16.mxu0 0
    %6447 = vmatpush1.bf16.msra.mxu0 0
    %6448 = vmatprep.subr.bf16.mxu0 0
    %6449 = vmatpush1.bf16.msra.mxu0 0
    %6450 = vmatprep.subr.bf16.mxu0 0
    %6451 = vmatpush1.bf16.msra.mxu0 0
    %6452 = vmatprep.mubr.bf16.mxu0 0
    %6453 = vmatmul.mubr.bf16.gmra.mrb[0].mxu0 %v5218
    %v6454 = vpop.f32.mrb[0].mxu0
    %v6455 = vadd.f32 0.0, %v6454
    %v6456 = vpop.f32.mrb[0].mxu0
    %v6457 = vpop.f32.mrb[0].mxu0
    %v6458 = vadd.f32 0.0, %v6457
    %v6459 = vpop.f32.mrb[0].mxu0
    %6460 = vmatprep.mubr.bf16.mxu0 0
    %6461 = vmatmul.mubr.bf16.gmra.mrb[0].mxu0 %v5221
    %v6462 = vpop.f32.mrb[0].mxu0
    %v6463 = vadd.f32 0.0, %v6462
    %v6464 = vpop.f32.mrb[0].mxu0
    %v6465 = vpop.f32.mrb[0].mxu0
    %v6466 = vadd.f32 0.0, %v6465
    %v6467 = vpop.f32.mrb[0].mxu0
    %6468 = vmatprep.mubr.bf16.mxu0 0
    %6469 = vmatmul.mubr.bf16.gmra.mrb[0].mxu0 %v5224
    %v6470 = vpop.f32.mrb[0].mxu0
    %v6471 = vadd.f32 0.0, %v6470
    %v6472 = vpop.f32.mrb[0].mxu0
    %v6473 = vpop.f32.mrb[0].mxu0
    %v6474 = vadd.f32 0.0, %v6473
    %v6475 = vpop.f32.mrb[0].mxu0
    %6476 = vmatprep.mubr.bf16.mxu0 0
    %6477 = vmatmul.mubr.bf16.gmra.mrb[0].mxu0 %v5227
    %v6478 = vpop.f32.mrb[0].mxu0
    %v6479 = vadd.f32 0.0, %v6478
    %v6480 = vpop.f32.mrb[0].mxu0
    %v6481 = vpop.f32.mrb[0].mxu0
    %v6482 = vadd.f32 0.0, %v6481
    %v6483 = vpop.f32.mrb[0].mxu0
    %6484 = vmatprep.mubr.bf16.mxu0 0
    %6485 = vmatmul.mubr.bf16.gmra.mrb[0].mxu0 %v5230
    %v6486 = vpop.f32.mrb[0].mxu0
    %v6487 = vadd.f32 0.0, %v6486
    %v6488 = vpop.f32.mrb[0].mxu0
    %v6489 = vpop.f32.mrb[0].mxu0
    %v6490 = vadd.f32 0.0, %v6489
    %v6491 = vpop.f32.mrb[0].mxu0
    %6492 = vmatprep.mubr.bf16.mxu0 0
    %6493 = vmatmul.mubr.bf16.gmra.mrb[0].mxu0 %v5233
    %v6494 = vpop.f32.mrb[0].mxu0
    %v6495 = vadd.f32 0.0, %v6494
    %v6496 = vpop.f32.mrb[0].mxu0
    %v6497 = vpop.f32.mrb[0].mxu0
    %v6498 = vadd.f32 0.0, %v6497
    %v6499 = vpop.f32.mrb[0].mxu0
    %6500 = vmatprep.mubr.bf16.mxu0 0
    %6501 = vmatmul.mubr.bf16.gmra.mrb[0].mxu0 %v5236
    %v6502 = vpop.f32.mrb[0].mxu0
    %v6503 = vadd.f32 0.0, %v6502
    %v6504 = vpop.f32.mrb[0].mxu0
    %v6505 = vpop.f32.mrb[0].mxu0
    %v6506 = vadd.f32 0.0, %v6505
    %v6507 = vpop.f32.mrb[0].mxu0
    %6508 = vmatprep.mubr.bf16.mxu0 0
    %6509 = vmatmul.mubr.bf16.gmra.mrb[0].mxu0 %v5239
    %v6510 = vpop.f32.mrb[0].mxu0
    %v6511 = vadd.f32 0.0, %v6510
    %v6512 = vpop.f32.mrb[0].mxu0
    %v6513 = vpop.f32.mrb[0].mxu0
    %v6514 = vadd.f32 0.0, %v6513
    %v6515 = vpop.f32.mrb[0].mxu0
    %6516 = vmatprep.mubr.bf16.mxu0 0
    %6517 = vmatmul.mubr.bf16.gmra.mrb[0].mxu0 %v5242
    %v6518 = vpop.f32.mrb[0].mxu0
    %v6519 = vadd.f32 0.0, %v6518
    %v6520 = vpop.f32.mrb[0].mxu0
    %v6521 = vpop.f32.mrb[0].mxu0
    %v6522 = vadd.f32 0.0, %v6521
    %v6523 = vpop.f32.mrb[0].mxu0
    %6524 = vmatprep.mubr.bf16.mxu0 0
    %6525 = vmatmul.mubr.bf16.gmra.mrb[0].mxu0 %v5245
    %v6526 = vpop.f32.mrb[0].mxu0
    %v6527 = vadd.f32 0.0, %v6526
    %v6528 = vpop.f32.mrb[0].mxu0
    %v6529 = vpop.f32.mrb[0].mxu0
    %v6530 = vadd.f32 0.0, %v6529
    %v6531 = vpop.f32.mrb[0].mxu0
    %6532 = vmatprep.mubr.bf16.mxu0 0
    %6533 = vmatmul.mubr.bf16.gmra.mrb[0].mxu0 %v5248
    %v6534 = vpop.f32.mrb[0].mxu0
    %v6535 = vadd.f32 0.0, %v6534
    %v6536 = vpop.f32.mrb[0].mxu0
    %v6537 = vpop.f32.mrb[0].mxu0
    %v6538 = vadd.f32 0.0, %v6537
    %v6539 = vpop.f32.mrb[0].mxu0
    %6540 = vmatprep.mubr.bf16.mxu0 0
    %6541 = vmatmul.mubr.bf16.gmra.mrb[0].mxu0 %v5251
    %v6542 = vpop.f32.mrb[0].mxu0
    %v6543 = vadd.f32 0.0, %v6542
    %v6544 = vpop.f32.mrb[0].mxu0
    %v6545 = vpop.f32.mrb[0].mxu0
    %v6546 = vadd.f32 0.0, %v6545
    %v6547 = vpop.f32.mrb[0].mxu0
    %6548 = vmatprep.mubr.bf16.mxu0 0
    %6549 = vmatmul.mubr.bf16.gmra.mrb[0].mxu0 %v5254
    %v6550 = vpop.f32.mrb[0].mxu0
    %v6551 = vadd.f32 0.0, %v6550
    %v6552 = vpop.f32.mrb[0].mxu0
    %v6553 = vpop.f32.mrb[0].mxu0
    %v6554 = vadd.f32 0.0, %v6553
    %v6555 = vpop.f32.mrb[0].mxu0
    %6556 = vmatprep.mubr.bf16.mxu0 0
    %6557 = vmatmul.mubr.bf16.gmra.mrb[0].mxu0 %v5257
    %v6558 = vpop.f32.mrb[0].mxu0
    %v6559 = vadd.f32 0.0, %v6558
    %v6560 = vpop.f32.mrb[0].mxu0
    %v6561 = vpop.f32.mrb[0].mxu0
    %v6562 = vadd.f32 0.0, %v6561
    %v6563 = vpop.f32.mrb[0].mxu0
    %6564 = vmatprep.mubr.bf16.mxu0 0
    %6565 = vmatmul.mubr.bf16.gmra.mrb[0].mxu0 %v5260
    %v6566 = vpop.f32.mrb[0].mxu0
    %v6567 = vadd.f32 0.0, %v6566
    %v6568 = vpop.f32.mrb[0].mxu0
    %v6569 = vpop.f32.mrb[0].mxu0
    %v6570 = vadd.f32 0.0, %v6569
    %v6571 = vpop.f32.mrb[0].mxu0
    %6572 = vmatprep.mubr.bf16.mxu0 0
    %6573 = vmatmul.mubr.bf16.gmra.mrb[0].mxu0 %v6418
    %v6574 = vpop.f32.mrb[0].mxu0
    %v6575 = vadd.f32 0.0, %v6574
    %v6576 = vpop.f32.mrb[0].mxu0
    %v6577 = vpop.f32.mrb[0].mxu0
    %v6578 = vadd.f32 0.0, %v6577
    %v6579 = vpop.f32.mrb[0].mxu0
    %6580 = vdwg.mxu0
    %v6581 = vadd.f32 %v6342, %v6455
    %v6582 = vadd.f32 %v6343, %v6458
    %v6583 = vadd.f32 %v6344, %v6463
    %v6584 = vadd.f32 %v6345, %v6466
    %v6585 = vadd.f32 %v6346, %v6471
    %v6586 = vadd.f32 %v6347, %v6474
    %v6587 = vadd.f32 %v6348, %v6479
    %v6588 = vadd.f32 %v6349, %v6482
    %v6589 = vadd.f32 %v6350, %v6487
    %v6590 = vadd.f32 %v6351, %v6490
    %v6591 = vadd.f32 %v6352, %v6495
    %v6592 = vadd.f32 %v6353, %v6498
    %v6593 = vadd.f32 %v6354, %v6503
    %v6594 = vadd.f32 %v6355, %v6506
    %v6595 = vadd.f32 %v6356, %v6511
    %v6596 = vadd.f32 %v6357, %v6514
    %v6597 = vadd.f32 %v6358, %v6519
    %v6598 = vadd.f32 %v6359, %v6522
    %v6599 = vadd.f32 %v6360, %v6527
    %v6600 = vadd.f32 %v6361, %v6530
    %v6601 = vadd.f32 %v6362, %v6535
    %v6602 = vadd.f32 %v6363, %v6538
    %v6603 = vadd.f32 %v6364, %v6543
    %v6604 = vadd.f32 %v6365, %v6546
    %v6605 = vadd.f32 %v6366, %v6551
    %v6606 = vadd.f32 %v6367, %v6554
    %v6607 = vadd.f32 %v6368, %v6559
    %v6608 = vadd.f32 %v6369, %v6562
    %v6609 = vadd.f32 %v6370, %v6567
    %v6610 = vadd.f32 %v6371, %v6570
    %v6611 = vadd.f32 %v6372, %v6575
    %v6612 = vadd.f32 %v6373, %v6578
    %v6614 = vrot.slane %v4756, 5
    %v6615 = vrot.slane %v6614, 4
    %v6616 = vrot.slane %v4757, 5
    %v6617 = vsel %vm2474, %v6615, %v6616
    %v6618 = vrot.slane %v6616, 4
    %v6619 = vrot.slane %v4758, 5
    %v6620 = vsel %vm2474, %v6618, %v6619
    %v6621 = vld [vmem:[%s3359] sm:$0xf]
    %v6622 = vld [vmem:[%s3359 + $0x4] sm:$0xf]
    %v6623 = vld [vmem:[%s3359 + $0x8] sm:$0xf]
    %v6624 = vld [vmem:[%s3359 + $0xc] sm:$0xf]
    %v6625 = vunpack.c.l.b16 %v6617
    %v6626 = vunpack.c.l.b16 %v6620
    %v6627 = vpack.c.b16 %v6626, %v6625
    %v6632 = vunpack.c.l.b16 %v6621
    %v6633 = vunpack.c.l.b16 %v6622
    %v6634 = vunpack.c.l.b16 %v6623
    %v6635 = vunpack.c.l.b16 %v6624
    %v6636 = vpack.c.b16 %v6633, %v6632
    %v6637 = vpack.c.b16 %v6635, %v6634
    %v6641 = vsel %vm1945, %v6627, 0
    %6643 = vmatprep.subr.bf16.mxu0 0
    %6644 = vmatpush1.bf16.msra.mxu0 %v6636
    %6645 = vmatprep.subr.bf16.mxu0 0
    %6646 = vmatpush1.bf16.msra.mxu0 %v6637
    %6647 = vmatprep.subr.bf16.mxu0 0
    %6648 = vmatpush1.bf16.msra.mxu0 0
    %6649 = vmatprep.subr.bf16.mxu0 0
    %6650 = vmatpush1.bf16.msra.mxu0 0
    %6651 = vmatprep.subr.bf16.mxu0 0
    %6652 = vmatpush1.bf16.msra.mxu0 0
    %6653 = vmatprep.subr.bf16.mxu0 0
    %6654 = vmatpush1.bf16.msra.mxu0 0
    %6655 = vmatprep.subr.bf16.mxu0 0
    %6656 = vmatpush1.bf16.msra.mxu0 0
    %6657 = vmatprep.subr.bf16.mxu0 0
    %6658 = vmatpush1.bf16.msra.mxu0 0
    %6659 = vmatprep.subr.bf16.mxu0 0
    %6660 = vmatpush1.bf16.msra.mxu0 0
    %6661 = vmatprep.subr.bf16.mxu0 0
    %6662 = vmatpush1.bf16.msra.mxu0 0
    %6663 = vmatprep.subr.bf16.mxu0 0
    %6664 = vmatpush1.bf16.msra.mxu0 0
    %6665 = vmatprep.subr.bf16.mxu0 0
    %6666 = vmatpush1.bf16.msra.mxu0 0
    %6667 = vmatprep.subr.bf16.mxu0 0
    %6668 = vmatpush1.bf16.msra.mxu0 0
    %6669 = vmatprep.subr.bf16.mxu0 0
    %6670 = vmatpush1.bf16.msra.mxu0 0
    %6671 = vmatprep.subr.bf16.mxu0 0
    %6672 = vmatpush1.bf16.msra.mxu0 0
    %6673 = vmatprep.subr.bf16.mxu0 0
    %6674 = vmatpush1.bf16.msra.mxu0 0
    %6675 = vmatprep.mubr.bf16.mxu0 0
    %6676 = vmatmul.mubr.bf16.gmra.mrb[0].mxu0 %v5920
    %v6677 = vpop.f32.mrb[0].mxu0
    %v6678 = vadd.f32 0.0, %v6677
    %v6679 = vpop.f32.mrb[0].mxu0
    %v6680 = vpop.f32.mrb[0].mxu0
    %v6681 = vadd.f32 0.0, %v6680
    %v6682 = vpop.f32.mrb[0].mxu0
    %6683 = vmatprep.mubr.bf16.mxu0 0
    %6684 = vmatmul.mubr.bf16.gmra.mrb[0].mxu0 %v5923
    %v6685 = vpop.f32.mrb[0].mxu0
    %v6686 = vadd.f32 0.0, %v6685
    %v6687 = vpop.f32.mrb[0].mxu0
    %v6688 = vpop.f32.mrb[0].mxu0
    %v6689 = vadd.f32 0.0, %v6688
    %v6690 = vpop.f32.mrb[0].mxu0
    %6691 = vmatprep.mubr.bf16.mxu0 0
    %6692 = vmatmul.mubr.bf16.gmra.mrb[0].mxu0 %v5926
    %v6693 = vpop.f32.mrb[0].mxu0
    %v6694 = vadd.f32 0.0, %v6693
    %v6695 = vpop.f32.mrb[0].mxu0
    %v6696 = vpop.f32.mrb[0].mxu0
    %v6697 = vadd.f32 0.0, %v6696
    %v6698 = vpop.f32.mrb[0].mxu0
    %6699 = vmatprep.mubr.bf16.mxu0 0
    %6700 = vmatmul.mubr.bf16.gmra.mrb[0].mxu0 %v5929
    %v6701 = vpop.f32.mrb[0].mxu0
    %v6702 = vadd.f32 0.0, %v6701
    %v6703 = vpop.f32.mrb[0].mxu0
    %v6704 = vpop.f32.mrb[0].mxu0
    %v6705 = vadd.f32 0.0, %v6704
    %v6706 = vpop.f32.mrb[0].mxu0
    %6707 = vmatprep.mubr.bf16.mxu0 0
    %6708 = vmatmul.mubr.bf16.gmra.mrb[0].mxu0 %v5932
    %v6709 = vpop.f32.mrb[0].mxu0
    %v6710 = vadd.f32 0.0, %v6709
    %v6711 = vpop.f32.mrb[0].mxu0
    %v6712 = vpop.f32.mrb[0].mxu0
    %v6713 = vadd.f32 0.0, %v6712
    %v6714 = vpop.f32.mrb[0].mxu0
    %6715 = vmatprep.mubr.bf16.mxu0 0
    %6716 = vmatmul.mubr.bf16.gmra.mrb[0].mxu0 %v5935
    %v6717 = vpop.f32.mrb[0].mxu0
    %v6718 = vadd.f32 0.0, %v6717
    %v6719 = vpop.f32.mrb[0].mxu0
    %v6720 = vpop.f32.mrb[0].mxu0
    %v6721 = vadd.f32 0.0, %v6720
    %v6722 = vpop.f32.mrb[0].mxu0
    %6723 = vmatprep.mubr.bf16.mxu0 0
    %6724 = vmatmul.mubr.bf16.gmra.mrb[0].mxu0 %v5938
    %v6725 = vpop.f32.mrb[0].mxu0
    %v6726 = vadd.f32 0.0, %v6725
    %v6727 = vpop.f32.mrb[0].mxu0
    %v6728 = vpop.f32.mrb[0].mxu0
    %v6729 = vadd.f32 0.0, %v6728
    %v6730 = vpop.f32.mrb[0].mxu0
    %6731 = vmatprep.mubr.bf16.mxu0 0
    %6732 = vmatmul.mubr.bf16.gmra.mrb[0].mxu0 %v5941
    %v6733 = vpop.f32.mrb[0].mxu0
    %v6734 = vadd.f32 0.0, %v6733
    %v6735 = vpop.f32.mrb[0].mxu0
    %v6736 = vpop.f32.mrb[0].mxu0
    %v6737 = vadd.f32 0.0, %v6736
    %v6738 = vpop.f32.mrb[0].mxu0
    %6739 = vmatprep.mubr.bf16.mxu0 0
    %6740 = vmatmul.mubr.bf16.gmra.mrb[0].mxu0 %v5944
    %v6741 = vpop.f32.mrb[0].mxu0
    %v6742 = vadd.f32 0.0, %v6741
    %v6743 = vpop.f32.mrb[0].mxu0
    %v6744 = vpop.f32.mrb[0].mxu0
    %v6745 = vadd.f32 0.0, %v6744
    %v6746 = vpop.f32.mrb[0].mxu0
    %6747 = vmatprep.mubr.bf16.mxu0 0
    %6748 = vmatmul.mubr.bf16.gmra.mrb[0].mxu0 %v5947
    %v6749 = vpop.f32.mrb[0].mxu0
    %v6750 = vadd.f32 0.0, %v6749
    %v6751 = vpop.f32.mrb[0].mxu0
    %v6752 = vpop.f32.mrb[0].mxu0
    %v6753 = vadd.f32 0.0, %v6752
    %v6754 = vpop.f32.mrb[0].mxu0
    %6755 = vmatprep.mubr.bf16.mxu0 0
    %6756 = vmatmul.mubr.bf16.gmra.mrb[0].mxu0 %v5950
    %v6757 = vpop.f32.mrb[0].mxu0
    %v6758 = vadd.f32 0.0, %v6757
    %v6759 = vpop.f32.mrb[0].mxu0
    %v6760 = vpop.f32.mrb[0].mxu0
    %v6761 = vadd.f32 0.0, %v6760
    %v6762 = vpop.f32.mrb[0].mxu0
    %6763 = vmatprep.mubr.bf16.mxu0 0
    %6764 = vmatmul.mubr.bf16.gmra.mrb[0].mxu0 %v5953
    %v6765 = vpop.f32.mrb[0].mxu0
    %v6766 = vadd.f32 0.0, %v6765
    %v6767 = vpop.f32.mrb[0].mxu0
    %v6768 = vpop.f32.mrb[0].mxu0
    %v6769 = vadd.f32 0.0, %v6768
    %v6770 = vpop.f32.mrb[0].mxu0
    %6771 = vmatprep.mubr.bf16.mxu0 0
    %6772 = vmatmul.mubr.bf16.gmra.mrb[0].mxu0 %v5956
    %v6773 = vpop.f32.mrb[0].mxu0
    %v6774 = vadd.f32 0.0, %v6773
    %v6775 = vpop.f32.mrb[0].mxu0
    %v6776 = vpop.f32.mrb[0].mxu0
    %v6777 = vadd.f32 0.0, %v6776
    %v6778 = vpop.f32.mrb[0].mxu0
    %6779 = vmatprep.mubr.bf16.mxu0 0
    %6780 = vmatmul.mubr.bf16.gmra.mrb[0].mxu0 %v5959
    %v6781 = vpop.f32.mrb[0].mxu0
    %v6782 = vadd.f32 0.0, %v6781
    %v6783 = vpop.f32.mrb[0].mxu0
    %v6784 = vpop.f32.mrb[0].mxu0
    %v6785 = vadd.f32 0.0, %v6784
    %v6786 = vpop.f32.mrb[0].mxu0
    %6787 = vmatprep.mubr.bf16.mxu0 0
    %6788 = vmatmul.mubr.bf16.gmra.mrb[0].mxu0 %v5962
    %v6789 = vpop.f32.mrb[0].mxu0
    %v6790 = vadd.f32 0.0, %v6789
    %v6791 = vpop.f32.mrb[0].mxu0
    %v6792 = vpop.f32.mrb[0].mxu0
    %v6793 = vadd.f32 0.0, %v6792
    %v6794 = vpop.f32.mrb[0].mxu0
    %6795 = vmatprep.mubr.bf16.mxu0 0
    %6796 = vmatmul.mubr.bf16.gmra.mrb[0].mxu0 %v6641
    %v6797 = vpop.f32.mrb[0].mxu0
    %v6798 = vadd.f32 0.0, %v6797
    %v6799 = vpop.f32.mrb[0].mxu0
    %v6800 = vpop.f32.mrb[0].mxu0
    %v6801 = vadd.f32 0.0, %v6800
    %v6802 = vpop.f32.mrb[0].mxu0
    %6803 = vdwg.mxu0
    %v6804 = vadd.f32 %v6581, %v6678
    %v6805 = vadd.f32 %v6582, %v6681
    %v6806 = vadd.f32 %v6583, %v6686
    %v6807 = vadd.f32 %v6584, %v6689
    %v6808 = vadd.f32 %v6585, %v6694
    %v6809 = vadd.f32 %v6586, %v6697
    %v6810 = vadd.f32 %v6587, %v6702
    %v6811 = vadd.f32 %v6588, %v6705
    %v6812 = vadd.f32 %v6589, %v6710
    %v6813 = vadd.f32 %v6590, %v6713
    %v6814 = vadd.f32 %v6591, %v6718
    %v6815 = vadd.f32 %v6592, %v6721
    %v6816 = vadd.f32 %v6593, %v6726
    %v6817 = vadd.f32 %v6594, %v6729
    %v6818 = vadd.f32 %v6595, %v6734
    %v6819 = vadd.f32 %v6596, %v6737
    %v6820 = vadd.f32 %v6597, %v6742
    %v6821 = vadd.f32 %v6598, %v6745
    %v6822 = vadd.f32 %v6599, %v6750
    %v6823 = vadd.f32 %v6600, %v6753
    %v6824 = vadd.f32 %v6601, %v6758
    %v6825 = vadd.f32 %v6602, %v6761
    %v6826 = vadd.f32 %v6603, %v6766
    %v6827 = vadd.f32 %v6604, %v6769
    %v6828 = vadd.f32 %v6605, %v6774
    %v6829 = vadd.f32 %v6606, %v6777
    %v6830 = vadd.f32 %v6607, %v6782
    %v6831 = vadd.f32 %v6608, %v6785
    %v6832 = vadd.f32 %v6609, %v6790
    %v6833 = vadd.f32 %v6610, %v6793
    %v6834 = vadd.f32 %v6611, %v6798
    %v6835 = vadd.f32 %v6612, %v6801
    %v6836 = vld [vmem:[%s3575] sm:$0xf]
    %v6837 = vld [vmem:[%s3575 + $0x4] sm:$0xf]
    %v6838 = vld [vmem:[%s3575 + $0x8] sm:$0xf]
    %v6839 = vld [vmem:[%s3575 + $0xc] sm:$0xf]
    %v6842 = vunpack.c.l.b16 %v4759
    %v6843 = vunpack.c.l.b16 %v4760
    %v6844 = vpack.c.b16 %v6843, %v6842
    %v6849 = vunpack.c.l.b16 %v6836
    %v6850 = vunpack.c.l.b16 %v6837
    %v6851 = vunpack.c.l.b16 %v6838
    %v6852 = vunpack.c.l.b16 %v6839
    %v6853 = vpack.c.b16 %v6850, %v6849
    %v6854 = vpack.c.b16 %v6852, %v6851
    %v6858 = vsel %vm1945, %v6844, 0
    %6860 = vmatprep.subr.bf16.mxu0 0
    %6861 = vmatpush1.bf16.msra.mxu0 %v6853
    %6862 = vmatprep.subr.bf16.mxu0 0
    %6863 = vmatpush1.bf16.msra.mxu0 %v6854
    %6864 = vmatprep.subr.bf16.mxu0 0
    %6865 = vmatpush1.bf16.msra.mxu0 0
    %6866 = vmatprep.subr.bf16.mxu0 0
    %6867 = vmatpush1.bf16.msra.mxu0 0
    %6868 = vmatprep.subr.bf16.mxu0 0
    %6869 = vmatpush1.bf16.msra.mxu0 0
    %6870 = vmatprep.subr.bf16.mxu0 0
    %6871 = vmatpush1.bf16.msra.mxu0 0
    %6872 = vmatprep.subr.bf16.mxu0 0
    %6873 = vmatpush1.bf16.msra.mxu0 0
    %6874 = vmatprep.subr.bf16.mxu0 0
    %6875 = vmatpush1.bf16.msra.mxu0 0
    %6876 = vmatprep.subr.bf16.mxu0 0
    %6877 = vmatpush1.bf16.msra.mxu0 0
    %6878 = vmatprep.subr.bf16.mxu0 0
    %6879 = vmatpush1.bf16.msra.mxu0 0
    %6880 = vmatprep.subr.bf16.mxu0 0
    %6881 = vmatpush1.bf16.msra.mxu0 0
    %6882 = vmatprep.subr.bf16.mxu0 0
    %6883 = vmatpush1.bf16.msra.mxu0 0
    %6884 = vmatprep.subr.bf16.mxu0 0
    %6885 = vmatpush1.bf16.msra.mxu0 0
    %6886 = vmatprep.subr.bf16.mxu0 0
    %6887 = vmatpush1.bf16.msra.mxu0 0
    %6888 = vmatprep.subr.bf16.mxu0 0
    %6889 = vmatpush1.bf16.msra.mxu0 0
    %6890 = vmatprep.subr.bf16.mxu0 0
    %6891 = vmatpush1.bf16.msra.mxu0 0
    %6892 = vmatprep.mubr.bf16.mxu0 0
    %6893 = vmatmul.mubr.bf16.gmra.mrb[0].mxu0 %v5522
    %v6894 = vpop.f32.mrb[0].mxu0
    %v6895 = vadd.f32 0.0, %v6894
    %v6896 = vpop.f32.mrb[0].mxu0
    %v6897 = vpop.f32.mrb[0].mxu0
    %v6898 = vadd.f32 0.0, %v6897
    %v6899 = vpop.f32.mrb[0].mxu0
    %6900 = vmatprep.mubr.bf16.mxu0 0
    %6901 = vmatmul.mubr.bf16.gmra.mrb[0].mxu0 %v5525
    %v6902 = vpop.f32.mrb[0].mxu0
    %v6903 = vadd.f32 0.0, %v6902
    %v6904 = vpop.f32.mrb[0].mxu0
    %v6905 = vpop.f32.mrb[0].mxu0
    %v6906 = vadd.f32 0.0, %v6905
    %v6907 = vpop.f32.mrb[0].mxu0
    %6908 = vmatprep.mubr.bf16.mxu0 0
    %6909 = vmatmul.mubr.bf16.gmra.mrb[0].mxu0 %v5528
    %v6910 = vpop.f32.mrb[0].mxu0
    %v6911 = vadd.f32 0.0, %v6910
    %v6912 = vpop.f32.mrb[0].mxu0
    %v6913 = vpop.f32.mrb[0].mxu0
    %v6914 = vadd.f32 0.0, %v6913
    %v6915 = vpop.f32.mrb[0].mxu0
    %6916 = vmatprep.mubr.bf16.mxu0 0
    %6917 = vmatmul.mubr.bf16.gmra.mrb[0].mxu0 %v5531
    %v6918 = vpop.f32.mrb[0].mxu0
    %v6919 = vadd.f32 0.0, %v6918
    %v6920 = vpop.f32.mrb[0].mxu0
    %v6921 = vpop.f32.mrb[0].mxu0
    %v6922 = vadd.f32 0.0, %v6921
    %v6923 = vpop.f32.mrb[0].mxu0
    %6924 = vmatprep.mubr.bf16.mxu0 0
    %6925 = vmatmul.mubr.bf16.gmra.mrb[0].mxu0 %v5534
    %v6926 = vpop.f32.mrb[0].mxu0
    %v6927 = vadd.f32 0.0, %v6926
    %v6928 = vpop.f32.mrb[0].mxu0
    %v6929 = vpop.f32.mrb[0].mxu0
    %v6930 = vadd.f32 0.0, %v6929
    %v6931 = vpop.f32.mrb[0].mxu0
    %6932 = vmatprep.mubr.bf16.mxu0 0
    %6933 = vmatmul.mubr.bf16.gmra.mrb[0].mxu0 %v5537
    %v6934 = vpop.f32.mrb[0].mxu0
    %v6935 = vadd.f32 0.0, %v6934
    %v6936 = vpop.f32.mrb[0].mxu0
    %v6937 = vpop.f32.mrb[0].mxu0
    %v6938 = vadd.f32 0.0, %v6937
    %v6939 = vpop.f32.mrb[0].mxu0
    %6940 = vmatprep.mubr.bf16.mxu0 0
    %6941 = vmatmul.mubr.bf16.gmra.mrb[0].mxu0 %v5540
    %v6942 = vpop.f32.mrb[0].mxu0
    %v6943 = vadd.f32 0.0, %v6942
    %v6944 = vpop.f32.mrb[0].mxu0
    %v6945 = vpop.f32.mrb[0].mxu0
    %v6946 = vadd.f32 0.0, %v6945
    %v6947 = vpop.f32.mrb[0].mxu0
    %6948 = vmatprep.mubr.bf16.mxu0 0
    %6949 = vmatmul.mubr.bf16.gmra.mrb[0].mxu0 %v5543
    %v6950 = vpop.f32.mrb[0].mxu0
    %v6951 = vadd.f32 0.0, %v6950
    %v6952 = vpop.f32.mrb[0].mxu0
    %v6953 = vpop.f32.mrb[0].mxu0
    %v6954 = vadd.f32 0.0, %v6953
    %v6955 = vpop.f32.mrb[0].mxu0
    %6956 = vmatprep.mubr.bf16.mxu0 0
    %6957 = vmatmul.mubr.bf16.gmra.mrb[0].mxu0 %v5546
    %v6958 = vpop.f32.mrb[0].mxu0
    %v6959 = vadd.f32 0.0, %v6958
    %v6960 = vpop.f32.mrb[0].mxu0
    %v6961 = vpop.f32.mrb[0].mxu0
    %v6962 = vadd.f32 0.0, %v6961
    %v6963 = vpop.f32.mrb[0].mxu0
    %6964 = vmatprep.mubr.bf16.mxu0 0
    %6965 = vmatmul.mubr.bf16.gmra.mrb[0].mxu0 %v5549
    %v6966 = vpop.f32.mrb[0].mxu0
    %v6967 = vadd.f32 0.0, %v6966
    %v6968 = vpop.f32.mrb[0].mxu0
    %v6969 = vpop.f32.mrb[0].mxu0
    %v6970 = vadd.f32 0.0, %v6969
    %v6971 = vpop.f32.mrb[0].mxu0
    %6972 = vmatprep.mubr.bf16.mxu0 0
    %6973 = vmatmul.mubr.bf16.gmra.mrb[0].mxu0 %v5552
    %v6974 = vpop.f32.mrb[0].mxu0
    %v6975 = vadd.f32 0.0, %v6974
    %v6976 = vpop.f32.mrb[0].mxu0
    %v6977 = vpop.f32.mrb[0].mxu0
    %v6978 = vadd.f32 0.0, %v6977
    %v6979 = vpop.f32.mrb[0].mxu0
    %6980 = vmatprep.mubr.bf16.mxu0 0
    %6981 = vmatmul.mubr.bf16.gmra.mrb[0].mxu0 %v5555
    %v6982 = vpop.f32.mrb[0].mxu0
    %v6983 = vadd.f32 0.0, %v6982
    %v6984 = vpop.f32.mrb[0].mxu0
    %v6985 = vpop.f32.mrb[0].mxu0
    %v6986 = vadd.f32 0.0, %v6985
    %v6987 = vpop.f32.mrb[0].mxu0
    %6988 = vmatprep.mubr.bf16.mxu0 0
    %6989 = vmatmul.mubr.bf16.gmra.mrb[0].mxu0 %v5558
    %v6990 = vpop.f32.mrb[0].mxu0
    %v6991 = vadd.f32 0.0, %v6990
    %v6992 = vpop.f32.mrb[0].mxu0
    %v6993 = vpop.f32.mrb[0].mxu0
    %v6994 = vadd.f32 0.0, %v6993
    %v6995 = vpop.f32.mrb[0].mxu0
    %6996 = vmatprep.mubr.bf16.mxu0 0
    %6997 = vmatmul.mubr.bf16.gmra.mrb[0].mxu0 %v5561
    %v6998 = vpop.f32.mrb[0].mxu0
    %v6999 = vadd.f32 0.0, %v6998
    %v7000 = vpop.f32.mrb[0].mxu0
    %v7001 = vpop.f32.mrb[0].mxu0
    %v7002 = vadd.f32 0.0, %v7001
    %v7003 = vpop.f32.mrb[0].mxu0
    %7004 = vmatprep.mubr.bf16.mxu0 0
    %7005 = vmatmul.mubr.bf16.gmra.mrb[0].mxu0 %v6179
    %v7006 = vpop.f32.mrb[0].mxu0
    %v7007 = vadd.f32 0.0, %v7006
    %v7008 = vpop.f32.mrb[0].mxu0
    %v7009 = vpop.f32.mrb[0].mxu0
    %v7010 = vadd.f32 0.0, %v7009
    %v7011 = vpop.f32.mrb[0].mxu0
    %7012 = vmatprep.mubr.bf16.mxu0 0
    %7013 = vmatmul.mubr.bf16.gmra.mrb[0].mxu0 %v6858
    %v7014 = vpop.f32.mrb[0].mxu0
    %v7015 = vadd.f32 0.0, %v7014
    %v7016 = vpop.f32.mrb[0].mxu0
    %v7017 = vpop.f32.mrb[0].mxu0
    %v7018 = vadd.f32 0.0, %v7017
    %v7019 = vpop.f32.mrb[0].mxu0
    %7020 = vdwg.mxu0
    %v7021 = vadd.f32 %v6804, %v6895
    %v7022 = vadd.f32 %v6805, %v6898
    %v7023 = vadd.f32 %v6806, %v6903
    %v7024 = vadd.f32 %v6807, %v6906
    %v7025 = vadd.f32 %v6808, %v6911
    %v7026 = vadd.f32 %v6809, %v6914
    %v7027 = vadd.f32 %v6810, %v6919
    %v7028 = vadd.f32 %v6811, %v6922
    %v7029 = vadd.f32 %v6812, %v6927
    %v7030 = vadd.f32 %v6813, %v6930
    %v7031 = vadd.f32 %v6814, %v6935
    %v7032 = vadd.f32 %v6815, %v6938
    %v7033 = vadd.f32 %v6816, %v6943
    %v7034 = vadd.f32 %v6817, %v6946
    %v7035 = vadd.f32 %v6818, %v6951
    %v7036 = vadd.f32 %v6819, %v6954
    %v7037 = vadd.f32 %v6820, %v6959
    %v7038 = vadd.f32 %v6821, %v6962
    %v7039 = vadd.f32 %v6822, %v6967
    %v7040 = vadd.f32 %v6823, %v6970
    %v7041 = vadd.f32 %v6824, %v6975
    %v7042 = vadd.f32 %v6825, %v6978
    %v7043 = vadd.f32 %v6826, %v6983
    %v7044 = vadd.f32 %v6827, %v6986
    %v7045 = vadd.f32 %v6828, %v6991
    %v7046 = vadd.f32 %v6829, %v6994
    %v7047 = vadd.f32 %v6830, %v6999
    %v7048 = vadd.f32 %v6831, %v7002
    %v7049 = vadd.f32 %v6832, %v7007
    %v7050 = vadd.f32 %v6833, %v7010
    %v7051 = vadd.f32 %v6834, %v7015
    %v7052 = vadd.f32 %v6835, %v7018
    %v7054 = vshrl.u32 %v4759, 16
    %v7056 = vrot.slane %v7054, 4
    %v7057 = vshll.u32 %v4759, 16
    %v7059 = vrot.slane %v7057, 5
    %v7060 = vor.u32 %v7056, %v7059
    %v7061 = vrot.slane %v7060, 4
    %v7063 = vshll.u32 %v4760, 16
    %v7065 = vrot.slane %v7063, 5
    %v7066 = vsel %vm1495, %v7061, %v7065
    %v7067 = vshrl.u32 %v4760, 16
    %v7069 = vrot.slane %v7067, 4
    %v7070 = vor.u32 %v7069, %v7065
    %v7071 = vrot.slane %v7070, 4
    %v7073 = vshll.u32 %v4761, 16
    %v7075 = vrot.slane %v7073, 5
    %v7076 = vsel %vm1495, %v7071, %v7075
    %v7077 = vld [vmem:[%s3817] sm:$0xf]
    %v7078 = vld [vmem:[%s3817 + $0x4] sm:$0xf]
    %v7079 = vld [vmem:[%s3817 + $0x8] sm:$0xf]
    %v7080 = vld [vmem:[%s3817 + $0xc] sm:$0xf]
    %v7081 = vunpack.c.l.b16 %v7066
    %v7082 = vunpack.c.l.b16 %v7076
    %v7083 = vpack.c.b16 %v7082, %v7081
    %v7088 = vunpack.c.l.b16 %v7077
    %v7089 = vunpack.c.l.b16 %v7078
    %v7090 = vunpack.c.l.b16 %v7079
    %v7091 = vunpack.c.l.b16 %v7080
    %v7092 = vpack.c.b16 %v7089, %v7088
    %v7093 = vpack.c.b16 %v7091, %v7090
    %v7097 = vsel %vm1945, %v7083, 0
    %7099 = vmatprep.subr.bf16.mxu0 0
    %7100 = vmatpush1.bf16.msra.mxu0 %v7092
    %7101 = vmatprep.subr.bf16.mxu0 0
    %7102 = vmatpush1.bf16.msra.mxu0 %v7093
    %7103 = vmatprep.subr.bf16.mxu0 0
    %7104 = vmatpush1.bf16.msra.mxu0 0
    %7105 = vmatprep.subr.bf16.mxu0 0
    %7106 = vmatpush1.bf16.msra.mxu0 0
    %7107 = vmatprep.subr.bf16.mxu0 0
    %7108 = vmatpush1.bf16.msra.mxu0 0
    %7109 = vmatprep.subr.bf16.mxu0 0
    %7110 = vmatpush1.bf16.msra.mxu0 0
    %7111 = vmatprep.subr.bf16.mxu0 0
    %7112 = vmatpush1.bf16.msra.mxu0 0
    %7113 = vmatprep.subr.bf16.mxu0 0
    %7114 = vmatpush1.bf16.msra.mxu0 0
    %7115 = vmatprep.subr.bf16.mxu0 0
    %7116 = vmatpush1.bf16.msra.mxu0 0
    %7117 = vmatprep.subr.bf16.mxu0 0
    %7118 = vmatpush1.bf16.msra.mxu0 0
    %7119 = vmatprep.subr.bf16.mxu0 0
    %7120 = vmatpush1.bf16.msra.mxu0 0
    %7121 = vmatprep.subr.bf16.mxu0 0
    %7122 = vmatpush1.bf16.msra.mxu0 0
    %7123 = vmatprep.subr.bf16.mxu0 0
    %7124 = vmatpush1.bf16.msra.mxu0 0
    %7125 = vmatprep.subr.bf16.mxu0 0
    %7126 = vmatpush1.bf16.msra.mxu0 0
    %7127 = vmatprep.subr.bf16.mxu0 0
    %7128 = vmatpush1.bf16.msra.mxu0 0
    %7129 = vmatprep.subr.bf16.mxu0 0
    %7130 = vmatpush1.bf16.msra.mxu0 0
    %7131 = vmatprep.mubr.bf16.mxu0 0
    %7132 = vmatmul.mubr.bf16.gmra.mrb[0].mxu0 %v5221
    %v7133 = vpop.f32.mrb[0].mxu0
    %v7134 = vadd.f32 0.0, %v7133
    %v7135 = vpop.f32.mrb[0].mxu0
    %v7136 = vpop.f32.mrb[0].mxu0
    %v7137 = vadd.f32 0.0, %v7136
    %v7138 = vpop.f32.mrb[0].mxu0
    %7139 = vmatprep.mubr.bf16.mxu0 0
    %7140 = vmatmul.mubr.bf16.gmra.mrb[0].mxu0 %v5224
    %v7141 = vpop.f32.mrb[0].mxu0
    %v7142 = vadd.f32 0.0, %v7141
    %v7143 = vpop.f32.mrb[0].mxu0
    %v7144 = vpop.f32.mrb[0].mxu0
    %v7145 = vadd.f32 0.0, %v7144
    %v7146 = vpop.f32.mrb[0].mxu0
    %7147 = vmatprep.mubr.bf16.mxu0 0
    %7148 = vmatmul.mubr.bf16.gmra.mrb[0].mxu0 %v5227
    %v7149 = vpop.f32.mrb[0].mxu0
    %v7150 = vadd.f32 0.0, %v7149
    %v7151 = vpop.f32.mrb[0].mxu0
    %v7152 = vpop.f32.mrb[0].mxu0
    %v7153 = vadd.f32 0.0, %v7152
    %v7154 = vpop.f32.mrb[0].mxu0
    %7155 = vmatprep.mubr.bf16.mxu0 0
    %7156 = vmatmul.mubr.bf16.gmra.mrb[0].mxu0 %v5230
    %v7157 = vpop.f32.mrb[0].mxu0
    %v7158 = vadd.f32 0.0, %v7157
    %v7159 = vpop.f32.mrb[0].mxu0
    %v7160 = vpop.f32.mrb[0].mxu0
    %v7161 = vadd.f32 0.0, %v7160
    %v7162 = vpop.f32.mrb[0].mxu0
    %7163 = vmatprep.mubr.bf16.mxu0 0
    %7164 = vmatmul.mubr.bf16.gmra.mrb[0].mxu0 %v5233
    %v7165 = vpop.f32.mrb[0].mxu0
    %v7166 = vadd.f32 0.0, %v7165
    %v7167 = vpop.f32.mrb[0].mxu0
    %v7168 = vpop.f32.mrb[0].mxu0
    %v7169 = vadd.f32 0.0, %v7168
    %v7170 = vpop.f32.mrb[0].mxu0
    %7171 = vmatprep.mubr.bf16.mxu0 0
    %7172 = vmatmul.mubr.bf16.gmra.mrb[0].mxu0 %v5236
    %v7173 = vpop.f32.mrb[0].mxu0
    %v7174 = vadd.f32 0.0, %v7173
    %v7175 = vpop.f32.mrb[0].mxu0
    %v7176 = vpop.f32.mrb[0].mxu0
    %v7177 = vadd.f32 0.0, %v7176
    %v7178 = vpop.f32.mrb[0].mxu0
    %7179 = vmatprep.mubr.bf16.mxu0 0
    %7180 = vmatmul.mubr.bf16.gmra.mrb[0].mxu0 %v5239
    %v7181 = vpop.f32.mrb[0].mxu0
    %v7182 = vadd.f32 0.0, %v7181
    %v7183 = vpop.f32.mrb[0].mxu0
    %v7184 = vpop.f32.mrb[0].mxu0
    %v7185 = vadd.f32 0.0, %v7184
    %v7186 = vpop.f32.mrb[0].mxu0
    %7187 = vmatprep.mubr.bf16.mxu0 0
    %7188 = vmatmul.mubr.bf16.gmra.mrb[0].mxu0 %v5242
    %v7189 = vpop.f32.mrb[0].mxu0
    %v7190 = vadd.f32 0.0, %v7189
    %v7191 = vpop.f32.mrb[0].mxu0
    %v7192 = vpop.f32.mrb[0].mxu0
    %v7193 = vadd.f32 0.0, %v7192
    %v7194 = vpop.f32.mrb[0].mxu0
    %7195 = vmatprep.mubr.bf16.mxu0 0
    %7196 = vmatmul.mubr.bf16.gmra.mrb[0].mxu0 %v5245
    %v7197 = vpop.f32.mrb[0].mxu0
    %v7198 = vadd.f32 0.0, %v7197
    %v7199 = vpop.f32.mrb[0].mxu0
    %v7200 = vpop.f32.mrb[0].mxu0
    %v7201 = vadd.f32 0.0, %v7200
    %v7202 = vpop.f32.mrb[0].mxu0
    %7203 = vmatprep.mubr.bf16.mxu0 0
    %7204 = vmatmul.mubr.bf16.gmra.mrb[0].mxu0 %v5248
    %v7205 = vpop.f32.mrb[0].mxu0
    %v7206 = vadd.f32 0.0, %v7205
    %v7207 = vpop.f32.mrb[0].mxu0
    %v7208 = vpop.f32.mrb[0].mxu0
    %v7209 = vadd.f32 0.0, %v7208
    %v7210 = vpop.f32.mrb[0].mxu0
    %7211 = vmatprep.mubr.bf16.mxu0 0
    %7212 = vmatmul.mubr.bf16.gmra.mrb[0].mxu0 %v5251
    %v7213 = vpop.f32.mrb[0].mxu0
    %v7214 = vadd.f32 0.0, %v7213
    %v7215 = vpop.f32.mrb[0].mxu0
    %v7216 = vpop.f32.mrb[0].mxu0
    %v7217 = vadd.f32 0.0, %v7216
    %v7218 = vpop.f32.mrb[0].mxu0
    %7219 = vmatprep.mubr.bf16.mxu0 0
    %7220 = vmatmul.mubr.bf16.gmra.mrb[0].mxu0 %v5254
    %v7221 = vpop.f32.mrb[0].mxu0
    %v7222 = vadd.f32 0.0, %v7221
    %v7223 = vpop.f32.mrb[0].mxu0
    %v7224 = vpop.f32.mrb[0].mxu0
    %v7225 = vadd.f32 0.0, %v7224
    %v7226 = vpop.f32.mrb[0].mxu0
    %7227 = vmatprep.mubr.bf16.mxu0 0
    %7228 = vmatmul.mubr.bf16.gmra.mrb[0].mxu0 %v5257
    %v7229 = vpop.f32.mrb[0].mxu0
    %v7230 = vadd.f32 0.0, %v7229
    %v7231 = vpop.f32.mrb[0].mxu0
    %v7232 = vpop.f32.mrb[0].mxu0
    %v7233 = vadd.f32 0.0, %v7232
    %v7234 = vpop.f32.mrb[0].mxu0
    %7235 = vmatprep.mubr.bf16.mxu0 0
    %7236 = vmatmul.mubr.bf16.gmra.mrb[0].mxu0 %v5260
    %v7237 = vpop.f32.mrb[0].mxu0
    %v7238 = vadd.f32 0.0, %v7237
    %v7239 = vpop.f32.mrb[0].mxu0
    %v7240 = vpop.f32.mrb[0].mxu0
    %v7241 = vadd.f32 0.0, %v7240
    %v7242 = vpop.f32.mrb[0].mxu0
    %7243 = vmatprep.mubr.bf16.mxu0 0
    %7244 = vmatmul.mubr.bf16.gmra.mrb[0].mxu0 %v6418
    %v7245 = vpop.f32.mrb[0].mxu0
    %v7246 = vadd.f32 0.0, %v7245
    %v7247 = vpop.f32.mrb[0].mxu0
    %v7248 = vpop.f32.mrb[0].mxu0
    %v7249 = vadd.f32 0.0, %v7248
    %v7250 = vpop.f32.mrb[0].mxu0
    %7251 = vmatprep.mubr.bf16.mxu0 0
    %7252 = vmatmul.mubr.bf16.gmra.mrb[0].mxu0 %v7097
    %v7253 = vpop.f32.mrb[0].mxu0
    %v7254 = vadd.f32 0.0, %v7253
    %v7255 = vpop.f32.mrb[0].mxu0
    %v7256 = vpop.f32.mrb[0].mxu0
    %v7257 = vadd.f32 0.0, %v7256
    %v7258 = vpop.f32.mrb[0].mxu0
    %7259 = vdwg.mxu0
    %v7260 = vadd.f32 %v7021, %v7134
    %v7261 = vadd.f32 %v7022, %v7137
    %v7262 = vadd.f32 %v7023, %v7142
    %v7263 = vadd.f32 %v7024, %v7145
    %v7264 = vadd.f32 %v7025, %v7150
    %v7265 = vadd.f32 %v7026, %v7153
    %v7266 = vadd.f32 %v7027, %v7158
    %v7267 = vadd.f32 %v7028, %v7161
    %v7268 = vadd.f32 %v7029, %v7166
    %v7269 = vadd.f32 %v7030, %v7169
    %v7270 = vadd.f32 %v7031, %v7174
    %v7271 = vadd.f32 %v7032, %v7177
    %v7272 = vadd.f32 %v7033, %v7182
    %v7273 = vadd.f32 %v7034, %v7185
    %v7274 = vadd.f32 %v7035, %v7190
    %v7275 = vadd.f32 %v7036, %v7193
    %v7276 = vadd.f32 %v7037, %v7198
    %v7277 = vadd.f32 %v7038, %v7201
    %v7278 = vadd.f32 %v7039, %v7206
    %v7279 = vadd.f32 %v7040, %v7209
    %v7280 = vadd.f32 %v7041, %v7214
    %v7281 = vadd.f32 %v7042, %v7217
    %v7282 = vadd.f32 %v7043, %v7222
    %v7283 = vadd.f32 %v7044, %v7225
    %v7284 = vadd.f32 %v7045, %v7230
    %v7285 = vadd.f32 %v7046, %v7233
    %v7286 = vadd.f32 %v7047, %v7238
    %v7287 = vadd.f32 %v7048, %v7241
    %v7288 = vadd.f32 %v7049, %v7246
    %v7289 = vadd.f32 %v7050, %v7249
    %v7290 = vadd.f32 %v7051, %v7254
    %v7291 = vadd.f32 %v7052, %v7257
    %v7293 = vrot.slane %v4759, 5
    %v7294 = vrot.slane %v7293, 4
    %v7295 = vrot.slane %v4760, 5
    %v7296 = vsel %vm2474, %v7294, %v7295
    %v7297 = vrot.slane %v7295, 4
    %v7298 = vrot.slane %v4761, 5
    %v7299 = vsel %vm2474, %v7297, %v7298
    %v7300 = vld [vmem:[%s4041] sm:$0xf]
    %v7301 = vld [vmem:[%s4041 + $0x4] sm:$0xf]
    %v7302 = vld [vmem:[%s4041 + $0x8] sm:$0xf]
    %v7303 = vld [vmem:[%s4041 + $0xc] sm:$0xf]
    %v7304 = vunpack.c.l.b16 %v7296
    %v7305 = vunpack.c.l.b16 %v7299
    %v7306 = vpack.c.b16 %v7305, %v7304
    %v7311 = vunpack.c.l.b16 %v7300
    %v7312 = vunpack.c.l.b16 %v7301
    %v7313 = vunpack.c.l.b16 %v7302
    %v7314 = vunpack.c.l.b16 %v7303
    %v7315 = vpack.c.b16 %v7312, %v7311
    %v7316 = vpack.c.b16 %v7314, %v7313
    %v7320 = vsel %vm1945, %v7306, 0
    %7322 = vmatprep.subr.bf16.mxu0 0
    %7323 = vmatpush1.bf16.msra.mxu0 %v7315
    %7324 = vmatprep.subr.bf16.mxu0 0
    %7325 = vmatpush1.bf16.msra.mxu0 %v7316
    %7326 = vmatprep.subr.bf16.mxu0 0
    %7327 = vmatpush1.bf16.msra.mxu0 0
    %7328 = vmatprep.subr.bf16.mxu0 0
    %7329 = vmatpush1.bf16.msra.mxu0 0
    %7330 = vmatprep.subr.bf16.mxu0 0
    %7331 = vmatpush1.bf16.msra.mxu0 0
    %7332 = vmatprep.subr.bf16.mxu0 0
    %7333 = vmatpush1.bf16.msra.mxu0 0
    %7334 = vmatprep.subr.bf16.mxu0 0
    %7335 = vmatpush1.bf16.msra.mxu0 0
    %7336 = vmatprep.subr.bf16.mxu0 0
    %7337 = vmatpush1.bf16.msra.mxu0 0
    %7338 = vmatprep.subr.bf16.mxu0 0
    %7339 = vmatpush1.bf16.msra.mxu0 0
    %7340 = vmatprep.subr.bf16.mxu0 0
    %7341 = vmatpush1.bf16.msra.mxu0 0
    %7342 = vmatprep.subr.bf16.mxu0 0
    %7343 = vmatpush1.bf16.msra.mxu0 0
    %7344 = vmatprep.subr.bf16.mxu0 0
    %7345 = vmatpush1.bf16.msra.mxu0 0
    %7346 = vmatprep.subr.bf16.mxu0 0
    %7347 = vmatpush1.bf16.msra.mxu0 0
    %7348 = vmatprep.subr.bf16.mxu0 0
    %7349 = vmatpush1.bf16.msra.mxu0 0
    %7350 = vmatprep.subr.bf16.mxu0 0
    %7351 = vmatpush1.bf16.msra.mxu0 0
    %7352 = vmatprep.subr.bf16.mxu0 0
    %7353 = vmatpush1.bf16.msra.mxu0 0
    %7354 = vmatprep.mubr.bf16.mxu0 0
    %7355 = vmatmul.mubr.bf16.gmra.mrb[0].mxu0 %v5923
    %v7356 = vpop.f32.mrb[0].mxu0
    %v7357 = vadd.f32 0.0, %v7356
    %v7358 = vpop.f32.mrb[0].mxu0
    %v7359 = vpop.f32.mrb[0].mxu0
    %v7360 = vadd.f32 0.0, %v7359
    %v7361 = vpop.f32.mrb[0].mxu0
    %7362 = vmatprep.mubr.bf16.mxu0 0
    %7363 = vmatmul.mubr.bf16.gmra.mrb[0].mxu0 %v5926
    %v7364 = vpop.f32.mrb[0].mxu0
    %v7365 = vadd.f32 0.0, %v7364
    %v7366 = vpop.f32.mrb[0].mxu0
    %v7367 = vpop.f32.mrb[0].mxu0
    %v7368 = vadd.f32 0.0, %v7367
    %v7369 = vpop.f32.mrb[0].mxu0
    %7370 = vmatprep.mubr.bf16.mxu0 0
    %7371 = vmatmul.mubr.bf16.gmra.mrb[0].mxu0 %v5929
    %v7372 = vpop.f32.mrb[0].mxu0
    %v7373 = vadd.f32 0.0, %v7372
    %v7374 = vpop.f32.mrb[0].mxu0
    %v7375 = vpop.f32.mrb[0].mxu0
    %v7376 = vadd.f32 0.0, %v7375
    %v7377 = vpop.f32.mrb[0].mxu0
    %7378 = vmatprep.mubr.bf16.mxu0 0
    %7379 = vmatmul.mubr.bf16.gmra.mrb[0].mxu0 %v5932
    %v7380 = vpop.f32.mrb[0].mxu0
    %v7381 = vadd.f32 0.0, %v7380
    %v7382 = vpop.f32.mrb[0].mxu0
    %v7383 = vpop.f32.mrb[0].mxu0
    %v7384 = vadd.f32 0.0, %v7383
    %v7385 = vpop.f32.mrb[0].mxu0
    %7386 = vmatprep.mubr.bf16.mxu0 0
    %7387 = vmatmul.mubr.bf16.gmra.mrb[0].mxu0 %v5935
    %v7388 = vpop.f32.mrb[0].mxu0
    %v7389 = vadd.f32 0.0, %v7388
    %v7390 = vpop.f32.mrb[0].mxu0
    %v7391 = vpop.f32.mrb[0].mxu0
    %v7392 = vadd.f32 0.0, %v7391
    %v7393 = vpop.f32.mrb[0].mxu0
    %7394 = vmatprep.mubr.bf16.mxu0 0
    %7395 = vmatmul.mubr.bf16.gmra.mrb[0].mxu0 %v5938
    %v7396 = vpop.f32.mrb[0].mxu0
    %v7397 = vadd.f32 0.0, %v7396
    %v7398 = vpop.f32.mrb[0].mxu0
    %v7399 = vpop.f32.mrb[0].mxu0
    %v7400 = vadd.f32 0.0, %v7399
    %v7401 = vpop.f32.mrb[0].mxu0
    %7402 = vmatprep.mubr.bf16.mxu0 0
    %7403 = vmatmul.mubr.bf16.gmra.mrb[0].mxu0 %v5941
    %v7404 = vpop.f32.mrb[0].mxu0
    %v7405 = vadd.f32 0.0, %v7404
    %v7406 = vpop.f32.mrb[0].mxu0
    %v7407 = vpop.f32.mrb[0].mxu0
    %v7408 = vadd.f32 0.0, %v7407
    %v7409 = vpop.f32.mrb[0].mxu0
    %7410 = vmatprep.mubr.bf16.mxu0 0
    %7411 = vmatmul.mubr.bf16.gmra.mrb[0].mxu0 %v5944
    %v7412 = vpop.f32.mrb[0].mxu0
    %v7413 = vadd.f32 0.0, %v7412
    %v7414 = vpop.f32.mrb[0].mxu0
    %v7415 = vpop.f32.mrb[0].mxu0
    %v7416 = vadd.f32 0.0, %v7415
    %v7417 = vpop.f32.mrb[0].mxu0
    %7418 = vmatprep.mubr.bf16.mxu0 0
    %7419 = vmatmul.mubr.bf16.gmra.mrb[0].mxu0 %v5947
    %v7420 = vpop.f32.mrb[0].mxu0
    %v7421 = vadd.f32 0.0, %v7420
    %v7422 = vpop.f32.mrb[0].mxu0
    %v7423 = vpop.f32.mrb[0].mxu0
    %v7424 = vadd.f32 0.0, %v7423
    %v7425 = vpop.f32.mrb[0].mxu0
    %7426 = vmatprep.mubr.bf16.mxu0 0
    %7427 = vmatmul.mubr.bf16.gmra.mrb[0].mxu0 %v5950
    %v7428 = vpop.f32.mrb[0].mxu0
    %v7429 = vadd.f32 0.0, %v7428
    %v7430 = vpop.f32.mrb[0].mxu0
    %v7431 = vpop.f32.mrb[0].mxu0
    %v7432 = vadd.f32 0.0, %v7431
    %v7433 = vpop.f32.mrb[0].mxu0
    %7434 = vmatprep.mubr.bf16.mxu0 0
    %7435 = vmatmul.mubr.bf16.gmra.mrb[0].mxu0 %v5953
    %v7436 = vpop.f32.mrb[0].mxu0
    %v7437 = vadd.f32 0.0, %v7436
    %v7438 = vpop.f32.mrb[0].mxu0
    %v7439 = vpop.f32.mrb[0].mxu0
    %v7440 = vadd.f32 0.0, %v7439
    %v7441 = vpop.f32.mrb[0].mxu0
    %7442 = vmatprep.mubr.bf16.mxu0 0
    %7443 = vmatmul.mubr.bf16.gmra.mrb[0].mxu0 %v5956
    %v7444 = vpop.f32.mrb[0].mxu0
    %v7445 = vadd.f32 0.0, %v7444
    %v7446 = vpop.f32.mrb[0].mxu0
    %v7447 = vpop.f32.mrb[0].mxu0
    %v7448 = vadd.f32 0.0, %v7447
    %v7449 = vpop.f32.mrb[0].mxu0
    %7450 = vmatprep.mubr.bf16.mxu0 0
    %7451 = vmatmul.mubr.bf16.gmra.mrb[0].mxu0 %v5959
    %v7452 = vpop.f32.mrb[0].mxu0
    %v7453 = vadd.f32 0.0, %v7452
    %v7454 = vpop.f32.mrb[0].mxu0
    %v7455 = vpop.f32.mrb[0].mxu0
    %v7456 = vadd.f32 0.0, %v7455
    %v7457 = vpop.f32.mrb[0].mxu0
    %7458 = vmatprep.mubr.bf16.mxu0 0
    %7459 = vmatmul.mubr.bf16.gmra.mrb[0].mxu0 %v5962
    %v7460 = vpop.f32.mrb[0].mxu0
    %v7461 = vadd.f32 0.0, %v7460
    %v7462 = vpop.f32.mrb[0].mxu0
    %v7463 = vpop.f32.mrb[0].mxu0
    %v7464 = vadd.f32 0.0, %v7463
    %v7465 = vpop.f32.mrb[0].mxu0
    %7466 = vmatprep.mubr.bf16.mxu0 0
    %7467 = vmatmul.mubr.bf16.gmra.mrb[0].mxu0 %v6641
    %v7468 = vpop.f32.mrb[0].mxu0
    %v7469 = vadd.f32 0.0, %v7468
    %v7470 = vpop.f32.mrb[0].mxu0
    %v7471 = vpop.f32.mrb[0].mxu0
    %v7472 = vadd.f32 0.0, %v7471
    %v7473 = vpop.f32.mrb[0].mxu0
    %7474 = vmatprep.mubr.bf16.mxu0 0
    %7475 = vmatmul.mubr.bf16.gmra.mrb[0].mxu0 %v7320
    %v7476 = vpop.f32.mrb[0].mxu0
    %v7477 = vadd.f32 0.0, %v7476
    %v7478 = vpop.f32.mrb[0].mxu0
    %v7479 = vpop.f32.mrb[0].mxu0
    %v7480 = vadd.f32 0.0, %v7479
    %v7481 = vpop.f32.mrb[0].mxu0
    %7482 = vdwg.mxu0
    %v7483 = vadd.f32 %v7260, %v7357
    %v7484 = vadd.f32 %v7261, %v7360
    %v7485 = vadd.f32 %v7262, %v7365
    %v7486 = vadd.f32 %v7263, %v7368
    %v7487 = vadd.f32 %v7264, %v7373
    %v7488 = vadd.f32 %v7265, %v7376
    %v7489 = vadd.f32 %v7266, %v7381
    %v7490 = vadd.f32 %v7267, %v7384
    %v7491 = vadd.f32 %v7268, %v7389
    %v7492 = vadd.f32 %v7269, %v7392
    %v7493 = vadd.f32 %v7270, %v7397
    %v7494 = vadd.f32 %v7271, %v7400
    %v7495 = vadd.f32 %v7272, %v7405
    %v7496 = vadd.f32 %v7273, %v7408
    %v7497 = vadd.f32 %v7274, %v7413
    %v7498 = vadd.f32 %v7275, %v7416
    %v7499 = vadd.f32 %v7276, %v7421
    %v7500 = vadd.f32 %v7277, %v7424
    %v7501 = vadd.f32 %v7278, %v7429
    %v7502 = vadd.f32 %v7279, %v7432
    %v7503 = vadd.f32 %v7280, %v7437
    %v7504 = vadd.f32 %v7281, %v7440
    %v7505 = vadd.f32 %v7282, %v7445
    %v7506 = vadd.f32 %v7283, %v7448
    %v7507 = vadd.f32 %v7284, %v7453
    %v7508 = vadd.f32 %v7285, %v7456
    %v7509 = vadd.f32 %v7286, %v7461
    %v7510 = vadd.f32 %v7287, %v7464
    %v7511 = vadd.f32 %v7288, %v7469
    %v7512 = vadd.f32 %v7289, %v7472
    %v7513 = vadd.f32 %v7290, %v7477
    %v7514 = vadd.f32 %v7291, %v7480
    %v7515 = vadd.f32 %v7483, %v4261
    %v7516 = vadd.f32 %v7484, %v4261
    %v7517 = vadd.f32 %v7485, %v4261
    %v7518 = vadd.f32 %v7486, %v4261
    %v7519 = vadd.f32 %v7487, %v4261
    %v7520 = vadd.f32 %v7488, %v4261
    %v7521 = vadd.f32 %v7489, %v4261
    %v7522 = vadd.f32 %v7490, %v4261
    %v7523 = vadd.f32 %v7491, %v4261
    %v7524 = vadd.f32 %v7492, %v4261
    %v7525 = vadd.f32 %v7493, %v4261
    %v7526 = vadd.f32 %v7494, %v4261
    %v7527 = vadd.f32 %v7495, %v4261
    %v7528 = vadd.f32 %v7496, %v4261
    %v7529 = vadd.f32 %v7497, %v4261
    %v7530 = vadd.f32 %v7498, %v4261
    %v7531 = vadd.f32 %v7499, %v4261
    %v7532 = vadd.f32 %v7500, %v4261
    %v7533 = vadd.f32 %v7501, %v4261
    %v7534 = vadd.f32 %v7502, %v4261
    %v7535 = vadd.f32 %v7503, %v4261
    %v7536 = vadd.f32 %v7504, %v4261
    %v7537 = vadd.f32 %v7505, %v4261
    %v7538 = vadd.f32 %v7506, %v4261
    %v7539 = vadd.f32 %v7507, %v4261
    %v7540 = vadd.f32 %v7508, %v4261
    %v7541 = vadd.f32 %v7509, %v4261
    %v7542 = vadd.f32 %v7510, %v4261
    %v7543 = vadd.f32 %v7511, %v4261
    %v7544 = vadd.f32 %v7512, %v4261
    %v7545 = vadd.f32 %v7513, %v4261
    %v7546 = vadd.f32 %v7514, %v4261
    %v7547 = vmax.f32 %v7515, 0.0
    %v7548 = vmax.f32 %v7516, 0.0
    %v7549 = vmax.f32 %v7517, 0.0
    %v7550 = vmax.f32 %v7518, 0.0
    %v7551 = vmax.f32 %v7519, 0.0
    %v7552 = vmax.f32 %v7520, 0.0
    %v7553 = vmax.f32 %v7521, 0.0
    %v7554 = vmax.f32 %v7522, 0.0
    %v7555 = vmax.f32 %v7523, 0.0
    %v7556 = vmax.f32 %v7524, 0.0
    %v7557 = vmax.f32 %v7525, 0.0
    %v7558 = vmax.f32 %v7526, 0.0
    %v7559 = vmax.f32 %v7527, 0.0
    %v7560 = vmax.f32 %v7528, 0.0
    %v7561 = vmax.f32 %v7529, 0.0
    %v7562 = vmax.f32 %v7530, 0.0
    %v7563 = vmax.f32 %v7531, 0.0
    %v7564 = vmax.f32 %v7532, 0.0
    %v7565 = vmax.f32 %v7533, 0.0
    %v7566 = vmax.f32 %v7534, 0.0
    %v7567 = vmax.f32 %v7535, 0.0
    %v7568 = vmax.f32 %v7536, 0.0
    %v7569 = vmax.f32 %v7537, 0.0
    %v7570 = vmax.f32 %v7538, 0.0
    %v7571 = vmax.f32 %v7539, 0.0
    %v7572 = vmax.f32 %v7540, 0.0
    %v7573 = vmax.f32 %v7541, 0.0
    %v7574 = vmax.f32 %v7542, 0.0
    %v7575 = vmax.f32 %v7543, 0.0
    %v7576 = vmax.f32 %v7544, 0.0
    %v7577 = vmax.f32 %v7545, 0.0
    %v7578 = vmax.f32 %v7546, 0.0
    %v7579 = vpack.c.bf16 %v7548, %v7547
    %v7580 = vpack.c.bf16 %v7550, %v7549
    %v7581 = vpack.c.bf16 %v7552, %v7551
    %v7582 = vpack.c.bf16 %v7554, %v7553
    %v7583 = vpack.c.bf16 %v7556, %v7555
    %v7584 = vpack.c.bf16 %v7558, %v7557
    %v7585 = vpack.c.bf16 %v7560, %v7559
    %v7586 = vpack.c.bf16 %v7562, %v7561
    %v7587 = vpack.c.bf16 %v7564, %v7563
    %v7588 = vpack.c.bf16 %v7566, %v7565
    %v7589 = vpack.c.bf16 %v7568, %v7567
    %v7590 = vpack.c.bf16 %v7570, %v7569
    %v7591 = vpack.c.bf16 %v7572, %v7571
    %v7592 = vpack.c.bf16 %v7574, %v7573
    %v7593 = vpack.c.bf16 %v7576, %v7575
    %v7594 = vpack.c.bf16 %v7578, %v7577
    %v7595 = vld [vmem:[%s5] sm:$0xf]
    %v7596 = vld [vmem:[%s5 + $0x4] sm:$0xf]
    %v7597 = vld [vmem:[%s5 + $0x8] sm:$0xf]
    %v7598 = vld [vmem:[%s5 + $0xc] sm:$0xf]
    %s7599 = sadd.s32 %s4347, 256
    %s7600 = scalar_lea.vmem [#allocation3], %s7599
    %v7601 = vld [vmem:[%s7600] sm:$0xff]
    %v7602 = vld [vmem:[%s7600 + $0x8] sm:$0xff]
    %v7603 = vld [vmem:[%s7600 + $0x10] sm:$0xff]
    %v7604 = vld [vmem:[%s7600 + $0x18] sm:$0xff]
    %v7605 = vld [vmem:[%s7600 + $0x20] sm:$0xff]
    %v7606 = vld [vmem:[%s7600 + $0x28] sm:$0xff]
    %v7607 = vld [vmem:[%s7600 + $0x30] sm:$0xff]
    %v7608 = vld [vmem:[%s7600 + $0x38] sm:$0xff]
    %v7609 = vld [vmem:[%s7600 + $0x40] sm:$0xff]
    %v7610 = vld [vmem:[%s7600 + $0x48] sm:$0xff]
    %v7611 = vld [vmem:[%s7600 + $0x50] sm:$0xff]
    %v7612 = vld [vmem:[%s7600 + $0x58] sm:$0xff]
    %v7613 = vld [vmem:[%s7600 + $0x60] sm:$0xff]
    %v7614 = vld [vmem:[%s7600 + $0x68] sm:$0xff]
    %v7615 = vld [vmem:[%s7600 + $0x70] sm:$0xff]
    %v7616 = vld [vmem:[%s7600 + $0x78] sm:$0xff]
    %v7617 = vld [vmem:[%s7600 + $0x80] sm:$0xff]
    %v7618 = vld [vmem:[%s7600 + $0x88] sm:$0xff]
    %v7619 = vld [vmem:[%s7600 + $0x90] sm:$0xff]
    %v7620 = vld [vmem:[%s7600 + $0x98] sm:$0xff]
    %v7621 = vld [vmem:[%s7600 + $0xa0] sm:$0xff]
    %v7622 = vld [vmem:[%s7600 + $0xa8] sm:$0xff]
    %v7623 = vld [vmem:[%s7600 + $0xb0] sm:$0xff]
    %v7624 = vld [vmem:[%s7600 + $0xb8] sm:$0xff]
    %v7625 = vld [vmem:[%s7600 + $0xc0] sm:$0xff]
    %v7626 = vld [vmem:[%s7600 + $0xc8] sm:$0xff]
    %v7627 = vld [vmem:[%s7600 + $0xd0] sm:$0xff]
    %v7628 = vld [vmem:[%s7600 + $0xd8] sm:$0xff]
    %v7629 = vld [vmem:[%s7600 + $0xe0] sm:$0xff]
    %v7630 = vld [vmem:[%s7600 + $0xe8] sm:$0xff]
    %v7631 = vld [vmem:[%s7600 + $0xf0] sm:$0xff]
    %v7632 = vld [vmem:[%s7600 + $0xf8] sm:$0xff]
    %v7637 = vunpack.c.l.b16 %v7595
    %v7638 = vunpack.c.l.b16 %v7596
    %v7639 = vunpack.c.l.b16 %v7597
    %v7640 = vunpack.c.l.b16 %v7598
    %v7641 = vpack.c.b16 %v7638, %v7637
    %v7642 = vpack.c.b16 %v7640, %v7639
    %v7646 = vsel %vm1945, %v7579, 0
    %v7649 = vsel %vm1945, %v7580, 0
    %v7652 = vsel %vm1945, %v7581, 0
    %v7655 = vsel %vm1945, %v7582, 0
    %v7658 = vsel %vm1945, %v7583, 0
    %v7661 = vsel %vm1945, %v7584, 0
    %v7664 = vsel %vm1945, %v7585, 0
    %v7667 = vsel %vm1945, %v7586, 0
    %v7670 = vsel %vm1945, %v7587, 0
    %v7673 = vsel %vm1945, %v7588, 0
    %v7676 = vsel %vm1945, %v7589, 0
    %v7679 = vsel %vm1945, %v7590, 0
    %v7682 = vsel %vm1945, %v7591, 0
    %v7685 = vsel %vm1945, %v7592, 0
    %v7688 = vsel %vm1945, %v7593, 0
    %v7691 = vsel %vm1945, %v7594, 0
    %7693 = vmatprep.subr.bf16.mxu0 0
    %7694 = vmatpush1.bf16.msra.mxu0 %v7641
    %7695 = vmatprep.subr.bf16.mxu0 0
    %7696 = vmatpush1.bf16.msra.mxu0 %v7642
    %7697 = vmatprep.subr.bf16.mxu0 0
    %7698 = vmatpush1.bf16.msra.mxu0 0
    %7699 = vmatprep.subr.bf16.mxu0 0
    %7700 = vmatpush1.bf16.msra.mxu0 0
    %7701 = vmatprep.subr.bf16.mxu0 0
    %7702 = vmatpush1.bf16.msra.mxu0 0
    %7703 = vmatprep.subr.bf16.mxu0 0
    %7704 = vmatpush1.bf16.msra.mxu0 0
    %7705 = vmatprep.subr.bf16.mxu0 0
    %7706 = vmatpush1.bf16.msra.mxu0 0
    %7707 = vmatprep.subr.bf16.mxu0 0
    %7708 = vmatpush1.bf16.msra.mxu0 0
    %7709 = vmatprep.subr.bf16.mxu0 0
    %7710 = vmatpush1.bf16.msra.mxu0 0
    %7711 = vmatprep.subr.bf16.mxu0 0
    %7712 = vmatpush1.bf16.msra.mxu0 0
    %7713 = vmatprep.subr.bf16.mxu0 0
    %7714 = vmatpush1.bf16.msra.mxu0 0
    %7715 = vmatprep.subr.bf16.mxu0 0
    %7716 = vmatpush1.bf16.msra.mxu0 0
    %7717 = vmatprep.subr.bf16.mxu0 0
    %7718 = vmatpush1.bf16.msra.mxu0 0
    %7719 = vmatprep.subr.bf16.mxu0 0
    %7720 = vmatpush1.bf16.msra.mxu0 0
    %7721 = vmatprep.subr.bf16.mxu0 0
    %7722 = vmatpush1.bf16.msra.mxu0 0
    %7723 = vmatprep.subr.bf16.mxu0 0
    %7724 = vmatpush1.bf16.msra.mxu0 0
    %7725 = vmatprep.mubr.bf16.mxu0 0
    %7726 = vmatmul.mubr.bf16.gmra.mrb[0].mxu0 %v7646
    %v7727 = vpop.f32.mrb[0].mxu0
    %v7728 = vadd.f32 %v4385, %v7727
    %v7729 = vpop.f32.mrb[0].mxu0
    %v7730 = vpop.f32.mrb[0].mxu0
    %v7731 = vadd.f32 %v4385, %v7730
    %v7732 = vpop.f32.mrb[0].mxu0
    %7733 = vmatprep.mubr.bf16.mxu0 0
    %7734 = vmatmul.mubr.bf16.gmra.mrb[0].mxu0 %v7649
    %v7735 = vpop.f32.mrb[0].mxu0
    %v7736 = vadd.f32 %v4385, %v7735
    %v7737 = vpop.f32.mrb[0].mxu0
    %v7738 = vpop.f32.mrb[0].mxu0
    %v7739 = vadd.f32 %v4385, %v7738
    %v7740 = vpop.f32.mrb[0].mxu0
    %7741 = vmatprep.mubr.bf16.mxu0 0
    %7742 = vmatmul.mubr.bf16.gmra.mrb[0].mxu0 %v7652
    %v7743 = vpop.f32.mrb[0].mxu0
    %v7744 = vadd.f32 %v4385, %v7743
    %v7745 = vpop.f32.mrb[0].mxu0
    %v7746 = vpop.f32.mrb[0].mxu0
    %v7747 = vadd.f32 %v4385, %v7746
    %v7748 = vpop.f32.mrb[0].mxu0
    %7749 = vmatprep.mubr.bf16.mxu0 0
    %7750 = vmatmul.mubr.bf16.gmra.mrb[0].mxu0 %v7655
    %v7751 = vpop.f32.mrb[0].mxu0
    %v7752 = vadd.f32 %v4385, %v7751
    %v7753 = vpop.f32.mrb[0].mxu0
    %v7754 = vpop.f32.mrb[0].mxu0
    %v7755 = vadd.f32 %v4385, %v7754
    %v7756 = vpop.f32.mrb[0].mxu0
    %7757 = vmatprep.mubr.bf16.mxu0 0
    %7758 = vmatmul.mubr.bf16.gmra.mrb[0].mxu0 %v7658
    %v7759 = vpop.f32.mrb[0].mxu0
    %v7760 = vadd.f32 %v4385, %v7759
    %v7761 = vpop.f32.mrb[0].mxu0
    %v7762 = vpop.f32.mrb[0].mxu0
    %v7763 = vadd.f32 %v4385, %v7762
    %v7764 = vpop.f32.mrb[0].mxu0
    %7765 = vmatprep.mubr.bf16.mxu0 0
    %7766 = vmatmul.mubr.bf16.gmra.mrb[0].mxu0 %v7661
    %v7767 = vpop.f32.mrb[0].mxu0
    %v7768 = vadd.f32 %v4385, %v7767
    %v7769 = vpop.f32.mrb[0].mxu0
    %v7770 = vpop.f32.mrb[0].mxu0
    %v7771 = vadd.f32 %v4385, %v7770
    %v7772 = vpop.f32.mrb[0].mxu0
    %7773 = vmatprep.mubr.bf16.mxu0 0
    %7774 = vmatmul.mubr.bf16.gmra.mrb[0].mxu0 %v7664
    %v7775 = vpop.f32.mrb[0].mxu0
    %v7776 = vadd.f32 %v4385, %v7775
    %v7777 = vpop.f32.mrb[0].mxu0
    %v7778 = vpop.f32.mrb[0].mxu0
    %v7779 = vadd.f32 %v4385, %v7778
    %v7780 = vpop.f32.mrb[0].mxu0
    %7781 = vmatprep.mubr.bf16.mxu0 0
    %7782 = vmatmul.mubr.bf16.gmra.mrb[0].mxu0 %v7667
    %v7783 = vpop.f32.mrb[0].mxu0
    %v7784 = vadd.f32 %v4385, %v7783
    %v7785 = vpop.f32.mrb[0].mxu0
    %v7786 = vpop.f32.mrb[0].mxu0
    %v7787 = vadd.f32 %v4385, %v7786
    %v7788 = vpop.f32.mrb[0].mxu0
    %7789 = vmatprep.mubr.bf16.mxu0 0
    %7790 = vmatmul.mubr.bf16.gmra.mrb[0].mxu0 %v7670
    %v7791 = vpop.f32.mrb[0].mxu0
    %v7792 = vadd.f32 %v4385, %v7791
    %v7793 = vpop.f32.mrb[0].mxu0
    %v7794 = vpop.f32.mrb[0].mxu0
    %v7795 = vadd.f32 %v4385, %v7794
    %v7796 = vpop.f32.mrb[0].mxu0
    %7797 = vmatprep.mubr.bf16.mxu0 0
    %7798 = vmatmul.mubr.bf16.gmra.mrb[0].mxu0 %v7673
    %v7799 = vpop.f32.mrb[0].mxu0
    %v7800 = vadd.f32 %v4385, %v7799
    %v7801 = vpop.f32.mrb[0].mxu0
    %v7802 = vpop.f32.mrb[0].mxu0
    %v7803 = vadd.f32 %v4385, %v7802
    %v7804 = vpop.f32.mrb[0].mxu0
    %7805 = vmatprep.mubr.bf16.mxu0 0
    %7806 = vmatmul.mubr.bf16.gmra.mrb[0].mxu0 %v7676
    %v7807 = vpop.f32.mrb[0].mxu0
    %v7808 = vadd.f32 %v4385, %v7807
    %v7809 = vpop.f32.mrb[0].mxu0
    %v7810 = vpop.f32.mrb[0].mxu0
    %v7811 = vadd.f32 %v4385, %v7810
    %v7812 = vpop.f32.mrb[0].mxu0
    %7813 = vmatprep.mubr.bf16.mxu0 0
    %7814 = vmatmul.mubr.bf16.gmra.mrb[0].mxu0 %v7679
    %v7815 = vpop.f32.mrb[0].mxu0
    %v7816 = vadd.f32 %v4385, %v7815
    %v7817 = vpop.f32.mrb[0].mxu0
    %v7818 = vpop.f32.mrb[0].mxu0
    %v7819 = vadd.f32 %v4385, %v7818
    %v7820 = vpop.f32.mrb[0].mxu0
    %7821 = vmatprep.mubr.bf16.mxu0 0
    %7822 = vmatmul.mubr.bf16.gmra.mrb[0].mxu0 %v7682
    %v7823 = vpop.f32.mrb[0].mxu0
    %v7824 = vadd.f32 %v4385, %v7823
    %v7825 = vpop.f32.mrb[0].mxu0
    %v7826 = vpop.f32.mrb[0].mxu0
    %v7827 = vadd.f32 %v4385, %v7826
    %v7828 = vpop.f32.mrb[0].mxu0
    %7829 = vmatprep.mubr.bf16.mxu0 0
    %7830 = vmatmul.mubr.bf16.gmra.mrb[0].mxu0 %v7685
    %v7831 = vpop.f32.mrb[0].mxu0
    %v7832 = vadd.f32 %v4385, %v7831
    %v7833 = vpop.f32.mrb[0].mxu0
    %v7834 = vpop.f32.mrb[0].mxu0
    %v7835 = vadd.f32 %v4385, %v7834
    %v7836 = vpop.f32.mrb[0].mxu0
    %7837 = vmatprep.mubr.bf16.mxu0 0
    %7838 = vmatmul.mubr.bf16.gmra.mrb[0].mxu0 %v7688
    %v7839 = vpop.f32.mrb[0].mxu0
    %v7840 = vadd.f32 %v4385, %v7839
    %v7841 = vpop.f32.mrb[0].mxu0
    %v7842 = vpop.f32.mrb[0].mxu0
    %v7843 = vadd.f32 %v4385, %v7842
    %v7844 = vpop.f32.mrb[0].mxu0
    %7845 = vmatprep.mubr.bf16.mxu0 0
    %7846 = vmatmul.mubr.bf16.gmra.mrb[0].mxu0 %v7691
    %v7847 = vpop.f32.mrb[0].mxu0
    %v7848 = vadd.f32 %v4385, %v7847
    %v7849 = vpop.f32.mrb[0].mxu0
    %v7850 = vpop.f32.mrb[0].mxu0
    %v7851 = vadd.f32 %v4385, %v7850
    %v7852 = vpop.f32.mrb[0].mxu0
    %7853 = vdwg.mxu0
    %v7854 = vadd.f32 %v7728, %v7601
    %v7855 = vadd.f32 %v7731, %v7602
    %v7856 = vadd.f32 %v7736, %v7603
    %v7857 = vadd.f32 %v7739, %v7604
    %v7858 = vadd.f32 %v7744, %v7605
    %v7859 = vadd.f32 %v7747, %v7606
    %v7860 = vadd.f32 %v7752, %v7607
    %v7861 = vadd.f32 %v7755, %v7608
    %v7862 = vadd.f32 %v7760, %v7609
    %v7863 = vadd.f32 %v7763, %v7610
    %v7864 = vadd.f32 %v7768, %v7611
    %v7865 = vadd.f32 %v7771, %v7612
    %v7866 = vadd.f32 %v7776, %v7613
    %v7867 = vadd.f32 %v7779, %v7614
    %v7868 = vadd.f32 %v7784, %v7615
    %v7869 = vadd.f32 %v7787, %v7616
    %v7870 = vadd.f32 %v7792, %v7617
    %v7871 = vadd.f32 %v7795, %v7618
    %v7872 = vadd.f32 %v7800, %v7619
    %v7873 = vadd.f32 %v7803, %v7620
    %v7874 = vadd.f32 %v7808, %v7621
    %v7875 = vadd.f32 %v7811, %v7622
    %v7876 = vadd.f32 %v7816, %v7623
    %v7877 = vadd.f32 %v7819, %v7624
    %v7878 = vadd.f32 %v7824, %v7625
    %v7879 = vadd.f32 %v7827, %v7626
    %v7880 = vadd.f32 %v7832, %v7627
    %v7881 = vadd.f32 %v7835, %v7628
    %v7882 = vadd.f32 %v7840, %v7629
    %v7883 = vadd.f32 %v7843, %v7630
    %v7884 = vadd.f32 %v7848, %v7631
    %v7885 = vadd.f32 %v7851, %v7632
    %v7886 = vmax.f32 %v7854, 0.0
    %v7887 = vmax.f32 %v7855, 0.0
    %v7888 = vmax.f32 %v7856, 0.0
    %v7889 = vmax.f32 %v7857, 0.0
    %v7890 = vmax.f32 %v7858, 0.0
    %v7891 = vmax.f32 %v7859, 0.0
    %v7892 = vmax.f32 %v7860, 0.0
    %v7893 = vmax.f32 %v7861, 0.0
    %v7894 = vmax.f32 %v7862, 0.0
    %v7895 = vmax.f32 %v7863, 0.0
    %v7896 = vmax.f32 %v7864, 0.0
    %v7897 = vmax.f32 %v7865, 0.0
    %v7898 = vmax.f32 %v7866, 0.0
    %v7899 = vmax.f32 %v7867, 0.0
    %v7900 = vmax.f32 %v7868, 0.0
    %v7901 = vmax.f32 %v7869, 0.0
    %v7902 = vmax.f32 %v7870, 0.0
    %v7903 = vmax.f32 %v7871, 0.0
    %v7904 = vmax.f32 %v7872, 0.0
    %v7905 = vmax.f32 %v7873, 0.0
    %v7906 = vmax.f32 %v7874, 0.0
    %v7907 = vmax.f32 %v7875, 0.0
    %v7908 = vmax.f32 %v7876, 0.0
    %v7909 = vmax.f32 %v7877, 0.0
    %v7910 = vmax.f32 %v7878, 0.0
    %v7911 = vmax.f32 %v7879, 0.0
    %v7912 = vmax.f32 %v7880, 0.0
    %v7913 = vmax.f32 %v7881, 0.0
    %v7914 = vmax.f32 %v7882, 0.0
    %v7915 = vmax.f32 %v7883, 0.0
    %v7916 = vmax.f32 %v7884, 0.0
    %v7917 = vmax.f32 %v7885, 0.0
    %s7918 = scalar_lea.vmem [#allocation8], %s7599
    %7919 = vst [vmem:[%s7918] sm:$0xff] %v7886
    %7920 = vst [vmem:[%s7918 + $0x8] sm:$0xff] %v7887
    %7921 = vst [vmem:[%s7918 + $0x10] sm:$0xff] %v7888
    %7922 = vst [vmem:[%s7918 + $0x18] sm:$0xff] %v7889
    %7923 = vst [vmem:[%s7918 + $0x20] sm:$0xff] %v7890
    %7924 = vst [vmem:[%s7918 + $0x28] sm:$0xff] %v7891
    %7925 = vst [vmem:[%s7918 + $0x30] sm:$0xff] %v7892
    %7926 = vst [vmem:[%s7918 + $0x38] sm:$0xff] %v7893
    %7927 = vst [vmem:[%s7918 + $0x40] sm:$0xff] %v7894
    %7928 = vst [vmem:[%s7918 + $0x48] sm:$0xff] %v7895
    %7929 = vst [vmem:[%s7918 + $0x50] sm:$0xff] %v7896
    %7930 = vst [vmem:[%s7918 + $0x58] sm:$0xff] %v7897
    %7931 = vst [vmem:[%s7918 + $0x60] sm:$0xff] %v7898
    %7932 = vst [vmem:[%s7918 + $0x68] sm:$0xff] %v7899
    %7933 = vst [vmem:[%s7918 + $0x70] sm:$0xff] %v7900
    %7934 = vst [vmem:[%s7918 + $0x78] sm:$0xff] %v7901
    %7935 = vst [vmem:[%s7918 + $0x80] sm:$0xff] %v7902
    %7936 = vst [vmem:[%s7918 + $0x88] sm:$0xff] %v7903
    %7937 = vst [vmem:[%s7918 + $0x90] sm:$0xff] %v7904
    %7938 = vst [vmem:[%s7918 + $0x98] sm:$0xff] %v7905
    %7939 = vst [vmem:[%s7918 + $0xa0] sm:$0xff] %v7906
    %7940 = vst [vmem:[%s7918 + $0xa8] sm:$0xff] %v7907
    %7941 = vst [vmem:[%s7918 + $0xb0] sm:$0xff] %v7908
    %7942 = vst [vmem:[%s7918 + $0xb8] sm:$0xff] %v7909
    %7943 = vst [vmem:[%s7918 + $0xc0] sm:$0xff] %v7910
    %7944 = vst [vmem:[%s7918 + $0xc8] sm:$0xff] %v7911
    %7945 = vst [vmem:[%s7918 + $0xd0] sm:$0xff] %v7912
    %7946 = vst [vmem:[%s7918 + $0xd8] sm:$0xff] %v7913
    %7947 = vst [vmem:[%s7918 + $0xe0] sm:$0xff] %v7914
    %7948 = vst [vmem:[%s7918 + $0xe8] sm:$0xff] %v7915
    %7949 = vst [vmem:[%s7918 + $0xf0] sm:$0xff] %v7916
    %7950 = vst [vmem:[%s7918 + $0xf8] sm:$0xff] %v7917
    // Predicated region
    $region38: #{tpu_custom_call.1} parent=1 // pred_check
      _
    $region39: #{tpu_custom_call.1} parent=1 // pred_check_branch
      %7952 = sbr.rel (0) target = $region41
    $region40: #{tpu_custom_call.1} parent=1 // pred_region
      %s7954 = ssub.s32 8192, 8192
      %7955 = vsyncadd [#allocation5], %s7954
      %s7956 = sshll.u32 [#allocation8], 4
      %s7957 = int_to_ptr.vmem [resolvable:$true] %s7956
      %7962 = dma.vmem_to_hbm [thread:$0]  %s7957, 8192, %s7, [#allocation5], 128, 128, 8
    $region41: #{tpu_custom_call.1} parent=1 // pred_fallthru
      _
    // Predicated region
    $region42: #{tpu_custom_call.1} parent=1 // pred_check
      _
    $region43: #{tpu_custom_call.1} parent=1 // pred_check_branch
      %7964 = sbr.rel (0) target = $region45
    $region44: #{tpu_custom_call.1} parent=1 // pred_region
      %7965 = dma.done [#allocation5], 8192
    $region45: #{tpu_custom_call.1} parent=1 // pred_fallthru
      _
    %7966 = vsyncpa [#allocation4], 1
    %7967 = vsyncpa [#allocation7], 1
    %7968 = vsyncpa [#allocation5], 1

</llo_original>
